<compile_context>
chip_gen: v7x
topology: tpu7x:2x2x1
jax: 0.10.0
libtpu: 0.0.40
codegen_flags: <defaults>
</compile_context>

<pallas_src>
import functools

import jax
import jax.numpy as jnp
from jax.experimental import pallas as pl
from jax.experimental.pallas import tpu as pltpu


# ----------------------------------------------------------------------------
# Small helpers
# ----------------------------------------------------------------------------
def _round_up(x, m):
    return ((x + m - 1) // m) * m


_VMEM = pl.BlockSpec(memory_space=pltpu.MemorySpace.VMEM)


# ----------------------------------------------------------------------------
# In-kernel building blocks
# ----------------------------------------------------------------------------
def _lstm_cell(gates, c, Hp):
    """One LSTM cell from pre-activations.  PyTorch gate order (i, f, g, o).
    Hp is a multiple of 128 -> every slice is a lane-aligned full-vreg block."""
    i_g = jax.nn.sigmoid(gates[:, 0 * Hp:1 * Hp])
    f_g = jax.nn.sigmoid(gates[:, 1 * Hp:2 * Hp])
    g_g = jnp.tanh(gates[:, 2 * Hp:3 * Hp])
    o_g = jax.nn.sigmoid(gates[:, 3 * Hp:4 * Hp])
    c_new = f_g * c + i_g * g_g
    h_new = o_g * jnp.tanh(c_new)
    return h_new, c_new


def _bilstm_layer(x_bf16, wih, whh_bd, bias, T, B, Hp, slab_ref=None):
    """Fused fwd+bwd recurrence over the whole sequence for one layer.

    x_bf16:  (T*B, Din) bf16, time-major rows (t*B + b).
    wih:     (Din, 8*Hp) bf16 = [fwd gates 4*Hp | bwd gates 4*Hp].
    whh_bd:  (2*Hp, 8*Hp) bf16 block-diagonal (fwd block, bwd block).
    bias:    (1, 8*Hp) f32 combined b_ih + b_hh, both directions.
    Returns (h_fwd at t=T-1, h_bwd at t=T-1).  If slab_ref is given, writes the
    full bidirectional hidden sequence slab_ref[t*B:(t+1)*B, :Hp]=h_fwd(t),
    slab_ref[..., Hp:2Hp]=h_bwd(t).
    """
    G = 4 * Hp

    # Hoisted input projection: ONE MXU matmul over the whole sequence covers
    # both directions; bias added once.
    xp = jnp.dot(x_bf16, wih, preferred_element_type=jnp.float32) + bias

    h_f = jnp.zeros((B, Hp), jnp.float32)
    c_f = jnp.zeros((B, Hp), jnp.float32)
    h_b = jnp.zeros((B, Hp), jnp.float32)
    c_b = jnp.zeros((B, Hp), jnp.float32)
    h_b_at_T1 = None

    # Fully unrolled time loop (T is a small trace-time constant here).
    # TODO(synk): bound the unroll with lax.fori_loop once T grows past ~16-32.
    for t in range(T):
        tb = T - 1 - t
        # Single block-diagonal matmul for both directions: K = 2*Hp = 256.
        h_cat = jnp.concatenate([h_f, h_b], axis=1).astype(jnp.bfloat16)
        hh = jnp.dot(h_cat, whh_bd, preferred_element_type=jnp.float32)
        gates_f = xp[t * B:(t + 1) * B, 0:G] + hh[:, 0:G]
        gates_b = xp[tb * B:(tb + 1) * B, G:2 * G] + hh[:, G:2 * G]
        h_f, c_f = _lstm_cell(gates_f, c_f, Hp)
        h_b, c_b = _lstm_cell(gates_b, c_b, Hp)
        if t == 0:
            h_b_at_T1 = h_b            # backward-direction output at time T-1
        if slab_ref is not None:
            slab_ref[t * B:(t + 1) * B, 0:Hp] = h_f
            slab_ref[tb * B:(tb + 1) * B, Hp:2 * Hp] = h_b
    return h_f, h_b_at_T1


def _lstm_model_kernel(*refs, seq_len, batch, hidden, num_layers):
    """All LSTM layers + Linear head in one kernel.

    refs = (x, [wih, whh_bd, bias] * num_layers, w_lin, b_lin, y, slab_scratch)
    """
    T, B, Hp = seq_len, batch, hidden
    x_ref = refs[0]
    w_lin_ref = refs[1 + 3 * num_layers]
    b_lin_ref = refs[2 + 3 * num_layers]
    y_ref = refs[3 + 3 * num_layers]
    slab_ref = refs[4 + 3 * num_layers]

    x_cur = x_ref[...].astype(jnp.bfloat16)
    h_f_last = h_b_last = None
    for layer in range(num_layers):
        wih = refs[1 + 3 * layer][...]
        whh_bd = refs[2 + 3 * layer][...]
        bias = refs[3 + 3 * layer][...]
        last_layer = layer == num_layers - 1
        h_f_last, h_b_last = _bilstm_layer(
            x_cur, wih, whh_bd, bias, T, B, Hp,
            slab_ref=None if last_layer else slab_ref)
        if not last_layer:
            # TODO(synk): inter-layer dropout is identity (eval-mode).
            x_cur = slab_ref[...].astype(jnp.bfloat16)

    # Fused Linear head on lstm_out[:, -1] = [h_fwd(T-1) | h_bwd(T-1)].
    last = jnp.concatenate([h_f_last, h_b_last], axis=1).astype(jnp.bfloat16)
    y_ref[...] = (jnp.dot(last, w_lin_ref[...],
                          preferred_element_type=jnp.float32)
                  + b_lin_ref[...])


# ----------------------------------------------------------------------------
# Parameter construction: PyTorch-style uniform init, padded/merged into the
# lane-aligned, direction-merged layout the kernel uses.
# ----------------------------------------------------------------------------
def _pad_gate_cols(w_t, H, Hp):
    """(rows, 4H) -> (rows, 4Hp); gate k real block at cols [k*Hp, k*Hp + H)."""
    rows = w_t.shape[0]
    out = jnp.zeros((rows, 4 * Hp), jnp.float32)
    for k in range(4):
        out = out.at[:, k * Hp:k * Hp + H].set(w_t[:, k * H:(k + 1) * H])
    return out


def _pad_bidir_rows(w, H, Hp):
    """(2H, C) -> (2Hp, C); fwd rows at [0, H), bwd rows at [Hp, Hp + H)."""
    C = w.shape[1]
    out = jnp.zeros((2 * Hp, C), jnp.float32)
    out = out.at[0:H, :].set(w[0:H, :])
    out = out.at[Hp:Hp + H, :].set(w[H:2 * H, :])
    return out


def init_params(key, input_size, hidden, output_size, num_layers):
    """Returns (kernel params, raw f32 params for the pure-JAX reference)."""
    H = hidden
    Hp = _round_up(hidden, 128)
    Op = _round_up(output_size, 128)
    bound = 1.0 / (hidden ** 0.5)

    params = {"lstm": [], "linear": None}
    raw = {"lstm": [], "linear": None}
    for layer in range(num_layers):
        d_in = input_size if layer == 0 else 2 * hidden
        wih_dirs, whh_dirs, b_dirs, raw_dir = [], [], [], []
        for _direction in range(2):                  # 0 = forward, 1 = reverse
            key, k1, k2, k3, k4 = jax.random.split(key, 5)
            w_ih = jax.random.uniform(k1, (4 * H, d_in), jnp.float32, -bound, bound)
            w_hh = jax.random.uniform(k2, (4 * H, H), jnp.float32, -bound, bound)
            b_ih = jax.random.uniform(k3, (4 * H,), jnp.float32, -bound, bound)
            b_hh = jax.random.uniform(k4, (4 * H,), jnp.float32, -bound, bound)
            raw_dir.extend([w_ih, w_hh, b_ih + b_hh])

            wih_t = _pad_gate_cols(w_ih.T, H, Hp)             # (d_in, 4Hp)
            if layer > 0:
                wih_t = _pad_bidir_rows(wih_t, H, Hp)         # (2Hp, 4Hp)
            whh_t = _pad_gate_cols(w_hh.T, H, Hp)             # (H, 4Hp)
            whh_t = jnp.zeros((Hp, 4 * Hp), jnp.float32).at[0:H, :].set(whh_t)
            b = _pad_gate_cols((b_ih + b_hh).reshape(1, -1), H, Hp)   # (1, 4Hp)
            wih_dirs.append(wih_t)
            whh_dirs.append(whh_t)
            b_dirs.append(b)

        # Merged layouts: one input-projection matmul and one block-diagonal
        # h @ W_hh matmul cover both directions (see performance review).
        wih_comb = jnp.concatenate(wih_dirs, axis=1).astype(jnp.bfloat16)
        whh_bd = jnp.zeros((2 * Hp, 8 * Hp), jnp.float32)
        whh_bd = whh_bd.at[0:Hp, 0:4 * Hp].set(whh_dirs[0])
        whh_bd = whh_bd.at[Hp:2 * Hp, 4 * Hp:8 * Hp].set(whh_dirs[1])
        whh_bd = whh_bd.astype(jnp.bfloat16)
        b_comb = jnp.concatenate(b_dirs, axis=1)              # (1, 8Hp) f32
        params["lstm"].append((wih_comb, whh_bd, b_comb))
        raw["lstm"].append(tuple(raw_dir[:3] + raw_dir[3:]))  # (wih_f, whh_f, b_f, wih_b, whh_b, b_b)

    key, k1, k2 = jax.random.split(key, 3)
    lin_bound = 1.0 / ((2 * hidden) ** 0.5)
    w_lin = jax.random.uniform(k1, (output_size, 2 * H), jnp.float32,
                               -lin_bound, lin_bound)
    b_lin = jax.random.uniform(k2, (output_size,), jnp.float32,
                               -lin_bound, lin_bound)
    raw["linear"] = (w_lin, b_lin)

    w_lin_t = _pad_bidir_rows(w_lin.T, H, Hp)                 # (2Hp, out)
    w_lin_p = (jnp.zeros((2 * Hp, Op), jnp.float32)
               .at[:, 0:output_size].set(w_lin_t)).astype(jnp.bfloat16)
    b_lin_p = jnp.zeros((1, Op), jnp.float32).at[0, 0:output_size].set(b_lin)
    params["linear"] = (w_lin_p, b_lin_p)
    return params, raw


# ----------------------------------------------------------------------------
# Forward pass matching LSTMModel.forward (single fused pallas_call)
# ----------------------------------------------------------------------------
@functools.partial(jax.jit, static_argnames=("num_layers", "hidden",
                                             "output_size"))
def lstm_model_forward(x_bf, params, *, num_layers, hidden, output_size):
    """x_bf: (B, T, input_size), batch_first — same as the PyTorch module."""
    B, T, _ = x_bf.shape
    Bp = _round_up(B, 8)
    Hp = _round_up(hidden, 128)
    Op = _round_up(output_size, 128)

    # Time-major rows (t*Bp + b), batch zero-padded to 8 sublanes, bf16 for MXU.
    x_tm = jnp.transpose(x_bf, (1, 0, 2)).astype(jnp.bfloat16)       # (T, B, D)
    if Bp != B:
        x_tm = jnp.pad(x_tm, ((0, 0), (0, Bp - B), (0, 0)))
    x2 = x_tm.reshape(T * Bp, x_tm.shape[-1])                        # (T*Bp, D)

    layer_args = []
    for layer in range(num_layers):
        layer_args.extend(params["lstm"][layer])
    w_lin, b_lin = params["linear"]

    # VMEM budget: inputs + scratch slab + in-kernel xp temporary, with headroom.
    n_bytes = x2.size * x2.dtype.itemsize
    for a in layer_args:
        n_bytes += a.size * a.dtype.itemsize
    n_bytes += w_lin.size * w_lin.dtype.itemsize + b_lin.size * b_lin.dtype.itemsize
    n_bytes += T * Bp * 2 * Hp * 4          # hidden slab scratch
    n_bytes += T * Bp * 8 * Hp * 4          # hoisted input projection temp
    n_bytes += Bp * Op * 4                  # output
    vmem_limit = int(min(max(3 * n_bytes, 32 << 20), 64 << 20))

    kern = functools.partial(_lstm_model_kernel, seq_len=T, batch=Bp,
                             hidden=Hp, num_layers=num_layers)
    y = pl.pallas_call(
        kern,
        out_shape=jax.ShapeDtypeStruct((Bp, Op), jnp.float32),
        in_specs=[_VMEM] * (1 + len(layer_args) + 2),
        out_specs=_VMEM,
        scratch_shapes=[pltpu.VMEM((T * Bp, 2 * Hp), jnp.float32)],
        compiler_params=pltpu.CompilerParams(vmem_limit_bytes=vmem_limit),
    )(x2, *layer_args, w_lin, b_lin)
    return y[:B, :output_size]


# ----------------------------------------------------------------------------
# Pure-JAX reference (PyTorch semantics) for a correctness check.
# Weights/inputs are rounded to bf16 to mirror the kernel's matmul operands.
# ----------------------------------------------------------------------------
def _reference_forward(x_bf, raw):
    rnd = lambda a: a.astype(jnp.bfloat16).astype(jnp.float32)

    def cell(x_t, h, c, w_ih, w_hh, b):
        gates = x_t @ w_ih.T + h @ w_hh.T + b
        H = h.shape[-1]
        i = jax.nn.sigmoid(gates[:, 0:H])
        f = jax.nn.sigmoid(gates[:, H:2 * H])
        g = jnp.tanh(gates[:, 2 * H:3 * H])
        o = jax.nn.sigmoid(gates[:, 3 * H:4 * H])
        c = f * c + i * g
        return o * jnp.tanh(c), c

    B, T, _ = x_bf.shape
    seq = rnd(x_bf.astype(jnp.float32))
    for li, (wih_f, whh_f, b_f, wih_b, whh_b, b_b) in enumerate(raw["lstm"]):
        if li > 0:
            seq = rnd(seq)
        H = whh_f.shape[1]
        hf = jnp.zeros((B, H)); cf = jnp.zeros((B, H))
        hb = jnp.zeros((B, H)); cb = jnp.zeros((B, H))
        outs_f, outs_b = [], []
        for t in range(T):
            hf, cf = cell(seq[:, t], hf, cf, rnd(wih_f), rnd(whh_f), b_f)
            outs_f.append(hf)
        for t in range(T - 1, -1, -1):
            hb, cb = cell(seq[:, t], hb, cb, rnd(wih_b), rnd(whh_b), b_b)
            outs_b.append(hb)
        outs_b = outs_b[::-1]
        seq = jnp.stack(
            [jnp.concatenate([outs_f[t], outs_b[t]], axis=-1) for t in range(T)],
            axis=1)
    w_lin, b_lin = raw["linear"]
    return rnd(seq[:, -1]) @ rnd(w_lin).T + b_lin


# ----------------------------------------------------------------------------
if __name__ == "__main__":
    INPUT_SIZE = 4
    HIDDEN = 32
    OUTPUT_SIZE = 3
    NUM_LAYERS = 2
    BATCH = 2
    SEQ = 8

    key = jax.random.PRNGKey(0)
    k_params, k_x = jax.random.split(key)

    params, raw = init_params(k_params, INPUT_SIZE, HIDDEN, OUTPUT_SIZE,
                              NUM_LAYERS)
    x = jax.random.normal(k_x, (BATCH, SEQ, INPUT_SIZE), jnp.float32)

    out = lstm_model_forward(x, params, num_layers=NUM_LAYERS,
                             hidden=HIDDEN, output_size=OUTPUT_SIZE)
    out = jax.block_until_ready(out)

    assert out.shape == (BATCH, OUTPUT_SIZE), out.shape
    assert jnp.all(jnp.isfinite(out))

    ref = _reference_forward(x, raw)
    assert jnp.allclose(out, ref, atol=2e-2), (out, ref)
    print("KERNEL_OK")
</pallas_src>

<mosaic_0001>
module attributes {stable_mosaic.version = 11 : i64} {
  func.func @_lstm_model_kernel(%arg0: memref<64x4xbf16, #tpu.memory_space<vmem>>, %arg1: memref<4x1024xbf16, #tpu.memory_space<vmem>>, %arg2: memref<256x1024xbf16, #tpu.memory_space<vmem>>, %arg3: memref<1x1024xf32, #tpu.memory_space<vmem>>, %arg4: memref<256x1024xbf16, #tpu.memory_space<vmem>>, %arg5: memref<256x1024xbf16, #tpu.memory_space<vmem>>, %arg6: memref<1x1024xf32, #tpu.memory_space<vmem>>, %arg7: memref<256x128xbf16, #tpu.memory_space<vmem>>, %arg8: memref<1x128xf32, #tpu.memory_space<vmem>>, %arg9: memref<8x128xf32, #tpu.memory_space<vmem>>, %arg10: memref<64x256xf32, #tpu.memory_space<vmem>>) attributes {dimension_semantics = [], scalar_prefetch = 0 : i64, scratch_operands = 1 : i64, tpu.core_type = #tpu.core_type<tc>} {
    %c0 = arith.constant 0 : index
    %c0_0 = arith.constant 0 : index
    %0 = vector.load %arg0[%c0, %c0_0] : memref<64x4xbf16, #tpu.memory_space<vmem>>, vector<64x4xbf16>
    %c0_1 = arith.constant 0 : index
    %c0_2 = arith.constant 0 : index
    %1 = vector.load %arg1[%c0_1, %c0_2] : memref<4x1024xbf16, #tpu.memory_space<vmem>>, vector<4x1024xbf16>
    %c0_3 = arith.constant 0 : index
    %c0_4 = arith.constant 0 : index
    %2 = vector.load %arg2[%c0_3, %c0_4] : memref<256x1024xbf16, #tpu.memory_space<vmem>>, vector<256x1024xbf16>
    %c0_5 = arith.constant 0 : index
    %c0_6 = arith.constant 0 : index
    %3 = vector.load %arg3[%c0_5, %c0_6] : memref<1x1024xf32, #tpu.memory_space<vmem>>, vector<1x1024xf32>
    %cst = arith.constant dense<0.000000e+00> : vector<64x1024xf32>
    %4 = tpu.matmul %0, %1, %cst {dimension_numbers = #tpu.dot_dimension_numbers<[1], [0], [0], [1], [0, 0, 1, 1], [], []>} : vector<64x4xbf16>, vector<4x1024xbf16>, vector<64x1024xf32> -> vector<64x1024xf32>
    %5 = vector.broadcast %3 : vector<1x1024xf32> to vector<64x1024xf32>
    %6 = arith.addf %4, %5 : vector<64x1024xf32>
    %cst_7 = arith.constant 0.000000e+00 : f32
    %7 = vector.broadcast %cst_7 : f32 to vector<8x128xf32>
    %cst_8 = arith.constant 0.000000e+00 : f32
    %8 = vector.broadcast %cst_8 : f32 to vector<8x128xf32>
    %cst_9 = arith.constant 0.000000e+00 : f32
    %9 = vector.broadcast %cst_9 : f32 to vector<8x128xf32>
    %cst_10 = arith.constant 0.000000e+00 : f32
    %10 = vector.broadcast %cst_10 : f32 to vector<8x128xf32>
    %11 = tpu.concatenate %7, %9 in 1 : vector<8x128xf32>, vector<8x128xf32> -> vector<8x256xf32>
    %12 = arith.truncf %11 : vector<8x256xf32> to vector<8x256xbf16>
    %cst_11 = arith.constant dense<0.000000e+00> : vector<8x1024xf32>
    %13 = tpu.matmul %12, %2, %cst_11 {dimension_numbers = #tpu.dot_dimension_numbers<[1], [0], [0], [1], [0, 0, 1, 1], [], []>} : vector<8x256xbf16>, vector<256x1024xbf16>, vector<8x1024xf32> -> vector<8x1024xf32>
    %14 = vector.extract_strided_slice %6 {offsets = [0, 0], sizes = [8, 512], strides = [1, 1]} : vector<64x1024xf32> to vector<8x512xf32>
    %15 = vector.extract_strided_slice %13 {offsets = [0, 0], sizes = [8, 512], strides = [1, 1]} : vector<8x1024xf32> to vector<8x512xf32>
    %16 = arith.addf %14, %15 : vector<8x512xf32>
    %17 = vector.extract_strided_slice %6 {offsets = [56, 512], sizes = [8, 512], strides = [1, 1]} : vector<64x1024xf32> to vector<8x512xf32>
    %18 = vector.extract_strided_slice %13 {offsets = [0, 512], sizes = [8, 512], strides = [1, 1]} : vector<8x1024xf32> to vector<8x512xf32>
    %19 = arith.addf %17, %18 : vector<8x512xf32>
    %20 = vector.extract_strided_slice %16 {offsets = [0, 0], sizes = [8, 128], strides = [1, 1]} : vector<8x512xf32> to vector<8x128xf32>
    %21 = arith.negf %20 : vector<8x128xf32>
    %22 = math.exp %21 : vector<8x128xf32>
    %cst_12 = arith.constant 1.000000e+00 : f32
    %23 = vector.broadcast %cst_12 : f32 to vector<8x128xf32>
    %24 = arith.addf %23, %22 : vector<8x128xf32>
    %25 = arith.divf %23, %24 : vector<8x128xf32>
    %26 = vector.extract_strided_slice %16 {offsets = [0, 128], sizes = [8, 128], strides = [1, 1]} : vector<8x512xf32> to vector<8x128xf32>
    %27 = arith.negf %26 : vector<8x128xf32>
    %28 = math.exp %27 : vector<8x128xf32>
    %cst_13 = arith.constant 1.000000e+00 : f32
    %29 = vector.broadcast %cst_13 : f32 to vector<8x128xf32>
    %30 = arith.addf %29, %28 : vector<8x128xf32>
    %31 = arith.divf %29, %30 : vector<8x128xf32>
    %32 = vector.extract_strided_slice %16 {offsets = [0, 256], sizes = [8, 128], strides = [1, 1]} : vector<8x512xf32> to vector<8x128xf32>
    %33 = math.tanh %32 : vector<8x128xf32>
    %34 = vector.extract_strided_slice %16 {offsets = [0, 384], sizes = [8, 128], strides = [1, 1]} : vector<8x512xf32> to vector<8x128xf32>
    %35 = arith.negf %34 : vector<8x128xf32>
    %36 = math.exp %35 : vector<8x128xf32>
    %cst_14 = arith.constant 1.000000e+00 : f32
    %37 = vector.broadcast %cst_14 : f32 to vector<8x128xf32>
    %38 = arith.addf %37, %36 : vector<8x128xf32>
    %39 = arith.divf %37, %38 : vector<8x128xf32>
    %40 = arith.mulf %31, %8 : vector<8x128xf32>
    %41 = arith.mulf %25, %33 : vector<8x128xf32>
    %42 = arith.addf %40, %41 : vector<8x128xf32>
    %43 = math.tanh %42 : vector<8x128xf32>
    %44 = arith.mulf %39, %43 : vector<8x128xf32>
    %45 = vector.extract_strided_slice %19 {offsets = [0, 0], sizes = [8, 128], strides = [1, 1]} : vector<8x512xf32> to vector<8x128xf32>
    %46 = arith.negf %45 : vector<8x128xf32>
    %47 = math.exp %46 : vector<8x128xf32>
    %cst_15 = arith.constant 1.000000e+00 : f32
    %48 = vector.broadcast %cst_15 : f32 to vector<8x128xf32>
    %49 = arith.addf %48, %47 : vector<8x128xf32>
    %50 = arith.divf %48, %49 : vector<8x128xf32>
    %51 = vector.extract_strided_slice %19 {offsets = [0, 128], sizes = [8, 128], strides = [1, 1]} : vector<8x512xf32> to vector<8x128xf32>
    %52 = arith.negf %51 : vector<8x128xf32>
    %53 = math.exp %52 : vector<8x128xf32>
    %cst_16 = arith.constant 1.000000e+00 : f32
    %54 = vector.broadcast %cst_16 : f32 to vector<8x128xf32>
    %55 = arith.addf %54, %53 : vector<8x128xf32>
    %56 = arith.divf %54, %55 : vector<8x128xf32>
    %57 = vector.extract_strided_slice %19 {offsets = [0, 256], sizes = [8, 128], strides = [1, 1]} : vector<8x512xf32> to vector<8x128xf32>
    %58 = math.tanh %57 : vector<8x128xf32>
    %59 = vector.extract_strided_slice %19 {offsets = [0, 384], sizes = [8, 128], strides = [1, 1]} : vector<8x512xf32> to vector<8x128xf32>
    %60 = arith.negf %59 : vector<8x128xf32>
    %61 = math.exp %60 : vector<8x128xf32>
    %cst_17 = arith.constant 1.000000e+00 : f32
    %62 = vector.broadcast %cst_17 : f32 to vector<8x128xf32>
    %63 = arith.addf %62, %61 : vector<8x128xf32>
    %64 = arith.divf %62, %63 : vector<8x128xf32>
    %65 = arith.mulf %56, %10 : vector<8x128xf32>
    %66 = arith.mulf %50, %58 : vector<8x128xf32>
    %67 = arith.addf %65, %66 : vector<8x128xf32>
    %68 = math.tanh %67 : vector<8x128xf32>
    %69 = arith.mulf %64, %68 : vector<8x128xf32>
    %c0_18 = arith.constant 0 : index
    %c0_19 = arith.constant 0 : index
    %70 = vector.load %arg10[%c0_18, %c0_19] : memref<64x256xf32, #tpu.memory_space<vmem>>, vector<8x128xf32>
    tpu.vector_store %arg10[%c0_18, %c0_19], %44 {strides = array<i32>} : memref<64x256xf32, #tpu.memory_space<vmem>>, vector<8x128xf32>,
    %c56 = arith.constant 56 : index
    %c128 = arith.constant 128 : index
    %71 = vector.load %arg10[%c56, %c128] : memref<64x256xf32, #tpu.memory_space<vmem>>, vector<8x128xf32>
    tpu.vector_store %arg10[%c56, %c128], %69 {strides = array<i32>} : memref<64x256xf32, #tpu.memory_space<vmem>>, vector<8x128xf32>,
    %72 = tpu.concatenate %44, %69 in 1 : vector<8x128xf32>, vector<8x128xf32> -> vector<8x256xf32>
    %73 = arith.truncf %72 : vector<8x256xf32> to vector<8x256xbf16>
    %cst_20 = arith.constant dense<0.000000e+00> : vector<8x1024xf32>
    %74 = tpu.matmul %73, %2, %cst_20 {dimension_numbers = #tpu.dot_dimension_numbers<[1], [0], [0], [1], [0, 0, 1, 1], [], []>} : vector<8x256xbf16>, vector<256x1024xbf16>, vector<8x1024xf32> -> vector<8x1024xf32>
    %75 = vector.extract_strided_slice %6 {offsets = [8, 0], sizes = [8, 512], strides = [1, 1]} : vector<64x1024xf32> to vector<8x512xf32>
    %76 = vector.extract_strided_slice %74 {offsets = [0, 0], sizes = [8, 512], strides = [1, 1]} : vector<8x1024xf32> to vector<8x512xf32>
    %77 = arith.addf %75, %76 : vector<8x512xf32>
    %78 = vector.extract_strided_slice %6 {offsets = [48, 512], sizes = [8, 512], strides = [1, 1]} : vector<64x1024xf32> to vector<8x512xf32>
    %79 = vector.extract_strided_slice %74 {offsets = [0, 512], sizes = [8, 512], strides = [1, 1]} : vector<8x1024xf32> to vector<8x512xf32>
    %80 = arith.addf %78, %79 : vector<8x512xf32>
    %81 = vector.extract_strided_slice %77 {offsets = [0, 0], sizes = [8, 128], strides = [1, 1]} : vector<8x512xf32> to vector<8x128xf32>
    %82 = arith.negf %81 : vector<8x128xf32>
    %83 = math.exp %82 : vector<8x128xf32>
    %cst_21 = arith.constant 1.000000e+00 : f32
    %84 = vector.broadcast %cst_21 : f32 to vector<8x128xf32>
    %85 = arith.addf %84, %83 : vector<8x128xf32>
    %86 = arith.divf %84, %85 : vector<8x128xf32>
    %87 = vector.extract_strided_slice %77 {offsets = [0, 128], sizes = [8, 128], strides = [1, 1]} : vector<8x512xf32> to vector<8x128xf32>
    %88 = arith.negf %87 : vector<8x128xf32>
    %89 = math.exp %88 : vector<8x128xf32>
    %cst_22 = arith.constant 1.000000e+00 : f32
    %90 = vector.broadcast %cst_22 : f32 to vector<8x128xf32>
    %91 = arith.addf %90, %89 : vector<8x128xf32>
    %92 = arith.divf %90, %91 : vector<8x128xf32>
    %93 = vector.extract_strided_slice %77 {offsets = [0, 256], sizes = [8, 128], strides = [1, 1]} : vector<8x512xf32> to vector<8x128xf32>
    %94 = math.tanh %93 : vector<8x128xf32>
    %95 = vector.extract_strided_slice %77 {offsets = [0, 384], sizes = [8, 128], strides = [1, 1]} : vector<8x512xf32> to vector<8x128xf32>
    %96 = arith.negf %95 : vector<8x128xf32>
    %97 = math.exp %96 : vector<8x128xf32>
    %cst_23 = arith.constant 1.000000e+00 : f32
    %98 = vector.broadcast %cst_23 : f32 to vector<8x128xf32>
    %99 = arith.addf %98, %97 : vector<8x128xf32>
    %100 = arith.divf %98, %99 : vector<8x128xf32>
    %101 = arith.mulf %92, %42 : vector<8x128xf32>
    %102 = arith.mulf %86, %94 : vector<8x128xf32>
    %103 = arith.addf %101, %102 : vector<8x128xf32>
    %104 = math.tanh %103 : vector<8x128xf32>
    %105 = arith.mulf %100, %104 : vector<8x128xf32>
    %106 = vector.extract_strided_slice %80 {offsets = [0, 0], sizes = [8, 128], strides = [1, 1]} : vector<8x512xf32> to vector<8x128xf32>
    %107 = arith.negf %106 : vector<8x128xf32>
    %108 = math.exp %107 : vector<8x128xf32>
    %cst_24 = arith.constant 1.000000e+00 : f32
    %109 = vector.broadcast %cst_24 : f32 to vector<8x128xf32>
    %110 = arith.addf %109, %108 : vector<8x128xf32>
    %111 = arith.divf %109, %110 : vector<8x128xf32>
    %112 = vector.extract_strided_slice %80 {offsets = [0, 128], sizes = [8, 128], strides = [1, 1]} : vector<8x512xf32> to vector<8x128xf32>
    %113 = arith.negf %112 : vector<8x128xf32>
    %114 = math.exp %113 : vector<8x128xf32>
    %cst_25 = arith.constant 1.000000e+00 : f32
    %115 = vector.broadcast %cst_25 : f32 to vector<8x128xf32>
    %116 = arith.addf %115, %114 : vector<8x128xf32>
    %117 = arith.divf %115, %116 : vector<8x128xf32>
    %118 = vector.extract_strided_slice %80 {offsets = [0, 256], sizes = [8, 128], strides = [1, 1]} : vector<8x512xf32> to vector<8x128xf32>
    %119 = math.tanh %118 : vector<8x128xf32>
    %120 = vector.extract_strided_slice %80 {offsets = [0, 384], sizes = [8, 128], strides = [1, 1]} : vector<8x512xf32> to vector<8x128xf32>
    %121 = arith.negf %120 : vector<8x128xf32>
    %122 = math.exp %121 : vector<8x128xf32>
    %cst_26 = arith.constant 1.000000e+00 : f32
    %123 = vector.broadcast %cst_26 : f32 to vector<8x128xf32>
    %124 = arith.addf %123, %122 : vector<8x128xf32>
    %125 = arith.divf %123, %124 : vector<8x128xf32>
    %126 = arith.mulf %117, %67 : vector<8x128xf32>
    %127 = arith.mulf %111, %119 : vector<8x128xf32>
    %128 = arith.addf %126, %127 : vector<8x128xf32>
    %129 = math.tanh %128 : vector<8x128xf32>
    %130 = arith.mulf %125, %129 : vector<8x128xf32>
    %c8 = arith.constant 8 : index
    %c0_27 = arith.constant 0 : index
    %131 = vector.load %arg10[%c8, %c0_27] : memref<64x256xf32, #tpu.memory_space<vmem>>, vector<8x128xf32>
    tpu.vector_store %arg10[%c8, %c0_27], %105 {strides = array<i32>} : memref<64x256xf32, #tpu.memory_space<vmem>>, vector<8x128xf32>,
    %c48 = arith.constant 48 : index
    %c128_28 = arith.constant 128 : index
    %132 = vector.load %arg10[%c48, %c128_28] : memref<64x256xf32, #tpu.memory_space<vmem>>, vector<8x128xf32>
    tpu.vector_store %arg10[%c48, %c128_28], %130 {strides = array<i32>} : memref<64x256xf32, #tpu.memory_space<vmem>>, vector<8x128xf32>,
    %133 = tpu.concatenate %105, %130 in 1 : vector<8x128xf32>, vector<8x128xf32> -> vector<8x256xf32>
    %134 = arith.truncf %133 : vector<8x256xf32> to vector<8x256xbf16>
    %cst_29 = arith.constant dense<0.000000e+00> : vector<8x1024xf32>
    %135 = tpu.matmul %134, %2, %cst_29 {dimension_numbers = #tpu.dot_dimension_numbers<[1], [0], [0], [1], [0, 0, 1, 1], [], []>} : vector<8x256xbf16>, vector<256x1024xbf16>, vector<8x1024xf32> -> vector<8x1024xf32>
    %136 = vector.extract_strided_slice %6 {offsets = [16, 0], sizes = [8, 512], strides = [1, 1]} : vector<64x1024xf32> to vector<8x512xf32>
    %137 = vector.extract_strided_slice %135 {offsets = [0, 0], sizes = [8, 512], strides = [1, 1]} : vector<8x1024xf32> to vector<8x512xf32>
    %138 = arith.addf %136, %137 : vector<8x512xf32>
    %139 = vector.extract_strided_slice %6 {offsets = [40, 512], sizes = [8, 512], strides = [1, 1]} : vector<64x1024xf32> to vector<8x512xf32>
    %140 = vector.extract_strided_slice %135 {offsets = [0, 512], sizes = [8, 512], strides = [1, 1]} : vector<8x1024xf32> to vector<8x512xf32>
    %141 = arith.addf %139, %140 : vector<8x512xf32>
    %142 = vector.extract_strided_slice %138 {offsets = [0, 0], sizes = [8, 128], strides = [1, 1]} : vector<8x512xf32> to vector<8x128xf32>
    %143 = arith.negf %142 : vector<8x128xf32>
    %144 = math.exp %143 : vector<8x128xf32>
    %cst_30 = arith.constant 1.000000e+00 : f32
    %145 = vector.broadcast %cst_30 : f32 to vector<8x128xf32>
    %146 = arith.addf %145, %144 : vector<8x128xf32>
    %147 = arith.divf %145, %146 : vector<8x128xf32>
    %148 = vector.extract_strided_slice %138 {offsets = [0, 128], sizes = [8, 128], strides = [1, 1]} : vector<8x512xf32> to vector<8x128xf32>
    %149 = arith.negf %148 : vector<8x128xf32>
    %150 = math.exp %149 : vector<8x128xf32>
    %cst_31 = arith.constant 1.000000e+00 : f32
    %151 = vector.broadcast %cst_31 : f32 to vector<8x128xf32>
    %152 = arith.addf %151, %150 : vector<8x128xf32>
    %153 = arith.divf %151, %152 : vector<8x128xf32>
    %154 = vector.extract_strided_slice %138 {offsets = [0, 256], sizes = [8, 128], strides = [1, 1]} : vector<8x512xf32> to vector<8x128xf32>
    %155 = math.tanh %154 : vector<8x128xf32>
    %156 = vector.extract_strided_slice %138 {offsets = [0, 384], sizes = [8, 128], strides = [1, 1]} : vector<8x512xf32> to vector<8x128xf32>
    %157 = arith.negf %156 : vector<8x128xf32>
    %158 = math.exp %157 : vector<8x128xf32>
    %cst_32 = arith.constant 1.000000e+00 : f32
    %159 = vector.broadcast %cst_32 : f32 to vector<8x128xf32>
    %160 = arith.addf %159, %158 : vector<8x128xf32>
    %161 = arith.divf %159, %160 : vector<8x128xf32>
    %162 = arith.mulf %153, %103 : vector<8x128xf32>
    %163 = arith.mulf %147, %155 : vector<8x128xf32>
    %164 = arith.addf %162, %163 : vector<8x128xf32>
    %165 = math.tanh %164 : vector<8x128xf32>
    %166 = arith.mulf %161, %165 : vector<8x128xf32>
    %167 = vector.extract_strided_slice %141 {offsets = [0, 0], sizes = [8, 128], strides = [1, 1]} : vector<8x512xf32> to vector<8x128xf32>
    %168 = arith.negf %167 : vector<8x128xf32>
    %169 = math.exp %168 : vector<8x128xf32>
    %cst_33 = arith.constant 1.000000e+00 : f32
    %170 = vector.broadcast %cst_33 : f32 to vector<8x128xf32>
    %171 = arith.addf %170, %169 : vector<8x128xf32>
    %172 = arith.divf %170, %171 : vector<8x128xf32>
    %173 = vector.extract_strided_slice %141 {offsets = [0, 128], sizes = [8, 128], strides = [1, 1]} : vector<8x512xf32> to vector<8x128xf32>
    %174 = arith.negf %173 : vector<8x128xf32>
    %175 = math.exp %174 : vector<8x128xf32>
    %cst_34 = arith.constant 1.000000e+00 : f32
    %176 = vector.broadcast %cst_34 : f32 to vector<8x128xf32>
    %177 = arith.addf %176, %175 : vector<8x128xf32>
    %178 = arith.divf %176, %177 : vector<8x128xf32>
    %179 = vector.extract_strided_slice %141 {offsets = [0, 256], sizes = [8, 128], strides = [1, 1]} : vector<8x512xf32> to vector<8x128xf32>
    %180 = math.tanh %179 : vector<8x128xf32>
    %181 = vector.extract_strided_slice %141 {offsets = [0, 384], sizes = [8, 128], strides = [1, 1]} : vector<8x512xf32> to vector<8x128xf32>
    %182 = arith.negf %181 : vector<8x128xf32>
    %183 = math.exp %182 : vector<8x128xf32>
    %cst_35 = arith.constant 1.000000e+00 : f32
    %184 = vector.broadcast %cst_35 : f32 to vector<8x128xf32>
    %185 = arith.addf %184, %183 : vector<8x128xf32>
    %186 = arith.divf %184, %185 : vector<8x128xf32>
    %187 = arith.mulf %178, %128 : vector<8x128xf32>
    %188 = arith.mulf %172, %180 : vector<8x128xf32>
    %189 = arith.addf %187, %188 : vector<8x128xf32>
    %190 = math.tanh %189 : vector<8x128xf32>
    %191 = arith.mulf %186, %190 : vector<8x128xf32>
    %c16 = arith.constant 16 : index
    %c0_36 = arith.constant 0 : index
    %192 = vector.load %arg10[%c16, %c0_36] : memref<64x256xf32, #tpu.memory_space<vmem>>, vector<8x128xf32>
    tpu.vector_store %arg10[%c16, %c0_36], %166 {strides = array<i32>} : memref<64x256xf32, #tpu.memory_space<vmem>>, vector<8x128xf32>,
    %c40 = arith.constant 40 : index
    %c128_37 = arith.constant 128 : index
    %193 = vector.load %arg10[%c40, %c128_37] : memref<64x256xf32, #tpu.memory_space<vmem>>, vector<8x128xf32>
    tpu.vector_store %arg10[%c40, %c128_37], %191 {strides = array<i32>} : memref<64x256xf32, #tpu.memory_space<vmem>>, vector<8x128xf32>,
    %194 = tpu.concatenate %166, %191 in 1 : vector<8x128xf32>, vector<8x128xf32> -> vector<8x256xf32>
    %195 = arith.truncf %194 : vector<8x256xf32> to vector<8x256xbf16>
    %cst_38 = arith.constant dense<0.000000e+00> : vector<8x1024xf32>
    %196 = tpu.matmul %195, %2, %cst_38 {dimension_numbers = #tpu.dot_dimension_numbers<[1], [0], [0], [1], [0, 0, 1, 1], [], []>} : vector<8x256xbf16>, vector<256x1024xbf16>, vector<8x1024xf32> -> vector<8x1024xf32>
    %197 = vector.extract_strided_slice %6 {offsets = [24, 0], sizes = [8, 512], strides = [1, 1]} : vector<64x1024xf32> to vector<8x512xf32>
    %198 = vector.extract_strided_slice %196 {offsets = [0, 0], sizes = [8, 512], strides = [1, 1]} : vector<8x1024xf32> to vector<8x512xf32>
    %199 = arith.addf %197, %198 : vector<8x512xf32>
    %200 = vector.extract_strided_slice %6 {offsets = [32, 512], sizes = [8, 512], strides = [1, 1]} : vector<64x1024xf32> to vector<8x512xf32>
    %201 = vector.extract_strided_slice %196 {offsets = [0, 512], sizes = [8, 512], strides = [1, 1]} : vector<8x1024xf32> to vector<8x512xf32>
    %202 = arith.addf %200, %201 : vector<8x512xf32>
    %203 = vector.extract_strided_slice %199 {offsets = [0, 0], sizes = [8, 128], strides = [1, 1]} : vector<8x512xf32> to vector<8x128xf32>
    %204 = arith.negf %203 : vector<8x128xf32>
    %205 = math.exp %204 : vector<8x128xf32>
    %cst_39 = arith.constant 1.000000e+00 : f32
    %206 = vector.broadcast %cst_39 : f32 to vector<8x128xf32>
    %207 = arith.addf %206, %205 : vector<8x128xf32>
    %208 = arith.divf %206, %207 : vector<8x128xf32>
    %209 = vector.extract_strided_slice %199 {offsets = [0, 128], sizes = [8, 128], strides = [1, 1]} : vector<8x512xf32> to vector<8x128xf32>
    %210 = arith.negf %209 : vector<8x128xf32>
    %211 = math.exp %210 : vector<8x128xf32>
    %cst_40 = arith.constant 1.000000e+00 : f32
    %212 = vector.broadcast %cst_40 : f32 to vector<8x128xf32>
    %213 = arith.addf %212, %211 : vector<8x128xf32>
    %214 = arith.divf %212, %213 : vector<8x128xf32>
    %215 = vector.extract_strided_slice %199 {offsets = [0, 256], sizes = [8, 128], strides = [1, 1]} : vector<8x512xf32> to vector<8x128xf32>
    %216 = math.tanh %215 : vector<8x128xf32>
    %217 = vector.extract_strided_slice %199 {offsets = [0, 384], sizes = [8, 128], strides = [1, 1]} : vector<8x512xf32> to vector<8x128xf32>
    %218 = arith.negf %217 : vector<8x128xf32>
    %219 = math.exp %218 : vector<8x128xf32>
    %cst_41 = arith.constant 1.000000e+00 : f32
    %220 = vector.broadcast %cst_41 : f32 to vector<8x128xf32>
    %221 = arith.addf %220, %219 : vector<8x128xf32>
    %222 = arith.divf %220, %221 : vector<8x128xf32>
    %223 = arith.mulf %214, %164 : vector<8x128xf32>
    %224 = arith.mulf %208, %216 : vector<8x128xf32>
    %225 = arith.addf %223, %224 : vector<8x128xf32>
    %226 = math.tanh %225 : vector<8x128xf32>
    %227 = arith.mulf %222, %226 : vector<8x128xf32>
    %228 = vector.extract_strided_slice %202 {offsets = [0, 0], sizes = [8, 128], strides = [1, 1]} : vector<8x512xf32> to vector<8x128xf32>
    %229 = arith.negf %228 : vector<8x128xf32>
    %230 = math.exp %229 : vector<8x128xf32>
    %cst_42 = arith.constant 1.000000e+00 : f32
    %231 = vector.broadcast %cst_42 : f32 to vector<8x128xf32>
    %232 = arith.addf %231, %230 : vector<8x128xf32>
    %233 = arith.divf %231, %232 : vector<8x128xf32>
    %234 = vector.extract_strided_slice %202 {offsets = [0, 128], sizes = [8, 128], strides = [1, 1]} : vector<8x512xf32> to vector<8x128xf32>
    %235 = arith.negf %234 : vector<8x128xf32>
    %236 = math.exp %235 : vector<8x128xf32>
    %cst_43 = arith.constant 1.000000e+00 : f32
    %237 = vector.broadcast %cst_43 : f32 to vector<8x128xf32>
    %238 = arith.addf %237, %236 : vector<8x128xf32>
    %239 = arith.divf %237, %238 : vector<8x128xf32>
    %240 = vector.extract_strided_slice %202 {offsets = [0, 256], sizes = [8, 128], strides = [1, 1]} : vector<8x512xf32> to vector<8x128xf32>
    %241 = math.tanh %240 : vector<8x128xf32>
    %242 = vector.extract_strided_slice %202 {offsets = [0, 384], sizes = [8, 128], strides = [1, 1]} : vector<8x512xf32> to vector<8x128xf32>
    %243 = arith.negf %242 : vector<8x128xf32>
    %244 = math.exp %243 : vector<8x128xf32>
    %cst_44 = arith.constant 1.000000e+00 : f32
    %245 = vector.broadcast %cst_44 : f32 to vector<8x128xf32>
    %246 = arith.addf %245, %244 : vector<8x128xf32>
    %247 = arith.divf %245, %246 : vector<8x128xf32>
    %248 = arith.mulf %239, %189 : vector<8x128xf32>
    %249 = arith.mulf %233, %241 : vector<8x128xf32>
    %250 = arith.addf %248, %249 : vector<8x128xf32>
    %251 = math.tanh %250 : vector<8x128xf32>
    %252 = arith.mulf %247, %251 : vector<8x128xf32>
    %c24 = arith.constant 24 : index
    %c0_45 = arith.constant 0 : index
    %253 = vector.load %arg10[%c24, %c0_45] : memref<64x256xf32, #tpu.memory_space<vmem>>, vector<8x128xf32>
    tpu.vector_store %arg10[%c24, %c0_45], %227 {strides = array<i32>} : memref<64x256xf32, #tpu.memory_space<vmem>>, vector<8x128xf32>,
    %c32 = arith.constant 32 : index
    %c128_46 = arith.constant 128 : index
    %254 = vector.load %arg10[%c32, %c128_46] : memref<64x256xf32, #tpu.memory_space<vmem>>, vector<8x128xf32>
    tpu.vector_store %arg10[%c32, %c128_46], %252 {strides = array<i32>} : memref<64x256xf32, #tpu.memory_space<vmem>>, vector<8x128xf32>,
    %255 = tpu.concatenate %227, %252 in 1 : vector<8x128xf32>, vector<8x128xf32> -> vector<8x256xf32>
    %256 = arith.truncf %255 : vector<8x256xf32> to vector<8x256xbf16>
    %cst_47 = arith.constant dense<0.000000e+00> : vector<8x1024xf32>
    %257 = tpu.matmul %256, %2, %cst_47 {dimension_numbers = #tpu.dot_dimension_numbers<[1], [0], [0], [1], [0, 0, 1, 1], [], []>} : vector<8x256xbf16>, vector<256x1024xbf16>, vector<8x1024xf32> -> vector<8x1024xf32>
    %258 = vector.extract_strided_slice %6 {offsets = [32, 0], sizes = [8, 512], strides = [1, 1]} : vector<64x1024xf32> to vector<8x512xf32>
    %259 = vector.extract_strided_slice %257 {offsets = [0, 0], sizes = [8, 512], strides = [1, 1]} : vector<8x1024xf32> to vector<8x512xf32>
    %260 = arith.addf %258, %259 : vector<8x512xf32>
    %261 = vector.extract_strided_slice %6 {offsets = [24, 512], sizes = [8, 512], strides = [1, 1]} : vector<64x1024xf32> to vector<8x512xf32>
    %262 = vector.extract_strided_slice %257 {offsets = [0, 512], sizes = [8, 512], strides = [1, 1]} : vector<8x1024xf32> to vector<8x512xf32>
    %263 = arith.addf %261, %262 : vector<8x512xf32>
    %264 = vector.extract_strided_slice %260 {offsets = [0, 0], sizes = [8, 128], strides = [1, 1]} : vector<8x512xf32> to vector<8x128xf32>
    %265 = arith.negf %264 : vector<8x128xf32>
    %266 = math.exp %265 : vector<8x128xf32>
    %cst_48 = arith.constant 1.000000e+00 : f32
    %267 = vector.broadcast %cst_48 : f32 to vector<8x128xf32>
    %268 = arith.addf %267, %266 : vector<8x128xf32>
    %269 = arith.divf %267, %268 : vector<8x128xf32>
    %270 = vector.extract_strided_slice %260 {offsets = [0, 128], sizes = [8, 128], strides = [1, 1]} : vector<8x512xf32> to vector<8x128xf32>
    %271 = arith.negf %270 : vector<8x128xf32>
    %272 = math.exp %271 : vector<8x128xf32>
    %cst_49 = arith.constant 1.000000e+00 : f32
    %273 = vector.broadcast %cst_49 : f32 to vector<8x128xf32>
    %274 = arith.addf %273, %272 : vector<8x128xf32>
    %275 = arith.divf %273, %274 : vector<8x128xf32>
    %276 = vector.extract_strided_slice %260 {offsets = [0, 256], sizes = [8, 128], strides = [1, 1]} : vector<8x512xf32> to vector<8x128xf32>
    %277 = math.tanh %276 : vector<8x128xf32>
    %278 = vector.extract_strided_slice %260 {offsets = [0, 384], sizes = [8, 128], strides = [1, 1]} : vector<8x512xf32> to vector<8x128xf32>
    %279 = arith.negf %278 : vector<8x128xf32>
    %280 = math.exp %279 : vector<8x128xf32>
    %cst_50 = arith.constant 1.000000e+00 : f32
    %281 = vector.broadcast %cst_50 : f32 to vector<8x128xf32>
    %282 = arith.addf %281, %280 : vector<8x128xf32>
    %283 = arith.divf %281, %282 : vector<8x128xf32>
    %284 = arith.mulf %275, %225 : vector<8x128xf32>
    %285 = arith.mulf %269, %277 : vector<8x128xf32>
    %286 = arith.addf %284, %285 : vector<8x128xf32>
    %287 = math.tanh %286 : vector<8x128xf32>
    %288 = arith.mulf %283, %287 : vector<8x128xf32>
    %289 = vector.extract_strided_slice %263 {offsets = [0, 0], sizes = [8, 128], strides = [1, 1]} : vector<8x512xf32> to vector<8x128xf32>
    %290 = arith.negf %289 : vector<8x128xf32>
    %291 = math.exp %290 : vector<8x128xf32>
    %cst_51 = arith.constant 1.000000e+00 : f32
    %292 = vector.broadcast %cst_51 : f32 to vector<8x128xf32>
    %293 = arith.addf %292, %291 : vector<8x128xf32>
    %294 = arith.divf %292, %293 : vector<8x128xf32>
    %295 = vector.extract_strided_slice %263 {offsets = [0, 128], sizes = [8, 128], strides = [1, 1]} : vector<8x512xf32> to vector<8x128xf32>
    %296 = arith.negf %295 : vector<8x128xf32>
    %297 = math.exp %296 : vector<8x128xf32>
    %cst_52 = arith.constant 1.000000e+00 : f32
    %298 = vector.broadcast %cst_52 : f32 to vector<8x128xf32>
    %299 = arith.addf %298, %297 : vector<8x128xf32>
    %300 = arith.divf %298, %299 : vector<8x128xf32>
    %301 = vector.extract_strided_slice %263 {offsets = [0, 256], sizes = [8, 128], strides = [1, 1]} : vector<8x512xf32> to vector<8x128xf32>
    %302 = math.tanh %301 : vector<8x128xf32>
    %303 = vector.extract_strided_slice %263 {offsets = [0, 384], sizes = [8, 128], strides = [1, 1]} : vector<8x512xf32> to vector<8x128xf32>
    %304 = arith.negf %303 : vector<8x128xf32>
    %305 = math.exp %304 : vector<8x128xf32>
    %cst_53 = arith.constant 1.000000e+00 : f32
    %306 = vector.broadcast %cst_53 : f32 to vector<8x128xf32>
    %307 = arith.addf %306, %305 : vector<8x128xf32>
    %308 = arith.divf %306, %307 : vector<8x128xf32>
    %309 = arith.mulf %300, %250 : vector<8x128xf32>
    %310 = arith.mulf %294, %302 : vector<8x128xf32>
    %311 = arith.addf %309, %310 : vector<8x128xf32>
    %312 = math.tanh %311 : vector<8x128xf32>
    %313 = arith.mulf %308, %312 : vector<8x128xf32>
    %c32_54 = arith.constant 32 : index
    %c0_55 = arith.constant 0 : index
    %314 = vector.load %arg10[%c32_54, %c0_55] : memref<64x256xf32, #tpu.memory_space<vmem>>, vector<8x128xf32>
    tpu.vector_store %arg10[%c32_54, %c0_55], %288 {strides = array<i32>} : memref<64x256xf32, #tpu.memory_space<vmem>>, vector<8x128xf32>,
    %c24_56 = arith.constant 24 : index
    %c128_57 = arith.constant 128 : index
    %315 = vector.load %arg10[%c24_56, %c128_57] : memref<64x256xf32, #tpu.memory_space<vmem>>, vector<8x128xf32>
    tpu.vector_store %arg10[%c24_56, %c128_57], %313 {strides = array<i32>} : memref<64x256xf32, #tpu.memory_space<vmem>>, vector<8x128xf32>,
    %316 = tpu.concatenate %288, %313 in 1 : vector<8x128xf32>, vector<8x128xf32> -> vector<8x256xf32>
    %317 = arith.truncf %316 : vector<8x256xf32> to vector<8x256xbf16>
    %cst_58 = arith.constant dense<0.000000e+00> : vector<8x1024xf32>
    %318 = tpu.matmul %317, %2, %cst_58 {dimension_numbers = #tpu.dot_dimension_numbers<[1], [0], [0], [1], [0, 0, 1, 1], [], []>} : vector<8x256xbf16>, vector<256x1024xbf16>, vector<8x1024xf32> -> vector<8x1024xf32>
    %319 = vector.extract_strided_slice %6 {offsets = [40, 0], sizes = [8, 512], strides = [1, 1]} : vector<64x1024xf32> to vector<8x512xf32>
    %320 = vector.extract_strided_slice %318 {offsets = [0, 0], sizes = [8, 512], strides = [1, 1]} : vector<8x1024xf32> to vector<8x512xf32>
    %321 = arith.addf %319, %320 : vector<8x512xf32>
    %322 = vector.extract_strided_slice %6 {offsets = [16, 512], sizes = [8, 512], strides = [1, 1]} : vector<64x1024xf32> to vector<8x512xf32>
    %323 = vector.extract_strided_slice %318 {offsets = [0, 512], sizes = [8, 512], strides = [1, 1]} : vector<8x1024xf32> to vector<8x512xf32>
    %324 = arith.addf %322, %323 : vector<8x512xf32>
    %325 = vector.extract_strided_slice %321 {offsets = [0, 0], sizes = [8, 128], strides = [1, 1]} : vector<8x512xf32> to vector<8x128xf32>
    %326 = arith.negf %325 : vector<8x128xf32>
    %327 = math.exp %326 : vector<8x128xf32>
    %cst_59 = arith.constant 1.000000e+00 : f32
    %328 = vector.broadcast %cst_59 : f32 to vector<8x128xf32>
    %329 = arith.addf %328, %327 : vector<8x128xf32>
    %330 = arith.divf %328, %329 : vector<8x128xf32>
    %331 = vector.extract_strided_slice %321 {offsets = [0, 128], sizes = [8, 128], strides = [1, 1]} : vector<8x512xf32> to vector<8x128xf32>
    %332 = arith.negf %331 : vector<8x128xf32>
    %333 = math.exp %332 : vector<8x128xf32>
    %cst_60 = arith.constant 1.000000e+00 : f32
    %334 = vector.broadcast %cst_60 : f32 to vector<8x128xf32>
    %335 = arith.addf %334, %333 : vector<8x128xf32>
    %336 = arith.divf %334, %335 : vector<8x128xf32>
    %337 = vector.extract_strided_slice %321 {offsets = [0, 256], sizes = [8, 128], strides = [1, 1]} : vector<8x512xf32> to vector<8x128xf32>
    %338 = math.tanh %337 : vector<8x128xf32>
    %339 = vector.extract_strided_slice %321 {offsets = [0, 384], sizes = [8, 128], strides = [1, 1]} : vector<8x512xf32> to vector<8x128xf32>
    %340 = arith.negf %339 : vector<8x128xf32>
    %341 = math.exp %340 : vector<8x128xf32>
    %cst_61 = arith.constant 1.000000e+00 : f32
    %342 = vector.broadcast %cst_61 : f32 to vector<8x128xf32>
    %343 = arith.addf %342, %341 : vector<8x128xf32>
    %344 = arith.divf %342, %343 : vector<8x128xf32>
    %345 = arith.mulf %336, %286 : vector<8x128xf32>
    %346 = arith.mulf %330, %338 : vector<8x128xf32>
    %347 = arith.addf %345, %346 : vector<8x128xf32>
    %348 = math.tanh %347 : vector<8x128xf32>
    %349 = arith.mulf %344, %348 : vector<8x128xf32>
    %350 = vector.extract_strided_slice %324 {offsets = [0, 0], sizes = [8, 128], strides = [1, 1]} : vector<8x512xf32> to vector<8x128xf32>
    %351 = arith.negf %350 : vector<8x128xf32>
    %352 = math.exp %351 : vector<8x128xf32>
    %cst_62 = arith.constant 1.000000e+00 : f32
    %353 = vector.broadcast %cst_62 : f32 to vector<8x128xf32>
    %354 = arith.addf %353, %352 : vector<8x128xf32>
    %355 = arith.divf %353, %354 : vector<8x128xf32>
    %356 = vector.extract_strided_slice %324 {offsets = [0, 128], sizes = [8, 128], strides = [1, 1]} : vector<8x512xf32> to vector<8x128xf32>
    %357 = arith.negf %356 : vector<8x128xf32>
    %358 = math.exp %357 : vector<8x128xf32>
    %cst_63 = arith.constant 1.000000e+00 : f32
    %359 = vector.broadcast %cst_63 : f32 to vector<8x128xf32>
    %360 = arith.addf %359, %358 : vector<8x128xf32>
    %361 = arith.divf %359, %360 : vector<8x128xf32>
    %362 = vector.extract_strided_slice %324 {offsets = [0, 256], sizes = [8, 128], strides = [1, 1]} : vector<8x512xf32> to vector<8x128xf32>
    %363 = math.tanh %362 : vector<8x128xf32>
    %364 = vector.extract_strided_slice %324 {offsets = [0, 384], sizes = [8, 128], strides = [1, 1]} : vector<8x512xf32> to vector<8x128xf32>
    %365 = arith.negf %364 : vector<8x128xf32>
    %366 = math.exp %365 : vector<8x128xf32>
    %cst_64 = arith.constant 1.000000e+00 : f32
    %367 = vector.broadcast %cst_64 : f32 to vector<8x128xf32>
    %368 = arith.addf %367, %366 : vector<8x128xf32>
    %369 = arith.divf %367, %368 : vector<8x128xf32>
    %370 = arith.mulf %361, %311 : vector<8x128xf32>
    %371 = arith.mulf %355, %363 : vector<8x128xf32>
    %372 = arith.addf %370, %371 : vector<8x128xf32>
    %373 = math.tanh %372 : vector<8x128xf32>
    %374 = arith.mulf %369, %373 : vector<8x128xf32>
    %c40_65 = arith.constant 40 : index
    %c0_66 = arith.constant 0 : index
    %375 = vector.load %arg10[%c40_65, %c0_66] : memref<64x256xf32, #tpu.memory_space<vmem>>, vector<8x128xf32>
    tpu.vector_store %arg10[%c40_65, %c0_66], %349 {strides = array<i32>} : memref<64x256xf32, #tpu.memory_space<vmem>>, vector<8x128xf32>,
    %c16_67 = arith.constant 16 : index
    %c128_68 = arith.constant 128 : index
    %376 = vector.load %arg10[%c16_67, %c128_68] : memref<64x256xf32, #tpu.memory_space<vmem>>, vector<8x128xf32>
    tpu.vector_store %arg10[%c16_67, %c128_68], %374 {strides = array<i32>} : memref<64x256xf32, #tpu.memory_space<vmem>>, vector<8x128xf32>,
    %377 = tpu.concatenate %349, %374 in 1 : vector<8x128xf32>, vector<8x128xf32> -> vector<8x256xf32>
    %378 = arith.truncf %377 : vector<8x256xf32> to vector<8x256xbf16>
    %cst_69 = arith.constant dense<0.000000e+00> : vector<8x1024xf32>
    %379 = tpu.matmul %378, %2, %cst_69 {dimension_numbers = #tpu.dot_dimension_numbers<[1], [0], [0], [1], [0, 0, 1, 1], [], []>} : vector<8x256xbf16>, vector<256x1024xbf16>, vector<8x1024xf32> -> vector<8x1024xf32>
    %380 = vector.extract_strided_slice %6 {offsets = [48, 0], sizes = [8, 512], strides = [1, 1]} : vector<64x1024xf32> to vector<8x512xf32>
    %381 = vector.extract_strided_slice %379 {offsets = [0, 0], sizes = [8, 512], strides = [1, 1]} : vector<8x1024xf32> to vector<8x512xf32>
    %382 = arith.addf %380, %381 : vector<8x512xf32>
    %383 = vector.extract_strided_slice %6 {offsets = [8, 512], sizes = [8, 512], strides = [1, 1]} : vector<64x1024xf32> to vector<8x512xf32>
    %384 = vector.extract_strided_slice %379 {offsets = [0, 512], sizes = [8, 512], strides = [1, 1]} : vector<8x1024xf32> to vector<8x512xf32>
    %385 = arith.addf %383, %384 : vector<8x512xf32>
    %386 = vector.extract_strided_slice %382 {offsets = [0, 0], sizes = [8, 128], strides = [1, 1]} : vector<8x512xf32> to vector<8x128xf32>
    %387 = arith.negf %386 : vector<8x128xf32>
    %388 = math.exp %387 : vector<8x128xf32>
    %cst_70 = arith.constant 1.000000e+00 : f32
    %389 = vector.broadcast %cst_70 : f32 to vector<8x128xf32>
    %390 = arith.addf %389, %388 : vector<8x128xf32>
    %391 = arith.divf %389, %390 : vector<8x128xf32>
    %392 = vector.extract_strided_slice %382 {offsets = [0, 128], sizes = [8, 128], strides = [1, 1]} : vector<8x512xf32> to vector<8x128xf32>
    %393 = arith.negf %392 : vector<8x128xf32>
    %394 = math.exp %393 : vector<8x128xf32>
    %cst_71 = arith.constant 1.000000e+00 : f32
    %395 = vector.broadcast %cst_71 : f32 to vector<8x128xf32>
    %396 = arith.addf %395, %394 : vector<8x128xf32>
    %397 = arith.divf %395, %396 : vector<8x128xf32>
    %398 = vector.extract_strided_slice %382 {offsets = [0, 256], sizes = [8, 128], strides = [1, 1]} : vector<8x512xf32> to vector<8x128xf32>
    %399 = math.tanh %398 : vector<8x128xf32>
    %400 = vector.extract_strided_slice %382 {offsets = [0, 384], sizes = [8, 128], strides = [1, 1]} : vector<8x512xf32> to vector<8x128xf32>
    %401 = arith.negf %400 : vector<8x128xf32>
    %402 = math.exp %401 : vector<8x128xf32>
    %cst_72 = arith.constant 1.000000e+00 : f32
    %403 = vector.broadcast %cst_72 : f32 to vector<8x128xf32>
    %404 = arith.addf %403, %402 : vector<8x128xf32>
    %405 = arith.divf %403, %404 : vector<8x128xf32>
    %406 = arith.mulf %397, %347 : vector<8x128xf32>
    %407 = arith.mulf %391, %399 : vector<8x128xf32>
    %408 = arith.addf %406, %407 : vector<8x128xf32>
    %409 = math.tanh %408 : vector<8x128xf32>
    %410 = arith.mulf %405, %409 : vector<8x128xf32>
    %411 = vector.extract_strided_slice %385 {offsets = [0, 0], sizes = [8, 128], strides = [1, 1]} : vector<8x512xf32> to vector<8x128xf32>
    %412 = arith.negf %411 : vector<8x128xf32>
    %413 = math.exp %412 : vector<8x128xf32>
    %cst_73 = arith.constant 1.000000e+00 : f32
    %414 = vector.broadcast %cst_73 : f32 to vector<8x128xf32>
    %415 = arith.addf %414, %413 : vector<8x128xf32>
    %416 = arith.divf %414, %415 : vector<8x128xf32>
    %417 = vector.extract_strided_slice %385 {offsets = [0, 128], sizes = [8, 128], strides = [1, 1]} : vector<8x512xf32> to vector<8x128xf32>
    %418 = arith.negf %417 : vector<8x128xf32>
    %419 = math.exp %418 : vector<8x128xf32>
    %cst_74 = arith.constant 1.000000e+00 : f32
    %420 = vector.broadcast %cst_74 : f32 to vector<8x128xf32>
    %421 = arith.addf %420, %419 : vector<8x128xf32>
    %422 = arith.divf %420, %421 : vector<8x128xf32>
    %423 = vector.extract_strided_slice %385 {offsets = [0, 256], sizes = [8, 128], strides = [1, 1]} : vector<8x512xf32> to vector<8x128xf32>
    %424 = math.tanh %423 : vector<8x128xf32>
    %425 = vector.extract_strided_slice %385 {offsets = [0, 384], sizes = [8, 128], strides = [1, 1]} : vector<8x512xf32> to vector<8x128xf32>
    %426 = arith.negf %425 : vector<8x128xf32>
    %427 = math.exp %426 : vector<8x128xf32>
    %cst_75 = arith.constant 1.000000e+00 : f32
    %428 = vector.broadcast %cst_75 : f32 to vector<8x128xf32>
    %429 = arith.addf %428, %427 : vector<8x128xf32>
    %430 = arith.divf %428, %429 : vector<8x128xf32>
    %431 = arith.mulf %422, %372 : vector<8x128xf32>
    %432 = arith.mulf %416, %424 : vector<8x128xf32>
    %433 = arith.addf %431, %432 : vector<8x128xf32>
    %434 = math.tanh %433 : vector<8x128xf32>
    %435 = arith.mulf %430, %434 : vector<8x128xf32>
    %c48_76 = arith.constant 48 : index
    %c0_77 = arith.constant 0 : index
    %436 = vector.load %arg10[%c48_76, %c0_77] : memref<64x256xf32, #tpu.memory_space<vmem>>, vector<8x128xf32>
    tpu.vector_store %arg10[%c48_76, %c0_77], %410 {strides = array<i32>} : memref<64x256xf32, #tpu.memory_space<vmem>>, vector<8x128xf32>,
    %c8_78 = arith.constant 8 : index
    %c128_79 = arith.constant 128 : index
    %437 = vector.load %arg10[%c8_78, %c128_79] : memref<64x256xf32, #tpu.memory_space<vmem>>, vector<8x128xf32>
    tpu.vector_store %arg10[%c8_78, %c128_79], %435 {strides = array<i32>} : memref<64x256xf32, #tpu.memory_space<vmem>>, vector<8x128xf32>,
    %438 = tpu.concatenate %410, %435 in 1 : vector<8x128xf32>, vector<8x128xf32> -> vector<8x256xf32>
    %439 = arith.truncf %438 : vector<8x256xf32> to vector<8x256xbf16>
    %cst_80 = arith.constant dense<0.000000e+00> : vector<8x1024xf32>
    %440 = tpu.matmul %439, %2, %cst_80 {dimension_numbers = #tpu.dot_dimension_numbers<[1], [0], [0], [1], [0, 0, 1, 1], [], []>} : vector<8x256xbf16>, vector<256x1024xbf16>, vector<8x1024xf32> -> vector<8x1024xf32>
    %441 = vector.extract_strided_slice %6 {offsets = [56, 0], sizes = [8, 512], strides = [1, 1]} : vector<64x1024xf32> to vector<8x512xf32>
    %442 = vector.extract_strided_slice %440 {offsets = [0, 0], sizes = [8, 512], strides = [1, 1]} : vector<8x1024xf32> to vector<8x512xf32>
    %443 = arith.addf %441, %442 : vector<8x512xf32>
    %444 = vector.extract_strided_slice %6 {offsets = [0, 512], sizes = [8, 512], strides = [1, 1]} : vector<64x1024xf32> to vector<8x512xf32>
    %445 = vector.extract_strided_slice %440 {offsets = [0, 512], sizes = [8, 512], strides = [1, 1]} : vector<8x1024xf32> to vector<8x512xf32>
    %446 = arith.addf %444, %445 : vector<8x512xf32>
    %447 = vector.extract_strided_slice %443 {offsets = [0, 0], sizes = [8, 128], strides = [1, 1]} : vector<8x512xf32> to vector<8x128xf32>
    %448 = arith.negf %447 : vector<8x128xf32>
    %449 = math.exp %448 : vector<8x128xf32>
    %cst_81 = arith.constant 1.000000e+00 : f32
    %450 = vector.broadcast %cst_81 : f32 to vector<8x128xf32>
    %451 = arith.addf %450, %449 : vector<8x128xf32>
    %452 = arith.divf %450, %451 : vector<8x128xf32>
    %453 = vector.extract_strided_slice %443 {offsets = [0, 128], sizes = [8, 128], strides = [1, 1]} : vector<8x512xf32> to vector<8x128xf32>
    %454 = arith.negf %453 : vector<8x128xf32>
    %455 = math.exp %454 : vector<8x128xf32>
    %cst_82 = arith.constant 1.000000e+00 : f32
    %456 = vector.broadcast %cst_82 : f32 to vector<8x128xf32>
    %457 = arith.addf %456, %455 : vector<8x128xf32>
    %458 = arith.divf %456, %457 : vector<8x128xf32>
    %459 = vector.extract_strided_slice %443 {offsets = [0, 256], sizes = [8, 128], strides = [1, 1]} : vector<8x512xf32> to vector<8x128xf32>
    %460 = math.tanh %459 : vector<8x128xf32>
    %461 = vector.extract_strided_slice %443 {offsets = [0, 384], sizes = [8, 128], strides = [1, 1]} : vector<8x512xf32> to vector<8x128xf32>
    %462 = arith.negf %461 : vector<8x128xf32>
    %463 = math.exp %462 : vector<8x128xf32>
    %cst_83 = arith.constant 1.000000e+00 : f32
    %464 = vector.broadcast %cst_83 : f32 to vector<8x128xf32>
    %465 = arith.addf %464, %463 : vector<8x128xf32>
    %466 = arith.divf %464, %465 : vector<8x128xf32>
    %467 = arith.mulf %458, %408 : vector<8x128xf32>
    %468 = arith.mulf %452, %460 : vector<8x128xf32>
    %469 = arith.addf %467, %468 : vector<8x128xf32>
    %470 = math.tanh %469 : vector<8x128xf32>
    %471 = arith.mulf %466, %470 : vector<8x128xf32>
    %472 = vector.extract_strided_slice %446 {offsets = [0, 0], sizes = [8, 128], strides = [1, 1]} : vector<8x512xf32> to vector<8x128xf32>
    %473 = arith.negf %472 : vector<8x128xf32>
    %474 = math.exp %473 : vector<8x128xf32>
    %cst_84 = arith.constant 1.000000e+00 : f32
    %475 = vector.broadcast %cst_84 : f32 to vector<8x128xf32>
    %476 = arith.addf %475, %474 : vector<8x128xf32>
    %477 = arith.divf %475, %476 : vector<8x128xf32>
    %478 = vector.extract_strided_slice %446 {offsets = [0, 128], sizes = [8, 128], strides = [1, 1]} : vector<8x512xf32> to vector<8x128xf32>
    %479 = arith.negf %478 : vector<8x128xf32>
    %480 = math.exp %479 : vector<8x128xf32>
    %cst_85 = arith.constant 1.000000e+00 : f32
    %481 = vector.broadcast %cst_85 : f32 to vector<8x128xf32>
    %482 = arith.addf %481, %480 : vector<8x128xf32>
    %483 = arith.divf %481, %482 : vector<8x128xf32>
    %484 = vector.extract_strided_slice %446 {offsets = [0, 256], sizes = [8, 128], strides = [1, 1]} : vector<8x512xf32> to vector<8x128xf32>
    %485 = math.tanh %484 : vector<8x128xf32>
    %486 = vector.extract_strided_slice %446 {offsets = [0, 384], sizes = [8, 128], strides = [1, 1]} : vector<8x512xf32> to vector<8x128xf32>
    %487 = arith.negf %486 : vector<8x128xf32>
    %488 = math.exp %487 : vector<8x128xf32>
    %cst_86 = arith.constant 1.000000e+00 : f32
    %489 = vector.broadcast %cst_86 : f32 to vector<8x128xf32>
    %490 = arith.addf %489, %488 : vector<8x128xf32>
    %491 = arith.divf %489, %490 : vector<8x128xf32>
    %492 = arith.mulf %483, %433 : vector<8x128xf32>
    %493 = arith.mulf %477, %485 : vector<8x128xf32>
    %494 = arith.addf %492, %493 : vector<8x128xf32>
    %495 = math.tanh %494 : vector<8x128xf32>
    %496 = arith.mulf %491, %495 : vector<8x128xf32>
    %c56_87 = arith.constant 56 : index
    %c0_88 = arith.constant 0 : index
    %497 = vector.load %arg10[%c56_87, %c0_88] : memref<64x256xf32, #tpu.memory_space<vmem>>, vector<8x128xf32>
    tpu.vector_store %arg10[%c56_87, %c0_88], %471 {strides = array<i32>} : memref<64x256xf32, #tpu.memory_space<vmem>>, vector<8x128xf32>,
    %c0_89 = arith.constant 0 : index
    %c128_90 = arith.constant 128 : index
    %498 = vector.load %arg10[%c0_89, %c128_90] : memref<64x256xf32, #tpu.memory_space<vmem>>, vector<8x128xf32>
    tpu.vector_store %arg10[%c0_89, %c128_90], %496 {strides = array<i32>} : memref<64x256xf32, #tpu.memory_space<vmem>>, vector<8x128xf32>,
    %c0_91 = arith.constant 0 : index
    %c0_92 = arith.constant 0 : index
    %499 = vector.load %arg10[%c0_91, %c0_92] : memref<64x256xf32, #tpu.memory_space<vmem>>, vector<64x256xf32>
    %500 = arith.truncf %499 : vector<64x256xf32> to vector<64x256xbf16>
    %c0_93 = arith.constant 0 : index
    %c0_94 = arith.constant 0 : index
    %501 = vector.load %arg4[%c0_93, %c0_94] : memref<256x1024xbf16, #tpu.memory_space<vmem>>, vector<256x1024xbf16>
    %c0_95 = arith.constant 0 : index
    %c0_96 = arith.constant 0 : index
    %502 = vector.load %arg5[%c0_95, %c0_96] : memref<256x1024xbf16, #tpu.memory_space<vmem>>, vector<256x1024xbf16>
    %c0_97 = arith.constant 0 : index
    %c0_98 = arith.constant 0 : index
    %503 = vector.load %arg6[%c0_97, %c0_98] : memref<1x1024xf32, #tpu.memory_space<vmem>>, vector<1x1024xf32>
    %cst_99 = arith.constant dense<0.000000e+00> : vector<64x1024xf32>
    %504 = tpu.matmul %500, %501, %cst_99 {dimension_numbers = #tpu.dot_dimension_numbers<[1], [0], [0], [1], [0, 0, 1, 1], [], []>} : vector<64x256xbf16>, vector<256x1024xbf16>, vector<64x1024xf32> -> vector<64x1024xf32>
    %505 = vector.broadcast %503 : vector<1x1024xf32> to vector<64x1024xf32>
    %506 = arith.addf %504, %505 : vector<64x1024xf32>
    %cst_100 = arith.constant 0.000000e+00 : f32
    %507 = vector.broadcast %cst_100 : f32 to vector<8x128xf32>
    %cst_101 = arith.constant 0.000000e+00 : f32
    %508 = vector.broadcast %cst_101 : f32 to vector<8x128xf32>
    %cst_102 = arith.constant 0.000000e+00 : f32
    %509 = vector.broadcast %cst_102 : f32 to vector<8x128xf32>
    %cst_103 = arith.constant 0.000000e+00 : f32
    %510 = vector.broadcast %cst_103 : f32 to vector<8x128xf32>
    %511 = tpu.concatenate %507, %509 in 1 : vector<8x128xf32>, vector<8x128xf32> -> vector<8x256xf32>
    %512 = arith.truncf %511 : vector<8x256xf32> to vector<8x256xbf16>
    %cst_104 = arith.constant dense<0.000000e+00> : vector<8x1024xf32>
    %513 = tpu.matmul %512, %502, %cst_104 {dimension_numbers = #tpu.dot_dimension_numbers<[1], [0], [0], [1], [0, 0, 1, 1], [], []>} : vector<8x256xbf16>, vector<256x1024xbf16>, vector<8x1024xf32> -> vector<8x1024xf32>
    %514 = vector.extract_strided_slice %506 {offsets = [0, 0], sizes = [8, 512], strides = [1, 1]} : vector<64x1024xf32> to vector<8x512xf32>
    %515 = vector.extract_strided_slice %513 {offsets = [0, 0], sizes = [8, 512], strides = [1, 1]} : vector<8x1024xf32> to vector<8x512xf32>
    %516 = arith.addf %514, %515 : vector<8x512xf32>
    %517 = vector.extract_strided_slice %506 {offsets = [56, 512], sizes = [8, 512], strides = [1, 1]} : vector<64x1024xf32> to vector<8x512xf32>
    %518 = vector.extract_strided_slice %513 {offsets = [0, 512], sizes = [8, 512], strides = [1, 1]} : vector<8x1024xf32> to vector<8x512xf32>
    %519 = arith.addf %517, %518 : vector<8x512xf32>
    %520 = vector.extract_strided_slice %516 {offsets = [0, 0], sizes = [8, 128], strides = [1, 1]} : vector<8x512xf32> to vector<8x128xf32>
    %521 = arith.negf %520 : vector<8x128xf32>
    %522 = math.exp %521 : vector<8x128xf32>
    %cst_105 = arith.constant 1.000000e+00 : f32
    %523 = vector.broadcast %cst_105 : f32 to vector<8x128xf32>
    %524 = arith.addf %523, %522 : vector<8x128xf32>
    %525 = arith.divf %523, %524 : vector<8x128xf32>
    %526 = vector.extract_strided_slice %516 {offsets = [0, 128], sizes = [8, 128], strides = [1, 1]} : vector<8x512xf32> to vector<8x128xf32>
    %527 = arith.negf %526 : vector<8x128xf32>
    %528 = math.exp %527 : vector<8x128xf32>
    %cst_106 = arith.constant 1.000000e+00 : f32
    %529 = vector.broadcast %cst_106 : f32 to vector<8x128xf32>
    %530 = arith.addf %529, %528 : vector<8x128xf32>
    %531 = arith.divf %529, %530 : vector<8x128xf32>
    %532 = vector.extract_strided_slice %516 {offsets = [0, 256], sizes = [8, 128], strides = [1, 1]} : vector<8x512xf32> to vector<8x128xf32>
    %533 = math.tanh %532 : vector<8x128xf32>
    %534 = vector.extract_strided_slice %516 {offsets = [0, 384], sizes = [8, 128], strides = [1, 1]} : vector<8x512xf32> to vector<8x128xf32>
    %535 = arith.negf %534 : vector<8x128xf32>
    %536 = math.exp %535 : vector<8x128xf32>
    %cst_107 = arith.constant 1.000000e+00 : f32
    %537 = vector.broadcast %cst_107 : f32 to vector<8x128xf32>
    %538 = arith.addf %537, %536 : vector<8x128xf32>
    %539 = arith.divf %537, %538 : vector<8x128xf32>
    %540 = arith.mulf %531, %508 : vector<8x128xf32>
    %541 = arith.mulf %525, %533 : vector<8x128xf32>
    %542 = arith.addf %540, %541 : vector<8x128xf32>
    %543 = math.tanh %542 : vector<8x128xf32>
    %544 = arith.mulf %539, %543 : vector<8x128xf32>
    %545 = vector.extract_strided_slice %519 {offsets = [0, 0], sizes = [8, 128], strides = [1, 1]} : vector<8x512xf32> to vector<8x128xf32>
    %546 = arith.negf %545 : vector<8x128xf32>
    %547 = math.exp %546 : vector<8x128xf32>
    %cst_108 = arith.constant 1.000000e+00 : f32
    %548 = vector.broadcast %cst_108 : f32 to vector<8x128xf32>
    %549 = arith.addf %548, %547 : vector<8x128xf32>
    %550 = arith.divf %548, %549 : vector<8x128xf32>
    %551 = vector.extract_strided_slice %519 {offsets = [0, 128], sizes = [8, 128], strides = [1, 1]} : vector<8x512xf32> to vector<8x128xf32>
    %552 = arith.negf %551 : vector<8x128xf32>
    %553 = math.exp %552 : vector<8x128xf32>
    %cst_109 = arith.constant 1.000000e+00 : f32
    %554 = vector.broadcast %cst_109 : f32 to vector<8x128xf32>
    %555 = arith.addf %554, %553 : vector<8x128xf32>
    %556 = arith.divf %554, %555 : vector<8x128xf32>
    %557 = vector.extract_strided_slice %519 {offsets = [0, 256], sizes = [8, 128], strides = [1, 1]} : vector<8x512xf32> to vector<8x128xf32>
    %558 = math.tanh %557 : vector<8x128xf32>
    %559 = vector.extract_strided_slice %519 {offsets = [0, 384], sizes = [8, 128], strides = [1, 1]} : vector<8x512xf32> to vector<8x128xf32>
    %560 = arith.negf %559 : vector<8x128xf32>
    %561 = math.exp %560 : vector<8x128xf32>
    %cst_110 = arith.constant 1.000000e+00 : f32
    %562 = vector.broadcast %cst_110 : f32 to vector<8x128xf32>
    %563 = arith.addf %562, %561 : vector<8x128xf32>
    %564 = arith.divf %562, %563 : vector<8x128xf32>
    %565 = arith.mulf %556, %510 : vector<8x128xf32>
    %566 = arith.mulf %550, %558 : vector<8x128xf32>
    %567 = arith.addf %565, %566 : vector<8x128xf32>
    %568 = math.tanh %567 : vector<8x128xf32>
    %569 = arith.mulf %564, %568 : vector<8x128xf32>
    %570 = tpu.concatenate %544, %569 in 1 : vector<8x128xf32>, vector<8x128xf32> -> vector<8x256xf32>
    %571 = arith.truncf %570 : vector<8x256xf32> to vector<8x256xbf16>
    %cst_111 = arith.constant dense<0.000000e+00> : vector<8x1024xf32>
    %572 = tpu.matmul %571, %502, %cst_111 {dimension_numbers = #tpu.dot_dimension_numbers<[1], [0], [0], [1], [0, 0, 1, 1], [], []>} : vector<8x256xbf16>, vector<256x1024xbf16>, vector<8x1024xf32> -> vector<8x1024xf32>
    %573 = vector.extract_strided_slice %506 {offsets = [8, 0], sizes = [8, 512], strides = [1, 1]} : vector<64x1024xf32> to vector<8x512xf32>
    %574 = vector.extract_strided_slice %572 {offsets = [0, 0], sizes = [8, 512], strides = [1, 1]} : vector<8x1024xf32> to vector<8x512xf32>
    %575 = arith.addf %573, %574 : vector<8x512xf32>
    %576 = vector.extract_strided_slice %506 {offsets = [48, 512], sizes = [8, 512], strides = [1, 1]} : vector<64x1024xf32> to vector<8x512xf32>
    %577 = vector.extract_strided_slice %572 {offsets = [0, 512], sizes = [8, 512], strides = [1, 1]} : vector<8x1024xf32> to vector<8x512xf32>
    %578 = arith.addf %576, %577 : vector<8x512xf32>
    %579 = vector.extract_strided_slice %575 {offsets = [0, 0], sizes = [8, 128], strides = [1, 1]} : vector<8x512xf32> to vector<8x128xf32>
    %580 = arith.negf %579 : vector<8x128xf32>
    %581 = math.exp %580 : vector<8x128xf32>
    %cst_112 = arith.constant 1.000000e+00 : f32
    %582 = vector.broadcast %cst_112 : f32 to vector<8x128xf32>
    %583 = arith.addf %582, %581 : vector<8x128xf32>
    %584 = arith.divf %582, %583 : vector<8x128xf32>
    %585 = vector.extract_strided_slice %575 {offsets = [0, 128], sizes = [8, 128], strides = [1, 1]} : vector<8x512xf32> to vector<8x128xf32>
    %586 = arith.negf %585 : vector<8x128xf32>
    %587 = math.exp %586 : vector<8x128xf32>
    %cst_113 = arith.constant 1.000000e+00 : f32
    %588 = vector.broadcast %cst_113 : f32 to vector<8x128xf32>
    %589 = arith.addf %588, %587 : vector<8x128xf32>
    %590 = arith.divf %588, %589 : vector<8x128xf32>
    %591 = vector.extract_strided_slice %575 {offsets = [0, 256], sizes = [8, 128], strides = [1, 1]} : vector<8x512xf32> to vector<8x128xf32>
    %592 = math.tanh %591 : vector<8x128xf32>
    %593 = vector.extract_strided_slice %575 {offsets = [0, 384], sizes = [8, 128], strides = [1, 1]} : vector<8x512xf32> to vector<8x128xf32>
    %594 = arith.negf %593 : vector<8x128xf32>
    %595 = math.exp %594 : vector<8x128xf32>
    %cst_114 = arith.constant 1.000000e+00 : f32
    %596 = vector.broadcast %cst_114 : f32 to vector<8x128xf32>
    %597 = arith.addf %596, %595 : vector<8x128xf32>
    %598 = arith.divf %596, %597 : vector<8x128xf32>
    %599 = arith.mulf %590, %542 : vector<8x128xf32>
    %600 = arith.mulf %584, %592 : vector<8x128xf32>
    %601 = arith.addf %599, %600 : vector<8x128xf32>
    %602 = math.tanh %601 : vector<8x128xf32>
    %603 = arith.mulf %598, %602 : vector<8x128xf32>
    %604 = vector.extract_strided_slice %578 {offsets = [0, 0], sizes = [8, 128], strides = [1, 1]} : vector<8x512xf32> to vector<8x128xf32>
    %605 = arith.negf %604 : vector<8x128xf32>
    %606 = math.exp %605 : vector<8x128xf32>
    %cst_115 = arith.constant 1.000000e+00 : f32
    %607 = vector.broadcast %cst_115 : f32 to vector<8x128xf32>
    %608 = arith.addf %607, %606 : vector<8x128xf32>
    %609 = arith.divf %607, %608 : vector<8x128xf32>
    %610 = vector.extract_strided_slice %578 {offsets = [0, 128], sizes = [8, 128], strides = [1, 1]} : vector<8x512xf32> to vector<8x128xf32>
    %611 = arith.negf %610 : vector<8x128xf32>
    %612 = math.exp %611 : vector<8x128xf32>
    %cst_116 = arith.constant 1.000000e+00 : f32
    %613 = vector.broadcast %cst_116 : f32 to vector<8x128xf32>
    %614 = arith.addf %613, %612 : vector<8x128xf32>
    %615 = arith.divf %613, %614 : vector<8x128xf32>
    %616 = vector.extract_strided_slice %578 {offsets = [0, 256], sizes = [8, 128], strides = [1, 1]} : vector<8x512xf32> to vector<8x128xf32>
    %617 = math.tanh %616 : vector<8x128xf32>
    %618 = vector.extract_strided_slice %578 {offsets = [0, 384], sizes = [8, 128], strides = [1, 1]} : vector<8x512xf32> to vector<8x128xf32>
    %619 = arith.negf %618 : vector<8x128xf32>
    %620 = math.exp %619 : vector<8x128xf32>
    %cst_117 = arith.constant 1.000000e+00 : f32
    %621 = vector.broadcast %cst_117 : f32 to vector<8x128xf32>
    %622 = arith.addf %621, %620 : vector<8x128xf32>
    %623 = arith.divf %621, %622 : vector<8x128xf32>
    %624 = arith.mulf %615, %567 : vector<8x128xf32>
    %625 = arith.mulf %609, %617 : vector<8x128xf32>
    %626 = arith.addf %624, %625 : vector<8x128xf32>
    %627 = math.tanh %626 : vector<8x128xf32>
    %628 = arith.mulf %623, %627 : vector<8x128xf32>
    %629 = tpu.concatenate %603, %628 in 1 : vector<8x128xf32>, vector<8x128xf32> -> vector<8x256xf32>
    %630 = arith.truncf %629 : vector<8x256xf32> to vector<8x256xbf16>
    %cst_118 = arith.constant dense<0.000000e+00> : vector<8x1024xf32>
    %631 = tpu.matmul %630, %502, %cst_118 {dimension_numbers = #tpu.dot_dimension_numbers<[1], [0], [0], [1], [0, 0, 1, 1], [], []>} : vector<8x256xbf16>, vector<256x1024xbf16>, vector<8x1024xf32> -> vector<8x1024xf32>
    %632 = vector.extract_strided_slice %506 {offsets = [16, 0], sizes = [8, 512], strides = [1, 1]} : vector<64x1024xf32> to vector<8x512xf32>
    %633 = vector.extract_strided_slice %631 {offsets = [0, 0], sizes = [8, 512], strides = [1, 1]} : vector<8x1024xf32> to vector<8x512xf32>
    %634 = arith.addf %632, %633 : vector<8x512xf32>
    %635 = vector.extract_strided_slice %506 {offsets = [40, 512], sizes = [8, 512], strides = [1, 1]} : vector<64x1024xf32> to vector<8x512xf32>
    %636 = vector.extract_strided_slice %631 {offsets = [0, 512], sizes = [8, 512], strides = [1, 1]} : vector<8x1024xf32> to vector<8x512xf32>
    %637 = arith.addf %635, %636 : vector<8x512xf32>
    %638 = vector.extract_strided_slice %634 {offsets = [0, 0], sizes = [8, 128], strides = [1, 1]} : vector<8x512xf32> to vector<8x128xf32>
    %639 = arith.negf %638 : vector<8x128xf32>
    %640 = math.exp %639 : vector<8x128xf32>
    %cst_119 = arith.constant 1.000000e+00 : f32
    %641 = vector.broadcast %cst_119 : f32 to vector<8x128xf32>
    %642 = arith.addf %641, %640 : vector<8x128xf32>
    %643 = arith.divf %641, %642 : vector<8x128xf32>
    %644 = vector.extract_strided_slice %634 {offsets = [0, 128], sizes = [8, 128], strides = [1, 1]} : vector<8x512xf32> to vector<8x128xf32>
    %645 = arith.negf %644 : vector<8x128xf32>
    %646 = math.exp %645 : vector<8x128xf32>
    %cst_120 = arith.constant 1.000000e+00 : f32
    %647 = vector.broadcast %cst_120 : f32 to vector<8x128xf32>
    %648 = arith.addf %647, %646 : vector<8x128xf32>
    %649 = arith.divf %647, %648 : vector<8x128xf32>
    %650 = vector.extract_strided_slice %634 {offsets = [0, 256], sizes = [8, 128], strides = [1, 1]} : vector<8x512xf32> to vector<8x128xf32>
    %651 = math.tanh %650 : vector<8x128xf32>
    %652 = vector.extract_strided_slice %634 {offsets = [0, 384], sizes = [8, 128], strides = [1, 1]} : vector<8x512xf32> to vector<8x128xf32>
    %653 = arith.negf %652 : vector<8x128xf32>
    %654 = math.exp %653 : vector<8x128xf32>
    %cst_121 = arith.constant 1.000000e+00 : f32
    %655 = vector.broadcast %cst_121 : f32 to vector<8x128xf32>
    %656 = arith.addf %655, %654 : vector<8x128xf32>
    %657 = arith.divf %655, %656 : vector<8x128xf32>
    %658 = arith.mulf %649, %601 : vector<8x128xf32>
    %659 = arith.mulf %643, %651 : vector<8x128xf32>
    %660 = arith.addf %658, %659 : vector<8x128xf32>
    %661 = math.tanh %660 : vector<8x128xf32>
    %662 = arith.mulf %657, %661 : vector<8x128xf32>
    %663 = vector.extract_strided_slice %637 {offsets = [0, 0], sizes = [8, 128], strides = [1, 1]} : vector<8x512xf32> to vector<8x128xf32>
    %664 = arith.negf %663 : vector<8x128xf32>
    %665 = math.exp %664 : vector<8x128xf32>
    %cst_122 = arith.constant 1.000000e+00 : f32
    %666 = vector.broadcast %cst_122 : f32 to vector<8x128xf32>
    %667 = arith.addf %666, %665 : vector<8x128xf32>
    %668 = arith.divf %666, %667 : vector<8x128xf32>
    %669 = vector.extract_strided_slice %637 {offsets = [0, 128], sizes = [8, 128], strides = [1, 1]} : vector<8x512xf32> to vector<8x128xf32>
    %670 = arith.negf %669 : vector<8x128xf32>
    %671 = math.exp %670 : vector<8x128xf32>
    %cst_123 = arith.constant 1.000000e+00 : f32
    %672 = vector.broadcast %cst_123 : f32 to vector<8x128xf32>
    %673 = arith.addf %672, %671 : vector<8x128xf32>
    %674 = arith.divf %672, %673 : vector<8x128xf32>
    %675 = vector.extract_strided_slice %637 {offsets = [0, 256], sizes = [8, 128], strides = [1, 1]} : vector<8x512xf32> to vector<8x128xf32>
    %676 = math.tanh %675 : vector<8x128xf32>
    %677 = vector.extract_strided_slice %637 {offsets = [0, 384], sizes = [8, 128], strides = [1, 1]} : vector<8x512xf32> to vector<8x128xf32>
    %678 = arith.negf %677 : vector<8x128xf32>
    %679 = math.exp %678 : vector<8x128xf32>
    %cst_124 = arith.constant 1.000000e+00 : f32
    %680 = vector.broadcast %cst_124 : f32 to vector<8x128xf32>
    %681 = arith.addf %680, %679 : vector<8x128xf32>
    %682 = arith.divf %680, %681 : vector<8x128xf32>
    %683 = arith.mulf %674, %626 : vector<8x128xf32>
    %684 = arith.mulf %668, %676 : vector<8x128xf32>
    %685 = arith.addf %683, %684 : vector<8x128xf32>
    %686 = math.tanh %685 : vector<8x128xf32>
    %687 = arith.mulf %682, %686 : vector<8x128xf32>
    %688 = tpu.concatenate %662, %687 in 1 : vector<8x128xf32>, vector<8x128xf32> -> vector<8x256xf32>
    %689 = arith.truncf %688 : vector<8x256xf32> to vector<8x256xbf16>
    %cst_125 = arith.constant dense<0.000000e+00> : vector<8x1024xf32>
    %690 = tpu.matmul %689, %502, %cst_125 {dimension_numbers = #tpu.dot_dimension_numbers<[1], [0], [0], [1], [0, 0, 1, 1], [], []>} : vector<8x256xbf16>, vector<256x1024xbf16>, vector<8x1024xf32> -> vector<8x1024xf32>
    %691 = vector.extract_strided_slice %506 {offsets = [24, 0], sizes = [8, 512], strides = [1, 1]} : vector<64x1024xf32> to vector<8x512xf32>
    %692 = vector.extract_strided_slice %690 {offsets = [0, 0], sizes = [8, 512], strides = [1, 1]} : vector<8x1024xf32> to vector<8x512xf32>
    %693 = arith.addf %691, %692 : vector<8x512xf32>
    %694 = vector.extract_strided_slice %506 {offsets = [32, 512], sizes = [8, 512], strides = [1, 1]} : vector<64x1024xf32> to vector<8x512xf32>
    %695 = vector.extract_strided_slice %690 {offsets = [0, 512], sizes = [8, 512], strides = [1, 1]} : vector<8x1024xf32> to vector<8x512xf32>
    %696 = arith.addf %694, %695 : vector<8x512xf32>
    %697 = vector.extract_strided_slice %693 {offsets = [0, 0], sizes = [8, 128], strides = [1, 1]} : vector<8x512xf32> to vector<8x128xf32>
    %698 = arith.negf %697 : vector<8x128xf32>
    %699 = math.exp %698 : vector<8x128xf32>
    %cst_126 = arith.constant 1.000000e+00 : f32
    %700 = vector.broadcast %cst_126 : f32 to vector<8x128xf32>
    %701 = arith.addf %700, %699 : vector<8x128xf32>
    %702 = arith.divf %700, %701 : vector<8x128xf32>
    %703 = vector.extract_strided_slice %693 {offsets = [0, 128], sizes = [8, 128], strides = [1, 1]} : vector<8x512xf32> to vector<8x128xf32>
    %704 = arith.negf %703 : vector<8x128xf32>
    %705 = math.exp %704 : vector<8x128xf32>
    %cst_127 = arith.constant 1.000000e+00 : f32
    %706 = vector.broadcast %cst_127 : f32 to vector<8x128xf32>
    %707 = arith.addf %706, %705 : vector<8x128xf32>
    %708 = arith.divf %706, %707 : vector<8x128xf32>
    %709 = vector.extract_strided_slice %693 {offsets = [0, 256], sizes = [8, 128], strides = [1, 1]} : vector<8x512xf32> to vector<8x128xf32>
    %710 = math.tanh %709 : vector<8x128xf32>
    %711 = vector.extract_strided_slice %693 {offsets = [0, 384], sizes = [8, 128], strides = [1, 1]} : vector<8x512xf32> to vector<8x128xf32>
    %712 = arith.negf %711 : vector<8x128xf32>
    %713 = math.exp %712 : vector<8x128xf32>
    %cst_128 = arith.constant 1.000000e+00 : f32
    %714 = vector.broadcast %cst_128 : f32 to vector<8x128xf32>
    %715 = arith.addf %714, %713 : vector<8x128xf32>
    %716 = arith.divf %714, %715 : vector<8x128xf32>
    %717 = arith.mulf %708, %660 : vector<8x128xf32>
    %718 = arith.mulf %702, %710 : vector<8x128xf32>
    %719 = arith.addf %717, %718 : vector<8x128xf32>
    %720 = math.tanh %719 : vector<8x128xf32>
    %721 = arith.mulf %716, %720 : vector<8x128xf32>
    %722 = vector.extract_strided_slice %696 {offsets = [0, 0], sizes = [8, 128], strides = [1, 1]} : vector<8x512xf32> to vector<8x128xf32>
    %723 = arith.negf %722 : vector<8x128xf32>
    %724 = math.exp %723 : vector<8x128xf32>
    %cst_129 = arith.constant 1.000000e+00 : f32
    %725 = vector.broadcast %cst_129 : f32 to vector<8x128xf32>
    %726 = arith.addf %725, %724 : vector<8x128xf32>
    %727 = arith.divf %725, %726 : vector<8x128xf32>
    %728 = vector.extract_strided_slice %696 {offsets = [0, 128], sizes = [8, 128], strides = [1, 1]} : vector<8x512xf32> to vector<8x128xf32>
    %729 = arith.negf %728 : vector<8x128xf32>
    %730 = math.exp %729 : vector<8x128xf32>
    %cst_130 = arith.constant 1.000000e+00 : f32
    %731 = vector.broadcast %cst_130 : f32 to vector<8x128xf32>
    %732 = arith.addf %731, %730 : vector<8x128xf32>
    %733 = arith.divf %731, %732 : vector<8x128xf32>
    %734 = vector.extract_strided_slice %696 {offsets = [0, 256], sizes = [8, 128], strides = [1, 1]} : vector<8x512xf32> to vector<8x128xf32>
    %735 = math.tanh %734 : vector<8x128xf32>
    %736 = vector.extract_strided_slice %696 {offsets = [0, 384], sizes = [8, 128], strides = [1, 1]} : vector<8x512xf32> to vector<8x128xf32>
    %737 = arith.negf %736 : vector<8x128xf32>
    %738 = math.exp %737 : vector<8x128xf32>
    %cst_131 = arith.constant 1.000000e+00 : f32
    %739 = vector.broadcast %cst_131 : f32 to vector<8x128xf32>
    %740 = arith.addf %739, %738 : vector<8x128xf32>
    %741 = arith.divf %739, %740 : vector<8x128xf32>
    %742 = arith.mulf %733, %685 : vector<8x128xf32>
    %743 = arith.mulf %727, %735 : vector<8x128xf32>
    %744 = arith.addf %742, %743 : vector<8x128xf32>
    %745 = math.tanh %744 : vector<8x128xf32>
    %746 = arith.mulf %741, %745 : vector<8x128xf32>
    %747 = tpu.concatenate %721, %746 in 1 : vector<8x128xf32>, vector<8x128xf32> -> vector<8x256xf32>
    %748 = arith.truncf %747 : vector<8x256xf32> to vector<8x256xbf16>
    %cst_132 = arith.constant dense<0.000000e+00> : vector<8x1024xf32>
    %749 = tpu.matmul %748, %502, %cst_132 {dimension_numbers = #tpu.dot_dimension_numbers<[1], [0], [0], [1], [0, 0, 1, 1], [], []>} : vector<8x256xbf16>, vector<256x1024xbf16>, vector<8x1024xf32> -> vector<8x1024xf32>
    %750 = vector.extract_strided_slice %506 {offsets = [32, 0], sizes = [8, 512], strides = [1, 1]} : vector<64x1024xf32> to vector<8x512xf32>
    %751 = vector.extract_strided_slice %749 {offsets = [0, 0], sizes = [8, 512], strides = [1, 1]} : vector<8x1024xf32> to vector<8x512xf32>
    %752 = arith.addf %750, %751 : vector<8x512xf32>
    %753 = vector.extract_strided_slice %506 {offsets = [24, 512], sizes = [8, 512], strides = [1, 1]} : vector<64x1024xf32> to vector<8x512xf32>
    %754 = vector.extract_strided_slice %749 {offsets = [0, 512], sizes = [8, 512], strides = [1, 1]} : vector<8x1024xf32> to vector<8x512xf32>
    %755 = arith.addf %753, %754 : vector<8x512xf32>
    %756 = vector.extract_strided_slice %752 {offsets = [0, 0], sizes = [8, 128], strides = [1, 1]} : vector<8x512xf32> to vector<8x128xf32>
    %757 = arith.negf %756 : vector<8x128xf32>
    %758 = math.exp %757 : vector<8x128xf32>
    %cst_133 = arith.constant 1.000000e+00 : f32
    %759 = vector.broadcast %cst_133 : f32 to vector<8x128xf32>
    %760 = arith.addf %759, %758 : vector<8x128xf32>
    %761 = arith.divf %759, %760 : vector<8x128xf32>
    %762 = vector.extract_strided_slice %752 {offsets = [0, 128], sizes = [8, 128], strides = [1, 1]} : vector<8x512xf32> to vector<8x128xf32>
    %763 = arith.negf %762 : vector<8x128xf32>
    %764 = math.exp %763 : vector<8x128xf32>
    %cst_134 = arith.constant 1.000000e+00 : f32
    %765 = vector.broadcast %cst_134 : f32 to vector<8x128xf32>
    %766 = arith.addf %765, %764 : vector<8x128xf32>
    %767 = arith.divf %765, %766 : vector<8x128xf32>
    %768 = vector.extract_strided_slice %752 {offsets = [0, 256], sizes = [8, 128], strides = [1, 1]} : vector<8x512xf32> to vector<8x128xf32>
    %769 = math.tanh %768 : vector<8x128xf32>
    %770 = vector.extract_strided_slice %752 {offsets = [0, 384], sizes = [8, 128], strides = [1, 1]} : vector<8x512xf32> to vector<8x128xf32>
    %771 = arith.negf %770 : vector<8x128xf32>
    %772 = math.exp %771 : vector<8x128xf32>
    %cst_135 = arith.constant 1.000000e+00 : f32
    %773 = vector.broadcast %cst_135 : f32 to vector<8x128xf32>
    %774 = arith.addf %773, %772 : vector<8x128xf32>
    %775 = arith.divf %773, %774 : vector<8x128xf32>
    %776 = arith.mulf %767, %719 : vector<8x128xf32>
    %777 = arith.mulf %761, %769 : vector<8x128xf32>
    %778 = arith.addf %776, %777 : vector<8x128xf32>
    %779 = math.tanh %778 : vector<8x128xf32>
    %780 = arith.mulf %775, %779 : vector<8x128xf32>
    %781 = vector.extract_strided_slice %755 {offsets = [0, 0], sizes = [8, 128], strides = [1, 1]} : vector<8x512xf32> to vector<8x128xf32>
    %782 = arith.negf %781 : vector<8x128xf32>
    %783 = math.exp %782 : vector<8x128xf32>
    %cst_136 = arith.constant 1.000000e+00 : f32
    %784 = vector.broadcast %cst_136 : f32 to vector<8x128xf32>
    %785 = arith.addf %784, %783 : vector<8x128xf32>
    %786 = arith.divf %784, %785 : vector<8x128xf32>
    %787 = vector.extract_strided_slice %755 {offsets = [0, 128], sizes = [8, 128], strides = [1, 1]} : vector<8x512xf32> to vector<8x128xf32>
    %788 = arith.negf %787 : vector<8x128xf32>
    %789 = math.exp %788 : vector<8x128xf32>
    %cst_137 = arith.constant 1.000000e+00 : f32
    %790 = vector.broadcast %cst_137 : f32 to vector<8x128xf32>
    %791 = arith.addf %790, %789 : vector<8x128xf32>
    %792 = arith.divf %790, %791 : vector<8x128xf32>
    %793 = vector.extract_strided_slice %755 {offsets = [0, 256], sizes = [8, 128], strides = [1, 1]} : vector<8x512xf32> to vector<8x128xf32>
    %794 = math.tanh %793 : vector<8x128xf32>
    %795 = vector.extract_strided_slice %755 {offsets = [0, 384], sizes = [8, 128], strides = [1, 1]} : vector<8x512xf32> to vector<8x128xf32>
    %796 = arith.negf %795 : vector<8x128xf32>
    %797 = math.exp %796 : vector<8x128xf32>
    %cst_138 = arith.constant 1.000000e+00 : f32
    %798 = vector.broadcast %cst_138 : f32 to vector<8x128xf32>
    %799 = arith.addf %798, %797 : vector<8x128xf32>
    %800 = arith.divf %798, %799 : vector<8x128xf32>
    %801 = arith.mulf %792, %744 : vector<8x128xf32>
    %802 = arith.mulf %786, %794 : vector<8x128xf32>
    %803 = arith.addf %801, %802 : vector<8x128xf32>
    %804 = math.tanh %803 : vector<8x128xf32>
    %805 = arith.mulf %800, %804 : vector<8x128xf32>
    %806 = tpu.concatenate %780, %805 in 1 : vector<8x128xf32>, vector<8x128xf32> -> vector<8x256xf32>
    %807 = arith.truncf %806 : vector<8x256xf32> to vector<8x256xbf16>
    %cst_139 = arith.constant dense<0.000000e+00> : vector<8x1024xf32>
    %808 = tpu.matmul %807, %502, %cst_139 {dimension_numbers = #tpu.dot_dimension_numbers<[1], [0], [0], [1], [0, 0, 1, 1], [], []>} : vector<8x256xbf16>, vector<256x1024xbf16>, vector<8x1024xf32> -> vector<8x1024xf32>
    %809 = vector.extract_strided_slice %506 {offsets = [40, 0], sizes = [8, 512], strides = [1, 1]} : vector<64x1024xf32> to vector<8x512xf32>
    %810 = vector.extract_strided_slice %808 {offsets = [0, 0], sizes = [8, 512], strides = [1, 1]} : vector<8x1024xf32> to vector<8x512xf32>
    %811 = arith.addf %809, %810 : vector<8x512xf32>
    %812 = vector.extract_strided_slice %506 {offsets = [16, 512], sizes = [8, 512], strides = [1, 1]} : vector<64x1024xf32> to vector<8x512xf32>
    %813 = vector.extract_strided_slice %808 {offsets = [0, 512], sizes = [8, 512], strides = [1, 1]} : vector<8x1024xf32> to vector<8x512xf32>
    %814 = arith.addf %812, %813 : vector<8x512xf32>
    %815 = vector.extract_strided_slice %811 {offsets = [0, 0], sizes = [8, 128], strides = [1, 1]} : vector<8x512xf32> to vector<8x128xf32>
    %816 = arith.negf %815 : vector<8x128xf32>
    %817 = math.exp %816 : vector<8x128xf32>
    %cst_140 = arith.constant 1.000000e+00 : f32
    %818 = vector.broadcast %cst_140 : f32 to vector<8x128xf32>
    %819 = arith.addf %818, %817 : vector<8x128xf32>
    %820 = arith.divf %818, %819 : vector<8x128xf32>
    %821 = vector.extract_strided_slice %811 {offsets = [0, 128], sizes = [8, 128], strides = [1, 1]} : vector<8x512xf32> to vector<8x128xf32>
    %822 = arith.negf %821 : vector<8x128xf32>
    %823 = math.exp %822 : vector<8x128xf32>
    %cst_141 = arith.constant 1.000000e+00 : f32
    %824 = vector.broadcast %cst_141 : f32 to vector<8x128xf32>
    %825 = arith.addf %824, %823 : vector<8x128xf32>
    %826 = arith.divf %824, %825 : vector<8x128xf32>
    %827 = vector.extract_strided_slice %811 {offsets = [0, 256], sizes = [8, 128], strides = [1, 1]} : vector<8x512xf32> to vector<8x128xf32>
    %828 = math.tanh %827 : vector<8x128xf32>
    %829 = vector.extract_strided_slice %811 {offsets = [0, 384], sizes = [8, 128], strides = [1, 1]} : vector<8x512xf32> to vector<8x128xf32>
    %830 = arith.negf %829 : vector<8x128xf32>
    %831 = math.exp %830 : vector<8x128xf32>
    %cst_142 = arith.constant 1.000000e+00 : f32
    %832 = vector.broadcast %cst_142 : f32 to vector<8x128xf32>
    %833 = arith.addf %832, %831 : vector<8x128xf32>
    %834 = arith.divf %832, %833 : vector<8x128xf32>
    %835 = arith.mulf %826, %778 : vector<8x128xf32>
    %836 = arith.mulf %820, %828 : vector<8x128xf32>
    %837 = arith.addf %835, %836 : vector<8x128xf32>
    %838 = math.tanh %837 : vector<8x128xf32>
    %839 = arith.mulf %834, %838 : vector<8x128xf32>
    %840 = vector.extract_strided_slice %814 {offsets = [0, 0], sizes = [8, 128], strides = [1, 1]} : vector<8x512xf32> to vector<8x128xf32>
    %841 = arith.negf %840 : vector<8x128xf32>
    %842 = math.exp %841 : vector<8x128xf32>
    %cst_143 = arith.constant 1.000000e+00 : f32
    %843 = vector.broadcast %cst_143 : f32 to vector<8x128xf32>
    %844 = arith.addf %843, %842 : vector<8x128xf32>
    %845 = arith.divf %843, %844 : vector<8x128xf32>
    %846 = vector.extract_strided_slice %814 {offsets = [0, 128], sizes = [8, 128], strides = [1, 1]} : vector<8x512xf32> to vector<8x128xf32>
    %847 = arith.negf %846 : vector<8x128xf32>
    %848 = math.exp %847 : vector<8x128xf32>
    %cst_144 = arith.constant 1.000000e+00 : f32
    %849 = vector.broadcast %cst_144 : f32 to vector<8x128xf32>
    %850 = arith.addf %849, %848 : vector<8x128xf32>
    %851 = arith.divf %849, %850 : vector<8x128xf32>
    %852 = vector.extract_strided_slice %814 {offsets = [0, 256], sizes = [8, 128], strides = [1, 1]} : vector<8x512xf32> to vector<8x128xf32>
    %853 = math.tanh %852 : vector<8x128xf32>
    %854 = vector.extract_strided_slice %814 {offsets = [0, 384], sizes = [8, 128], strides = [1, 1]} : vector<8x512xf32> to vector<8x128xf32>
    %855 = arith.negf %854 : vector<8x128xf32>
    %856 = math.exp %855 : vector<8x128xf32>
    %cst_145 = arith.constant 1.000000e+00 : f32
    %857 = vector.broadcast %cst_145 : f32 to vector<8x128xf32>
    %858 = arith.addf %857, %856 : vector<8x128xf32>
    %859 = arith.divf %857, %858 : vector<8x128xf32>
    %860 = arith.mulf %851, %803 : vector<8x128xf32>
    %861 = arith.mulf %845, %853 : vector<8x128xf32>
    %862 = arith.addf %860, %861 : vector<8x128xf32>
    %863 = math.tanh %862 : vector<8x128xf32>
    %864 = arith.mulf %859, %863 : vector<8x128xf32>
    %865 = tpu.concatenate %839, %864 in 1 : vector<8x128xf32>, vector<8x128xf32> -> vector<8x256xf32>
    %866 = arith.truncf %865 : vector<8x256xf32> to vector<8x256xbf16>
    %cst_146 = arith.constant dense<0.000000e+00> : vector<8x1024xf32>
    %867 = tpu.matmul %866, %502, %cst_146 {dimension_numbers = #tpu.dot_dimension_numbers<[1], [0], [0], [1], [0, 0, 1, 1], [], []>} : vector<8x256xbf16>, vector<256x1024xbf16>, vector<8x1024xf32> -> vector<8x1024xf32>
    %868 = vector.extract_strided_slice %506 {offsets = [48, 0], sizes = [8, 512], strides = [1, 1]} : vector<64x1024xf32> to vector<8x512xf32>
    %869 = vector.extract_strided_slice %867 {offsets = [0, 0], sizes = [8, 512], strides = [1, 1]} : vector<8x1024xf32> to vector<8x512xf32>
    %870 = arith.addf %868, %869 : vector<8x512xf32>
    %871 = vector.extract_strided_slice %506 {offsets = [8, 512], sizes = [8, 512], strides = [1, 1]} : vector<64x1024xf32> to vector<8x512xf32>
    %872 = vector.extract_strided_slice %867 {offsets = [0, 512], sizes = [8, 512], strides = [1, 1]} : vector<8x1024xf32> to vector<8x512xf32>
    %873 = arith.addf %871, %872 : vector<8x512xf32>
    %874 = vector.extract_strided_slice %870 {offsets = [0, 0], sizes = [8, 128], strides = [1, 1]} : vector<8x512xf32> to vector<8x128xf32>
    %875 = arith.negf %874 : vector<8x128xf32>
    %876 = math.exp %875 : vector<8x128xf32>
    %cst_147 = arith.constant 1.000000e+00 : f32
    %877 = vector.broadcast %cst_147 : f32 to vector<8x128xf32>
    %878 = arith.addf %877, %876 : vector<8x128xf32>
    %879 = arith.divf %877, %878 : vector<8x128xf32>
    %880 = vector.extract_strided_slice %870 {offsets = [0, 128], sizes = [8, 128], strides = [1, 1]} : vector<8x512xf32> to vector<8x128xf32>
    %881 = arith.negf %880 : vector<8x128xf32>
    %882 = math.exp %881 : vector<8x128xf32>
    %cst_148 = arith.constant 1.000000e+00 : f32
    %883 = vector.broadcast %cst_148 : f32 to vector<8x128xf32>
    %884 = arith.addf %883, %882 : vector<8x128xf32>
    %885 = arith.divf %883, %884 : vector<8x128xf32>
    %886 = vector.extract_strided_slice %870 {offsets = [0, 256], sizes = [8, 128], strides = [1, 1]} : vector<8x512xf32> to vector<8x128xf32>
    %887 = math.tanh %886 : vector<8x128xf32>
    %888 = vector.extract_strided_slice %870 {offsets = [0, 384], sizes = [8, 128], strides = [1, 1]} : vector<8x512xf32> to vector<8x128xf32>
    %889 = arith.negf %888 : vector<8x128xf32>
    %890 = math.exp %889 : vector<8x128xf32>
    %cst_149 = arith.constant 1.000000e+00 : f32
    %891 = vector.broadcast %cst_149 : f32 to vector<8x128xf32>
    %892 = arith.addf %891, %890 : vector<8x128xf32>
    %893 = arith.divf %891, %892 : vector<8x128xf32>
    %894 = arith.mulf %885, %837 : vector<8x128xf32>
    %895 = arith.mulf %879, %887 : vector<8x128xf32>
    %896 = arith.addf %894, %895 : vector<8x128xf32>
    %897 = math.tanh %896 : vector<8x128xf32>
    %898 = arith.mulf %893, %897 : vector<8x128xf32>
    %899 = vector.extract_strided_slice %873 {offsets = [0, 0], sizes = [8, 128], strides = [1, 1]} : vector<8x512xf32> to vector<8x128xf32>
    %900 = arith.negf %899 : vector<8x128xf32>
    %901 = math.exp %900 : vector<8x128xf32>
    %cst_150 = arith.constant 1.000000e+00 : f32
    %902 = vector.broadcast %cst_150 : f32 to vector<8x128xf32>
    %903 = arith.addf %902, %901 : vector<8x128xf32>
    %904 = arith.divf %902, %903 : vector<8x128xf32>
    %905 = vector.extract_strided_slice %873 {offsets = [0, 128], sizes = [8, 128], strides = [1, 1]} : vector<8x512xf32> to vector<8x128xf32>
    %906 = arith.negf %905 : vector<8x128xf32>
    %907 = math.exp %906 : vector<8x128xf32>
    %cst_151 = arith.constant 1.000000e+00 : f32
    %908 = vector.broadcast %cst_151 : f32 to vector<8x128xf32>
    %909 = arith.addf %908, %907 : vector<8x128xf32>
    %910 = arith.divf %908, %909 : vector<8x128xf32>
    %911 = vector.extract_strided_slice %873 {offsets = [0, 256], sizes = [8, 128], strides = [1, 1]} : vector<8x512xf32> to vector<8x128xf32>
    %912 = math.tanh %911 : vector<8x128xf32>
    %913 = vector.extract_strided_slice %873 {offsets = [0, 384], sizes = [8, 128], strides = [1, 1]} : vector<8x512xf32> to vector<8x128xf32>
    %914 = arith.negf %913 : vector<8x128xf32>
    %915 = math.exp %914 : vector<8x128xf32>
    %cst_152 = arith.constant 1.000000e+00 : f32
    %916 = vector.broadcast %cst_152 : f32 to vector<8x128xf32>
    %917 = arith.addf %916, %915 : vector<8x128xf32>
    %918 = arith.divf %916, %917 : vector<8x128xf32>
    %919 = arith.mulf %910, %862 : vector<8x128xf32>
    %920 = arith.mulf %904, %912 : vector<8x128xf32>
    %921 = arith.addf %919, %920 : vector<8x128xf32>
    %922 = math.tanh %921 : vector<8x128xf32>
    %923 = arith.mulf %918, %922 : vector<8x128xf32>
    %924 = tpu.concatenate %898, %923 in 1 : vector<8x128xf32>, vector<8x128xf32> -> vector<8x256xf32>
    %925 = arith.truncf %924 : vector<8x256xf32> to vector<8x256xbf16>
    %cst_153 = arith.constant dense<0.000000e+00> : vector<8x1024xf32>
    %926 = tpu.matmul %925, %502, %cst_153 {dimension_numbers = #tpu.dot_dimension_numbers<[1], [0], [0], [1], [0, 0, 1, 1], [], []>} : vector<8x256xbf16>, vector<256x1024xbf16>, vector<8x1024xf32> -> vector<8x1024xf32>
    %927 = vector.extract_strided_slice %506 {offsets = [56, 0], sizes = [8, 512], strides = [1, 1]} : vector<64x1024xf32> to vector<8x512xf32>
    %928 = vector.extract_strided_slice %926 {offsets = [0, 0], sizes = [8, 512], strides = [1, 1]} : vector<8x1024xf32> to vector<8x512xf32>
    %929 = arith.addf %927, %928 : vector<8x512xf32>
    %930 = vector.extract_strided_slice %929 {offsets = [0, 0], sizes = [8, 128], strides = [1, 1]} : vector<8x512xf32> to vector<8x128xf32>
    %931 = arith.negf %930 : vector<8x128xf32>
    %932 = math.exp %931 : vector<8x128xf32>
    %cst_154 = arith.constant 1.000000e+00 : f32
    %933 = vector.broadcast %cst_154 : f32 to vector<8x128xf32>
    %934 = arith.addf %933, %932 : vector<8x128xf32>
    %935 = arith.divf %933, %934 : vector<8x128xf32>
    %936 = vector.extract_strided_slice %929 {offsets = [0, 128], sizes = [8, 128], strides = [1, 1]} : vector<8x512xf32> to vector<8x128xf32>
    %937 = arith.negf %936 : vector<8x128xf32>
    %938 = math.exp %937 : vector<8x128xf32>
    %cst_155 = arith.constant 1.000000e+00 : f32
    %939 = vector.broadcast %cst_155 : f32 to vector<8x128xf32>
    %940 = arith.addf %939, %938 : vector<8x128xf32>
    %941 = arith.divf %939, %940 : vector<8x128xf32>
    %942 = vector.extract_strided_slice %929 {offsets = [0, 256], sizes = [8, 128], strides = [1, 1]} : vector<8x512xf32> to vector<8x128xf32>
    %943 = math.tanh %942 : vector<8x128xf32>
    %944 = vector.extract_strided_slice %929 {offsets = [0, 384], sizes = [8, 128], strides = [1, 1]} : vector<8x512xf32> to vector<8x128xf32>
    %945 = arith.negf %944 : vector<8x128xf32>
    %946 = math.exp %945 : vector<8x128xf32>
    %cst_156 = arith.constant 1.000000e+00 : f32
    %947 = vector.broadcast %cst_156 : f32 to vector<8x128xf32>
    %948 = arith.addf %947, %946 : vector<8x128xf32>
    %949 = arith.divf %947, %948 : vector<8x128xf32>
    %950 = arith.mulf %941, %896 : vector<8x128xf32>
    %951 = arith.mulf %935, %943 : vector<8x128xf32>
    %952 = arith.addf %950, %951 : vector<8x128xf32>
    %953 = math.tanh %952 : vector<8x128xf32>
    %954 = arith.mulf %949, %953 : vector<8x128xf32>
    %955 = tpu.concatenate %954, %569 in 1 : vector<8x128xf32>, vector<8x128xf32> -> vector<8x256xf32>
    %956 = arith.truncf %955 : vector<8x256xf32> to vector<8x256xbf16>
    %c0_157 = arith.constant 0 : index
    %c0_158 = arith.constant 0 : index
    %957 = vector.load %arg7[%c0_157, %c0_158] : memref<256x128xbf16, #tpu.memory_space<vmem>>, vector<256x128xbf16>
    %cst_159 = arith.constant dense<0.000000e+00> : vector<8x128xf32>
    %958 = tpu.matmul %956, %957, %cst_159 {dimension_numbers = #tpu.dot_dimension_numbers<[1], [0], [0], [1], [0, 0, 1, 1], [], []>} : vector<8x256xbf16>, vector<256x128xbf16>, vector<8x128xf32> -> vector<8x128xf32>
    %c0_160 = arith.constant 0 : index
    %c0_161 = arith.constant 0 : index
    %959 = vector.load %arg8[%c0_160, %c0_161] : memref<1x128xf32, #tpu.memory_space<vmem>>, vector<1x128xf32>
    %960 = vector.broadcast %959 : vector<1x128xf32> to vector<8x128xf32>
    %961 = arith.addf %958, %960 : vector<8x128xf32>
    %c0_162 = arith.constant 0 : index
    %c0_163 = arith.constant 0 : index
    %962 = vector.load %arg9[%c0_162, %c0_163] : memref<8x128xf32, #tpu.memory_space<vmem>>, vector<8x128xf32>
    tpu.vector_store %arg9[%c0_162, %c0_163], %961 {strides = array<i32>} : memref<8x128xf32, #tpu.memory_space<vmem>>, vector<8x128xf32>,
    return
  }
}

</mosaic_0001>

<llo_original>
// kernel: lstm_model_forward.1
$region0: #{lstm_model_forward.1}
  #allocation0 [shape = 'u32[]', space=smem, size = 0x4, offset = 0x4, fixed_abs, tag = 'smem constant byte address 0x4 - core index']
  #allocation1 [shape = 'u32[144,128]{1,0:T(1,128)}', space=vmem, size = 0x12000, scoped, tag = 'internal scratch']
  #allocation2 [shape = 'f32[64,256]{1,0:T(8,128)}', space=vmem, size = 0x10000, scoped, tag = 'scratch operand']
  %s0 = inlined_call_operand.vmem [shape: bf16[64,4], index: 0, kind: input, shape index: {}]
  %s1 = inlined_call_operand.vmem [shape: bf16[4,1024], index: 1, kind: input, shape index: {}]
  %s2 = inlined_call_operand.hbm [shape: bf16[256,1024], index: 2, kind: input, shape index: {}]
  %s3 = inlined_call_operand.vmem [shape: f32[1,1024], index: 3, kind: input, shape index: {}]
  %s4 = inlined_call_operand.hbm [shape: bf16[256,1024], index: 4, kind: input, shape index: {}]
  %s5 = inlined_call_operand.hbm [shape: bf16[256,1024], index: 5, kind: input, shape index: {}]
  %s6 = inlined_call_operand.vmem [shape: f32[1,1024], index: 6, kind: input, shape index: {}]
  %s7 = inlined_call_operand.hbm [shape: bf16[256,128], index: 7, kind: input, shape index: {}]
  %s8 = inlined_call_operand.vmem [shape: f32[1,128], index: 8, kind: input, shape index: {}]
  %s9 = inlined_call_operand.vmem [shape: f32[8,128], index: 9, kind: output, shape index: {}]
  %s10 = sld [smem:[#allocation0]]
  $region62: #{lstm_model_forward.1} parent=0
    _
  %s12 = ssub.s32 1, %s10
  %s13 = scalar_select 0, %s12, %s10
  $region1: #{lstm_model_forward.1} parent=0
    #allocation3 [shape = 'u8[524288]{0}', space=vmem, size = 0x80000, scoped, tag = 'input window, operand 2, single buffered']
    #allocation4 [shape = 's32[1]{0}', space=sflag, size = 0x4, scoped, tag = 'scoped memory for lstm_model_forward.1']
    #allocation5 [shape = 'u8[524288]{0}', space=vmem, size = 0x80000, scoped, tag = 'input window, operand 4, single buffered']
    #allocation6 [shape = 's32[1]{0}', space=sflag, size = 0x4, scoped, tag = 'scoped memory for lstm_model_forward.1']
    #allocation7 [shape = 'u8[524288]{0}', space=vmem, size = 0x80000, scoped, tag = 'input window, operand 5, single buffered']
    #allocation8 [shape = 'u8[65536]{0}', space=vmem, size = 0x10000, scoped, tag = 'input window, operand 7, single buffered']
    #allocation9 [shape = 's32[1]{0}', space=sflag, size = 0x4, scoped, tag = 'scoped memory for lstm_model_forward.1']
    %14 = vsyncpa [#allocation4], 0
    %15 = vsyncpa [#allocation6], 0
    %16 = vsyncpa [#allocation9], 0
    // Predicated region
    $region2: #{lstm_model_forward.1} parent=1 // pred_check
      _
    $region3: #{lstm_model_forward.1} parent=1 // pred_check_branch
      %18 = sbr.rel (0) target = $region5
    $region4: #{lstm_model_forward.1} parent=1 // pred_region
      _
    $region5: #{lstm_model_forward.1} parent=1 // pred_fallthru
      _
    // Predicated region
    $region6: #{lstm_model_forward.1} parent=1 // pred_check
      _
    $region7: #{lstm_model_forward.1} parent=1 // pred_check_branch
      %20 = sbr.rel (0) target = $region9
    $region8: #{lstm_model_forward.1} parent=1 // pred_region
      _
    $region9: #{lstm_model_forward.1} parent=1 // pred_fallthru
      _
    // Predicated region
    $region10: #{lstm_model_forward.1} parent=1 // pred_check
      _
    $region11: #{lstm_model_forward.1} parent=1 // pred_check_branch
      %22 = sbr.rel (0) target = $region13
    $region12: #{lstm_model_forward.1} parent=1 // pred_region
      %s24 = ssub.s32 16384, 16384
      %25 = vsyncadd [#allocation4], %s24
      %s26 = sshll.u32 [#allocation3], 4
      %s27 = int_to_ptr.vmem [resolvable:$true] %s26
      %32 = dma.hbm_to_vmem [thread:$0]  %s2, 16384, %s27, [#allocation4], 512, 512, 32
    $region13: #{lstm_model_forward.1} parent=1 // pred_fallthru
      _
    // Predicated region
    $region14: #{lstm_model_forward.1} parent=1 // pred_check
      _
    $region15: #{lstm_model_forward.1} parent=1 // pred_check_branch
      %34 = sbr.rel (0) target = $region17
    $region16: #{lstm_model_forward.1} parent=1 // pred_region
      _
    $region17: #{lstm_model_forward.1} parent=1 // pred_fallthru
      _
    // Predicated region
    $region18: #{lstm_model_forward.1} parent=1 // pred_check
      _
    $region19: #{lstm_model_forward.1} parent=1 // pred_check_branch
      %36 = sbr.rel (0) target = $region21
    $region20: #{lstm_model_forward.1} parent=1 // pred_region
      %s38 = ssub.s32 16384, 16384
      %39 = vsyncadd [#allocation6], %s38
      %s40 = sshll.u32 [#allocation5], 4
      %s41 = int_to_ptr.vmem [resolvable:$true] %s40
      %46 = dma.hbm_to_vmem [thread:$0]  %s4, 16384, %s41, [#allocation6], 512, 512, 32
    $region21: #{lstm_model_forward.1} parent=1 // pred_fallthru
      _
    // Predicated region
    $region22: #{lstm_model_forward.1} parent=1 // pred_check
      _
    $region23: #{lstm_model_forward.1} parent=1 // pred_check_branch
      %48 = sbr.rel (0) target = $region25
    $region24: #{lstm_model_forward.1} parent=1 // pred_region
      %s50 = ssub.s32 16384, 16384
      %51 = vsyncadd [#allocation6], %s50
      %s52 = sshll.u32 [#allocation7], 4
      %s53 = int_to_ptr.vmem [resolvable:$true] %s52
      %58 = dma.hbm_to_vmem [thread:$0]  %s5, 16384, %s53, [#allocation6], 512, 512, 32
    $region25: #{lstm_model_forward.1} parent=1 // pred_fallthru
      _
    // Predicated region
    $region26: #{lstm_model_forward.1} parent=1 // pred_check
      _
    $region27: #{lstm_model_forward.1} parent=1 // pred_check_branch
      %60 = sbr.rel (0) target = $region29
    $region28: #{lstm_model_forward.1} parent=1 // pred_region
      _
    $region29: #{lstm_model_forward.1} parent=1 // pred_fallthru
      _
    // Predicated region
    $region30: #{lstm_model_forward.1} parent=1 // pred_check
      _
    $region31: #{lstm_model_forward.1} parent=1 // pred_check_branch
      %62 = sbr.rel (0) target = $region33
    $region32: #{lstm_model_forward.1} parent=1 // pred_region
      %s64 = ssub.s32 2048, 2048
      %65 = vsyncadd [#allocation9], %s64
      %s66 = sshll.u32 [#allocation8], 4
      %s67 = int_to_ptr.vmem [resolvable:$true] %s66
      %72 = dma.hbm_to_vmem [thread:$0]  %s7, 2048, %s67, [#allocation9], 64, 64, 4
    $region33: #{lstm_model_forward.1} parent=1 // pred_fallthru
      _
    // Predicated region
    $region34: #{lstm_model_forward.1} parent=1 // pred_check
      _
    $region35: #{lstm_model_forward.1} parent=1 // pred_check_branch
      %74 = sbr.rel (0) target = $region37
    $region36: #{lstm_model_forward.1} parent=1 // pred_region
      _
    $region37: #{lstm_model_forward.1} parent=1 // pred_fallthru
      _
    // Predicated region
    $region38: #{lstm_model_forward.1} parent=1 // pred_check
      _
    $region39: #{lstm_model_forward.1} parent=1 // pred_check_branch
      %76 = sbr.rel (0) target = $region41
    $region40: #{lstm_model_forward.1} parent=1 // pred_region
      %77 = dma.done [#allocation4], 16384
    $region41: #{lstm_model_forward.1} parent=1 // pred_fallthru
      _
    // Predicated region
    $region42: #{lstm_model_forward.1} parent=1 // pred_check
      _
    $region43: #{lstm_model_forward.1} parent=1 // pred_check_branch
      %79 = sbr.rel (0) target = $region45
    $region44: #{lstm_model_forward.1} parent=1 // pred_region
      %80 = dma.done [#allocation6], 16384
    $region45: #{lstm_model_forward.1} parent=1 // pred_fallthru
      _
    // Predicated region
    $region46: #{lstm_model_forward.1} parent=1 // pred_check
      _
    $region47: #{lstm_model_forward.1} parent=1 // pred_check_branch
      %82 = sbr.rel (0) target = $region49
    $region48: #{lstm_model_forward.1} parent=1 // pred_region
      %83 = dma.done [#allocation6], 16384
    $region49: #{lstm_model_forward.1} parent=1 // pred_fallthru
      _
    // Predicated region
    $region50: #{lstm_model_forward.1} parent=1 // pred_check
      _
    $region51: #{lstm_model_forward.1} parent=1 // pred_check_branch
      %85 = sbr.rel (0) target = $region53
    $region52: #{lstm_model_forward.1} parent=1 // pred_region
      %86 = dma.done [#allocation9], 2048
    $region53: #{lstm_model_forward.1} parent=1 // pred_fallthru
      _
    %v88 = vld [vmem:[%s0] sm:$0xf]
    %v89 = vld [vmem:[%s0 + $0x4] sm:$0xf]
    %v90 = vld [vmem:[%s0 + $0x8] sm:$0xf]
    %v91 = vld [vmem:[%s0 + $0xc] sm:$0xf]
    %v92 = vld [vmem:[%s0 + $0x10] sm:$0xf]
    %v93 = vld [vmem:[%s0 + $0x14] sm:$0xf]
    %v94 = vld [vmem:[%s0 + $0x18] sm:$0xf]
    %v95 = vld [vmem:[%s0 + $0x1c] sm:$0xf]
    %v96 = vld [vmem:[%s1] sm:$0xff]
    %v97 = vld [vmem:[%s1 + $0x8] sm:$0xff]
    %v98 = vld [vmem:[#allocation3] sm:$0xff]
    %v99 = vld [vmem:[#allocation3 + $0x8] sm:$0xff]
    %v100 = vld [vmem:[#allocation3 + $0x10] sm:$0xff]
    %v101 = vld [vmem:[#allocation3 + $0x18] sm:$0xff]
    %v102 = vld [vmem:[#allocation3 + $0x20] sm:$0xff]
    %v103 = vld [vmem:[#allocation3 + $0x28] sm:$0xff]
    %v104 = vld [vmem:[#allocation3 + $0x30] sm:$0xff]
    %v105 = vld [vmem:[#allocation3 + $0x38] sm:$0xff]
    %v106 = vld [vmem:[#allocation3 + $0x40] sm:$0xff]
    %v107 = vld [vmem:[#allocation3 + $0x48] sm:$0xff]
    %v108 = vld [vmem:[#allocation3 + $0x50] sm:$0xff]
    %v109 = vld [vmem:[#allocation3 + $0x58] sm:$0xff]
    %v110 = vld [vmem:[#allocation3 + $0x60] sm:$0xff]
    %v111 = vld [vmem:[#allocation3 + $0x68] sm:$0xff]
    %v112 = vld [vmem:[#allocation3 + $0x70] sm:$0xff]
    %v113 = vld [vmem:[#allocation3 + $0x78] sm:$0xff]
    %v114 = vld [vmem:[#allocation3 + $0x80] sm:$0xff]
    %v115 = vld [vmem:[#allocation3 + $0x88] sm:$0xff]
    %v116 = vld [vmem:[#allocation3 + $0x90] sm:$0xff]
    %v117 = vld [vmem:[#allocation3 + $0x98] sm:$0xff]
    %v118 = vld [vmem:[#allocation3 + $0xa0] sm:$0xff]
    %v119 = vld [vmem:[#allocation3 + $0xa8] sm:$0xff]
    %v120 = vld [vmem:[#allocation3 + $0xb0] sm:$0xff]
    %v121 = vld [vmem:[#allocation3 + $0xb8] sm:$0xff]
    %v122 = vld [vmem:[#allocation3 + $0xc0] sm:$0xff]
    %v123 = vld [vmem:[#allocation3 + $0xc8] sm:$0xff]
    %v124 = vld [vmem:[#allocation3 + $0xd0] sm:$0xff]
    %v125 = vld [vmem:[#allocation3 + $0xd8] sm:$0xff]
    %v126 = vld [vmem:[#allocation3 + $0xe0] sm:$0xff]
    %v127 = vld [vmem:[#allocation3 + $0xe8] sm:$0xff]
    %v128 = vld [vmem:[#allocation3 + $0xf0] sm:$0xff]
    %v129 = vld [vmem:[#allocation3 + $0xf8] sm:$0xff]
    %v130 = vld [vmem:[#allocation3 + $0x100] sm:$0xff]
    %v131 = vld [vmem:[#allocation3 + $0x108] sm:$0xff]
    %v132 = vld [vmem:[#allocation3 + $0x110] sm:$0xff]
    %v133 = vld [vmem:[#allocation3 + $0x118] sm:$0xff]
    %v134 = vld [vmem:[#allocation3 + $0x120] sm:$0xff]
    %v135 = vld [vmem:[#allocation3 + $0x128] sm:$0xff]
    %v136 = vld [vmem:[#allocation3 + $0x130] sm:$0xff]
    %v137 = vld [vmem:[#allocation3 + $0x138] sm:$0xff]
    %v138 = vld [vmem:[#allocation3 + $0x140] sm:$0xff]
    %v139 = vld [vmem:[#allocation3 + $0x148] sm:$0xff]
    %v140 = vld [vmem:[#allocation3 + $0x150] sm:$0xff]
    %v141 = vld [vmem:[#allocation3 + $0x158] sm:$0xff]
    %v142 = vld [vmem:[#allocation3 + $0x160] sm:$0xff]
    %v143 = vld [vmem:[#allocation3 + $0x168] sm:$0xff]
    %v144 = vld [vmem:[#allocation3 + $0x170] sm:$0xff]
    %v145 = vld [vmem:[#allocation3 + $0x178] sm:$0xff]
    %v146 = vld [vmem:[#allocation3 + $0x180] sm:$0xff]
    %v147 = vld [vmem:[#allocation3 + $0x188] sm:$0xff]
    %v148 = vld [vmem:[#allocation3 + $0x190] sm:$0xff]
    %v149 = vld [vmem:[#allocation3 + $0x198] sm:$0xff]
    %v150 = vld [vmem:[#allocation3 + $0x1a0] sm:$0xff]
    %v151 = vld [vmem:[#allocation3 + $0x1a8] sm:$0xff]
    %v152 = vld [vmem:[#allocation3 + $0x1b0] sm:$0xff]
    %v153 = vld [vmem:[#allocation3 + $0x1b8] sm:$0xff]
    %v154 = vld [vmem:[#allocation3 + $0x1c0] sm:$0xff]
    %v155 = vld [vmem:[#allocation3 + $0x1c8] sm:$0xff]
    %v156 = vld [vmem:[#allocation3 + $0x1d0] sm:$0xff]
    %v157 = vld [vmem:[#allocation3 + $0x1d8] sm:$0xff]
    %v158 = vld [vmem:[#allocation3 + $0x1e0] sm:$0xff]
    %v159 = vld [vmem:[#allocation3 + $0x1e8] sm:$0xff]
    %v160 = vld [vmem:[#allocation3 + $0x1f0] sm:$0xff]
    %v161 = vld [vmem:[#allocation3 + $0x1f8] sm:$0xff]
    %v162 = vld [vmem:[#allocation3 + $0x200] sm:$0xff]
    %v163 = vld [vmem:[#allocation3 + $0x208] sm:$0xff]
    %v164 = vld [vmem:[#allocation3 + $0x210] sm:$0xff]
    %v165 = vld [vmem:[#allocation3 + $0x218] sm:$0xff]
    %v166 = vld [vmem:[#allocation3 + $0x220] sm:$0xff]
    %v167 = vld [vmem:[#allocation3 + $0x228] sm:$0xff]
    %v168 = vld [vmem:[#allocation3 + $0x230] sm:$0xff]
    %v169 = vld [vmem:[#allocation3 + $0x238] sm:$0xff]
    %v170 = vld [vmem:[#allocation3 + $0x240] sm:$0xff]
    %v171 = vld [vmem:[#allocation3 + $0x248] sm:$0xff]
    %v172 = vld [vmem:[#allocation3 + $0x250] sm:$0xff]
    %v173 = vld [vmem:[#allocation3 + $0x258] sm:$0xff]
    %v174 = vld [vmem:[#allocation3 + $0x260] sm:$0xff]
    %v175 = vld [vmem:[#allocation3 + $0x268] sm:$0xff]
    %v176 = vld [vmem:[#allocation3 + $0x270] sm:$0xff]
    %v177 = vld [vmem:[#allocation3 + $0x278] sm:$0xff]
    %v178 = vld [vmem:[#allocation3 + $0x280] sm:$0xff]
    %v179 = vld [vmem:[#allocation3 + $0x288] sm:$0xff]
    %v180 = vld [vmem:[#allocation3 + $0x290] sm:$0xff]
    %v181 = vld [vmem:[#allocation3 + $0x298] sm:$0xff]
    %v182 = vld [vmem:[#allocation3 + $0x2a0] sm:$0xff]
    %v183 = vld [vmem:[#allocation3 + $0x2a8] sm:$0xff]
    %v184 = vld [vmem:[#allocation3 + $0x2b0] sm:$0xff]
    %v185 = vld [vmem:[#allocation3 + $0x2b8] sm:$0xff]
    %v186 = vld [vmem:[#allocation3 + $0x2c0] sm:$0xff]
    %v187 = vld [vmem:[#allocation3 + $0x2c8] sm:$0xff]
    %v188 = vld [vmem:[#allocation3 + $0x2d0] sm:$0xff]
    %v189 = vld [vmem:[#allocation3 + $0x2d8] sm:$0xff]
    %v190 = vld [vmem:[#allocation3 + $0x2e0] sm:$0xff]
    %v191 = vld [vmem:[#allocation3 + $0x2e8] sm:$0xff]
    %v192 = vld [vmem:[#allocation3 + $0x2f0] sm:$0xff]
    %v193 = vld [vmem:[#allocation3 + $0x2f8] sm:$0xff]
    %v194 = vld [vmem:[#allocation3 + $0x300] sm:$0xff]
    %v195 = vld [vmem:[#allocation3 + $0x308] sm:$0xff]
    %v196 = vld [vmem:[#allocation3 + $0x310] sm:$0xff]
    %v197 = vld [vmem:[#allocation3 + $0x318] sm:$0xff]
    %v198 = vld [vmem:[#allocation3 + $0x320] sm:$0xff]
    %v199 = vld [vmem:[#allocation3 + $0x328] sm:$0xff]
    %v200 = vld [vmem:[#allocation3 + $0x330] sm:$0xff]
    %v201 = vld [vmem:[#allocation3 + $0x338] sm:$0xff]
    %v202 = vld [vmem:[#allocation3 + $0x340] sm:$0xff]
    %v203 = vld [vmem:[#allocation3 + $0x348] sm:$0xff]
    %v204 = vld [vmem:[#allocation3 + $0x350] sm:$0xff]
    %v205 = vld [vmem:[#allocation3 + $0x358] sm:$0xff]
    %v206 = vld [vmem:[#allocation3 + $0x360] sm:$0xff]
    %v207 = vld [vmem:[#allocation3 + $0x368] sm:$0xff]
    %v208 = vld [vmem:[#allocation3 + $0x370] sm:$0xff]
    %v209 = vld [vmem:[#allocation3 + $0x378] sm:$0xff]
    %v210 = vld [vmem:[#allocation3 + $0x380] sm:$0xff]
    %v211 = vld [vmem:[#allocation3 + $0x388] sm:$0xff]
    %v212 = vld [vmem:[#allocation3 + $0x390] sm:$0xff]
    %v213 = vld [vmem:[#allocation3 + $0x398] sm:$0xff]
    %v214 = vld [vmem:[#allocation3 + $0x3a0] sm:$0xff]
    %v215 = vld [vmem:[#allocation3 + $0x3a8] sm:$0xff]
    %v216 = vld [vmem:[#allocation3 + $0x3b0] sm:$0xff]
    %v217 = vld [vmem:[#allocation3 + $0x3b8] sm:$0xff]
    %v218 = vld [vmem:[#allocation3 + $0x3c0] sm:$0xff]
    %v219 = vld [vmem:[#allocation3 + $0x3c8] sm:$0xff]
    %v220 = vld [vmem:[#allocation3 + $0x3d0] sm:$0xff]
    %v221 = vld [vmem:[#allocation3 + $0x3d8] sm:$0xff]
    %v222 = vld [vmem:[#allocation3 + $0x3e0] sm:$0xff]
    %v223 = vld [vmem:[#allocation3 + $0x3e8] sm:$0xff]
    %v224 = vld [vmem:[#allocation3 + $0x3f0] sm:$0xff]
    %v225 = vld [vmem:[#allocation3 + $0x3f8] sm:$0xff]
    %v226 = vld [vmem:[%s3] sm:$0xff]
    %v228 = vlaneseq
    %v229 = vshrl.u32 %v228, 7
    %v230 = vsub.s32 0, %v229
    %v231 = vrot.slane %v226, %v230
    %v232 = vlaneseq
    %v233 = vshrl.u32 %v232, 7
    %v234 = vsub.s32 1, %v233
    %v235 = vrot.slane %v226, %v234
    %v236 = vlaneseq
    %v237 = vshrl.u32 %v236, 7
    %v238 = vsub.s32 2, %v237
    %v239 = vrot.slane %v226, %v238
    %v240 = vlaneseq
    %v241 = vshrl.u32 %v240, 7
    %v242 = vsub.s32 3, %v241
    %v243 = vrot.slane %v226, %v242
    %v244 = vlaneseq
    %v245 = vshrl.u32 %v244, 7
    %v246 = vsub.s32 4, %v245
    %v247 = vrot.slane %v226, %v246
    %v248 = vlaneseq
    %v249 = vshrl.u32 %v248, 7
    %v250 = vsub.s32 5, %v249
    %v251 = vrot.slane %v226, %v250
    %v252 = vlaneseq
    %v253 = vshrl.u32 %v252, 7
    %v254 = vsub.s32 6, %v253
    %v255 = vrot.slane %v226, %v254
    %v256 = vlaneseq
    %v257 = vshrl.u32 %v256, 7
    %v258 = vsub.s32 7, %v257
    %v259 = vrot.slane %v226, %v258
    %v276 = vunpack.c.l.b16 %v88
    %v277 = vunpack.c.l.b16 %v89
    %v278 = vunpack.c.l.b16 %v90
    %v279 = vunpack.c.l.b16 %v91
    %v280 = vunpack.c.l.b16 %v92
    %v281 = vunpack.c.l.b16 %v93
    %v282 = vunpack.c.l.b16 %v94
    %v283 = vunpack.c.l.b16 %v95
    %v284 = vpack.c.b16 %v277, %v276
    %v285 = vpack.c.b16 %v279, %v278
    %v286 = vpack.c.b16 %v281, %v280
    %v287 = vpack.c.b16 %v283, %v282
    %v290 = vcombine.high %v96, %v96
    %v292 = vunpack.c.l.s4 1983009808
    %v293 = vunpack.c.0.s8 %v292
    %v294 = vlaneseq
    %v295 = vshrl.u32 %v294, 7
    %v296 = vsub.s32 %v293, %v295
    %v297 = vrot.slane %v96, %v296
    %v299 = vunpack.c.l.s4 1983009808
    %v300 = vunpack.c.0.s8 %v299
    %v301 = vlaneseq
    %v302 = vshrl.u32 %v301, 7
    %v303 = vsub.s32 %v300, %v302
    %v304 = vrot.slane %v290, %v303
    %v305 = vcombine.high %v297, %v297
    %v306 = vcombine.high %v304, %v304
    %v307 = vcombine.high %v97, %v97
    %v309 = vunpack.c.l.s4 1983009808
    %v310 = vunpack.c.0.s8 %v309
    %v311 = vlaneseq
    %v312 = vshrl.u32 %v311, 7
    %v313 = vsub.s32 %v310, %v312
    %v314 = vrot.slane %v97, %v313
    %v316 = vunpack.c.l.s4 1983009808
    %v317 = vunpack.c.0.s8 %v316
    %v318 = vlaneseq
    %v319 = vshrl.u32 %v318, 7
    %v320 = vsub.s32 %v317, %v319
    %v321 = vrot.slane %v307, %v320
    %v322 = vcombine.high %v314, %v314
    %v323 = vcombine.high %v321, %v321
    %vm324 = vcmask 31744
    %v326 = vsel %vm324, %v284, 0
    %v329 = vsel %vm324, %v285, 0
    %v332 = vsel %vm324, %v286, 0
    %v335 = vsel %vm324, %v287, 0
    %vm337 = vcmask 1041408
    %v339 = vsel %vm337, %v297, 0
    %v342 = vsel %vm337, %v305, 0
    %v345 = vsel %vm337, %v304, 0
    %v348 = vsel %vm337, %v306, 0
    %v351 = vsel %vm337, %v314, 0
    %v354 = vsel %vm337, %v322, 0
    %v357 = vsel %vm337, %v321, 0
    %v360 = vsel %vm337, %v323, 0
    %362 = vmatprep.subr.bf16.mxu0 %v342
    %363 = vmatpush1.bf16.msra.mxu0 %v339
    %364 = vmatprep.subr.bf16.mxu0 0
    %365 = vmatpush1.bf16.msra.mxu0 0
    %366 = vmatprep.subr.bf16.mxu0 0
    %367 = vmatpush1.bf16.msra.mxu0 0
    %368 = vmatprep.subr.bf16.mxu0 0
    %369 = vmatpush1.bf16.msra.mxu0 0
    %370 = vmatprep.subr.bf16.mxu0 0
    %371 = vmatpush1.bf16.msra.mxu0 0
    %372 = vmatprep.subr.bf16.mxu0 0
    %373 = vmatpush1.bf16.msra.mxu0 0
    %374 = vmatprep.subr.bf16.mxu0 0
    %375 = vmatpush1.bf16.msra.mxu0 0
    %376 = vmatprep.subr.bf16.mxu0 0
    %377 = vmatpush1.bf16.msra.mxu0 0
    %378 = vmatprep.subr.bf16.mxu0 0
    %379 = vmatpush1.bf16.msra.mxu0 0
    %380 = vmatprep.subr.bf16.mxu0 0
    %381 = vmatpush1.bf16.msra.mxu0 0
    %382 = vmatprep.subr.bf16.mxu0 0
    %383 = vmatpush1.bf16.msra.mxu0 0
    %384 = vmatprep.subr.bf16.mxu0 0
    %385 = vmatpush1.bf16.msra.mxu0 0
    %386 = vmatprep.subr.bf16.mxu0 0
    %387 = vmatpush1.bf16.msra.mxu0 0
    %388 = vmatprep.subr.bf16.mxu0 0
    %389 = vmatpush1.bf16.msra.mxu0 0
    %390 = vmatprep.subr.bf16.mxu0 0
    %391 = vmatpush1.bf16.msra.mxu0 0
    %392 = vmatprep.subr.bf16.mxu0 0
    %393 = vmatpush1.bf16.msra.mxu0 0
    %394 = vmatprep.mubr.bf16.mxu0 0
    %395 = vmatmul.mubr.bf16.gmra.mrb[0].mxu0 %v326
    %v396 = vpop.f32.mrb[0].mxu0
    %v397 = vadd.f32 %v231, %v396
    %v398 = vpop.f32.mrb[0].mxu0
    %v399 = vadd.f32 %v235, %v398
    %v400 = vpop.f32.mrb[0].mxu0
    %v401 = vadd.f32 %v231, %v400
    %v402 = vpop.f32.mrb[0].mxu0
    %v403 = vadd.f32 %v235, %v402
    %404 = vmatprep.mubr.bf16.mxu0 0
    %405 = vmatmul.mubr.bf16.gmra.mrb[0].mxu0 %v329
    %v406 = vpop.f32.mrb[0].mxu0
    %v407 = vadd.f32 %v231, %v406
    %v408 = vpop.f32.mrb[0].mxu0
    %v409 = vadd.f32 %v235, %v408
    %v410 = vpop.f32.mrb[0].mxu0
    %v411 = vadd.f32 %v231, %v410
    %v412 = vpop.f32.mrb[0].mxu0
    %v413 = vadd.f32 %v235, %v412
    %414 = vmatprep.mubr.bf16.mxu0 0
    %415 = vmatmul.mubr.bf16.gmra.mrb[0].mxu0 %v332
    %v416 = vpop.f32.mrb[0].mxu0
    %v417 = vadd.f32 %v231, %v416
    %v418 = vpop.f32.mrb[0].mxu0
    %v419 = vadd.f32 %v235, %v418
    %v420 = vpop.f32.mrb[0].mxu0
    %v421 = vadd.f32 %v231, %v420
    %v422 = vpop.f32.mrb[0].mxu0
    %v423 = vadd.f32 %v235, %v422
    %424 = vmatprep.mubr.bf16.mxu0 0
    %425 = vmatmul.mubr.bf16.gmra.mrb[0].mxu0 %v335
    %v426 = vpop.f32.mrb[0].mxu0
    %v427 = vadd.f32 %v231, %v426
    %v428 = vpop.f32.mrb[0].mxu0
    %v429 = vadd.f32 %v235, %v428
    %v430 = vpop.f32.mrb[0].mxu0
    %v431 = vadd.f32 %v231, %v430
    %v432 = vpop.f32.mrb[0].mxu0
    %v433 = vadd.f32 %v235, %v432
    %434 = vdwg.mxu0
    %435 = vmatprep.subr.bf16.mxu0 %v348
    %436 = vmatpush1.bf16.msra.mxu0 %v345
    %437 = vmatprep.subr.bf16.mxu0 0
    %438 = vmatpush1.bf16.msra.mxu0 0
    %439 = vmatprep.subr.bf16.mxu0 0
    %440 = vmatpush1.bf16.msra.mxu0 0
    %441 = vmatprep.subr.bf16.mxu0 0
    %442 = vmatpush1.bf16.msra.mxu0 0
    %443 = vmatprep.subr.bf16.mxu0 0
    %444 = vmatpush1.bf16.msra.mxu0 0
    %445 = vmatprep.subr.bf16.mxu0 0
    %446 = vmatpush1.bf16.msra.mxu0 0
    %447 = vmatprep.subr.bf16.mxu0 0
    %448 = vmatpush1.bf16.msra.mxu0 0
    %449 = vmatprep.subr.bf16.mxu0 0
    %450 = vmatpush1.bf16.msra.mxu0 0
    %451 = vmatprep.subr.bf16.mxu0 0
    %452 = vmatpush1.bf16.msra.mxu0 0
    %453 = vmatprep.subr.bf16.mxu0 0
    %454 = vmatpush1.bf16.msra.mxu0 0
    %455 = vmatprep.subr.bf16.mxu0 0
    %456 = vmatpush1.bf16.msra.mxu0 0
    %457 = vmatprep.subr.bf16.mxu0 0
    %458 = vmatpush1.bf16.msra.mxu0 0
    %459 = vmatprep.subr.bf16.mxu0 0
    %460 = vmatpush1.bf16.msra.mxu0 0
    %461 = vmatprep.subr.bf16.mxu0 0
    %462 = vmatpush1.bf16.msra.mxu0 0
    %463 = vmatprep.subr.bf16.mxu0 0
    %464 = vmatpush1.bf16.msra.mxu0 0
    %465 = vmatprep.subr.bf16.mxu0 0
    %466 = vmatpush1.bf16.msra.mxu0 0
    %467 = vmatprep.mubr.bf16.mxu0 0
    %468 = vmatmul.mubr.bf16.gmra.mrb[0].mxu0 %v326
    %v469 = vpop.f32.mrb[0].mxu0
    %v470 = vadd.f32 %v239, %v469
    %v471 = vpop.f32.mrb[0].mxu0
    %v472 = vadd.f32 %v243, %v471
    %v473 = vpop.f32.mrb[0].mxu0
    %v474 = vadd.f32 %v239, %v473
    %v475 = vpop.f32.mrb[0].mxu0
    %v476 = vadd.f32 %v243, %v475
    %477 = vmatprep.mubr.bf16.mxu0 0
    %478 = vmatmul.mubr.bf16.gmra.mrb[0].mxu0 %v329
    %v479 = vpop.f32.mrb[0].mxu0
    %v480 = vadd.f32 %v239, %v479
    %v481 = vpop.f32.mrb[0].mxu0
    %v482 = vadd.f32 %v243, %v481
    %v483 = vpop.f32.mrb[0].mxu0
    %v484 = vadd.f32 %v239, %v483
    %v485 = vpop.f32.mrb[0].mxu0
    %v486 = vadd.f32 %v243, %v485
    %487 = vmatprep.mubr.bf16.mxu0 0
    %488 = vmatmul.mubr.bf16.gmra.mrb[0].mxu0 %v332
    %v489 = vpop.f32.mrb[0].mxu0
    %v490 = vadd.f32 %v239, %v489
    %v491 = vpop.f32.mrb[0].mxu0
    %v492 = vadd.f32 %v243, %v491
    %v493 = vpop.f32.mrb[0].mxu0
    %v494 = vadd.f32 %v239, %v493
    %v495 = vpop.f32.mrb[0].mxu0
    %v496 = vadd.f32 %v243, %v495
    %497 = vmatprep.mubr.bf16.mxu0 0
    %498 = vmatmul.mubr.bf16.gmra.mrb[0].mxu0 %v335
    %v499 = vpop.f32.mrb[0].mxu0
    %v500 = vadd.f32 %v239, %v499
    %v501 = vpop.f32.mrb[0].mxu0
    %v502 = vadd.f32 %v243, %v501
    %v503 = vpop.f32.mrb[0].mxu0
    %v504 = vadd.f32 %v239, %v503
    %v505 = vpop.f32.mrb[0].mxu0
    %v506 = vadd.f32 %v243, %v505
    %507 = vdwg.mxu0
    %508 = vmatprep.subr.bf16.mxu0 %v354
    %509 = vmatpush1.bf16.msra.mxu0 %v351
    %510 = vmatprep.subr.bf16.mxu0 0
    %511 = vmatpush1.bf16.msra.mxu0 0
    %512 = vmatprep.subr.bf16.mxu0 0
    %513 = vmatpush1.bf16.msra.mxu0 0
    %514 = vmatprep.subr.bf16.mxu0 0
    %515 = vmatpush1.bf16.msra.mxu0 0
    %516 = vmatprep.subr.bf16.mxu0 0
    %517 = vmatpush1.bf16.msra.mxu0 0
    %518 = vmatprep.subr.bf16.mxu0 0
    %519 = vmatpush1.bf16.msra.mxu0 0
    %520 = vmatprep.subr.bf16.mxu0 0
    %521 = vmatpush1.bf16.msra.mxu0 0
    %522 = vmatprep.subr.bf16.mxu0 0
    %523 = vmatpush1.bf16.msra.mxu0 0
    %524 = vmatprep.subr.bf16.mxu0 0
    %525 = vmatpush1.bf16.msra.mxu0 0
    %526 = vmatprep.subr.bf16.mxu0 0
    %527 = vmatpush1.bf16.msra.mxu0 0
    %528 = vmatprep.subr.bf16.mxu0 0
    %529 = vmatpush1.bf16.msra.mxu0 0
    %530 = vmatprep.subr.bf16.mxu0 0
    %531 = vmatpush1.bf16.msra.mxu0 0
    %532 = vmatprep.subr.bf16.mxu0 0
    %533 = vmatpush1.bf16.msra.mxu0 0
    %534 = vmatprep.subr.bf16.mxu0 0
    %535 = vmatpush1.bf16.msra.mxu0 0
    %536 = vmatprep.subr.bf16.mxu0 0
    %537 = vmatpush1.bf16.msra.mxu0 0
    %538 = vmatprep.subr.bf16.mxu0 0
    %539 = vmatpush1.bf16.msra.mxu0 0
    %540 = vmatprep.mubr.bf16.mxu0 0
    %541 = vmatmul.mubr.bf16.gmra.mrb[0].mxu0 %v326
    %v542 = vpop.f32.mrb[0].mxu0
    %v543 = vadd.f32 %v247, %v542
    %v544 = vpop.f32.mrb[0].mxu0
    %v545 = vadd.f32 %v251, %v544
    %v546 = vpop.f32.mrb[0].mxu0
    %v547 = vadd.f32 %v247, %v546
    %v548 = vpop.f32.mrb[0].mxu0
    %v549 = vadd.f32 %v251, %v548
    %550 = vmatprep.mubr.bf16.mxu0 0
    %551 = vmatmul.mubr.bf16.gmra.mrb[0].mxu0 %v329
    %v552 = vpop.f32.mrb[0].mxu0
    %v553 = vadd.f32 %v247, %v552
    %v554 = vpop.f32.mrb[0].mxu0
    %v555 = vadd.f32 %v251, %v554
    %v556 = vpop.f32.mrb[0].mxu0
    %v557 = vadd.f32 %v247, %v556
    %v558 = vpop.f32.mrb[0].mxu0
    %v559 = vadd.f32 %v251, %v558
    %560 = vmatprep.mubr.bf16.mxu0 0
    %561 = vmatmul.mubr.bf16.gmra.mrb[0].mxu0 %v332
    %v562 = vpop.f32.mrb[0].mxu0
    %v563 = vadd.f32 %v247, %v562
    %v564 = vpop.f32.mrb[0].mxu0
    %v565 = vadd.f32 %v251, %v564
    %v566 = vpop.f32.mrb[0].mxu0
    %v567 = vadd.f32 %v247, %v566
    %v568 = vpop.f32.mrb[0].mxu0
    %v569 = vadd.f32 %v251, %v568
    %570 = vmatprep.mubr.bf16.mxu0 0
    %571 = vmatmul.mubr.bf16.gmra.mrb[0].mxu0 %v335
    %v572 = vpop.f32.mrb[0].mxu0
    %v573 = vadd.f32 %v247, %v572
    %v574 = vpop.f32.mrb[0].mxu0
    %v575 = vadd.f32 %v251, %v574
    %v576 = vpop.f32.mrb[0].mxu0
    %v577 = vadd.f32 %v247, %v576
    %v578 = vpop.f32.mrb[0].mxu0
    %v579 = vadd.f32 %v251, %v578
    %580 = vdwg.mxu0
    %581 = vmatprep.subr.bf16.mxu0 %v360
    %582 = vmatpush1.bf16.msra.mxu0 %v357
    %583 = vmatprep.subr.bf16.mxu0 0
    %584 = vmatpush1.bf16.msra.mxu0 0
    %585 = vmatprep.subr.bf16.mxu0 0
    %586 = vmatpush1.bf16.msra.mxu0 0
    %587 = vmatprep.subr.bf16.mxu0 0
    %588 = vmatpush1.bf16.msra.mxu0 0
    %589 = vmatprep.subr.bf16.mxu0 0
    %590 = vmatpush1.bf16.msra.mxu0 0
    %591 = vmatprep.subr.bf16.mxu0 0
    %592 = vmatpush1.bf16.msra.mxu0 0
    %593 = vmatprep.subr.bf16.mxu0 0
    %594 = vmatpush1.bf16.msra.mxu0 0
    %595 = vmatprep.subr.bf16.mxu0 0
    %596 = vmatpush1.bf16.msra.mxu0 0
    %597 = vmatprep.subr.bf16.mxu0 0
    %598 = vmatpush1.bf16.msra.mxu0 0
    %599 = vmatprep.subr.bf16.mxu0 0
    %600 = vmatpush1.bf16.msra.mxu0 0
    %601 = vmatprep.subr.bf16.mxu0 0
    %602 = vmatpush1.bf16.msra.mxu0 0
    %603 = vmatprep.subr.bf16.mxu0 0
    %604 = vmatpush1.bf16.msra.mxu0 0
    %605 = vmatprep.subr.bf16.mxu0 0
    %606 = vmatpush1.bf16.msra.mxu0 0
    %607 = vmatprep.subr.bf16.mxu0 0
    %608 = vmatpush1.bf16.msra.mxu0 0
    %609 = vmatprep.subr.bf16.mxu0 0
    %610 = vmatpush1.bf16.msra.mxu0 0
    %611 = vmatprep.subr.bf16.mxu0 0
    %612 = vmatpush1.bf16.msra.mxu0 0
    %613 = vmatprep.mubr.bf16.mxu0 0
    %614 = vmatmul.mubr.bf16.gmra.mrb[0].mxu0 %v326
    %v615 = vpop.f32.mrb[0].mxu0
    %v616 = vadd.f32 %v255, %v615
    %v617 = vpop.f32.mrb[0].mxu0
    %v618 = vadd.f32 %v259, %v617
    %v619 = vpop.f32.mrb[0].mxu0
    %v620 = vadd.f32 %v255, %v619
    %v621 = vpop.f32.mrb[0].mxu0
    %v622 = vadd.f32 %v259, %v621
    %623 = vmatprep.mubr.bf16.mxu0 0
    %624 = vmatmul.mubr.bf16.gmra.mrb[0].mxu0 %v329
    %v625 = vpop.f32.mrb[0].mxu0
    %v626 = vadd.f32 %v255, %v625
    %v627 = vpop.f32.mrb[0].mxu0
    %v628 = vadd.f32 %v259, %v627
    %v629 = vpop.f32.mrb[0].mxu0
    %v630 = vadd.f32 %v255, %v629
    %v631 = vpop.f32.mrb[0].mxu0
    %v632 = vadd.f32 %v259, %v631
    %633 = vmatprep.mubr.bf16.mxu0 0
    %634 = vmatmul.mubr.bf16.gmra.mrb[0].mxu0 %v332
    %v635 = vpop.f32.mrb[0].mxu0
    %v636 = vadd.f32 %v255, %v635
    %v637 = vpop.f32.mrb[0].mxu0
    %v638 = vadd.f32 %v259, %v637
    %v639 = vpop.f32.mrb[0].mxu0
    %v640 = vadd.f32 %v255, %v639
    %v641 = vpop.f32.mrb[0].mxu0
    %v642 = vadd.f32 %v259, %v641
    %643 = vmatprep.mubr.bf16.mxu0 0
    %644 = vmatmul.mubr.bf16.gmra.mrb[0].mxu0 %v335
    %v645 = vpop.f32.mrb[0].mxu0
    %v646 = vadd.f32 %v255, %v645
    %v647 = vpop.f32.mrb[0].mxu0
    %v648 = vadd.f32 %v259, %v647
    %v649 = vpop.f32.mrb[0].mxu0
    %v650 = vadd.f32 %v255, %v649
    %v651 = vpop.f32.mrb[0].mxu0
    %v652 = vadd.f32 %v259, %v651
    %653 = vdwg.mxu0
    %v654 = vpack.c.bf16 0.0, 0.0
    %v783 = vunpack.c.l.b16 %v98
    %v784 = vunpack.c.h.b16 %v98
    %v785 = vunpack.c.l.b16 %v99
    %v786 = vunpack.c.h.b16 %v99
    %v787 = vunpack.c.l.b16 %v100
    %v788 = vunpack.c.h.b16 %v100
    %v789 = vunpack.c.l.b16 %v101
    %v790 = vunpack.c.h.b16 %v101
    %v791 = vunpack.c.l.b16 %v102
    %v792 = vunpack.c.h.b16 %v102
    %v793 = vunpack.c.l.b16 %v103
    %v794 = vunpack.c.h.b16 %v103
    %v795 = vunpack.c.l.b16 %v104
    %v796 = vunpack.c.h.b16 %v104
    %v797 = vunpack.c.l.b16 %v105
    %v798 = vunpack.c.h.b16 %v105
    %v799 = vunpack.c.l.b16 %v106
    %v800 = vunpack.c.h.b16 %v106
    %v801 = vunpack.c.l.b16 %v107
    %v802 = vunpack.c.h.b16 %v107
    %v803 = vunpack.c.l.b16 %v108
    %v804 = vunpack.c.h.b16 %v108
    %v805 = vunpack.c.l.b16 %v109
    %v806 = vunpack.c.h.b16 %v109
    %v807 = vunpack.c.l.b16 %v110
    %v808 = vunpack.c.h.b16 %v110
    %v809 = vunpack.c.l.b16 %v111
    %v810 = vunpack.c.h.b16 %v111
    %v811 = vunpack.c.l.b16 %v112
    %v812 = vunpack.c.h.b16 %v112
    %v813 = vunpack.c.l.b16 %v113
    %v814 = vunpack.c.h.b16 %v113
    %v815 = vunpack.c.l.b16 %v114
    %v816 = vunpack.c.h.b16 %v114
    %v817 = vunpack.c.l.b16 %v115
    %v818 = vunpack.c.h.b16 %v115
    %v819 = vunpack.c.l.b16 %v116
    %v820 = vunpack.c.h.b16 %v116
    %v821 = vunpack.c.l.b16 %v117
    %v822 = vunpack.c.h.b16 %v117
    %v823 = vunpack.c.l.b16 %v118
    %v824 = vunpack.c.h.b16 %v118
    %v825 = vunpack.c.l.b16 %v119
    %v826 = vunpack.c.h.b16 %v119
    %v827 = vunpack.c.l.b16 %v120
    %v828 = vunpack.c.h.b16 %v120
    %v829 = vunpack.c.l.b16 %v121
    %v830 = vunpack.c.h.b16 %v121
    %v831 = vunpack.c.l.b16 %v122
    %v832 = vunpack.c.h.b16 %v122
    %v833 = vunpack.c.l.b16 %v123
    %v834 = vunpack.c.h.b16 %v123
    %v835 = vunpack.c.l.b16 %v124
    %v836 = vunpack.c.h.b16 %v124
    %v837 = vunpack.c.l.b16 %v125
    %v838 = vunpack.c.h.b16 %v125
    %v839 = vunpack.c.l.b16 %v126
    %v840 = vunpack.c.h.b16 %v126
    %v841 = vunpack.c.l.b16 %v127
    %v842 = vunpack.c.h.b16 %v127
    %v843 = vunpack.c.l.b16 %v128
    %v844 = vunpack.c.h.b16 %v128
    %v845 = vunpack.c.l.b16 %v129
    %v846 = vunpack.c.h.b16 %v129
    %v847 = vunpack.c.l.b16 %v130
    %v848 = vunpack.c.h.b16 %v130
    %v849 = vunpack.c.l.b16 %v131
    %v850 = vunpack.c.h.b16 %v131
    %v851 = vunpack.c.l.b16 %v132
    %v852 = vunpack.c.h.b16 %v132
    %v853 = vunpack.c.l.b16 %v133
    %v854 = vunpack.c.h.b16 %v133
    %v855 = vunpack.c.l.b16 %v134
    %v856 = vunpack.c.h.b16 %v134
    %v857 = vunpack.c.l.b16 %v135
    %v858 = vunpack.c.h.b16 %v135
    %v859 = vunpack.c.l.b16 %v136
    %v860 = vunpack.c.h.b16 %v136
    %v861 = vunpack.c.l.b16 %v137
    %v862 = vunpack.c.h.b16 %v137
    %v863 = vunpack.c.l.b16 %v138
    %v864 = vunpack.c.h.b16 %v138
    %v865 = vunpack.c.l.b16 %v139
    %v866 = vunpack.c.h.b16 %v139
    %v867 = vunpack.c.l.b16 %v140
    %v868 = vunpack.c.h.b16 %v140
    %v869 = vunpack.c.l.b16 %v141
    %v870 = vunpack.c.h.b16 %v141
    %v871 = vunpack.c.l.b16 %v142
    %v872 = vunpack.c.h.b16 %v142
    %v873 = vunpack.c.l.b16 %v143
    %v874 = vunpack.c.h.b16 %v143
    %v875 = vunpack.c.l.b16 %v144
    %v876 = vunpack.c.h.b16 %v144
    %v877 = vunpack.c.l.b16 %v145
    %v878 = vunpack.c.h.b16 %v145
    %v879 = vunpack.c.l.b16 %v146
    %v880 = vunpack.c.h.b16 %v146
    %v881 = vunpack.c.l.b16 %v147
    %v882 = vunpack.c.h.b16 %v147
    %v883 = vunpack.c.l.b16 %v148
    %v884 = vunpack.c.h.b16 %v148
    %v885 = vunpack.c.l.b16 %v149
    %v886 = vunpack.c.h.b16 %v149
    %v887 = vunpack.c.l.b16 %v150
    %v888 = vunpack.c.h.b16 %v150
    %v889 = vunpack.c.l.b16 %v151
    %v890 = vunpack.c.h.b16 %v151
    %v891 = vunpack.c.l.b16 %v152
    %v892 = vunpack.c.h.b16 %v152
    %v893 = vunpack.c.l.b16 %v153
    %v894 = vunpack.c.h.b16 %v153
    %v895 = vunpack.c.l.b16 %v154
    %v896 = vunpack.c.h.b16 %v154
    %v897 = vunpack.c.l.b16 %v155
    %v898 = vunpack.c.h.b16 %v155
    %v899 = vunpack.c.l.b16 %v156
    %v900 = vunpack.c.h.b16 %v156
    %v901 = vunpack.c.l.b16 %v157
    %v902 = vunpack.c.h.b16 %v157
    %v903 = vunpack.c.l.b16 %v158
    %v904 = vunpack.c.h.b16 %v158
    %v905 = vunpack.c.l.b16 %v159
    %v906 = vunpack.c.h.b16 %v159
    %v907 = vunpack.c.l.b16 %v160
    %v908 = vunpack.c.h.b16 %v160
    %v909 = vunpack.c.l.b16 %v161
    %v910 = vunpack.c.h.b16 %v161
    %v911 = vunpack.c.l.b16 %v162
    %v912 = vunpack.c.h.b16 %v162
    %v913 = vunpack.c.l.b16 %v163
    %v914 = vunpack.c.h.b16 %v163
    %v915 = vunpack.c.l.b16 %v164
    %v916 = vunpack.c.h.b16 %v164
    %v917 = vunpack.c.l.b16 %v165
    %v918 = vunpack.c.h.b16 %v165
    %v919 = vunpack.c.l.b16 %v166
    %v920 = vunpack.c.h.b16 %v166
    %v921 = vunpack.c.l.b16 %v167
    %v922 = vunpack.c.h.b16 %v167
    %v923 = vunpack.c.l.b16 %v168
    %v924 = vunpack.c.h.b16 %v168
    %v925 = vunpack.c.l.b16 %v169
    %v926 = vunpack.c.h.b16 %v169
    %v927 = vunpack.c.l.b16 %v170
    %v928 = vunpack.c.h.b16 %v170
    %v929 = vunpack.c.l.b16 %v171
    %v930 = vunpack.c.h.b16 %v171
    %v931 = vunpack.c.l.b16 %v172
    %v932 = vunpack.c.h.b16 %v172
    %v933 = vunpack.c.l.b16 %v173
    %v934 = vunpack.c.h.b16 %v173
    %v935 = vunpack.c.l.b16 %v174
    %v936 = vunpack.c.h.b16 %v174
    %v937 = vunpack.c.l.b16 %v175
    %v938 = vunpack.c.h.b16 %v175
    %v939 = vunpack.c.l.b16 %v176
    %v940 = vunpack.c.h.b16 %v176
    %v941 = vunpack.c.l.b16 %v177
    %v942 = vunpack.c.h.b16 %v177
    %v943 = vunpack.c.l.b16 %v178
    %v944 = vunpack.c.h.b16 %v178
    %v945 = vunpack.c.l.b16 %v179
    %v946 = vunpack.c.h.b16 %v179
    %v947 = vunpack.c.l.b16 %v180
    %v948 = vunpack.c.h.b16 %v180
    %v949 = vunpack.c.l.b16 %v181
    %v950 = vunpack.c.h.b16 %v181
    %v951 = vunpack.c.l.b16 %v182
    %v952 = vunpack.c.h.b16 %v182
    %v953 = vunpack.c.l.b16 %v183
    %v954 = vunpack.c.h.b16 %v183
    %v955 = vunpack.c.l.b16 %v184
    %v956 = vunpack.c.h.b16 %v184
    %v957 = vunpack.c.l.b16 %v185
    %v958 = vunpack.c.h.b16 %v185
    %v959 = vunpack.c.l.b16 %v186
    %v960 = vunpack.c.h.b16 %v186
    %v961 = vunpack.c.l.b16 %v187
    %v962 = vunpack.c.h.b16 %v187
    %v963 = vunpack.c.l.b16 %v188
    %v964 = vunpack.c.h.b16 %v188
    %v965 = vunpack.c.l.b16 %v189
    %v966 = vunpack.c.h.b16 %v189
    %v967 = vunpack.c.l.b16 %v190
    %v968 = vunpack.c.h.b16 %v190
    %v969 = vunpack.c.l.b16 %v191
    %v970 = vunpack.c.h.b16 %v191
    %v971 = vunpack.c.l.b16 %v192
    %v972 = vunpack.c.h.b16 %v192
    %v973 = vunpack.c.l.b16 %v193
    %v974 = vunpack.c.h.b16 %v193
    %v975 = vunpack.c.l.b16 %v194
    %v976 = vunpack.c.h.b16 %v194
    %v977 = vunpack.c.l.b16 %v195
    %v978 = vunpack.c.h.b16 %v195
    %v979 = vunpack.c.l.b16 %v196
    %v980 = vunpack.c.h.b16 %v196
    %v981 = vunpack.c.l.b16 %v197
    %v982 = vunpack.c.h.b16 %v197
    %v983 = vunpack.c.l.b16 %v198
    %v984 = vunpack.c.h.b16 %v198
    %v985 = vunpack.c.l.b16 %v199
    %v986 = vunpack.c.h.b16 %v199
    %v987 = vunpack.c.l.b16 %v200
    %v988 = vunpack.c.h.b16 %v200
    %v989 = vunpack.c.l.b16 %v201
    %v990 = vunpack.c.h.b16 %v201
    %v991 = vunpack.c.l.b16 %v202
    %v992 = vunpack.c.h.b16 %v202
    %v993 = vunpack.c.l.b16 %v203
    %v994 = vunpack.c.h.b16 %v203
    %v995 = vunpack.c.l.b16 %v204
    %v996 = vunpack.c.h.b16 %v204
    %v997 = vunpack.c.l.b16 %v205
    %v998 = vunpack.c.h.b16 %v205
    %v999 = vunpack.c.l.b16 %v206
    %v1000 = vunpack.c.h.b16 %v206
    %v1001 = vunpack.c.l.b16 %v207
    %v1002 = vunpack.c.h.b16 %v207
    %v1003 = vunpack.c.l.b16 %v208
    %v1004 = vunpack.c.h.b16 %v208
    %v1005 = vunpack.c.l.b16 %v209
    %v1006 = vunpack.c.h.b16 %v209
    %v1007 = vunpack.c.l.b16 %v210
    %v1008 = vunpack.c.h.b16 %v210
    %v1009 = vunpack.c.l.b16 %v211
    %v1010 = vunpack.c.h.b16 %v211
    %v1011 = vunpack.c.l.b16 %v212
    %v1012 = vunpack.c.h.b16 %v212
    %v1013 = vunpack.c.l.b16 %v213
    %v1014 = vunpack.c.h.b16 %v213
    %v1015 = vunpack.c.l.b16 %v214
    %v1016 = vunpack.c.h.b16 %v214
    %v1017 = vunpack.c.l.b16 %v215
    %v1018 = vunpack.c.h.b16 %v215
    %v1019 = vunpack.c.l.b16 %v216
    %v1020 = vunpack.c.h.b16 %v216
    %v1021 = vunpack.c.l.b16 %v217
    %v1022 = vunpack.c.h.b16 %v217
    %v1023 = vunpack.c.l.b16 %v218
    %v1024 = vunpack.c.h.b16 %v218
    %v1025 = vunpack.c.l.b16 %v219
    %v1026 = vunpack.c.h.b16 %v219
    %v1027 = vunpack.c.l.b16 %v220
    %v1028 = vunpack.c.h.b16 %v220
    %v1029 = vunpack.c.l.b16 %v221
    %v1030 = vunpack.c.h.b16 %v221
    %v1031 = vunpack.c.l.b16 %v222
    %v1032 = vunpack.c.h.b16 %v222
    %v1033 = vunpack.c.l.b16 %v223
    %v1034 = vunpack.c.h.b16 %v223
    %v1035 = vunpack.c.l.b16 %v224
    %v1036 = vunpack.c.h.b16 %v224
    %v1037 = vunpack.c.l.b16 %v225
    %v1038 = vunpack.c.h.b16 %v225
    %v1039 = vpack.c.b16 %v791, %v783
    %v1040 = vpack.c.b16 %v792, %v784
    %v1041 = vpack.c.b16 %v793, %v785
    %v1042 = vpack.c.b16 %v794, %v786
    %v1043 = vpack.c.b16 %v795, %v787
    %v1044 = vpack.c.b16 %v796, %v788
    %v1045 = vpack.c.b16 %v797, %v789
    %v1046 = vpack.c.b16 %v798, %v790
    %v1047 = vpack.c.b16 %v807, %v799
    %v1048 = vpack.c.b16 %v808, %v800
    %v1049 = vpack.c.b16 %v809, %v801
    %v1050 = vpack.c.b16 %v810, %v802
    %v1051 = vpack.c.b16 %v811, %v803
    %v1052 = vpack.c.b16 %v812, %v804
    %v1053 = vpack.c.b16 %v813, %v805
    %v1054 = vpack.c.b16 %v814, %v806
    %v1055 = vpack.c.b16 %v823, %v815
    %v1056 = vpack.c.b16 %v824, %v816
    %v1057 = vpack.c.b16 %v825, %v817
    %v1058 = vpack.c.b16 %v826, %v818
    %v1059 = vpack.c.b16 %v827, %v819
    %v1060 = vpack.c.b16 %v828, %v820
    %v1061 = vpack.c.b16 %v829, %v821
    %v1062 = vpack.c.b16 %v830, %v822
    %v1063 = vpack.c.b16 %v839, %v831
    %v1064 = vpack.c.b16 %v840, %v832
    %v1065 = vpack.c.b16 %v841, %v833
    %v1066 = vpack.c.b16 %v842, %v834
    %v1067 = vpack.c.b16 %v843, %v835
    %v1068 = vpack.c.b16 %v844, %v836
    %v1069 = vpack.c.b16 %v845, %v837
    %v1070 = vpack.c.b16 %v846, %v838
    %v1071 = vpack.c.b16 %v855, %v847
    %v1072 = vpack.c.b16 %v856, %v848
    %v1073 = vpack.c.b16 %v857, %v849
    %v1074 = vpack.c.b16 %v858, %v850
    %v1075 = vpack.c.b16 %v859, %v851
    %v1076 = vpack.c.b16 %v860, %v852
    %v1077 = vpack.c.b16 %v861, %v853
    %v1078 = vpack.c.b16 %v862, %v854
    %v1079 = vpack.c.b16 %v871, %v863
    %v1080 = vpack.c.b16 %v872, %v864
    %v1081 = vpack.c.b16 %v873, %v865
    %v1082 = vpack.c.b16 %v874, %v866
    %v1083 = vpack.c.b16 %v875, %v867
    %v1084 = vpack.c.b16 %v876, %v868
    %v1085 = vpack.c.b16 %v877, %v869
    %v1086 = vpack.c.b16 %v878, %v870
    %v1087 = vpack.c.b16 %v887, %v879
    %v1088 = vpack.c.b16 %v888, %v880
    %v1089 = vpack.c.b16 %v889, %v881
    %v1090 = vpack.c.b16 %v890, %v882
    %v1091 = vpack.c.b16 %v891, %v883
    %v1092 = vpack.c.b16 %v892, %v884
    %v1093 = vpack.c.b16 %v893, %v885
    %v1094 = vpack.c.b16 %v894, %v886
    %v1095 = vpack.c.b16 %v903, %v895
    %v1096 = vpack.c.b16 %v904, %v896
    %v1097 = vpack.c.b16 %v905, %v897
    %v1098 = vpack.c.b16 %v906, %v898
    %v1099 = vpack.c.b16 %v907, %v899
    %v1100 = vpack.c.b16 %v908, %v900
    %v1101 = vpack.c.b16 %v909, %v901
    %v1102 = vpack.c.b16 %v910, %v902
    %v1103 = vpack.c.b16 %v919, %v911
    %v1104 = vpack.c.b16 %v920, %v912
    %v1105 = vpack.c.b16 %v921, %v913
    %v1106 = vpack.c.b16 %v922, %v914
    %v1107 = vpack.c.b16 %v923, %v915
    %v1108 = vpack.c.b16 %v924, %v916
    %v1109 = vpack.c.b16 %v925, %v917
    %v1110 = vpack.c.b16 %v926, %v918
    %v1111 = vpack.c.b16 %v935, %v927
    %v1112 = vpack.c.b16 %v936, %v928
    %v1113 = vpack.c.b16 %v937, %v929
    %v1114 = vpack.c.b16 %v938, %v930
    %v1115 = vpack.c.b16 %v939, %v931
    %v1116 = vpack.c.b16 %v940, %v932
    %v1117 = vpack.c.b16 %v941, %v933
    %v1118 = vpack.c.b16 %v942, %v934
    %v1119 = vpack.c.b16 %v951, %v943
    %v1120 = vpack.c.b16 %v952, %v944
    %v1121 = vpack.c.b16 %v953, %v945
    %v1122 = vpack.c.b16 %v954, %v946
    %v1123 = vpack.c.b16 %v955, %v947
    %v1124 = vpack.c.b16 %v956, %v948
    %v1125 = vpack.c.b16 %v957, %v949
    %v1126 = vpack.c.b16 %v958, %v950
    %v1127 = vpack.c.b16 %v967, %v959
    %v1128 = vpack.c.b16 %v968, %v960
    %v1129 = vpack.c.b16 %v969, %v961
    %v1130 = vpack.c.b16 %v970, %v962
    %v1131 = vpack.c.b16 %v971, %v963
    %v1132 = vpack.c.b16 %v972, %v964
    %v1133 = vpack.c.b16 %v973, %v965
    %v1134 = vpack.c.b16 %v974, %v966
    %v1135 = vpack.c.b16 %v983, %v975
    %v1136 = vpack.c.b16 %v984, %v976
    %v1137 = vpack.c.b16 %v985, %v977
    %v1138 = vpack.c.b16 %v986, %v978
    %v1139 = vpack.c.b16 %v987, %v979
    %v1140 = vpack.c.b16 %v988, %v980
    %v1141 = vpack.c.b16 %v989, %v981
    %v1142 = vpack.c.b16 %v990, %v982
    %v1143 = vpack.c.b16 %v999, %v991
    %v1144 = vpack.c.b16 %v1000, %v992
    %v1145 = vpack.c.b16 %v1001, %v993
    %v1146 = vpack.c.b16 %v1002, %v994
    %v1147 = vpack.c.b16 %v1003, %v995
    %v1148 = vpack.c.b16 %v1004, %v996
    %v1149 = vpack.c.b16 %v1005, %v997
    %v1150 = vpack.c.b16 %v1006, %v998
    %v1151 = vpack.c.b16 %v1015, %v1007
    %v1152 = vpack.c.b16 %v1016, %v1008
    %v1153 = vpack.c.b16 %v1017, %v1009
    %v1154 = vpack.c.b16 %v1018, %v1010
    %v1155 = vpack.c.b16 %v1019, %v1011
    %v1156 = vpack.c.b16 %v1020, %v1012
    %v1157 = vpack.c.b16 %v1021, %v1013
    %v1158 = vpack.c.b16 %v1022, %v1014
    %v1159 = vpack.c.b16 %v1031, %v1023
    %v1160 = vpack.c.b16 %v1032, %v1024
    %v1161 = vpack.c.b16 %v1033, %v1025
    %v1162 = vpack.c.b16 %v1034, %v1026
    %v1163 = vpack.c.b16 %v1035, %v1027
    %v1164 = vpack.c.b16 %v1036, %v1028
    %v1165 = vpack.c.b16 %v1037, %v1029
    %v1166 = vpack.c.b16 %v1038, %v1030
    %1295 = vmatprep.subr.bf16.mxu0 %v1040
    %1296 = vmatpush1.bf16.msra.mxu0 %v1039
    %1297 = vmatprep.subr.bf16.mxu0 %v1048
    %1298 = vmatpush1.bf16.msra.mxu0 %v1047
    %1299 = vmatprep.subr.bf16.mxu0 %v1056
    %1300 = vmatpush1.bf16.msra.mxu0 %v1055
    %1301 = vmatprep.subr.bf16.mxu0 %v1064
    %1302 = vmatpush1.bf16.msra.mxu0 %v1063
    %1303 = vmatprep.subr.bf16.mxu0 %v1072
    %1304 = vmatpush1.bf16.msra.mxu0 %v1071
    %1305 = vmatprep.subr.bf16.mxu0 %v1080
    %1306 = vmatpush1.bf16.msra.mxu0 %v1079
    %1307 = vmatprep.subr.bf16.mxu0 %v1088
    %1308 = vmatpush1.bf16.msra.mxu0 %v1087
    %1309 = vmatprep.subr.bf16.mxu0 %v1096
    %1310 = vmatpush1.bf16.msra.mxu0 %v1095
    %1311 = vmatprep.subr.bf16.mxu0 %v1104
    %1312 = vmatpush1.bf16.msra.mxu0 %v1103
    %1313 = vmatprep.subr.bf16.mxu0 %v1112
    %1314 = vmatpush1.bf16.msra.mxu0 %v1111
    %1315 = vmatprep.subr.bf16.mxu0 %v1120
    %1316 = vmatpush1.bf16.msra.mxu0 %v1119
    %1317 = vmatprep.subr.bf16.mxu0 %v1128
    %1318 = vmatpush1.bf16.msra.mxu0 %v1127
    %1319 = vmatprep.subr.bf16.mxu0 %v1136
    %1320 = vmatpush1.bf16.msra.mxu0 %v1135
    %1321 = vmatprep.subr.bf16.mxu0 %v1144
    %1322 = vmatpush1.bf16.msra.mxu0 %v1143
    %1323 = vmatprep.subr.bf16.mxu0 %v1152
    %1324 = vmatpush1.bf16.msra.mxu0 %v1151
    %1325 = vmatprep.subr.bf16.mxu0 %v1160
    %1326 = vmatpush1.bf16.msra.mxu0 %v1159
    %1327 = vmatprep.mubr.bf16.mxu0 %v654
    %1328 = vmatmul.mubr.bf16.gmra.mrb[0].mxu0 %v654
    %v1329 = vpop.f32.mrb[0].mxu0
    %v1330 = vadd.f32 0.0, %v1329
    %v1331 = vpop.f32.mrb[0].mxu0
    %v1332 = vadd.f32 0.0, %v1331
    %v1333 = vpop.f32.mrb[0].mxu0
    %v1334 = vpop.f32.mrb[0].mxu0
    %1335 = vdwg.mxu0
    %1336 = vmatprep.subr.bf16.mxu0 %v1042
    %1337 = vmatpush1.bf16.msra.mxu0 %v1041
    %1338 = vmatprep.subr.bf16.mxu0 %v1050
    %1339 = vmatpush1.bf16.msra.mxu0 %v1049
    %1340 = vmatprep.subr.bf16.mxu0 %v1058
    %1341 = vmatpush1.bf16.msra.mxu0 %v1057
    %1342 = vmatprep.subr.bf16.mxu0 %v1066
    %1343 = vmatpush1.bf16.msra.mxu0 %v1065
    %1344 = vmatprep.subr.bf16.mxu0 %v1074
    %1345 = vmatpush1.bf16.msra.mxu0 %v1073
    %1346 = vmatprep.subr.bf16.mxu0 %v1082
    %1347 = vmatpush1.bf16.msra.mxu0 %v1081
    %1348 = vmatprep.subr.bf16.mxu0 %v1090
    %1349 = vmatpush1.bf16.msra.mxu0 %v1089
    %1350 = vmatprep.subr.bf16.mxu0 %v1098
    %1351 = vmatpush1.bf16.msra.mxu0 %v1097
    %1352 = vmatprep.subr.bf16.mxu0 %v1106
    %1353 = vmatpush1.bf16.msra.mxu0 %v1105
    %1354 = vmatprep.subr.bf16.mxu0 %v1114
    %1355 = vmatpush1.bf16.msra.mxu0 %v1113
    %1356 = vmatprep.subr.bf16.mxu0 %v1122
    %1357 = vmatpush1.bf16.msra.mxu0 %v1121
    %1358 = vmatprep.subr.bf16.mxu0 %v1130
    %1359 = vmatpush1.bf16.msra.mxu0 %v1129
    %1360 = vmatprep.subr.bf16.mxu0 %v1138
    %1361 = vmatpush1.bf16.msra.mxu0 %v1137
    %1362 = vmatprep.subr.bf16.mxu0 %v1146
    %1363 = vmatpush1.bf16.msra.mxu0 %v1145
    %1364 = vmatprep.subr.bf16.mxu0 %v1154
    %1365 = vmatpush1.bf16.msra.mxu0 %v1153
    %1366 = vmatprep.subr.bf16.mxu0 %v1162
    %1367 = vmatpush1.bf16.msra.mxu0 %v1161
    %1368 = vmatprep.mubr.bf16.mxu0 %v654
    %1369 = vmatmul.mubr.bf16.gmra.mrb[0].mxu0 %v654
    %v1370 = vpop.f32.mrb[0].mxu0
    %v1371 = vadd.f32 0.0, %v1370
    %v1372 = vpop.f32.mrb[0].mxu0
    %v1373 = vadd.f32 0.0, %v1372
    %v1374 = vpop.f32.mrb[0].mxu0
    %v1375 = vpop.f32.mrb[0].mxu0
    %1376 = vdwg.mxu0
    %1377 = vmatprep.subr.bf16.mxu0 %v1044
    %1378 = vmatpush1.bf16.msra.mxu0 %v1043
    %1379 = vmatprep.subr.bf16.mxu0 %v1052
    %1380 = vmatpush1.bf16.msra.mxu0 %v1051
    %1381 = vmatprep.subr.bf16.mxu0 %v1060
    %1382 = vmatpush1.bf16.msra.mxu0 %v1059
    %1383 = vmatprep.subr.bf16.mxu0 %v1068
    %1384 = vmatpush1.bf16.msra.mxu0 %v1067
    %1385 = vmatprep.subr.bf16.mxu0 %v1076
    %1386 = vmatpush1.bf16.msra.mxu0 %v1075
    %1387 = vmatprep.subr.bf16.mxu0 %v1084
    %1388 = vmatpush1.bf16.msra.mxu0 %v1083
    %1389 = vmatprep.subr.bf16.mxu0 %v1092
    %1390 = vmatpush1.bf16.msra.mxu0 %v1091
    %1391 = vmatprep.subr.bf16.mxu0 %v1100
    %1392 = vmatpush1.bf16.msra.mxu0 %v1099
    %1393 = vmatprep.subr.bf16.mxu0 %v1108
    %1394 = vmatpush1.bf16.msra.mxu0 %v1107
    %1395 = vmatprep.subr.bf16.mxu0 %v1116
    %1396 = vmatpush1.bf16.msra.mxu0 %v1115
    %1397 = vmatprep.subr.bf16.mxu0 %v1124
    %1398 = vmatpush1.bf16.msra.mxu0 %v1123
    %1399 = vmatprep.subr.bf16.mxu0 %v1132
    %1400 = vmatpush1.bf16.msra.mxu0 %v1131
    %1401 = vmatprep.subr.bf16.mxu0 %v1140
    %1402 = vmatpush1.bf16.msra.mxu0 %v1139
    %1403 = vmatprep.subr.bf16.mxu0 %v1148
    %1404 = vmatpush1.bf16.msra.mxu0 %v1147
    %1405 = vmatprep.subr.bf16.mxu0 %v1156
    %1406 = vmatpush1.bf16.msra.mxu0 %v1155
    %1407 = vmatprep.subr.bf16.mxu0 %v1164
    %1408 = vmatpush1.bf16.msra.mxu0 %v1163
    %1409 = vmatprep.mubr.bf16.mxu0 %v654
    %1410 = vmatmul.mubr.bf16.gmra.mrb[0].mxu0 %v654
    %v1411 = vpop.f32.mrb[0].mxu0
    %v1412 = vadd.f32 0.0, %v1411
    %v1413 = vpop.f32.mrb[0].mxu0
    %v1414 = vadd.f32 0.0, %v1413
    %v1415 = vpop.f32.mrb[0].mxu0
    %v1416 = vpop.f32.mrb[0].mxu0
    %1417 = vdwg.mxu0
    %1418 = vmatprep.subr.bf16.mxu0 %v1046
    %1419 = vmatpush1.bf16.msra.mxu0 %v1045
    %1420 = vmatprep.subr.bf16.mxu0 %v1054
    %1421 = vmatpush1.bf16.msra.mxu0 %v1053
    %1422 = vmatprep.subr.bf16.mxu0 %v1062
    %1423 = vmatpush1.bf16.msra.mxu0 %v1061
    %1424 = vmatprep.subr.bf16.mxu0 %v1070
    %1425 = vmatpush1.bf16.msra.mxu0 %v1069
    %1426 = vmatprep.subr.bf16.mxu0 %v1078
    %1427 = vmatpush1.bf16.msra.mxu0 %v1077
    %1428 = vmatprep.subr.bf16.mxu0 %v1086
    %1429 = vmatpush1.bf16.msra.mxu0 %v1085
    %1430 = vmatprep.subr.bf16.mxu0 %v1094
    %1431 = vmatpush1.bf16.msra.mxu0 %v1093
    %1432 = vmatprep.subr.bf16.mxu0 %v1102
    %1433 = vmatpush1.bf16.msra.mxu0 %v1101
    %1434 = vmatprep.subr.bf16.mxu0 %v1110
    %1435 = vmatpush1.bf16.msra.mxu0 %v1109
    %1436 = vmatprep.subr.bf16.mxu0 %v1118
    %1437 = vmatpush1.bf16.msra.mxu0 %v1117
    %1438 = vmatprep.subr.bf16.mxu0 %v1126
    %1439 = vmatpush1.bf16.msra.mxu0 %v1125
    %1440 = vmatprep.subr.bf16.mxu0 %v1134
    %1441 = vmatpush1.bf16.msra.mxu0 %v1133
    %1442 = vmatprep.subr.bf16.mxu0 %v1142
    %1443 = vmatpush1.bf16.msra.mxu0 %v1141
    %1444 = vmatprep.subr.bf16.mxu0 %v1150
    %1445 = vmatpush1.bf16.msra.mxu0 %v1149
    %1446 = vmatprep.subr.bf16.mxu0 %v1158
    %1447 = vmatpush1.bf16.msra.mxu0 %v1157
    %1448 = vmatprep.subr.bf16.mxu0 %v1166
    %1449 = vmatpush1.bf16.msra.mxu0 %v1165
    %1450 = vmatprep.mubr.bf16.mxu0 %v654
    %1451 = vmatmul.mubr.bf16.gmra.mrb[0].mxu0 %v654
    %v1452 = vpop.f32.mrb[0].mxu0
    %v1453 = vadd.f32 0.0, %v1452
    %v1454 = vpop.f32.mrb[0].mxu0
    %v1455 = vadd.f32 0.0, %v1454
    %v1456 = vpop.f32.mrb[0].mxu0
    %v1457 = vpop.f32.mrb[0].mxu0
    %1458 = vdwg.mxu0
    %v1459 = vadd.f32 %v397, %v1330
    %v1460 = vadd.f32 %v399, %v1332
    %v1461 = vadd.f32 %v470, %v1371
    %v1462 = vadd.f32 %v472, %v1373
    %v1463 = vadd.f32 %v577, %v1412
    %v1464 = vadd.f32 %v579, %v1414
    %v1465 = vadd.f32 %v650, %v1453
    %v1466 = vadd.f32 %v652, %v1455
    %v1467 = vxor.u32 %v1459, 2147483648
    %v1468 = vmul.f32 %v1467, 1.442695
    %v1469 = vpow.pop %v1468
    %v1470 = vadd.f32 %v1469, 1.0
    %v1471 = vrcp.pop %v1470
    %v1472 = vmul.f32 1.0, %v1471
    %v1473 = vxor.u32 %v1460, 2147483648
    %v1474 = vmul.f32 %v1473, 1.442695
    %v1475 = vpow.pop %v1474
    %v1476 = vadd.f32 %v1475, 1.0
    %v1477 = vrcp.pop %v1476
    %v1478 = vmul.f32 1.0, %v1477
    %v1479 = vtanh.pop %v1461
    %v1480 = vxor.u32 %v1462, 2147483648
    %v1481 = vmul.f32 %v1480, 1.442695
    %v1482 = vpow.pop %v1481
    %v1483 = vadd.f32 %v1482, 1.0
    %v1484 = vrcp.pop %v1483
    %v1485 = vmul.f32 1.0, %v1484
    %v1486 = vmul.f32 %v1478, 0.0
    %v1487 = vmul.f32 %v1472, %v1479
    %v1488 = vadd.f32 %v1486, %v1487
    %v1489 = vtanh.pop %v1488
    %v1490 = vmul.f32 %v1485, %v1489
    %v1491 = vxor.u32 %v1463, 2147483648
    %v1492 = vmul.f32 %v1491, 1.442695
    %v1493 = vpow.pop %v1492
    %v1494 = vadd.f32 %v1493, 1.0
    %v1495 = vrcp.pop %v1494
    %v1496 = vmul.f32 1.0, %v1495
    %v1497 = vxor.u32 %v1464, 2147483648
    %v1498 = vmul.f32 %v1497, 1.442695
    %v1499 = vpow.pop %v1498
    %v1500 = vadd.f32 %v1499, 1.0
    %v1501 = vrcp.pop %v1500
    %v1502 = vmul.f32 1.0, %v1501
    %v1503 = vtanh.pop %v1465
    %v1504 = vxor.u32 %v1466, 2147483648
    %v1505 = vmul.f32 %v1504, 1.442695
    %v1506 = vpow.pop %v1505
    %v1507 = vadd.f32 %v1506, 1.0
    %v1508 = vrcp.pop %v1507
    %v1509 = vmul.f32 1.0, %v1508
    %v1510 = vmul.f32 %v1502, 0.0
    %v1511 = vmul.f32 %v1496, %v1503
    %v1512 = vadd.f32 %v1510, %v1511
    %v1513 = vtanh.pop %v1512
    %v1514 = vmul.f32 %v1509, %v1513
    %1515 = vst [vmem:[#allocation2] sm:$0xff] %v1490
    %1516 = vst [vmem:[#allocation2 + $0x78] sm:$0xff] %v1514
    %v1517 = vpack.c.bf16 %v1490, %v1490
    %v1518 = vpack.c.bf16 %v1514, %v1514
    %1519 = vmatprep.subr.bf16.mxu0 %v1040
    %1520 = vmatpush1.bf16.msra.mxu0 %v1039
    %1521 = vmatprep.subr.bf16.mxu0 %v1048
    %1522 = vmatpush1.bf16.msra.mxu0 %v1047
    %1523 = vmatprep.subr.bf16.mxu0 %v1056
    %1524 = vmatpush1.bf16.msra.mxu0 %v1055
    %1525 = vmatprep.subr.bf16.mxu0 %v1064
    %1526 = vmatpush1.bf16.msra.mxu0 %v1063
    %1527 = vmatprep.subr.bf16.mxu0 %v1072
    %1528 = vmatpush1.bf16.msra.mxu0 %v1071
    %1529 = vmatprep.subr.bf16.mxu0 %v1080
    %1530 = vmatpush1.bf16.msra.mxu0 %v1079
    %1531 = vmatprep.subr.bf16.mxu0 %v1088
    %1532 = vmatpush1.bf16.msra.mxu0 %v1087
    %1533 = vmatprep.subr.bf16.mxu0 %v1096
    %1534 = vmatpush1.bf16.msra.mxu0 %v1095
    %1535 = vmatprep.subr.bf16.mxu0 %v1104
    %1536 = vmatpush1.bf16.msra.mxu0 %v1103
    %1537 = vmatprep.subr.bf16.mxu0 %v1112
    %1538 = vmatpush1.bf16.msra.mxu0 %v1111
    %1539 = vmatprep.subr.bf16.mxu0 %v1120
    %1540 = vmatpush1.bf16.msra.mxu0 %v1119
    %1541 = vmatprep.subr.bf16.mxu0 %v1128
    %1542 = vmatpush1.bf16.msra.mxu0 %v1127
    %1543 = vmatprep.subr.bf16.mxu0 %v1136
    %1544 = vmatpush1.bf16.msra.mxu0 %v1135
    %1545 = vmatprep.subr.bf16.mxu0 %v1144
    %1546 = vmatpush1.bf16.msra.mxu0 %v1143
    %1547 = vmatprep.subr.bf16.mxu0 %v1152
    %1548 = vmatpush1.bf16.msra.mxu0 %v1151
    %1549 = vmatprep.subr.bf16.mxu0 %v1160
    %1550 = vmatpush1.bf16.msra.mxu0 %v1159
    %1551 = vmatprep.mubr.bf16.mxu0 %v1518
    %1552 = vmatmul.mubr.bf16.gmra.mrb[0].mxu0 %v1517
    %v1553 = vpop.f32.mrb[0].mxu0
    %v1554 = vadd.f32 0.0, %v1553
    %v1555 = vpop.f32.mrb[0].mxu0
    %v1556 = vadd.f32 0.0, %v1555
    %v1557 = vpop.f32.mrb[0].mxu0
    %v1558 = vpop.f32.mrb[0].mxu0
    %1559 = vdwg.mxu0
    %1560 = vmatprep.subr.bf16.mxu0 %v1042
    %1561 = vmatpush1.bf16.msra.mxu0 %v1041
    %1562 = vmatprep.subr.bf16.mxu0 %v1050
    %1563 = vmatpush1.bf16.msra.mxu0 %v1049
    %1564 = vmatprep.subr.bf16.mxu0 %v1058
    %1565 = vmatpush1.bf16.msra.mxu0 %v1057
    %1566 = vmatprep.subr.bf16.mxu0 %v1066
    %1567 = vmatpush1.bf16.msra.mxu0 %v1065
    %1568 = vmatprep.subr.bf16.mxu0 %v1074
    %1569 = vmatpush1.bf16.msra.mxu0 %v1073
    %1570 = vmatprep.subr.bf16.mxu0 %v1082
    %1571 = vmatpush1.bf16.msra.mxu0 %v1081
    %1572 = vmatprep.subr.bf16.mxu0 %v1090
    %1573 = vmatpush1.bf16.msra.mxu0 %v1089
    %1574 = vmatprep.subr.bf16.mxu0 %v1098
    %1575 = vmatpush1.bf16.msra.mxu0 %v1097
    %1576 = vmatprep.subr.bf16.mxu0 %v1106
    %1577 = vmatpush1.bf16.msra.mxu0 %v1105
    %1578 = vmatprep.subr.bf16.mxu0 %v1114
    %1579 = vmatpush1.bf16.msra.mxu0 %v1113
    %1580 = vmatprep.subr.bf16.mxu0 %v1122
    %1581 = vmatpush1.bf16.msra.mxu0 %v1121
    %1582 = vmatprep.subr.bf16.mxu0 %v1130
    %1583 = vmatpush1.bf16.msra.mxu0 %v1129
    %1584 = vmatprep.subr.bf16.mxu0 %v1138
    %1585 = vmatpush1.bf16.msra.mxu0 %v1137
    %1586 = vmatprep.subr.bf16.mxu0 %v1146
    %1587 = vmatpush1.bf16.msra.mxu0 %v1145
    %1588 = vmatprep.subr.bf16.mxu0 %v1154
    %1589 = vmatpush1.bf16.msra.mxu0 %v1153
    %1590 = vmatprep.subr.bf16.mxu0 %v1162
    %1591 = vmatpush1.bf16.msra.mxu0 %v1161
    %1592 = vmatprep.mubr.bf16.mxu0 %v1518
    %1593 = vmatmul.mubr.bf16.gmra.mrb[0].mxu0 %v1517
    %v1594 = vpop.f32.mrb[0].mxu0
    %v1595 = vadd.f32 0.0, %v1594
    %v1596 = vpop.f32.mrb[0].mxu0
    %v1597 = vadd.f32 0.0, %v1596
    %v1598 = vpop.f32.mrb[0].mxu0
    %v1599 = vpop.f32.mrb[0].mxu0
    %1600 = vdwg.mxu0
    %1601 = vmatprep.subr.bf16.mxu0 %v1044
    %1602 = vmatpush1.bf16.msra.mxu0 %v1043
    %1603 = vmatprep.subr.bf16.mxu0 %v1052
    %1604 = vmatpush1.bf16.msra.mxu0 %v1051
    %1605 = vmatprep.subr.bf16.mxu0 %v1060
    %1606 = vmatpush1.bf16.msra.mxu0 %v1059
    %1607 = vmatprep.subr.bf16.mxu0 %v1068
    %1608 = vmatpush1.bf16.msra.mxu0 %v1067
    %1609 = vmatprep.subr.bf16.mxu0 %v1076
    %1610 = vmatpush1.bf16.msra.mxu0 %v1075
    %1611 = vmatprep.subr.bf16.mxu0 %v1084
    %1612 = vmatpush1.bf16.msra.mxu0 %v1083
    %1613 = vmatprep.subr.bf16.mxu0 %v1092
    %1614 = vmatpush1.bf16.msra.mxu0 %v1091
    %1615 = vmatprep.subr.bf16.mxu0 %v1100
    %1616 = vmatpush1.bf16.msra.mxu0 %v1099
    %1617 = vmatprep.subr.bf16.mxu0 %v1108
    %1618 = vmatpush1.bf16.msra.mxu0 %v1107
    %1619 = vmatprep.subr.bf16.mxu0 %v1116
    %1620 = vmatpush1.bf16.msra.mxu0 %v1115
    %1621 = vmatprep.subr.bf16.mxu0 %v1124
    %1622 = vmatpush1.bf16.msra.mxu0 %v1123
    %1623 = vmatprep.subr.bf16.mxu0 %v1132
    %1624 = vmatpush1.bf16.msra.mxu0 %v1131
    %1625 = vmatprep.subr.bf16.mxu0 %v1140
    %1626 = vmatpush1.bf16.msra.mxu0 %v1139
    %1627 = vmatprep.subr.bf16.mxu0 %v1148
    %1628 = vmatpush1.bf16.msra.mxu0 %v1147
    %1629 = vmatprep.subr.bf16.mxu0 %v1156
    %1630 = vmatpush1.bf16.msra.mxu0 %v1155
    %1631 = vmatprep.subr.bf16.mxu0 %v1164
    %1632 = vmatpush1.bf16.msra.mxu0 %v1163
    %1633 = vmatprep.mubr.bf16.mxu0 %v1518
    %1634 = vmatmul.mubr.bf16.gmra.mrb[0].mxu0 %v1517
    %v1635 = vpop.f32.mrb[0].mxu0
    %v1636 = vadd.f32 0.0, %v1635
    %v1637 = vpop.f32.mrb[0].mxu0
    %v1638 = vadd.f32 0.0, %v1637
    %v1639 = vpop.f32.mrb[0].mxu0
    %v1640 = vpop.f32.mrb[0].mxu0
    %1641 = vdwg.mxu0
    %1642 = vmatprep.subr.bf16.mxu0 %v1046
    %1643 = vmatpush1.bf16.msra.mxu0 %v1045
    %1644 = vmatprep.subr.bf16.mxu0 %v1054
    %1645 = vmatpush1.bf16.msra.mxu0 %v1053
    %1646 = vmatprep.subr.bf16.mxu0 %v1062
    %1647 = vmatpush1.bf16.msra.mxu0 %v1061
    %1648 = vmatprep.subr.bf16.mxu0 %v1070
    %1649 = vmatpush1.bf16.msra.mxu0 %v1069
    %1650 = vmatprep.subr.bf16.mxu0 %v1078
    %1651 = vmatpush1.bf16.msra.mxu0 %v1077
    %1652 = vmatprep.subr.bf16.mxu0 %v1086
    %1653 = vmatpush1.bf16.msra.mxu0 %v1085
    %1654 = vmatprep.subr.bf16.mxu0 %v1094
    %1655 = vmatpush1.bf16.msra.mxu0 %v1093
    %1656 = vmatprep.subr.bf16.mxu0 %v1102
    %1657 = vmatpush1.bf16.msra.mxu0 %v1101
    %1658 = vmatprep.subr.bf16.mxu0 %v1110
    %1659 = vmatpush1.bf16.msra.mxu0 %v1109
    %1660 = vmatprep.subr.bf16.mxu0 %v1118
    %1661 = vmatpush1.bf16.msra.mxu0 %v1117
    %1662 = vmatprep.subr.bf16.mxu0 %v1126
    %1663 = vmatpush1.bf16.msra.mxu0 %v1125
    %1664 = vmatprep.subr.bf16.mxu0 %v1134
    %1665 = vmatpush1.bf16.msra.mxu0 %v1133
    %1666 = vmatprep.subr.bf16.mxu0 %v1142
    %1667 = vmatpush1.bf16.msra.mxu0 %v1141
    %1668 = vmatprep.subr.bf16.mxu0 %v1150
    %1669 = vmatpush1.bf16.msra.mxu0 %v1149
    %1670 = vmatprep.subr.bf16.mxu0 %v1158
    %1671 = vmatpush1.bf16.msra.mxu0 %v1157
    %1672 = vmatprep.subr.bf16.mxu0 %v1166
    %1673 = vmatpush1.bf16.msra.mxu0 %v1165
    %1674 = vmatprep.mubr.bf16.mxu0 %v1518
    %1675 = vmatmul.mubr.bf16.gmra.mrb[0].mxu0 %v1517
    %v1676 = vpop.f32.mrb[0].mxu0
    %v1677 = vadd.f32 0.0, %v1676
    %v1678 = vpop.f32.mrb[0].mxu0
    %v1679 = vadd.f32 0.0, %v1678
    %v1680 = vpop.f32.mrb[0].mxu0
    %v1681 = vpop.f32.mrb[0].mxu0
    %1682 = vdwg.mxu0
    %v1683 = vadd.f32 %v401, %v1554
    %v1684 = vadd.f32 %v403, %v1556
    %v1685 = vadd.f32 %v474, %v1595
    %v1686 = vadd.f32 %v476, %v1597
    %v1687 = vadd.f32 %v573, %v1636
    %v1688 = vadd.f32 %v575, %v1638
    %v1689 = vadd.f32 %v646, %v1677
    %v1690 = vadd.f32 %v648, %v1679
    %v1691 = vxor.u32 %v1683, 2147483648
    %v1692 = vmul.f32 %v1691, 1.442695
    %v1693 = vpow.pop %v1692
    %v1694 = vadd.f32 %v1693, 1.0
    %v1695 = vrcp.pop %v1694
    %v1696 = vmul.f32 1.0, %v1695
    %v1697 = vxor.u32 %v1684, 2147483648
    %v1698 = vmul.f32 %v1697, 1.442695
    %v1699 = vpow.pop %v1698
    %v1700 = vadd.f32 %v1699, 1.0
    %v1701 = vrcp.pop %v1700
    %v1702 = vmul.f32 1.0, %v1701
    %v1703 = vtanh.pop %v1685
    %v1704 = vxor.u32 %v1686, 2147483648
    %v1705 = vmul.f32 %v1704, 1.442695
    %v1706 = vpow.pop %v1705
    %v1707 = vadd.f32 %v1706, 1.0
    %v1708 = vrcp.pop %v1707
    %v1709 = vmul.f32 1.0, %v1708
    %v1710 = vmul.f32 %v1702, %v1488
    %v1711 = vmul.f32 %v1696, %v1703
    %v1712 = vadd.f32 %v1710, %v1711
    %v1713 = vtanh.pop %v1712
    %v1714 = vmul.f32 %v1709, %v1713
    %v1715 = vxor.u32 %v1687, 2147483648
    %v1716 = vmul.f32 %v1715, 1.442695
    %v1717 = vpow.pop %v1716
    %v1718 = vadd.f32 %v1717, 1.0
    %v1719 = vrcp.pop %v1718
    %v1720 = vmul.f32 1.0, %v1719
    %v1721 = vxor.u32 %v1688, 2147483648
    %v1722 = vmul.f32 %v1721, 1.442695
    %v1723 = vpow.pop %v1722
    %v1724 = vadd.f32 %v1723, 1.0
    %v1725 = vrcp.pop %v1724
    %v1726 = vmul.f32 1.0, %v1725
    %v1727 = vtanh.pop %v1689
    %v1728 = vxor.u32 %v1690, 2147483648
    %v1729 = vmul.f32 %v1728, 1.442695
    %v1730 = vpow.pop %v1729
    %v1731 = vadd.f32 %v1730, 1.0
    %v1732 = vrcp.pop %v1731
    %v1733 = vmul.f32 1.0, %v1732
    %v1734 = vmul.f32 %v1726, %v1512
    %v1735 = vmul.f32 %v1720, %v1727
    %v1736 = vadd.f32 %v1734, %v1735
    %v1737 = vtanh.pop %v1736
    %v1738 = vmul.f32 %v1733, %v1737
    %1739 = vst [vmem:[#allocation2 + $0x10] sm:$0xff] %v1714
    %1740 = vst [vmem:[#allocation2 + $0x68] sm:$0xff] %v1738
    %v1741 = vpack.c.bf16 %v1714, %v1714
    %v1742 = vpack.c.bf16 %v1738, %v1738
    %1743 = vmatprep.subr.bf16.mxu0 %v1040
    %1744 = vmatpush1.bf16.msra.mxu0 %v1039
    %1745 = vmatprep.subr.bf16.mxu0 %v1048
    %1746 = vmatpush1.bf16.msra.mxu0 %v1047
    %1747 = vmatprep.subr.bf16.mxu0 %v1056
    %1748 = vmatpush1.bf16.msra.mxu0 %v1055
    %1749 = vmatprep.subr.bf16.mxu0 %v1064
    %1750 = vmatpush1.bf16.msra.mxu0 %v1063
    %1751 = vmatprep.subr.bf16.mxu0 %v1072
    %1752 = vmatpush1.bf16.msra.mxu0 %v1071
    %1753 = vmatprep.subr.bf16.mxu0 %v1080
    %1754 = vmatpush1.bf16.msra.mxu0 %v1079
    %1755 = vmatprep.subr.bf16.mxu0 %v1088
    %1756 = vmatpush1.bf16.msra.mxu0 %v1087
    %1757 = vmatprep.subr.bf16.mxu0 %v1096
    %1758 = vmatpush1.bf16.msra.mxu0 %v1095
    %1759 = vmatprep.subr.bf16.mxu0 %v1104
    %1760 = vmatpush1.bf16.msra.mxu0 %v1103
    %1761 = vmatprep.subr.bf16.mxu0 %v1112
    %1762 = vmatpush1.bf16.msra.mxu0 %v1111
    %1763 = vmatprep.subr.bf16.mxu0 %v1120
    %1764 = vmatpush1.bf16.msra.mxu0 %v1119
    %1765 = vmatprep.subr.bf16.mxu0 %v1128
    %1766 = vmatpush1.bf16.msra.mxu0 %v1127
    %1767 = vmatprep.subr.bf16.mxu0 %v1136
    %1768 = vmatpush1.bf16.msra.mxu0 %v1135
    %1769 = vmatprep.subr.bf16.mxu0 %v1144
    %1770 = vmatpush1.bf16.msra.mxu0 %v1143
    %1771 = vmatprep.subr.bf16.mxu0 %v1152
    %1772 = vmatpush1.bf16.msra.mxu0 %v1151
    %1773 = vmatprep.subr.bf16.mxu0 %v1160
    %1774 = vmatpush1.bf16.msra.mxu0 %v1159
    %1775 = vmatprep.mubr.bf16.mxu0 %v1742
    %1776 = vmatmul.mubr.bf16.gmra.mrb[0].mxu0 %v1741
    %v1777 = vpop.f32.mrb[0].mxu0
    %v1778 = vadd.f32 0.0, %v1777
    %v1779 = vpop.f32.mrb[0].mxu0
    %v1780 = vadd.f32 0.0, %v1779
    %v1781 = vpop.f32.mrb[0].mxu0
    %v1782 = vpop.f32.mrb[0].mxu0
    %1783 = vdwg.mxu0
    %1784 = vmatprep.subr.bf16.mxu0 %v1042
    %1785 = vmatpush1.bf16.msra.mxu0 %v1041
    %1786 = vmatprep.subr.bf16.mxu0 %v1050
    %1787 = vmatpush1.bf16.msra.mxu0 %v1049
    %1788 = vmatprep.subr.bf16.mxu0 %v1058
    %1789 = vmatpush1.bf16.msra.mxu0 %v1057
    %1790 = vmatprep.subr.bf16.mxu0 %v1066
    %1791 = vmatpush1.bf16.msra.mxu0 %v1065
    %1792 = vmatprep.subr.bf16.mxu0 %v1074
    %1793 = vmatpush1.bf16.msra.mxu0 %v1073
    %1794 = vmatprep.subr.bf16.mxu0 %v1082
    %1795 = vmatpush1.bf16.msra.mxu0 %v1081
    %1796 = vmatprep.subr.bf16.mxu0 %v1090
    %1797 = vmatpush1.bf16.msra.mxu0 %v1089
    %1798 = vmatprep.subr.bf16.mxu0 %v1098
    %1799 = vmatpush1.bf16.msra.mxu0 %v1097
    %1800 = vmatprep.subr.bf16.mxu0 %v1106
    %1801 = vmatpush1.bf16.msra.mxu0 %v1105
    %1802 = vmatprep.subr.bf16.mxu0 %v1114
    %1803 = vmatpush1.bf16.msra.mxu0 %v1113
    %1804 = vmatprep.subr.bf16.mxu0 %v1122
    %1805 = vmatpush1.bf16.msra.mxu0 %v1121
    %1806 = vmatprep.subr.bf16.mxu0 %v1130
    %1807 = vmatpush1.bf16.msra.mxu0 %v1129
    %1808 = vmatprep.subr.bf16.mxu0 %v1138
    %1809 = vmatpush1.bf16.msra.mxu0 %v1137
    %1810 = vmatprep.subr.bf16.mxu0 %v1146
    %1811 = vmatpush1.bf16.msra.mxu0 %v1145
    %1812 = vmatprep.subr.bf16.mxu0 %v1154
    %1813 = vmatpush1.bf16.msra.mxu0 %v1153
    %1814 = vmatprep.subr.bf16.mxu0 %v1162
    %1815 = vmatpush1.bf16.msra.mxu0 %v1161
    %1816 = vmatprep.mubr.bf16.mxu0 %v1742
    %1817 = vmatmul.mubr.bf16.gmra.mrb[0].mxu0 %v1741
    %v1818 = vpop.f32.mrb[0].mxu0
    %v1819 = vadd.f32 0.0, %v1818
    %v1820 = vpop.f32.mrb[0].mxu0
    %v1821 = vadd.f32 0.0, %v1820
    %v1822 = vpop.f32.mrb[0].mxu0
    %v1823 = vpop.f32.mrb[0].mxu0
    %1824 = vdwg.mxu0
    %1825 = vmatprep.subr.bf16.mxu0 %v1044
    %1826 = vmatpush1.bf16.msra.mxu0 %v1043
    %1827 = vmatprep.subr.bf16.mxu0 %v1052
    %1828 = vmatpush1.bf16.msra.mxu0 %v1051
    %1829 = vmatprep.subr.bf16.mxu0 %v1060
    %1830 = vmatpush1.bf16.msra.mxu0 %v1059
    %1831 = vmatprep.subr.bf16.mxu0 %v1068
    %1832 = vmatpush1.bf16.msra.mxu0 %v1067
    %1833 = vmatprep.subr.bf16.mxu0 %v1076
    %1834 = vmatpush1.bf16.msra.mxu0 %v1075
    %1835 = vmatprep.subr.bf16.mxu0 %v1084
    %1836 = vmatpush1.bf16.msra.mxu0 %v1083
    %1837 = vmatprep.subr.bf16.mxu0 %v1092
    %1838 = vmatpush1.bf16.msra.mxu0 %v1091
    %1839 = vmatprep.subr.bf16.mxu0 %v1100
    %1840 = vmatpush1.bf16.msra.mxu0 %v1099
    %1841 = vmatprep.subr.bf16.mxu0 %v1108
    %1842 = vmatpush1.bf16.msra.mxu0 %v1107
    %1843 = vmatprep.subr.bf16.mxu0 %v1116
    %1844 = vmatpush1.bf16.msra.mxu0 %v1115
    %1845 = vmatprep.subr.bf16.mxu0 %v1124
    %1846 = vmatpush1.bf16.msra.mxu0 %v1123
    %1847 = vmatprep.subr.bf16.mxu0 %v1132
    %1848 = vmatpush1.bf16.msra.mxu0 %v1131
    %1849 = vmatprep.subr.bf16.mxu0 %v1140
    %1850 = vmatpush1.bf16.msra.mxu0 %v1139
    %1851 = vmatprep.subr.bf16.mxu0 %v1148
    %1852 = vmatpush1.bf16.msra.mxu0 %v1147
    %1853 = vmatprep.subr.bf16.mxu0 %v1156
    %1854 = vmatpush1.bf16.msra.mxu0 %v1155
    %1855 = vmatprep.subr.bf16.mxu0 %v1164
    %1856 = vmatpush1.bf16.msra.mxu0 %v1163
    %1857 = vmatprep.mubr.bf16.mxu0 %v1742
    %1858 = vmatmul.mubr.bf16.gmra.mrb[0].mxu0 %v1741
    %v1859 = vpop.f32.mrb[0].mxu0
    %v1860 = vadd.f32 0.0, %v1859
    %v1861 = vpop.f32.mrb[0].mxu0
    %v1862 = vadd.f32 0.0, %v1861
    %v1863 = vpop.f32.mrb[0].mxu0
    %v1864 = vpop.f32.mrb[0].mxu0
    %1865 = vdwg.mxu0
    %1866 = vmatprep.subr.bf16.mxu0 %v1046
    %1867 = vmatpush1.bf16.msra.mxu0 %v1045
    %1868 = vmatprep.subr.bf16.mxu0 %v1054
    %1869 = vmatpush1.bf16.msra.mxu0 %v1053
    %1870 = vmatprep.subr.bf16.mxu0 %v1062
    %1871 = vmatpush1.bf16.msra.mxu0 %v1061
    %1872 = vmatprep.subr.bf16.mxu0 %v1070
    %1873 = vmatpush1.bf16.msra.mxu0 %v1069
    %1874 = vmatprep.subr.bf16.mxu0 %v1078
    %1875 = vmatpush1.bf16.msra.mxu0 %v1077
    %1876 = vmatprep.subr.bf16.mxu0 %v1086
    %1877 = vmatpush1.bf16.msra.mxu0 %v1085
    %1878 = vmatprep.subr.bf16.mxu0 %v1094
    %1879 = vmatpush1.bf16.msra.mxu0 %v1093
    %1880 = vmatprep.subr.bf16.mxu0 %v1102
    %1881 = vmatpush1.bf16.msra.mxu0 %v1101
    %1882 = vmatprep.subr.bf16.mxu0 %v1110
    %1883 = vmatpush1.bf16.msra.mxu0 %v1109
    %1884 = vmatprep.subr.bf16.mxu0 %v1118
    %1885 = vmatpush1.bf16.msra.mxu0 %v1117
    %1886 = vmatprep.subr.bf16.mxu0 %v1126
    %1887 = vmatpush1.bf16.msra.mxu0 %v1125
    %1888 = vmatprep.subr.bf16.mxu0 %v1134
    %1889 = vmatpush1.bf16.msra.mxu0 %v1133
    %1890 = vmatprep.subr.bf16.mxu0 %v1142
    %1891 = vmatpush1.bf16.msra.mxu0 %v1141
    %1892 = vmatprep.subr.bf16.mxu0 %v1150
    %1893 = vmatpush1.bf16.msra.mxu0 %v1149
    %1894 = vmatprep.subr.bf16.mxu0 %v1158
    %1895 = vmatpush1.bf16.msra.mxu0 %v1157
    %1896 = vmatprep.subr.bf16.mxu0 %v1166
    %1897 = vmatpush1.bf16.msra.mxu0 %v1165
    %1898 = vmatprep.mubr.bf16.mxu0 %v1742
    %1899 = vmatmul.mubr.bf16.gmra.mrb[0].mxu0 %v1741
    %v1900 = vpop.f32.mrb[0].mxu0
    %v1901 = vadd.f32 0.0, %v1900
    %v1902 = vpop.f32.mrb[0].mxu0
    %v1903 = vadd.f32 0.0, %v1902
    %v1904 = vpop.f32.mrb[0].mxu0
    %v1905 = vpop.f32.mrb[0].mxu0
    %1906 = vdwg.mxu0
    %v1907 = vadd.f32 %v407, %v1778
    %v1908 = vadd.f32 %v409, %v1780
    %v1909 = vadd.f32 %v480, %v1819
    %v1910 = vadd.f32 %v482, %v1821
    %v1911 = vadd.f32 %v567, %v1860
    %v1912 = vadd.f32 %v569, %v1862
    %v1913 = vadd.f32 %v640, %v1901
    %v1914 = vadd.f32 %v642, %v1903
    %v1915 = vxor.u32 %v1907, 2147483648
    %v1916 = vmul.f32 %v1915, 1.442695
    %v1917 = vpow.pop %v1916
    %v1918 = vadd.f32 %v1917, 1.0
    %v1919 = vrcp.pop %v1918
    %v1920 = vmul.f32 1.0, %v1919
    %v1921 = vxor.u32 %v1908, 2147483648
    %v1922 = vmul.f32 %v1921, 1.442695
    %v1923 = vpow.pop %v1922
    %v1924 = vadd.f32 %v1923, 1.0
    %v1925 = vrcp.pop %v1924
    %v1926 = vmul.f32 1.0, %v1925
    %v1927 = vtanh.pop %v1909
    %v1928 = vxor.u32 %v1910, 2147483648
    %v1929 = vmul.f32 %v1928, 1.442695
    %v1930 = vpow.pop %v1929
    %v1931 = vadd.f32 %v1930, 1.0
    %v1932 = vrcp.pop %v1931
    %v1933 = vmul.f32 1.0, %v1932
    %v1934 = vmul.f32 %v1926, %v1712
    %v1935 = vmul.f32 %v1920, %v1927
    %v1936 = vadd.f32 %v1934, %v1935
    %v1937 = vtanh.pop %v1936
    %v1938 = vmul.f32 %v1933, %v1937
    %v1939 = vxor.u32 %v1911, 2147483648
    %v1940 = vmul.f32 %v1939, 1.442695
    %v1941 = vpow.pop %v1940
    %v1942 = vadd.f32 %v1941, 1.0
    %v1943 = vrcp.pop %v1942
    %v1944 = vmul.f32 1.0, %v1943
    %v1945 = vxor.u32 %v1912, 2147483648
    %v1946 = vmul.f32 %v1945, 1.442695
    %v1947 = vpow.pop %v1946
    %v1948 = vadd.f32 %v1947, 1.0
    %v1949 = vrcp.pop %v1948
    %v1950 = vmul.f32 1.0, %v1949
    %v1951 = vtanh.pop %v1913
    %v1952 = vxor.u32 %v1914, 2147483648
    %v1953 = vmul.f32 %v1952, 1.442695
    %v1954 = vpow.pop %v1953
    %v1955 = vadd.f32 %v1954, 1.0
    %v1956 = vrcp.pop %v1955
    %v1957 = vmul.f32 1.0, %v1956
    %v1958 = vmul.f32 %v1950, %v1736
    %v1959 = vmul.f32 %v1944, %v1951
    %v1960 = vadd.f32 %v1958, %v1959
    %v1961 = vtanh.pop %v1960
    %v1962 = vmul.f32 %v1957, %v1961
    %1963 = vst [vmem:[#allocation2 + $0x20] sm:$0xff] %v1938
    %1964 = vst [vmem:[#allocation2 + $0x58] sm:$0xff] %v1962
    %v1965 = vpack.c.bf16 %v1938, %v1938
    %v1966 = vpack.c.bf16 %v1962, %v1962
    %1967 = vmatprep.subr.bf16.mxu0 %v1040
    %1968 = vmatpush1.bf16.msra.mxu0 %v1039
    %1969 = vmatprep.subr.bf16.mxu0 %v1048
    %1970 = vmatpush1.bf16.msra.mxu0 %v1047
    %1971 = vmatprep.subr.bf16.mxu0 %v1056
    %1972 = vmatpush1.bf16.msra.mxu0 %v1055
    %1973 = vmatprep.subr.bf16.mxu0 %v1064
    %1974 = vmatpush1.bf16.msra.mxu0 %v1063
    %1975 = vmatprep.subr.bf16.mxu0 %v1072
    %1976 = vmatpush1.bf16.msra.mxu0 %v1071
    %1977 = vmatprep.subr.bf16.mxu0 %v1080
    %1978 = vmatpush1.bf16.msra.mxu0 %v1079
    %1979 = vmatprep.subr.bf16.mxu0 %v1088
    %1980 = vmatpush1.bf16.msra.mxu0 %v1087
    %1981 = vmatprep.subr.bf16.mxu0 %v1096
    %1982 = vmatpush1.bf16.msra.mxu0 %v1095
    %1983 = vmatprep.subr.bf16.mxu0 %v1104
    %1984 = vmatpush1.bf16.msra.mxu0 %v1103
    %1985 = vmatprep.subr.bf16.mxu0 %v1112
    %1986 = vmatpush1.bf16.msra.mxu0 %v1111
    %1987 = vmatprep.subr.bf16.mxu0 %v1120
    %1988 = vmatpush1.bf16.msra.mxu0 %v1119
    %1989 = vmatprep.subr.bf16.mxu0 %v1128
    %1990 = vmatpush1.bf16.msra.mxu0 %v1127
    %1991 = vmatprep.subr.bf16.mxu0 %v1136
    %1992 = vmatpush1.bf16.msra.mxu0 %v1135
    %1993 = vmatprep.subr.bf16.mxu0 %v1144
    %1994 = vmatpush1.bf16.msra.mxu0 %v1143
    %1995 = vmatprep.subr.bf16.mxu0 %v1152
    %1996 = vmatpush1.bf16.msra.mxu0 %v1151
    %1997 = vmatprep.subr.bf16.mxu0 %v1160
    %1998 = vmatpush1.bf16.msra.mxu0 %v1159
    %1999 = vmatprep.mubr.bf16.mxu0 %v1966
    %2000 = vmatmul.mubr.bf16.gmra.mrb[0].mxu0 %v1965
    %v2001 = vpop.f32.mrb[0].mxu0
    %v2002 = vadd.f32 0.0, %v2001
    %v2003 = vpop.f32.mrb[0].mxu0
    %v2004 = vadd.f32 0.0, %v2003
    %v2005 = vpop.f32.mrb[0].mxu0
    %v2006 = vpop.f32.mrb[0].mxu0
    %2007 = vdwg.mxu0
    %2008 = vmatprep.subr.bf16.mxu0 %v1042
    %2009 = vmatpush1.bf16.msra.mxu0 %v1041
    %2010 = vmatprep.subr.bf16.mxu0 %v1050
    %2011 = vmatpush1.bf16.msra.mxu0 %v1049
    %2012 = vmatprep.subr.bf16.mxu0 %v1058
    %2013 = vmatpush1.bf16.msra.mxu0 %v1057
    %2014 = vmatprep.subr.bf16.mxu0 %v1066
    %2015 = vmatpush1.bf16.msra.mxu0 %v1065
    %2016 = vmatprep.subr.bf16.mxu0 %v1074
    %2017 = vmatpush1.bf16.msra.mxu0 %v1073
    %2018 = vmatprep.subr.bf16.mxu0 %v1082
    %2019 = vmatpush1.bf16.msra.mxu0 %v1081
    %2020 = vmatprep.subr.bf16.mxu0 %v1090
    %2021 = vmatpush1.bf16.msra.mxu0 %v1089
    %2022 = vmatprep.subr.bf16.mxu0 %v1098
    %2023 = vmatpush1.bf16.msra.mxu0 %v1097
    %2024 = vmatprep.subr.bf16.mxu0 %v1106
    %2025 = vmatpush1.bf16.msra.mxu0 %v1105
    %2026 = vmatprep.subr.bf16.mxu0 %v1114
    %2027 = vmatpush1.bf16.msra.mxu0 %v1113
    %2028 = vmatprep.subr.bf16.mxu0 %v1122
    %2029 = vmatpush1.bf16.msra.mxu0 %v1121
    %2030 = vmatprep.subr.bf16.mxu0 %v1130
    %2031 = vmatpush1.bf16.msra.mxu0 %v1129
    %2032 = vmatprep.subr.bf16.mxu0 %v1138
    %2033 = vmatpush1.bf16.msra.mxu0 %v1137
    %2034 = vmatprep.subr.bf16.mxu0 %v1146
    %2035 = vmatpush1.bf16.msra.mxu0 %v1145
    %2036 = vmatprep.subr.bf16.mxu0 %v1154
    %2037 = vmatpush1.bf16.msra.mxu0 %v1153
    %2038 = vmatprep.subr.bf16.mxu0 %v1162
    %2039 = vmatpush1.bf16.msra.mxu0 %v1161
    %2040 = vmatprep.mubr.bf16.mxu0 %v1966
    %2041 = vmatmul.mubr.bf16.gmra.mrb[0].mxu0 %v1965
    %v2042 = vpop.f32.mrb[0].mxu0
    %v2043 = vadd.f32 0.0, %v2042
    %v2044 = vpop.f32.mrb[0].mxu0
    %v2045 = vadd.f32 0.0, %v2044
    %v2046 = vpop.f32.mrb[0].mxu0
    %v2047 = vpop.f32.mrb[0].mxu0
    %2048 = vdwg.mxu0
    %2049 = vmatprep.subr.bf16.mxu0 %v1044
    %2050 = vmatpush1.bf16.msra.mxu0 %v1043
    %2051 = vmatprep.subr.bf16.mxu0 %v1052
    %2052 = vmatpush1.bf16.msra.mxu0 %v1051
    %2053 = vmatprep.subr.bf16.mxu0 %v1060
    %2054 = vmatpush1.bf16.msra.mxu0 %v1059
    %2055 = vmatprep.subr.bf16.mxu0 %v1068
    %2056 = vmatpush1.bf16.msra.mxu0 %v1067
    %2057 = vmatprep.subr.bf16.mxu0 %v1076
    %2058 = vmatpush1.bf16.msra.mxu0 %v1075
    %2059 = vmatprep.subr.bf16.mxu0 %v1084
    %2060 = vmatpush1.bf16.msra.mxu0 %v1083
    %2061 = vmatprep.subr.bf16.mxu0 %v1092
    %2062 = vmatpush1.bf16.msra.mxu0 %v1091
    %2063 = vmatprep.subr.bf16.mxu0 %v1100
    %2064 = vmatpush1.bf16.msra.mxu0 %v1099
    %2065 = vmatprep.subr.bf16.mxu0 %v1108
    %2066 = vmatpush1.bf16.msra.mxu0 %v1107
    %2067 = vmatprep.subr.bf16.mxu0 %v1116
    %2068 = vmatpush1.bf16.msra.mxu0 %v1115
    %2069 = vmatprep.subr.bf16.mxu0 %v1124
    %2070 = vmatpush1.bf16.msra.mxu0 %v1123
    %2071 = vmatprep.subr.bf16.mxu0 %v1132
    %2072 = vmatpush1.bf16.msra.mxu0 %v1131
    %2073 = vmatprep.subr.bf16.mxu0 %v1140
    %2074 = vmatpush1.bf16.msra.mxu0 %v1139
    %2075 = vmatprep.subr.bf16.mxu0 %v1148
    %2076 = vmatpush1.bf16.msra.mxu0 %v1147
    %2077 = vmatprep.subr.bf16.mxu0 %v1156
    %2078 = vmatpush1.bf16.msra.mxu0 %v1155
    %2079 = vmatprep.subr.bf16.mxu0 %v1164
    %2080 = vmatpush1.bf16.msra.mxu0 %v1163
    %2081 = vmatprep.mubr.bf16.mxu0 %v1966
    %2082 = vmatmul.mubr.bf16.gmra.mrb[0].mxu0 %v1965
    %v2083 = vpop.f32.mrb[0].mxu0
    %v2084 = vadd.f32 0.0, %v2083
    %v2085 = vpop.f32.mrb[0].mxu0
    %v2086 = vadd.f32 0.0, %v2085
    %v2087 = vpop.f32.mrb[0].mxu0
    %v2088 = vpop.f32.mrb[0].mxu0
    %2089 = vdwg.mxu0
    %2090 = vmatprep.subr.bf16.mxu0 %v1046
    %2091 = vmatpush1.bf16.msra.mxu0 %v1045
    %2092 = vmatprep.subr.bf16.mxu0 %v1054
    %2093 = vmatpush1.bf16.msra.mxu0 %v1053
    %2094 = vmatprep.subr.bf16.mxu0 %v1062
    %2095 = vmatpush1.bf16.msra.mxu0 %v1061
    %2096 = vmatprep.subr.bf16.mxu0 %v1070
    %2097 = vmatpush1.bf16.msra.mxu0 %v1069
    %2098 = vmatprep.subr.bf16.mxu0 %v1078
    %2099 = vmatpush1.bf16.msra.mxu0 %v1077
    %2100 = vmatprep.subr.bf16.mxu0 %v1086
    %2101 = vmatpush1.bf16.msra.mxu0 %v1085
    %2102 = vmatprep.subr.bf16.mxu0 %v1094
    %2103 = vmatpush1.bf16.msra.mxu0 %v1093
    %2104 = vmatprep.subr.bf16.mxu0 %v1102
    %2105 = vmatpush1.bf16.msra.mxu0 %v1101
    %2106 = vmatprep.subr.bf16.mxu0 %v1110
    %2107 = vmatpush1.bf16.msra.mxu0 %v1109
    %2108 = vmatprep.subr.bf16.mxu0 %v1118
    %2109 = vmatpush1.bf16.msra.mxu0 %v1117
    %2110 = vmatprep.subr.bf16.mxu0 %v1126
    %2111 = vmatpush1.bf16.msra.mxu0 %v1125
    %2112 = vmatprep.subr.bf16.mxu0 %v1134
    %2113 = vmatpush1.bf16.msra.mxu0 %v1133
    %2114 = vmatprep.subr.bf16.mxu0 %v1142
    %2115 = vmatpush1.bf16.msra.mxu0 %v1141
    %2116 = vmatprep.subr.bf16.mxu0 %v1150
    %2117 = vmatpush1.bf16.msra.mxu0 %v1149
    %2118 = vmatprep.subr.bf16.mxu0 %v1158
    %2119 = vmatpush1.bf16.msra.mxu0 %v1157
    %2120 = vmatprep.subr.bf16.mxu0 %v1166
    %2121 = vmatpush1.bf16.msra.mxu0 %v1165
    %2122 = vmatprep.mubr.bf16.mxu0 %v1966
    %2123 = vmatmul.mubr.bf16.gmra.mrb[0].mxu0 %v1965
    %v2124 = vpop.f32.mrb[0].mxu0
    %v2125 = vadd.f32 0.0, %v2124
    %v2126 = vpop.f32.mrb[0].mxu0
    %v2127 = vadd.f32 0.0, %v2126
    %v2128 = vpop.f32.mrb[0].mxu0
    %v2129 = vpop.f32.mrb[0].mxu0
    %2130 = vdwg.mxu0
    %v2131 = vadd.f32 %v411, %v2002
    %v2132 = vadd.f32 %v413, %v2004
    %v2133 = vadd.f32 %v484, %v2043
    %v2134 = vadd.f32 %v486, %v2045
    %v2135 = vadd.f32 %v563, %v2084
    %v2136 = vadd.f32 %v565, %v2086
    %v2137 = vadd.f32 %v636, %v2125
    %v2138 = vadd.f32 %v638, %v2127
    %v2139 = vxor.u32 %v2131, 2147483648
    %v2140 = vmul.f32 %v2139, 1.442695
    %v2141 = vpow.pop %v2140
    %v2142 = vadd.f32 %v2141, 1.0
    %v2143 = vrcp.pop %v2142
    %v2144 = vmul.f32 1.0, %v2143
    %v2145 = vxor.u32 %v2132, 2147483648
    %v2146 = vmul.f32 %v2145, 1.442695
    %v2147 = vpow.pop %v2146
    %v2148 = vadd.f32 %v2147, 1.0
    %v2149 = vrcp.pop %v2148
    %v2150 = vmul.f32 1.0, %v2149
    %v2151 = vtanh.pop %v2133
    %v2152 = vxor.u32 %v2134, 2147483648
    %v2153 = vmul.f32 %v2152, 1.442695
    %v2154 = vpow.pop %v2153
    %v2155 = vadd.f32 %v2154, 1.0
    %v2156 = vrcp.pop %v2155
    %v2157 = vmul.f32 1.0, %v2156
    %v2158 = vmul.f32 %v2150, %v1936
    %v2159 = vmul.f32 %v2144, %v2151
    %v2160 = vadd.f32 %v2158, %v2159
    %v2161 = vtanh.pop %v2160
    %v2162 = vmul.f32 %v2157, %v2161
    %v2163 = vxor.u32 %v2135, 2147483648
    %v2164 = vmul.f32 %v2163, 1.442695
    %v2165 = vpow.pop %v2164
    %v2166 = vadd.f32 %v2165, 1.0
    %v2167 = vrcp.pop %v2166
    %v2168 = vmul.f32 1.0, %v2167
    %v2169 = vxor.u32 %v2136, 2147483648
    %v2170 = vmul.f32 %v2169, 1.442695
    %v2171 = vpow.pop %v2170
    %v2172 = vadd.f32 %v2171, 1.0
    %v2173 = vrcp.pop %v2172
    %v2174 = vmul.f32 1.0, %v2173
    %v2175 = vtanh.pop %v2137
    %v2176 = vxor.u32 %v2138, 2147483648
    %v2177 = vmul.f32 %v2176, 1.442695
    %v2178 = vpow.pop %v2177
    %v2179 = vadd.f32 %v2178, 1.0
    %v2180 = vrcp.pop %v2179
    %v2181 = vmul.f32 1.0, %v2180
    %v2182 = vmul.f32 %v2174, %v1960
    %v2183 = vmul.f32 %v2168, %v2175
    %v2184 = vadd.f32 %v2182, %v2183
    %v2185 = vtanh.pop %v2184
    %v2186 = vmul.f32 %v2181, %v2185
    %2187 = vst [vmem:[#allocation2 + $0x30] sm:$0xff] %v2162
    %2188 = vst [vmem:[#allocation2 + $0x48] sm:$0xff] %v2186
    %v2189 = vpack.c.bf16 %v2162, %v2162
    %v2190 = vpack.c.bf16 %v2186, %v2186
    %2191 = vmatprep.subr.bf16.mxu0 %v1040
    %2192 = vmatpush1.bf16.msra.mxu0 %v1039
    %2193 = vmatprep.subr.bf16.mxu0 %v1048
    %2194 = vmatpush1.bf16.msra.mxu0 %v1047
    %2195 = vmatprep.subr.bf16.mxu0 %v1056
    %2196 = vmatpush1.bf16.msra.mxu0 %v1055
    %2197 = vmatprep.subr.bf16.mxu0 %v1064
    %2198 = vmatpush1.bf16.msra.mxu0 %v1063
    %2199 = vmatprep.subr.bf16.mxu0 %v1072
    %2200 = vmatpush1.bf16.msra.mxu0 %v1071
    %2201 = vmatprep.subr.bf16.mxu0 %v1080
    %2202 = vmatpush1.bf16.msra.mxu0 %v1079
    %2203 = vmatprep.subr.bf16.mxu0 %v1088
    %2204 = vmatpush1.bf16.msra.mxu0 %v1087
    %2205 = vmatprep.subr.bf16.mxu0 %v1096
    %2206 = vmatpush1.bf16.msra.mxu0 %v1095
    %2207 = vmatprep.subr.bf16.mxu0 %v1104
    %2208 = vmatpush1.bf16.msra.mxu0 %v1103
    %2209 = vmatprep.subr.bf16.mxu0 %v1112
    %2210 = vmatpush1.bf16.msra.mxu0 %v1111
    %2211 = vmatprep.subr.bf16.mxu0 %v1120
    %2212 = vmatpush1.bf16.msra.mxu0 %v1119
    %2213 = vmatprep.subr.bf16.mxu0 %v1128
    %2214 = vmatpush1.bf16.msra.mxu0 %v1127
    %2215 = vmatprep.subr.bf16.mxu0 %v1136
    %2216 = vmatpush1.bf16.msra.mxu0 %v1135
    %2217 = vmatprep.subr.bf16.mxu0 %v1144
    %2218 = vmatpush1.bf16.msra.mxu0 %v1143
    %2219 = vmatprep.subr.bf16.mxu0 %v1152
    %2220 = vmatpush1.bf16.msra.mxu0 %v1151
    %2221 = vmatprep.subr.bf16.mxu0 %v1160
    %2222 = vmatpush1.bf16.msra.mxu0 %v1159
    %2223 = vmatprep.mubr.bf16.mxu0 %v2190
    %2224 = vmatmul.mubr.bf16.gmra.mrb[0].mxu0 %v2189
    %v2225 = vpop.f32.mrb[0].mxu0
    %v2226 = vadd.f32 0.0, %v2225
    %v2227 = vpop.f32.mrb[0].mxu0
    %v2228 = vadd.f32 0.0, %v2227
    %v2229 = vpop.f32.mrb[0].mxu0
    %v2230 = vpop.f32.mrb[0].mxu0
    %2231 = vdwg.mxu0
    %2232 = vmatprep.subr.bf16.mxu0 %v1042
    %2233 = vmatpush1.bf16.msra.mxu0 %v1041
    %2234 = vmatprep.subr.bf16.mxu0 %v1050
    %2235 = vmatpush1.bf16.msra.mxu0 %v1049
    %2236 = vmatprep.subr.bf16.mxu0 %v1058
    %2237 = vmatpush1.bf16.msra.mxu0 %v1057
    %2238 = vmatprep.subr.bf16.mxu0 %v1066
    %2239 = vmatpush1.bf16.msra.mxu0 %v1065
    %2240 = vmatprep.subr.bf16.mxu0 %v1074
    %2241 = vmatpush1.bf16.msra.mxu0 %v1073
    %2242 = vmatprep.subr.bf16.mxu0 %v1082
    %2243 = vmatpush1.bf16.msra.mxu0 %v1081
    %2244 = vmatprep.subr.bf16.mxu0 %v1090
    %2245 = vmatpush1.bf16.msra.mxu0 %v1089
    %2246 = vmatprep.subr.bf16.mxu0 %v1098
    %2247 = vmatpush1.bf16.msra.mxu0 %v1097
    %2248 = vmatprep.subr.bf16.mxu0 %v1106
    %2249 = vmatpush1.bf16.msra.mxu0 %v1105
    %2250 = vmatprep.subr.bf16.mxu0 %v1114
    %2251 = vmatpush1.bf16.msra.mxu0 %v1113
    %2252 = vmatprep.subr.bf16.mxu0 %v1122
    %2253 = vmatpush1.bf16.msra.mxu0 %v1121
    %2254 = vmatprep.subr.bf16.mxu0 %v1130
    %2255 = vmatpush1.bf16.msra.mxu0 %v1129
    %2256 = vmatprep.subr.bf16.mxu0 %v1138
    %2257 = vmatpush1.bf16.msra.mxu0 %v1137
    %2258 = vmatprep.subr.bf16.mxu0 %v1146
    %2259 = vmatpush1.bf16.msra.mxu0 %v1145
    %2260 = vmatprep.subr.bf16.mxu0 %v1154
    %2261 = vmatpush1.bf16.msra.mxu0 %v1153
    %2262 = vmatprep.subr.bf16.mxu0 %v1162
    %2263 = vmatpush1.bf16.msra.mxu0 %v1161
    %2264 = vmatprep.mubr.bf16.mxu0 %v2190
    %2265 = vmatmul.mubr.bf16.gmra.mrb[0].mxu0 %v2189
    %v2266 = vpop.f32.mrb[0].mxu0
    %v2267 = vadd.f32 0.0, %v2266
    %v2268 = vpop.f32.mrb[0].mxu0
    %v2269 = vadd.f32 0.0, %v2268
    %v2270 = vpop.f32.mrb[0].mxu0
    %v2271 = vpop.f32.mrb[0].mxu0
    %2272 = vdwg.mxu0
    %2273 = vmatprep.subr.bf16.mxu0 %v1044
    %2274 = vmatpush1.bf16.msra.mxu0 %v1043
    %2275 = vmatprep.subr.bf16.mxu0 %v1052
    %2276 = vmatpush1.bf16.msra.mxu0 %v1051
    %2277 = vmatprep.subr.bf16.mxu0 %v1060
    %2278 = vmatpush1.bf16.msra.mxu0 %v1059
    %2279 = vmatprep.subr.bf16.mxu0 %v1068
    %2280 = vmatpush1.bf16.msra.mxu0 %v1067
    %2281 = vmatprep.subr.bf16.mxu0 %v1076
    %2282 = vmatpush1.bf16.msra.mxu0 %v1075
    %2283 = vmatprep.subr.bf16.mxu0 %v1084
    %2284 = vmatpush1.bf16.msra.mxu0 %v1083
    %2285 = vmatprep.subr.bf16.mxu0 %v1092
    %2286 = vmatpush1.bf16.msra.mxu0 %v1091
    %2287 = vmatprep.subr.bf16.mxu0 %v1100
    %2288 = vmatpush1.bf16.msra.mxu0 %v1099
    %2289 = vmatprep.subr.bf16.mxu0 %v1108
    %2290 = vmatpush1.bf16.msra.mxu0 %v1107
    %2291 = vmatprep.subr.bf16.mxu0 %v1116
    %2292 = vmatpush1.bf16.msra.mxu0 %v1115
    %2293 = vmatprep.subr.bf16.mxu0 %v1124
    %2294 = vmatpush1.bf16.msra.mxu0 %v1123
    %2295 = vmatprep.subr.bf16.mxu0 %v1132
    %2296 = vmatpush1.bf16.msra.mxu0 %v1131
    %2297 = vmatprep.subr.bf16.mxu0 %v1140
    %2298 = vmatpush1.bf16.msra.mxu0 %v1139
    %2299 = vmatprep.subr.bf16.mxu0 %v1148
    %2300 = vmatpush1.bf16.msra.mxu0 %v1147
    %2301 = vmatprep.subr.bf16.mxu0 %v1156
    %2302 = vmatpush1.bf16.msra.mxu0 %v1155
    %2303 = vmatprep.subr.bf16.mxu0 %v1164
    %2304 = vmatpush1.bf16.msra.mxu0 %v1163
    %2305 = vmatprep.mubr.bf16.mxu0 %v2190
    %2306 = vmatmul.mubr.bf16.gmra.mrb[0].mxu0 %v2189
    %v2307 = vpop.f32.mrb[0].mxu0
    %v2308 = vadd.f32 0.0, %v2307
    %v2309 = vpop.f32.mrb[0].mxu0
    %v2310 = vadd.f32 0.0, %v2309
    %v2311 = vpop.f32.mrb[0].mxu0
    %v2312 = vpop.f32.mrb[0].mxu0
    %2313 = vdwg.mxu0
    %2314 = vmatprep.subr.bf16.mxu0 %v1046
    %2315 = vmatpush1.bf16.msra.mxu0 %v1045
    %2316 = vmatprep.subr.bf16.mxu0 %v1054
    %2317 = vmatpush1.bf16.msra.mxu0 %v1053
    %2318 = vmatprep.subr.bf16.mxu0 %v1062
    %2319 = vmatpush1.bf16.msra.mxu0 %v1061
    %2320 = vmatprep.subr.bf16.mxu0 %v1070
    %2321 = vmatpush1.bf16.msra.mxu0 %v1069
    %2322 = vmatprep.subr.bf16.mxu0 %v1078
    %2323 = vmatpush1.bf16.msra.mxu0 %v1077
    %2324 = vmatprep.subr.bf16.mxu0 %v1086
    %2325 = vmatpush1.bf16.msra.mxu0 %v1085
    %2326 = vmatprep.subr.bf16.mxu0 %v1094
    %2327 = vmatpush1.bf16.msra.mxu0 %v1093
    %2328 = vmatprep.subr.bf16.mxu0 %v1102
    %2329 = vmatpush1.bf16.msra.mxu0 %v1101
    %2330 = vmatprep.subr.bf16.mxu0 %v1110
    %2331 = vmatpush1.bf16.msra.mxu0 %v1109
    %2332 = vmatprep.subr.bf16.mxu0 %v1118
    %2333 = vmatpush1.bf16.msra.mxu0 %v1117
    %2334 = vmatprep.subr.bf16.mxu0 %v1126
    %2335 = vmatpush1.bf16.msra.mxu0 %v1125
    %2336 = vmatprep.subr.bf16.mxu0 %v1134
    %2337 = vmatpush1.bf16.msra.mxu0 %v1133
    %2338 = vmatprep.subr.bf16.mxu0 %v1142
    %2339 = vmatpush1.bf16.msra.mxu0 %v1141
    %2340 = vmatprep.subr.bf16.mxu0 %v1150
    %2341 = vmatpush1.bf16.msra.mxu0 %v1149
    %2342 = vmatprep.subr.bf16.mxu0 %v1158
    %2343 = vmatpush1.bf16.msra.mxu0 %v1157
    %2344 = vmatprep.subr.bf16.mxu0 %v1166
    %2345 = vmatpush1.bf16.msra.mxu0 %v1165
    %2346 = vmatprep.mubr.bf16.mxu0 %v2190
    %2347 = vmatmul.mubr.bf16.gmra.mrb[0].mxu0 %v2189
    %v2348 = vpop.f32.mrb[0].mxu0
    %v2349 = vadd.f32 0.0, %v2348
    %v2350 = vpop.f32.mrb[0].mxu0
    %v2351 = vadd.f32 0.0, %v2350
    %v2352 = vpop.f32.mrb[0].mxu0
    %v2353 = vpop.f32.mrb[0].mxu0
    %2354 = vdwg.mxu0
    %v2355 = vadd.f32 %v417, %v2226
    %v2356 = vadd.f32 %v419, %v2228
    %v2357 = vadd.f32 %v490, %v2267
    %v2358 = vadd.f32 %v492, %v2269
    %v2359 = vadd.f32 %v557, %v2308
    %v2360 = vadd.f32 %v559, %v2310
    %v2361 = vadd.f32 %v630, %v2349
    %v2362 = vadd.f32 %v632, %v2351
    %v2363 = vxor.u32 %v2355, 2147483648
    %v2364 = vmul.f32 %v2363, 1.442695
    %v2365 = vpow.pop %v2364
    %v2366 = vadd.f32 %v2365, 1.0
    %v2367 = vrcp.pop %v2366
    %v2368 = vmul.f32 1.0, %v2367
    %v2369 = vxor.u32 %v2356, 2147483648
    %v2370 = vmul.f32 %v2369, 1.442695
    %v2371 = vpow.pop %v2370
    %v2372 = vadd.f32 %v2371, 1.0
    %v2373 = vrcp.pop %v2372
    %v2374 = vmul.f32 1.0, %v2373
    %v2375 = vtanh.pop %v2357
    %v2376 = vxor.u32 %v2358, 2147483648
    %v2377 = vmul.f32 %v2376, 1.442695
    %v2378 = vpow.pop %v2377
    %v2379 = vadd.f32 %v2378, 1.0
    %v2380 = vrcp.pop %v2379
    %v2381 = vmul.f32 1.0, %v2380
    %v2382 = vmul.f32 %v2374, %v2160
    %v2383 = vmul.f32 %v2368, %v2375
    %v2384 = vadd.f32 %v2382, %v2383
    %v2385 = vtanh.pop %v2384
    %v2386 = vmul.f32 %v2381, %v2385
    %v2387 = vxor.u32 %v2359, 2147483648
    %v2388 = vmul.f32 %v2387, 1.442695
    %v2389 = vpow.pop %v2388
    %v2390 = vadd.f32 %v2389, 1.0
    %v2391 = vrcp.pop %v2390
    %v2392 = vmul.f32 1.0, %v2391
    %v2393 = vxor.u32 %v2360, 2147483648
    %v2394 = vmul.f32 %v2393, 1.442695
    %v2395 = vpow.pop %v2394
    %v2396 = vadd.f32 %v2395, 1.0
    %v2397 = vrcp.pop %v2396
    %v2398 = vmul.f32 1.0, %v2397
    %v2399 = vtanh.pop %v2361
    %v2400 = vxor.u32 %v2362, 2147483648
    %v2401 = vmul.f32 %v2400, 1.442695
    %v2402 = vpow.pop %v2401
    %v2403 = vadd.f32 %v2402, 1.0
    %v2404 = vrcp.pop %v2403
    %v2405 = vmul.f32 1.0, %v2404
    %v2406 = vmul.f32 %v2398, %v2184
    %v2407 = vmul.f32 %v2392, %v2399
    %v2408 = vadd.f32 %v2406, %v2407
    %v2409 = vtanh.pop %v2408
    %v2410 = vmul.f32 %v2405, %v2409
    %2411 = vst [vmem:[#allocation2 + $0x40] sm:$0xff] %v2386
    %2412 = vst [vmem:[#allocation2 + $0x38] sm:$0xff] %v2410
    %v2413 = vpack.c.bf16 %v2386, %v2386
    %v2414 = vpack.c.bf16 %v2410, %v2410
    %2415 = vmatprep.subr.bf16.mxu0 %v1040
    %2416 = vmatpush1.bf16.msra.mxu0 %v1039
    %2417 = vmatprep.subr.bf16.mxu0 %v1048
    %2418 = vmatpush1.bf16.msra.mxu0 %v1047
    %2419 = vmatprep.subr.bf16.mxu0 %v1056
    %2420 = vmatpush1.bf16.msra.mxu0 %v1055
    %2421 = vmatprep.subr.bf16.mxu0 %v1064
    %2422 = vmatpush1.bf16.msra.mxu0 %v1063
    %2423 = vmatprep.subr.bf16.mxu0 %v1072
    %2424 = vmatpush1.bf16.msra.mxu0 %v1071
    %2425 = vmatprep.subr.bf16.mxu0 %v1080
    %2426 = vmatpush1.bf16.msra.mxu0 %v1079
    %2427 = vmatprep.subr.bf16.mxu0 %v1088
    %2428 = vmatpush1.bf16.msra.mxu0 %v1087
    %2429 = vmatprep.subr.bf16.mxu0 %v1096
    %2430 = vmatpush1.bf16.msra.mxu0 %v1095
    %2431 = vmatprep.subr.bf16.mxu0 %v1104
    %2432 = vmatpush1.bf16.msra.mxu0 %v1103
    %2433 = vmatprep.subr.bf16.mxu0 %v1112
    %2434 = vmatpush1.bf16.msra.mxu0 %v1111
    %2435 = vmatprep.subr.bf16.mxu0 %v1120
    %2436 = vmatpush1.bf16.msra.mxu0 %v1119
    %2437 = vmatprep.subr.bf16.mxu0 %v1128
    %2438 = vmatpush1.bf16.msra.mxu0 %v1127
    %2439 = vmatprep.subr.bf16.mxu0 %v1136
    %2440 = vmatpush1.bf16.msra.mxu0 %v1135
    %2441 = vmatprep.subr.bf16.mxu0 %v1144
    %2442 = vmatpush1.bf16.msra.mxu0 %v1143
    %2443 = vmatprep.subr.bf16.mxu0 %v1152
    %2444 = vmatpush1.bf16.msra.mxu0 %v1151
    %2445 = vmatprep.subr.bf16.mxu0 %v1160
    %2446 = vmatpush1.bf16.msra.mxu0 %v1159
    %2447 = vmatprep.mubr.bf16.mxu0 %v2414
    %2448 = vmatmul.mubr.bf16.gmra.mrb[0].mxu0 %v2413
    %v2449 = vpop.f32.mrb[0].mxu0
    %v2450 = vadd.f32 0.0, %v2449
    %v2451 = vpop.f32.mrb[0].mxu0
    %v2452 = vadd.f32 0.0, %v2451
    %v2453 = vpop.f32.mrb[0].mxu0
    %v2454 = vpop.f32.mrb[0].mxu0
    %2455 = vdwg.mxu0
    %2456 = vmatprep.subr.bf16.mxu0 %v1042
    %2457 = vmatpush1.bf16.msra.mxu0 %v1041
    %2458 = vmatprep.subr.bf16.mxu0 %v1050
    %2459 = vmatpush1.bf16.msra.mxu0 %v1049
    %2460 = vmatprep.subr.bf16.mxu0 %v1058
    %2461 = vmatpush1.bf16.msra.mxu0 %v1057
    %2462 = vmatprep.subr.bf16.mxu0 %v1066
    %2463 = vmatpush1.bf16.msra.mxu0 %v1065
    %2464 = vmatprep.subr.bf16.mxu0 %v1074
    %2465 = vmatpush1.bf16.msra.mxu0 %v1073
    %2466 = vmatprep.subr.bf16.mxu0 %v1082
    %2467 = vmatpush1.bf16.msra.mxu0 %v1081
    %2468 = vmatprep.subr.bf16.mxu0 %v1090
    %2469 = vmatpush1.bf16.msra.mxu0 %v1089
    %2470 = vmatprep.subr.bf16.mxu0 %v1098
    %2471 = vmatpush1.bf16.msra.mxu0 %v1097
    %2472 = vmatprep.subr.bf16.mxu0 %v1106
    %2473 = vmatpush1.bf16.msra.mxu0 %v1105
    %2474 = vmatprep.subr.bf16.mxu0 %v1114
    %2475 = vmatpush1.bf16.msra.mxu0 %v1113
    %2476 = vmatprep.subr.bf16.mxu0 %v1122
    %2477 = vmatpush1.bf16.msra.mxu0 %v1121
    %2478 = vmatprep.subr.bf16.mxu0 %v1130
    %2479 = vmatpush1.bf16.msra.mxu0 %v1129
    %2480 = vmatprep.subr.bf16.mxu0 %v1138
    %2481 = vmatpush1.bf16.msra.mxu0 %v1137
    %2482 = vmatprep.subr.bf16.mxu0 %v1146
    %2483 = vmatpush1.bf16.msra.mxu0 %v1145
    %2484 = vmatprep.subr.bf16.mxu0 %v1154
    %2485 = vmatpush1.bf16.msra.mxu0 %v1153
    %2486 = vmatprep.subr.bf16.mxu0 %v1162
    %2487 = vmatpush1.bf16.msra.mxu0 %v1161
    %2488 = vmatprep.mubr.bf16.mxu0 %v2414
    %2489 = vmatmul.mubr.bf16.gmra.mrb[0].mxu0 %v2413
    %v2490 = vpop.f32.mrb[0].mxu0
    %v2491 = vadd.f32 0.0, %v2490
    %v2492 = vpop.f32.mrb[0].mxu0
    %v2493 = vadd.f32 0.0, %v2492
    %v2494 = vpop.f32.mrb[0].mxu0
    %v2495 = vpop.f32.mrb[0].mxu0
    %2496 = vdwg.mxu0
    %2497 = vmatprep.subr.bf16.mxu0 %v1044
    %2498 = vmatpush1.bf16.msra.mxu0 %v1043
    %2499 = vmatprep.subr.bf16.mxu0 %v1052
    %2500 = vmatpush1.bf16.msra.mxu0 %v1051
    %2501 = vmatprep.subr.bf16.mxu0 %v1060
    %2502 = vmatpush1.bf16.msra.mxu0 %v1059
    %2503 = vmatprep.subr.bf16.mxu0 %v1068
    %2504 = vmatpush1.bf16.msra.mxu0 %v1067
    %2505 = vmatprep.subr.bf16.mxu0 %v1076
    %2506 = vmatpush1.bf16.msra.mxu0 %v1075
    %2507 = vmatprep.subr.bf16.mxu0 %v1084
    %2508 = vmatpush1.bf16.msra.mxu0 %v1083
    %2509 = vmatprep.subr.bf16.mxu0 %v1092
    %2510 = vmatpush1.bf16.msra.mxu0 %v1091
    %2511 = vmatprep.subr.bf16.mxu0 %v1100
    %2512 = vmatpush1.bf16.msra.mxu0 %v1099
    %2513 = vmatprep.subr.bf16.mxu0 %v1108
    %2514 = vmatpush1.bf16.msra.mxu0 %v1107
    %2515 = vmatprep.subr.bf16.mxu0 %v1116
    %2516 = vmatpush1.bf16.msra.mxu0 %v1115
    %2517 = vmatprep.subr.bf16.mxu0 %v1124
    %2518 = vmatpush1.bf16.msra.mxu0 %v1123
    %2519 = vmatprep.subr.bf16.mxu0 %v1132
    %2520 = vmatpush1.bf16.msra.mxu0 %v1131
    %2521 = vmatprep.subr.bf16.mxu0 %v1140
    %2522 = vmatpush1.bf16.msra.mxu0 %v1139
    %2523 = vmatprep.subr.bf16.mxu0 %v1148
    %2524 = vmatpush1.bf16.msra.mxu0 %v1147
    %2525 = vmatprep.subr.bf16.mxu0 %v1156
    %2526 = vmatpush1.bf16.msra.mxu0 %v1155
    %2527 = vmatprep.subr.bf16.mxu0 %v1164
    %2528 = vmatpush1.bf16.msra.mxu0 %v1163
    %2529 = vmatprep.mubr.bf16.mxu0 %v2414
    %2530 = vmatmul.mubr.bf16.gmra.mrb[0].mxu0 %v2413
    %v2531 = vpop.f32.mrb[0].mxu0
    %v2532 = vadd.f32 0.0, %v2531
    %v2533 = vpop.f32.mrb[0].mxu0
    %v2534 = vadd.f32 0.0, %v2533
    %v2535 = vpop.f32.mrb[0].mxu0
    %v2536 = vpop.f32.mrb[0].mxu0
    %2537 = vdwg.mxu0
    %2538 = vmatprep.subr.bf16.mxu0 %v1046
    %2539 = vmatpush1.bf16.msra.mxu0 %v1045
    %2540 = vmatprep.subr.bf16.mxu0 %v1054
    %2541 = vmatpush1.bf16.msra.mxu0 %v1053
    %2542 = vmatprep.subr.bf16.mxu0 %v1062
    %2543 = vmatpush1.bf16.msra.mxu0 %v1061
    %2544 = vmatprep.subr.bf16.mxu0 %v1070
    %2545 = vmatpush1.bf16.msra.mxu0 %v1069
    %2546 = vmatprep.subr.bf16.mxu0 %v1078
    %2547 = vmatpush1.bf16.msra.mxu0 %v1077
    %2548 = vmatprep.subr.bf16.mxu0 %v1086
    %2549 = vmatpush1.bf16.msra.mxu0 %v1085
    %2550 = vmatprep.subr.bf16.mxu0 %v1094
    %2551 = vmatpush1.bf16.msra.mxu0 %v1093
    %2552 = vmatprep.subr.bf16.mxu0 %v1102
    %2553 = vmatpush1.bf16.msra.mxu0 %v1101
    %2554 = vmatprep.subr.bf16.mxu0 %v1110
    %2555 = vmatpush1.bf16.msra.mxu0 %v1109
    %2556 = vmatprep.subr.bf16.mxu0 %v1118
    %2557 = vmatpush1.bf16.msra.mxu0 %v1117
    %2558 = vmatprep.subr.bf16.mxu0 %v1126
    %2559 = vmatpush1.bf16.msra.mxu0 %v1125
    %2560 = vmatprep.subr.bf16.mxu0 %v1134
    %2561 = vmatpush1.bf16.msra.mxu0 %v1133
    %2562 = vmatprep.subr.bf16.mxu0 %v1142
    %2563 = vmatpush1.bf16.msra.mxu0 %v1141
    %2564 = vmatprep.subr.bf16.mxu0 %v1150
    %2565 = vmatpush1.bf16.msra.mxu0 %v1149
    %2566 = vmatprep.subr.bf16.mxu0 %v1158
    %2567 = vmatpush1.bf16.msra.mxu0 %v1157
    %2568 = vmatprep.subr.bf16.mxu0 %v1166
    %2569 = vmatpush1.bf16.msra.mxu0 %v1165
    %2570 = vmatprep.mubr.bf16.mxu0 %v2414
    %2571 = vmatmul.mubr.bf16.gmra.mrb[0].mxu0 %v2413
    %v2572 = vpop.f32.mrb[0].mxu0
    %v2573 = vadd.f32 0.0, %v2572
    %v2574 = vpop.f32.mrb[0].mxu0
    %v2575 = vadd.f32 0.0, %v2574
    %v2576 = vpop.f32.mrb[0].mxu0
    %v2577 = vpop.f32.mrb[0].mxu0
    %2578 = vdwg.mxu0
    %v2579 = vadd.f32 %v421, %v2450
    %v2580 = vadd.f32 %v423, %v2452
    %v2581 = vadd.f32 %v494, %v2491
    %v2582 = vadd.f32 %v496, %v2493
    %v2583 = vadd.f32 %v553, %v2532
    %v2584 = vadd.f32 %v555, %v2534
    %v2585 = vadd.f32 %v626, %v2573
    %v2586 = vadd.f32 %v628, %v2575
    %v2587 = vxor.u32 %v2579, 2147483648
    %v2588 = vmul.f32 %v2587, 1.442695
    %v2589 = vpow.pop %v2588
    %v2590 = vadd.f32 %v2589, 1.0
    %v2591 = vrcp.pop %v2590
    %v2592 = vmul.f32 1.0, %v2591
    %v2593 = vxor.u32 %v2580, 2147483648
    %v2594 = vmul.f32 %v2593, 1.442695
    %v2595 = vpow.pop %v2594
    %v2596 = vadd.f32 %v2595, 1.0
    %v2597 = vrcp.pop %v2596
    %v2598 = vmul.f32 1.0, %v2597
    %v2599 = vtanh.pop %v2581
    %v2600 = vxor.u32 %v2582, 2147483648
    %v2601 = vmul.f32 %v2600, 1.442695
    %v2602 = vpow.pop %v2601
    %v2603 = vadd.f32 %v2602, 1.0
    %v2604 = vrcp.pop %v2603
    %v2605 = vmul.f32 1.0, %v2604
    %v2606 = vmul.f32 %v2598, %v2384
    %v2607 = vmul.f32 %v2592, %v2599
    %v2608 = vadd.f32 %v2606, %v2607
    %v2609 = vtanh.pop %v2608
    %v2610 = vmul.f32 %v2605, %v2609
    %v2611 = vxor.u32 %v2583, 2147483648
    %v2612 = vmul.f32 %v2611, 1.442695
    %v2613 = vpow.pop %v2612
    %v2614 = vadd.f32 %v2613, 1.0
    %v2615 = vrcp.pop %v2614
    %v2616 = vmul.f32 1.0, %v2615
    %v2617 = vxor.u32 %v2584, 2147483648
    %v2618 = vmul.f32 %v2617, 1.442695
    %v2619 = vpow.pop %v2618
    %v2620 = vadd.f32 %v2619, 1.0
    %v2621 = vrcp.pop %v2620
    %v2622 = vmul.f32 1.0, %v2621
    %v2623 = vtanh.pop %v2585
    %v2624 = vxor.u32 %v2586, 2147483648
    %v2625 = vmul.f32 %v2624, 1.442695
    %v2626 = vpow.pop %v2625
    %v2627 = vadd.f32 %v2626, 1.0
    %v2628 = vrcp.pop %v2627
    %v2629 = vmul.f32 1.0, %v2628
    %v2630 = vmul.f32 %v2622, %v2408
    %v2631 = vmul.f32 %v2616, %v2623
    %v2632 = vadd.f32 %v2630, %v2631
    %v2633 = vtanh.pop %v2632
    %v2634 = vmul.f32 %v2629, %v2633
    %2635 = vst [vmem:[#allocation2 + $0x50] sm:$0xff] %v2610
    %2636 = vst [vmem:[#allocation2 + $0x28] sm:$0xff] %v2634
    %v2637 = vpack.c.bf16 %v2610, %v2610
    %v2638 = vpack.c.bf16 %v2634, %v2634
    %2639 = vmatprep.subr.bf16.mxu0 %v1040
    %2640 = vmatpush1.bf16.msra.mxu0 %v1039
    %2641 = vmatprep.subr.bf16.mxu0 %v1048
    %2642 = vmatpush1.bf16.msra.mxu0 %v1047
    %2643 = vmatprep.subr.bf16.mxu0 %v1056
    %2644 = vmatpush1.bf16.msra.mxu0 %v1055
    %2645 = vmatprep.subr.bf16.mxu0 %v1064
    %2646 = vmatpush1.bf16.msra.mxu0 %v1063
    %2647 = vmatprep.subr.bf16.mxu0 %v1072
    %2648 = vmatpush1.bf16.msra.mxu0 %v1071
    %2649 = vmatprep.subr.bf16.mxu0 %v1080
    %2650 = vmatpush1.bf16.msra.mxu0 %v1079
    %2651 = vmatprep.subr.bf16.mxu0 %v1088
    %2652 = vmatpush1.bf16.msra.mxu0 %v1087
    %2653 = vmatprep.subr.bf16.mxu0 %v1096
    %2654 = vmatpush1.bf16.msra.mxu0 %v1095
    %2655 = vmatprep.subr.bf16.mxu0 %v1104
    %2656 = vmatpush1.bf16.msra.mxu0 %v1103
    %2657 = vmatprep.subr.bf16.mxu0 %v1112
    %2658 = vmatpush1.bf16.msra.mxu0 %v1111
    %2659 = vmatprep.subr.bf16.mxu0 %v1120
    %2660 = vmatpush1.bf16.msra.mxu0 %v1119
    %2661 = vmatprep.subr.bf16.mxu0 %v1128
    %2662 = vmatpush1.bf16.msra.mxu0 %v1127
    %2663 = vmatprep.subr.bf16.mxu0 %v1136
    %2664 = vmatpush1.bf16.msra.mxu0 %v1135
    %2665 = vmatprep.subr.bf16.mxu0 %v1144
    %2666 = vmatpush1.bf16.msra.mxu0 %v1143
    %2667 = vmatprep.subr.bf16.mxu0 %v1152
    %2668 = vmatpush1.bf16.msra.mxu0 %v1151
    %2669 = vmatprep.subr.bf16.mxu0 %v1160
    %2670 = vmatpush1.bf16.msra.mxu0 %v1159
    %2671 = vmatprep.mubr.bf16.mxu0 %v2638
    %2672 = vmatmul.mubr.bf16.gmra.mrb[0].mxu0 %v2637
    %v2673 = vpop.f32.mrb[0].mxu0
    %v2674 = vadd.f32 0.0, %v2673
    %v2675 = vpop.f32.mrb[0].mxu0
    %v2676 = vadd.f32 0.0, %v2675
    %v2677 = vpop.f32.mrb[0].mxu0
    %v2678 = vpop.f32.mrb[0].mxu0
    %2679 = vdwg.mxu0
    %2680 = vmatprep.subr.bf16.mxu0 %v1042
    %2681 = vmatpush1.bf16.msra.mxu0 %v1041
    %2682 = vmatprep.subr.bf16.mxu0 %v1050
    %2683 = vmatpush1.bf16.msra.mxu0 %v1049
    %2684 = vmatprep.subr.bf16.mxu0 %v1058
    %2685 = vmatpush1.bf16.msra.mxu0 %v1057
    %2686 = vmatprep.subr.bf16.mxu0 %v1066
    %2687 = vmatpush1.bf16.msra.mxu0 %v1065
    %2688 = vmatprep.subr.bf16.mxu0 %v1074
    %2689 = vmatpush1.bf16.msra.mxu0 %v1073
    %2690 = vmatprep.subr.bf16.mxu0 %v1082
    %2691 = vmatpush1.bf16.msra.mxu0 %v1081
    %2692 = vmatprep.subr.bf16.mxu0 %v1090
    %2693 = vmatpush1.bf16.msra.mxu0 %v1089
    %2694 = vmatprep.subr.bf16.mxu0 %v1098
    %2695 = vmatpush1.bf16.msra.mxu0 %v1097
    %2696 = vmatprep.subr.bf16.mxu0 %v1106
    %2697 = vmatpush1.bf16.msra.mxu0 %v1105
    %2698 = vmatprep.subr.bf16.mxu0 %v1114
    %2699 = vmatpush1.bf16.msra.mxu0 %v1113
    %2700 = vmatprep.subr.bf16.mxu0 %v1122
    %2701 = vmatpush1.bf16.msra.mxu0 %v1121
    %2702 = vmatprep.subr.bf16.mxu0 %v1130
    %2703 = vmatpush1.bf16.msra.mxu0 %v1129
    %2704 = vmatprep.subr.bf16.mxu0 %v1138
    %2705 = vmatpush1.bf16.msra.mxu0 %v1137
    %2706 = vmatprep.subr.bf16.mxu0 %v1146
    %2707 = vmatpush1.bf16.msra.mxu0 %v1145
    %2708 = vmatprep.subr.bf16.mxu0 %v1154
    %2709 = vmatpush1.bf16.msra.mxu0 %v1153
    %2710 = vmatprep.subr.bf16.mxu0 %v1162
    %2711 = vmatpush1.bf16.msra.mxu0 %v1161
    %2712 = vmatprep.mubr.bf16.mxu0 %v2638
    %2713 = vmatmul.mubr.bf16.gmra.mrb[0].mxu0 %v2637
    %v2714 = vpop.f32.mrb[0].mxu0
    %v2715 = vadd.f32 0.0, %v2714
    %v2716 = vpop.f32.mrb[0].mxu0
    %v2717 = vadd.f32 0.0, %v2716
    %v2718 = vpop.f32.mrb[0].mxu0
    %v2719 = vpop.f32.mrb[0].mxu0
    %2720 = vdwg.mxu0
    %2721 = vmatprep.subr.bf16.mxu0 %v1044
    %2722 = vmatpush1.bf16.msra.mxu0 %v1043
    %2723 = vmatprep.subr.bf16.mxu0 %v1052
    %2724 = vmatpush1.bf16.msra.mxu0 %v1051
    %2725 = vmatprep.subr.bf16.mxu0 %v1060
    %2726 = vmatpush1.bf16.msra.mxu0 %v1059
    %2727 = vmatprep.subr.bf16.mxu0 %v1068
    %2728 = vmatpush1.bf16.msra.mxu0 %v1067
    %2729 = vmatprep.subr.bf16.mxu0 %v1076
    %2730 = vmatpush1.bf16.msra.mxu0 %v1075
    %2731 = vmatprep.subr.bf16.mxu0 %v1084
    %2732 = vmatpush1.bf16.msra.mxu0 %v1083
    %2733 = vmatprep.subr.bf16.mxu0 %v1092
    %2734 = vmatpush1.bf16.msra.mxu0 %v1091
    %2735 = vmatprep.subr.bf16.mxu0 %v1100
    %2736 = vmatpush1.bf16.msra.mxu0 %v1099
    %2737 = vmatprep.subr.bf16.mxu0 %v1108
    %2738 = vmatpush1.bf16.msra.mxu0 %v1107
    %2739 = vmatprep.subr.bf16.mxu0 %v1116
    %2740 = vmatpush1.bf16.msra.mxu0 %v1115
    %2741 = vmatprep.subr.bf16.mxu0 %v1124
    %2742 = vmatpush1.bf16.msra.mxu0 %v1123
    %2743 = vmatprep.subr.bf16.mxu0 %v1132
    %2744 = vmatpush1.bf16.msra.mxu0 %v1131
    %2745 = vmatprep.subr.bf16.mxu0 %v1140
    %2746 = vmatpush1.bf16.msra.mxu0 %v1139
    %2747 = vmatprep.subr.bf16.mxu0 %v1148
    %2748 = vmatpush1.bf16.msra.mxu0 %v1147
    %2749 = vmatprep.subr.bf16.mxu0 %v1156
    %2750 = vmatpush1.bf16.msra.mxu0 %v1155
    %2751 = vmatprep.subr.bf16.mxu0 %v1164
    %2752 = vmatpush1.bf16.msra.mxu0 %v1163
    %2753 = vmatprep.mubr.bf16.mxu0 %v2638
    %2754 = vmatmul.mubr.bf16.gmra.mrb[0].mxu0 %v2637
    %v2755 = vpop.f32.mrb[0].mxu0
    %v2756 = vadd.f32 0.0, %v2755
    %v2757 = vpop.f32.mrb[0].mxu0
    %v2758 = vadd.f32 0.0, %v2757
    %v2759 = vpop.f32.mrb[0].mxu0
    %v2760 = vpop.f32.mrb[0].mxu0
    %2761 = vdwg.mxu0
    %2762 = vmatprep.subr.bf16.mxu0 %v1046
    %2763 = vmatpush1.bf16.msra.mxu0 %v1045
    %2764 = vmatprep.subr.bf16.mxu0 %v1054
    %2765 = vmatpush1.bf16.msra.mxu0 %v1053
    %2766 = vmatprep.subr.bf16.mxu0 %v1062
    %2767 = vmatpush1.bf16.msra.mxu0 %v1061
    %2768 = vmatprep.subr.bf16.mxu0 %v1070
    %2769 = vmatpush1.bf16.msra.mxu0 %v1069
    %2770 = vmatprep.subr.bf16.mxu0 %v1078
    %2771 = vmatpush1.bf16.msra.mxu0 %v1077
    %2772 = vmatprep.subr.bf16.mxu0 %v1086
    %2773 = vmatpush1.bf16.msra.mxu0 %v1085
    %2774 = vmatprep.subr.bf16.mxu0 %v1094
    %2775 = vmatpush1.bf16.msra.mxu0 %v1093
    %2776 = vmatprep.subr.bf16.mxu0 %v1102
    %2777 = vmatpush1.bf16.msra.mxu0 %v1101
    %2778 = vmatprep.subr.bf16.mxu0 %v1110
    %2779 = vmatpush1.bf16.msra.mxu0 %v1109
    %2780 = vmatprep.subr.bf16.mxu0 %v1118
    %2781 = vmatpush1.bf16.msra.mxu0 %v1117
    %2782 = vmatprep.subr.bf16.mxu0 %v1126
    %2783 = vmatpush1.bf16.msra.mxu0 %v1125
    %2784 = vmatprep.subr.bf16.mxu0 %v1134
    %2785 = vmatpush1.bf16.msra.mxu0 %v1133
    %2786 = vmatprep.subr.bf16.mxu0 %v1142
    %2787 = vmatpush1.bf16.msra.mxu0 %v1141
    %2788 = vmatprep.subr.bf16.mxu0 %v1150
    %2789 = vmatpush1.bf16.msra.mxu0 %v1149
    %2790 = vmatprep.subr.bf16.mxu0 %v1158
    %2791 = vmatpush1.bf16.msra.mxu0 %v1157
    %2792 = vmatprep.subr.bf16.mxu0 %v1166
    %2793 = vmatpush1.bf16.msra.mxu0 %v1165
    %2794 = vmatprep.mubr.bf16.mxu0 %v2638
    %2795 = vmatmul.mubr.bf16.gmra.mrb[0].mxu0 %v2637
    %v2796 = vpop.f32.mrb[0].mxu0
    %v2797 = vadd.f32 0.0, %v2796
    %v2798 = vpop.f32.mrb[0].mxu0
    %v2799 = vadd.f32 0.0, %v2798
    %v2800 = vpop.f32.mrb[0].mxu0
    %v2801 = vpop.f32.mrb[0].mxu0
    %2802 = vdwg.mxu0
    %v2803 = vadd.f32 %v427, %v2674
    %v2804 = vadd.f32 %v429, %v2676
    %v2805 = vadd.f32 %v500, %v2715
    %v2806 = vadd.f32 %v502, %v2717
    %v2807 = vadd.f32 %v547, %v2756
    %v2808 = vadd.f32 %v549, %v2758
    %v2809 = vadd.f32 %v620, %v2797
    %v2810 = vadd.f32 %v622, %v2799
    %v2811 = vxor.u32 %v2803, 2147483648
    %v2812 = vmul.f32 %v2811, 1.442695
    %v2813 = vpow.pop %v2812
    %v2814 = vadd.f32 %v2813, 1.0
    %v2815 = vrcp.pop %v2814
    %v2816 = vmul.f32 1.0, %v2815
    %v2817 = vxor.u32 %v2804, 2147483648
    %v2818 = vmul.f32 %v2817, 1.442695
    %v2819 = vpow.pop %v2818
    %v2820 = vadd.f32 %v2819, 1.0
    %v2821 = vrcp.pop %v2820
    %v2822 = vmul.f32 1.0, %v2821
    %v2823 = vtanh.pop %v2805
    %v2824 = vxor.u32 %v2806, 2147483648
    %v2825 = vmul.f32 %v2824, 1.442695
    %v2826 = vpow.pop %v2825
    %v2827 = vadd.f32 %v2826, 1.0
    %v2828 = vrcp.pop %v2827
    %v2829 = vmul.f32 1.0, %v2828
    %v2830 = vmul.f32 %v2822, %v2608
    %v2831 = vmul.f32 %v2816, %v2823
    %v2832 = vadd.f32 %v2830, %v2831
    %v2833 = vtanh.pop %v2832
    %v2834 = vmul.f32 %v2829, %v2833
    %v2835 = vxor.u32 %v2807, 2147483648
    %v2836 = vmul.f32 %v2835, 1.442695
    %v2837 = vpow.pop %v2836
    %v2838 = vadd.f32 %v2837, 1.0
    %v2839 = vrcp.pop %v2838
    %v2840 = vmul.f32 1.0, %v2839
    %v2841 = vxor.u32 %v2808, 2147483648
    %v2842 = vmul.f32 %v2841, 1.442695
    %v2843 = vpow.pop %v2842
    %v2844 = vadd.f32 %v2843, 1.0
    %v2845 = vrcp.pop %v2844
    %v2846 = vmul.f32 1.0, %v2845
    %v2847 = vtanh.pop %v2809
    %v2848 = vxor.u32 %v2810, 2147483648
    %v2849 = vmul.f32 %v2848, 1.442695
    %v2850 = vpow.pop %v2849
    %v2851 = vadd.f32 %v2850, 1.0
    %v2852 = vrcp.pop %v2851
    %v2853 = vmul.f32 1.0, %v2852
    %v2854 = vmul.f32 %v2846, %v2632
    %v2855 = vmul.f32 %v2840, %v2847
    %v2856 = vadd.f32 %v2854, %v2855
    %v2857 = vtanh.pop %v2856
    %v2858 = vmul.f32 %v2853, %v2857
    %2859 = vst [vmem:[#allocation2 + $0x60] sm:$0xff] %v2834
    %2860 = vst [vmem:[#allocation2 + $0x18] sm:$0xff] %v2858
    %v2861 = vpack.c.bf16 %v2834, %v2834
    %v2862 = vpack.c.bf16 %v2858, %v2858
    %2863 = vmatprep.subr.bf16.mxu0 %v1040
    %2864 = vmatpush1.bf16.msra.mxu0 %v1039
    %2865 = vmatprep.subr.bf16.mxu0 %v1048
    %2866 = vmatpush1.bf16.msra.mxu0 %v1047
    %2867 = vmatprep.subr.bf16.mxu0 %v1056
    %2868 = vmatpush1.bf16.msra.mxu0 %v1055
    %2869 = vmatprep.subr.bf16.mxu0 %v1064
    %2870 = vmatpush1.bf16.msra.mxu0 %v1063
    %2871 = vmatprep.subr.bf16.mxu0 %v1072
    %2872 = vmatpush1.bf16.msra.mxu0 %v1071
    %2873 = vmatprep.subr.bf16.mxu0 %v1080
    %2874 = vmatpush1.bf16.msra.mxu0 %v1079
    %2875 = vmatprep.subr.bf16.mxu0 %v1088
    %2876 = vmatpush1.bf16.msra.mxu0 %v1087
    %2877 = vmatprep.subr.bf16.mxu0 %v1096
    %2878 = vmatpush1.bf16.msra.mxu0 %v1095
    %2879 = vmatprep.subr.bf16.mxu0 %v1104
    %2880 = vmatpush1.bf16.msra.mxu0 %v1103
    %2881 = vmatprep.subr.bf16.mxu0 %v1112
    %2882 = vmatpush1.bf16.msra.mxu0 %v1111
    %2883 = vmatprep.subr.bf16.mxu0 %v1120
    %2884 = vmatpush1.bf16.msra.mxu0 %v1119
    %2885 = vmatprep.subr.bf16.mxu0 %v1128
    %2886 = vmatpush1.bf16.msra.mxu0 %v1127
    %2887 = vmatprep.subr.bf16.mxu0 %v1136
    %2888 = vmatpush1.bf16.msra.mxu0 %v1135
    %2889 = vmatprep.subr.bf16.mxu0 %v1144
    %2890 = vmatpush1.bf16.msra.mxu0 %v1143
    %2891 = vmatprep.subr.bf16.mxu0 %v1152
    %2892 = vmatpush1.bf16.msra.mxu0 %v1151
    %2893 = vmatprep.subr.bf16.mxu0 %v1160
    %2894 = vmatpush1.bf16.msra.mxu0 %v1159
    %2895 = vmatprep.mubr.bf16.mxu0 %v2862
    %2896 = vmatmul.mubr.bf16.gmra.mrb[0].mxu0 %v2861
    %v2897 = vpop.f32.mrb[0].mxu0
    %v2898 = vadd.f32 0.0, %v2897
    %v2899 = vpop.f32.mrb[0].mxu0
    %v2900 = vadd.f32 0.0, %v2899
    %v2901 = vpop.f32.mrb[0].mxu0
    %v2902 = vpop.f32.mrb[0].mxu0
    %2903 = vdwg.mxu0
    %2904 = vmatprep.subr.bf16.mxu0 %v1042
    %2905 = vmatpush1.bf16.msra.mxu0 %v1041
    %2906 = vmatprep.subr.bf16.mxu0 %v1050
    %2907 = vmatpush1.bf16.msra.mxu0 %v1049
    %2908 = vmatprep.subr.bf16.mxu0 %v1058
    %2909 = vmatpush1.bf16.msra.mxu0 %v1057
    %2910 = vmatprep.subr.bf16.mxu0 %v1066
    %2911 = vmatpush1.bf16.msra.mxu0 %v1065
    %2912 = vmatprep.subr.bf16.mxu0 %v1074
    %2913 = vmatpush1.bf16.msra.mxu0 %v1073
    %2914 = vmatprep.subr.bf16.mxu0 %v1082
    %2915 = vmatpush1.bf16.msra.mxu0 %v1081
    %2916 = vmatprep.subr.bf16.mxu0 %v1090
    %2917 = vmatpush1.bf16.msra.mxu0 %v1089
    %2918 = vmatprep.subr.bf16.mxu0 %v1098
    %2919 = vmatpush1.bf16.msra.mxu0 %v1097
    %2920 = vmatprep.subr.bf16.mxu0 %v1106
    %2921 = vmatpush1.bf16.msra.mxu0 %v1105
    %2922 = vmatprep.subr.bf16.mxu0 %v1114
    %2923 = vmatpush1.bf16.msra.mxu0 %v1113
    %2924 = vmatprep.subr.bf16.mxu0 %v1122
    %2925 = vmatpush1.bf16.msra.mxu0 %v1121
    %2926 = vmatprep.subr.bf16.mxu0 %v1130
    %2927 = vmatpush1.bf16.msra.mxu0 %v1129
    %2928 = vmatprep.subr.bf16.mxu0 %v1138
    %2929 = vmatpush1.bf16.msra.mxu0 %v1137
    %2930 = vmatprep.subr.bf16.mxu0 %v1146
    %2931 = vmatpush1.bf16.msra.mxu0 %v1145
    %2932 = vmatprep.subr.bf16.mxu0 %v1154
    %2933 = vmatpush1.bf16.msra.mxu0 %v1153
    %2934 = vmatprep.subr.bf16.mxu0 %v1162
    %2935 = vmatpush1.bf16.msra.mxu0 %v1161
    %2936 = vmatprep.mubr.bf16.mxu0 %v2862
    %2937 = vmatmul.mubr.bf16.gmra.mrb[0].mxu0 %v2861
    %v2938 = vpop.f32.mrb[0].mxu0
    %v2939 = vadd.f32 0.0, %v2938
    %v2940 = vpop.f32.mrb[0].mxu0
    %v2941 = vadd.f32 0.0, %v2940
    %v2942 = vpop.f32.mrb[0].mxu0
    %v2943 = vpop.f32.mrb[0].mxu0
    %2944 = vdwg.mxu0
    %2945 = vmatprep.subr.bf16.mxu0 %v1044
    %2946 = vmatpush1.bf16.msra.mxu0 %v1043
    %2947 = vmatprep.subr.bf16.mxu0 %v1052
    %2948 = vmatpush1.bf16.msra.mxu0 %v1051
    %2949 = vmatprep.subr.bf16.mxu0 %v1060
    %2950 = vmatpush1.bf16.msra.mxu0 %v1059
    %2951 = vmatprep.subr.bf16.mxu0 %v1068
    %2952 = vmatpush1.bf16.msra.mxu0 %v1067
    %2953 = vmatprep.subr.bf16.mxu0 %v1076
    %2954 = vmatpush1.bf16.msra.mxu0 %v1075
    %2955 = vmatprep.subr.bf16.mxu0 %v1084
    %2956 = vmatpush1.bf16.msra.mxu0 %v1083
    %2957 = vmatprep.subr.bf16.mxu0 %v1092
    %2958 = vmatpush1.bf16.msra.mxu0 %v1091
    %2959 = vmatprep.subr.bf16.mxu0 %v1100
    %2960 = vmatpush1.bf16.msra.mxu0 %v1099
    %2961 = vmatprep.subr.bf16.mxu0 %v1108
    %2962 = vmatpush1.bf16.msra.mxu0 %v1107
    %2963 = vmatprep.subr.bf16.mxu0 %v1116
    %2964 = vmatpush1.bf16.msra.mxu0 %v1115
    %2965 = vmatprep.subr.bf16.mxu0 %v1124
    %2966 = vmatpush1.bf16.msra.mxu0 %v1123
    %2967 = vmatprep.subr.bf16.mxu0 %v1132
    %2968 = vmatpush1.bf16.msra.mxu0 %v1131
    %2969 = vmatprep.subr.bf16.mxu0 %v1140
    %2970 = vmatpush1.bf16.msra.mxu0 %v1139
    %2971 = vmatprep.subr.bf16.mxu0 %v1148
    %2972 = vmatpush1.bf16.msra.mxu0 %v1147
    %2973 = vmatprep.subr.bf16.mxu0 %v1156
    %2974 = vmatpush1.bf16.msra.mxu0 %v1155
    %2975 = vmatprep.subr.bf16.mxu0 %v1164
    %2976 = vmatpush1.bf16.msra.mxu0 %v1163
    %2977 = vmatprep.mubr.bf16.mxu0 %v2862
    %2978 = vmatmul.mubr.bf16.gmra.mrb[0].mxu0 %v2861
    %v2979 = vpop.f32.mrb[0].mxu0
    %v2980 = vadd.f32 0.0, %v2979
    %v2981 = vpop.f32.mrb[0].mxu0
    %v2982 = vadd.f32 0.0, %v2981
    %v2983 = vpop.f32.mrb[0].mxu0
    %v2984 = vpop.f32.mrb[0].mxu0
    %2985 = vdwg.mxu0
    %2986 = vmatprep.subr.bf16.mxu0 %v1046
    %2987 = vmatpush1.bf16.msra.mxu0 %v1045
    %2988 = vmatprep.subr.bf16.mxu0 %v1054
    %2989 = vmatpush1.bf16.msra.mxu0 %v1053
    %2990 = vmatprep.subr.bf16.mxu0 %v1062
    %2991 = vmatpush1.bf16.msra.mxu0 %v1061
    %2992 = vmatprep.subr.bf16.mxu0 %v1070
    %2993 = vmatpush1.bf16.msra.mxu0 %v1069
    %2994 = vmatprep.subr.bf16.mxu0 %v1078
    %2995 = vmatpush1.bf16.msra.mxu0 %v1077
    %2996 = vmatprep.subr.bf16.mxu0 %v1086
    %2997 = vmatpush1.bf16.msra.mxu0 %v1085
    %2998 = vmatprep.subr.bf16.mxu0 %v1094
    %2999 = vmatpush1.bf16.msra.mxu0 %v1093
    %3000 = vmatprep.subr.bf16.mxu0 %v1102
    %3001 = vmatpush1.bf16.msra.mxu0 %v1101
    %3002 = vmatprep.subr.bf16.mxu0 %v1110
    %3003 = vmatpush1.bf16.msra.mxu0 %v1109
    %3004 = vmatprep.subr.bf16.mxu0 %v1118
    %3005 = vmatpush1.bf16.msra.mxu0 %v1117
    %3006 = vmatprep.subr.bf16.mxu0 %v1126
    %3007 = vmatpush1.bf16.msra.mxu0 %v1125
    %3008 = vmatprep.subr.bf16.mxu0 %v1134
    %3009 = vmatpush1.bf16.msra.mxu0 %v1133
    %3010 = vmatprep.subr.bf16.mxu0 %v1142
    %3011 = vmatpush1.bf16.msra.mxu0 %v1141
    %3012 = vmatprep.subr.bf16.mxu0 %v1150
    %3013 = vmatpush1.bf16.msra.mxu0 %v1149
    %3014 = vmatprep.subr.bf16.mxu0 %v1158
    %3015 = vmatpush1.bf16.msra.mxu0 %v1157
    %3016 = vmatprep.subr.bf16.mxu0 %v1166
    %3017 = vmatpush1.bf16.msra.mxu0 %v1165
    %3018 = vmatprep.mubr.bf16.mxu0 %v2862
    %3019 = vmatmul.mubr.bf16.gmra.mrb[0].mxu0 %v2861
    %v3020 = vpop.f32.mrb[0].mxu0
    %v3021 = vadd.f32 0.0, %v3020
    %v3022 = vpop.f32.mrb[0].mxu0
    %v3023 = vadd.f32 0.0, %v3022
    %v3024 = vpop.f32.mrb[0].mxu0
    %v3025 = vpop.f32.mrb[0].mxu0
    %3026 = vdwg.mxu0
    %v3027 = vadd.f32 %v431, %v2898
    %v3028 = vadd.f32 %v433, %v2900
    %v3029 = vadd.f32 %v504, %v2939
    %v3030 = vadd.f32 %v506, %v2941
    %v3031 = vadd.f32 %v543, %v2980
    %v3032 = vadd.f32 %v545, %v2982
    %v3033 = vadd.f32 %v616, %v3021
    %v3034 = vadd.f32 %v618, %v3023
    %v3035 = vxor.u32 %v3027, 2147483648
    %v3036 = vmul.f32 %v3035, 1.442695
    %v3037 = vpow.pop %v3036
    %v3038 = vadd.f32 %v3037, 1.0
    %v3039 = vrcp.pop %v3038
    %v3040 = vmul.f32 1.0, %v3039
    %v3041 = vxor.u32 %v3028, 2147483648
    %v3042 = vmul.f32 %v3041, 1.442695
    %v3043 = vpow.pop %v3042
    %v3044 = vadd.f32 %v3043, 1.0
    %v3045 = vrcp.pop %v3044
    %v3046 = vmul.f32 1.0, %v3045
    %v3047 = vtanh.pop %v3029
    %v3048 = vxor.u32 %v3030, 2147483648
    %v3049 = vmul.f32 %v3048, 1.442695
    %v3050 = vpow.pop %v3049
    %v3051 = vadd.f32 %v3050, 1.0
    %v3052 = vrcp.pop %v3051
    %v3053 = vmul.f32 1.0, %v3052
    %v3054 = vmul.f32 %v3046, %v2832
    %v3055 = vmul.f32 %v3040, %v3047
    %v3056 = vadd.f32 %v3054, %v3055
    %v3057 = vtanh.pop %v3056
    %v3058 = vmul.f32 %v3053, %v3057
    %v3059 = vxor.u32 %v3031, 2147483648
    %v3060 = vmul.f32 %v3059, 1.442695
    %v3061 = vpow.pop %v3060
    %v3062 = vadd.f32 %v3061, 1.0
    %v3063 = vrcp.pop %v3062
    %v3064 = vmul.f32 1.0, %v3063
    %v3065 = vxor.u32 %v3032, 2147483648
    %v3066 = vmul.f32 %v3065, 1.442695
    %v3067 = vpow.pop %v3066
    %v3068 = vadd.f32 %v3067, 1.0
    %v3069 = vrcp.pop %v3068
    %v3070 = vmul.f32 1.0, %v3069
    %v3071 = vtanh.pop %v3033
    %v3072 = vxor.u32 %v3034, 2147483648
    %v3073 = vmul.f32 %v3072, 1.442695
    %v3074 = vpow.pop %v3073
    %v3075 = vadd.f32 %v3074, 1.0
    %v3076 = vrcp.pop %v3075
    %v3077 = vmul.f32 1.0, %v3076
    %v3078 = vmul.f32 %v3070, %v2856
    %v3079 = vmul.f32 %v3064, %v3071
    %v3080 = vadd.f32 %v3078, %v3079
    %v3081 = vtanh.pop %v3080
    %v3082 = vmul.f32 %v3077, %v3081
    %3083 = vst [vmem:[#allocation2 + $0x70] sm:$0xff] %v3058
    %3084 = vst [vmem:[#allocation2 + $0x8] sm:$0xff] %v3082
    %v3085 = vld [vmem:[#allocation2] sm:$0xff]
    %v3086 = vld [vmem:[#allocation2 + $0x8] sm:$0xff]
    %v3087 = vld [vmem:[#allocation2 + $0x10] sm:$0xff]
    %v3088 = vld [vmem:[#allocation2 + $0x18] sm:$0xff]
    %v3089 = vld [vmem:[#allocation2 + $0x20] sm:$0xff]
    %v3090 = vld [vmem:[#allocation2 + $0x28] sm:$0xff]
    %v3091 = vld [vmem:[#allocation2 + $0x30] sm:$0xff]
    %v3092 = vld [vmem:[#allocation2 + $0x38] sm:$0xff]
    %v3093 = vld [vmem:[#allocation2 + $0x40] sm:$0xff]
    %v3094 = vld [vmem:[#allocation2 + $0x48] sm:$0xff]
    %v3095 = vld [vmem:[#allocation2 + $0x50] sm:$0xff]
    %v3096 = vld [vmem:[#allocation2 + $0x58] sm:$0xff]
    %v3097 = vld [vmem:[#allocation2 + $0x60] sm:$0xff]
    %v3098 = vld [vmem:[#allocation2 + $0x68] sm:$0xff]
    %v3099 = vld [vmem:[#allocation2 + $0x70] sm:$0xff]
    %v3100 = vld [vmem:[#allocation2 + $0x78] sm:$0xff]
    %v3101 = vpack.c.bf16 %v3087, %v3085
    %v3102 = vpack.c.bf16 %v3088, %v3086
    %v3103 = vpack.c.bf16 %v3091, %v3089
    %v3104 = vpack.c.bf16 %v3092, %v3090
    %v3105 = vpack.c.bf16 %v3095, %v3093
    %v3106 = vpack.c.bf16 %v3096, %v3094
    %v3107 = vpack.c.bf16 %v3099, %v3097
    %v3108 = vpack.c.bf16 %v3100, %v3098
    %v3109 = vld [vmem:[#allocation5] sm:$0xff]
    %v3110 = vld [vmem:[#allocation5 + $0x8] sm:$0xff]
    %v3111 = vld [vmem:[#allocation5 + $0x10] sm:$0xff]
    %v3112 = vld [vmem:[#allocation5 + $0x18] sm:$0xff]
    %v3113 = vld [vmem:[#allocation5 + $0x20] sm:$0xff]
    %v3114 = vld [vmem:[#allocation5 + $0x28] sm:$0xff]
    %v3115 = vld [vmem:[#allocation5 + $0x30] sm:$0xff]
    %v3116 = vld [vmem:[#allocation5 + $0x38] sm:$0xff]
    %v3117 = vld [vmem:[#allocation5 + $0x40] sm:$0xff]
    %v3118 = vld [vmem:[#allocation5 + $0x48] sm:$0xff]
    %v3119 = vld [vmem:[#allocation5 + $0x50] sm:$0xff]
    %v3120 = vld [vmem:[#allocation5 + $0x58] sm:$0xff]
    %v3121 = vld [vmem:[#allocation5 + $0x60] sm:$0xff]
    %v3122 = vld [vmem:[#allocation5 + $0x68] sm:$0xff]
    %v3123 = vld [vmem:[#allocation5 + $0x70] sm:$0xff]
    %v3124 = vld [vmem:[#allocation5 + $0x78] sm:$0xff]
    %v3125 = vld [vmem:[#allocation5 + $0x80] sm:$0xff]
    %v3126 = vld [vmem:[#allocation5 + $0x88] sm:$0xff]
    %v3127 = vld [vmem:[#allocation5 + $0x90] sm:$0xff]
    %v3128 = vld [vmem:[#allocation5 + $0x98] sm:$0xff]
    %v3129 = vld [vmem:[#allocation5 + $0xa0] sm:$0xff]
    %v3130 = vld [vmem:[#allocation5 + $0xa8] sm:$0xff]
    %v3131 = vld [vmem:[#allocation5 + $0xb0] sm:$0xff]
    %v3132 = vld [vmem:[#allocation5 + $0xb8] sm:$0xff]
    %v3133 = vld [vmem:[#allocation5 + $0xc0] sm:$0xff]
    %v3134 = vld [vmem:[#allocation5 + $0xc8] sm:$0xff]
    %v3135 = vld [vmem:[#allocation5 + $0xd0] sm:$0xff]
    %v3136 = vld [vmem:[#allocation5 + $0xd8] sm:$0xff]
    %v3137 = vld [vmem:[#allocation5 + $0xe0] sm:$0xff]
    %v3138 = vld [vmem:[#allocation5 + $0xe8] sm:$0xff]
    %v3139 = vld [vmem:[#allocation5 + $0xf0] sm:$0xff]
    %v3140 = vld [vmem:[#allocation5 + $0xf8] sm:$0xff]
    %v3141 = vld [vmem:[#allocation5 + $0x100] sm:$0xff]
    %v3142 = vld [vmem:[#allocation5 + $0x108] sm:$0xff]
    %v3143 = vld [vmem:[#allocation5 + $0x110] sm:$0xff]
    %v3144 = vld [vmem:[#allocation5 + $0x118] sm:$0xff]
    %v3145 = vld [vmem:[#allocation5 + $0x120] sm:$0xff]
    %v3146 = vld [vmem:[#allocation5 + $0x128] sm:$0xff]
    %v3147 = vld [vmem:[#allocation5 + $0x130] sm:$0xff]
    %v3148 = vld [vmem:[#allocation5 + $0x138] sm:$0xff]
    %v3149 = vld [vmem:[#allocation5 + $0x140] sm:$0xff]
    %v3150 = vld [vmem:[#allocation5 + $0x148] sm:$0xff]
    %v3151 = vld [vmem:[#allocation5 + $0x150] sm:$0xff]
    %v3152 = vld [vmem:[#allocation5 + $0x158] sm:$0xff]
    %v3153 = vld [vmem:[#allocation5 + $0x160] sm:$0xff]
    %v3154 = vld [vmem:[#allocation5 + $0x168] sm:$0xff]
    %v3155 = vld [vmem:[#allocation5 + $0x170] sm:$0xff]
    %v3156 = vld [vmem:[#allocation5 + $0x178] sm:$0xff]
    %v3157 = vld [vmem:[#allocation5 + $0x180] sm:$0xff]
    %v3158 = vld [vmem:[#allocation5 + $0x188] sm:$0xff]
    %v3159 = vld [vmem:[#allocation5 + $0x190] sm:$0xff]
    %v3160 = vld [vmem:[#allocation5 + $0x198] sm:$0xff]
    %v3161 = vld [vmem:[#allocation5 + $0x1a0] sm:$0xff]
    %v3162 = vld [vmem:[#allocation5 + $0x1a8] sm:$0xff]
    %v3163 = vld [vmem:[#allocation5 + $0x1b0] sm:$0xff]
    %v3164 = vld [vmem:[#allocation5 + $0x1b8] sm:$0xff]
    %v3165 = vld [vmem:[#allocation5 + $0x1c0] sm:$0xff]
    %v3166 = vld [vmem:[#allocation5 + $0x1c8] sm:$0xff]
    %v3167 = vld [vmem:[#allocation5 + $0x1d0] sm:$0xff]
    %v3168 = vld [vmem:[#allocation5 + $0x1d8] sm:$0xff]
    %v3169 = vld [vmem:[#allocation5 + $0x1e0] sm:$0xff]
    %v3170 = vld [vmem:[#allocation5 + $0x1e8] sm:$0xff]
    %v3171 = vld [vmem:[#allocation5 + $0x1f0] sm:$0xff]
    %v3172 = vld [vmem:[#allocation5 + $0x1f8] sm:$0xff]
    %v3173 = vld [vmem:[#allocation5 + $0x200] sm:$0xff]
    %v3174 = vld [vmem:[#allocation5 + $0x208] sm:$0xff]
    %v3175 = vld [vmem:[#allocation5 + $0x210] sm:$0xff]
    %v3176 = vld [vmem:[#allocation5 + $0x218] sm:$0xff]
    %v3177 = vld [vmem:[#allocation5 + $0x220] sm:$0xff]
    %v3178 = vld [vmem:[#allocation5 + $0x228] sm:$0xff]
    %v3179 = vld [vmem:[#allocation5 + $0x230] sm:$0xff]
    %v3180 = vld [vmem:[#allocation5 + $0x238] sm:$0xff]
    %v3181 = vld [vmem:[#allocation5 + $0x240] sm:$0xff]
    %v3182 = vld [vmem:[#allocation5 + $0x248] sm:$0xff]
    %v3183 = vld [vmem:[#allocation5 + $0x250] sm:$0xff]
    %v3184 = vld [vmem:[#allocation5 + $0x258] sm:$0xff]
    %v3185 = vld [vmem:[#allocation5 + $0x260] sm:$0xff]
    %v3186 = vld [vmem:[#allocation5 + $0x268] sm:$0xff]
    %v3187 = vld [vmem:[#allocation5 + $0x270] sm:$0xff]
    %v3188 = vld [vmem:[#allocation5 + $0x278] sm:$0xff]
    %v3189 = vld [vmem:[#allocation5 + $0x280] sm:$0xff]
    %v3190 = vld [vmem:[#allocation5 + $0x288] sm:$0xff]
    %v3191 = vld [vmem:[#allocation5 + $0x290] sm:$0xff]
    %v3192 = vld [vmem:[#allocation5 + $0x298] sm:$0xff]
    %v3193 = vld [vmem:[#allocation5 + $0x2a0] sm:$0xff]
    %v3194 = vld [vmem:[#allocation5 + $0x2a8] sm:$0xff]
    %v3195 = vld [vmem:[#allocation5 + $0x2b0] sm:$0xff]
    %v3196 = vld [vmem:[#allocation5 + $0x2b8] sm:$0xff]
    %v3197 = vld [vmem:[#allocation5 + $0x2c0] sm:$0xff]
    %v3198 = vld [vmem:[#allocation5 + $0x2c8] sm:$0xff]
    %v3199 = vld [vmem:[#allocation5 + $0x2d0] sm:$0xff]
    %v3200 = vld [vmem:[#allocation5 + $0x2d8] sm:$0xff]
    %v3201 = vld [vmem:[#allocation5 + $0x2e0] sm:$0xff]
    %v3202 = vld [vmem:[#allocation5 + $0x2e8] sm:$0xff]
    %v3203 = vld [vmem:[#allocation5 + $0x2f0] sm:$0xff]
    %v3204 = vld [vmem:[#allocation5 + $0x2f8] sm:$0xff]
    %v3205 = vld [vmem:[#allocation5 + $0x300] sm:$0xff]
    %v3206 = vld [vmem:[#allocation5 + $0x308] sm:$0xff]
    %v3207 = vld [vmem:[#allocation5 + $0x310] sm:$0xff]
    %v3208 = vld [vmem:[#allocation5 + $0x318] sm:$0xff]
    %v3209 = vld [vmem:[#allocation5 + $0x320] sm:$0xff]
    %v3210 = vld [vmem:[#allocation5 + $0x328] sm:$0xff]
    %v3211 = vld [vmem:[#allocation5 + $0x330] sm:$0xff]
    %v3212 = vld [vmem:[#allocation5 + $0x338] sm:$0xff]
    %v3213 = vld [vmem:[#allocation5 + $0x340] sm:$0xff]
    %v3214 = vld [vmem:[#allocation5 + $0x348] sm:$0xff]
    %v3215 = vld [vmem:[#allocation5 + $0x350] sm:$0xff]
    %v3216 = vld [vmem:[#allocation5 + $0x358] sm:$0xff]
    %v3217 = vld [vmem:[#allocation5 + $0x360] sm:$0xff]
    %v3218 = vld [vmem:[#allocation5 + $0x368] sm:$0xff]
    %v3219 = vld [vmem:[#allocation5 + $0x370] sm:$0xff]
    %v3220 = vld [vmem:[#allocation5 + $0x378] sm:$0xff]
    %v3221 = vld [vmem:[#allocation5 + $0x380] sm:$0xff]
    %v3222 = vld [vmem:[#allocation5 + $0x388] sm:$0xff]
    %v3223 = vld [vmem:[#allocation5 + $0x390] sm:$0xff]
    %v3224 = vld [vmem:[#allocation5 + $0x398] sm:$0xff]
    %v3225 = vld [vmem:[#allocation5 + $0x3a0] sm:$0xff]
    %v3226 = vld [vmem:[#allocation5 + $0x3a8] sm:$0xff]
    %v3227 = vld [vmem:[#allocation5 + $0x3b0] sm:$0xff]
    %v3228 = vld [vmem:[#allocation5 + $0x3b8] sm:$0xff]
    %v3229 = vld [vmem:[#allocation5 + $0x3c0] sm:$0xff]
    %v3230 = vld [vmem:[#allocation5 + $0x3c8] sm:$0xff]
    %v3231 = vld [vmem:[#allocation5 + $0x3d0] sm:$0xff]
    %v3232 = vld [vmem:[#allocation5 + $0x3d8] sm:$0xff]
    %v3233 = vld [vmem:[#allocation5 + $0x3e0] sm:$0xff]
    %v3234 = vld [vmem:[#allocation5 + $0x3e8] sm:$0xff]
    %v3235 = vld [vmem:[#allocation5 + $0x3f0] sm:$0xff]
    %v3236 = vld [vmem:[#allocation5 + $0x3f8] sm:$0xff]
    %v3237 = vld [vmem:[#allocation7] sm:$0xff]
    %v3238 = vld [vmem:[#allocation7 + $0x8] sm:$0xff]
    %v3239 = vld [vmem:[#allocation7 + $0x10] sm:$0xff]
    %v3240 = vld [vmem:[#allocation7 + $0x18] sm:$0xff]
    %v3241 = vld [vmem:[#allocation7 + $0x20] sm:$0xff]
    %v3242 = vld [vmem:[#allocation7 + $0x28] sm:$0xff]
    %v3243 = vld [vmem:[#allocation7 + $0x30] sm:$0xff]
    %v3244 = vld [vmem:[#allocation7 + $0x38] sm:$0xff]
    %v3245 = vld [vmem:[#allocation7 + $0x40] sm:$0xff]
    %v3246 = vld [vmem:[#allocation7 + $0x48] sm:$0xff]
    %v3247 = vld [vmem:[#allocation7 + $0x50] sm:$0xff]
    %v3248 = vld [vmem:[#allocation7 + $0x58] sm:$0xff]
    %v3249 = vld [vmem:[#allocation7 + $0x60] sm:$0xff]
    %v3250 = vld [vmem:[#allocation7 + $0x68] sm:$0xff]
    %v3251 = vld [vmem:[#allocation7 + $0x70] sm:$0xff]
    %v3252 = vld [vmem:[#allocation7 + $0x78] sm:$0xff]
    %v3253 = vld [vmem:[#allocation7 + $0x80] sm:$0xff]
    %v3254 = vld [vmem:[#allocation7 + $0x88] sm:$0xff]
    %v3255 = vld [vmem:[#allocation7 + $0x90] sm:$0xff]
    %v3256 = vld [vmem:[#allocation7 + $0x98] sm:$0xff]
    %v3257 = vld [vmem:[#allocation7 + $0xa0] sm:$0xff]
    %v3258 = vld [vmem:[#allocation7 + $0xa8] sm:$0xff]
    %v3259 = vld [vmem:[#allocation7 + $0xb0] sm:$0xff]
    %v3260 = vld [vmem:[#allocation7 + $0xb8] sm:$0xff]
    %v3261 = vld [vmem:[#allocation7 + $0xc0] sm:$0xff]
    %v3262 = vld [vmem:[#allocation7 + $0xc8] sm:$0xff]
    %v3263 = vld [vmem:[#allocation7 + $0xd0] sm:$0xff]
    %v3264 = vld [vmem:[#allocation7 + $0xd8] sm:$0xff]
    %v3265 = vld [vmem:[#allocation7 + $0xe0] sm:$0xff]
    %v3266 = vld [vmem:[#allocation7 + $0xe8] sm:$0xff]
    %v3267 = vld [vmem:[#allocation7 + $0xf0] sm:$0xff]
    %v3268 = vld [vmem:[#allocation7 + $0xf8] sm:$0xff]
    %v3269 = vld [vmem:[#allocation7 + $0x100] sm:$0xff]
    %v3270 = vld [vmem:[#allocation7 + $0x108] sm:$0xff]
    %v3271 = vld [vmem:[#allocation7 + $0x110] sm:$0xff]
    %v3272 = vld [vmem:[#allocation7 + $0x118] sm:$0xff]
    %v3273 = vld [vmem:[#allocation7 + $0x120] sm:$0xff]
    %v3274 = vld [vmem:[#allocation7 + $0x128] sm:$0xff]
    %v3275 = vld [vmem:[#allocation7 + $0x130] sm:$0xff]
    %v3276 = vld [vmem:[#allocation7 + $0x138] sm:$0xff]
    %v3277 = vld [vmem:[#allocation7 + $0x140] sm:$0xff]
    %v3278 = vld [vmem:[#allocation7 + $0x148] sm:$0xff]
    %v3279 = vld [vmem:[#allocation7 + $0x150] sm:$0xff]
    %v3280 = vld [vmem:[#allocation7 + $0x158] sm:$0xff]
    %v3281 = vld [vmem:[#allocation7 + $0x160] sm:$0xff]
    %v3282 = vld [vmem:[#allocation7 + $0x168] sm:$0xff]
    %v3283 = vld [vmem:[#allocation7 + $0x170] sm:$0xff]
    %v3284 = vld [vmem:[#allocation7 + $0x178] sm:$0xff]
    %v3285 = vld [vmem:[#allocation7 + $0x180] sm:$0xff]
    %v3286 = vld [vmem:[#allocation7 + $0x188] sm:$0xff]
    %v3287 = vld [vmem:[#allocation7 + $0x190] sm:$0xff]
    %v3288 = vld [vmem:[#allocation7 + $0x198] sm:$0xff]
    %v3289 = vld [vmem:[#allocation7 + $0x1a0] sm:$0xff]
    %v3290 = vld [vmem:[#allocation7 + $0x1a8] sm:$0xff]
    %v3291 = vld [vmem:[#allocation7 + $0x1b0] sm:$0xff]
    %v3292 = vld [vmem:[#allocation7 + $0x1b8] sm:$0xff]
    %v3293 = vld [vmem:[#allocation7 + $0x1c0] sm:$0xff]
    %v3294 = vld [vmem:[#allocation7 + $0x1c8] sm:$0xff]
    %v3295 = vld [vmem:[#allocation7 + $0x1d0] sm:$0xff]
    %v3296 = vld [vmem:[#allocation7 + $0x1d8] sm:$0xff]
    %v3297 = vld [vmem:[#allocation7 + $0x1e0] sm:$0xff]
    %v3298 = vld [vmem:[#allocation7 + $0x1e8] sm:$0xff]
    %v3299 = vld [vmem:[#allocation7 + $0x1f0] sm:$0xff]
    %v3300 = vld [vmem:[#allocation7 + $0x1f8] sm:$0xff]
    %v3301 = vld [vmem:[#allocation7 + $0x200] sm:$0xff]
    %v3302 = vld [vmem:[#allocation7 + $0x208] sm:$0xff]
    %v3303 = vld [vmem:[#allocation7 + $0x210] sm:$0xff]
    %v3304 = vld [vmem:[#allocation7 + $0x218] sm:$0xff]
    %v3305 = vld [vmem:[#allocation7 + $0x220] sm:$0xff]
    %v3306 = vld [vmem:[#allocation7 + $0x228] sm:$0xff]
    %v3307 = vld [vmem:[#allocation7 + $0x230] sm:$0xff]
    %v3308 = vld [vmem:[#allocation7 + $0x238] sm:$0xff]
    %v3309 = vld [vmem:[#allocation7 + $0x240] sm:$0xff]
    %v3310 = vld [vmem:[#allocation7 + $0x248] sm:$0xff]
    %v3311 = vld [vmem:[#allocation7 + $0x250] sm:$0xff]
    %v3312 = vld [vmem:[#allocation7 + $0x258] sm:$0xff]
    %v3313 = vld [vmem:[#allocation7 + $0x260] sm:$0xff]
    %v3314 = vld [vmem:[#allocation7 + $0x268] sm:$0xff]
    %v3315 = vld [vmem:[#allocation7 + $0x270] sm:$0xff]
    %v3316 = vld [vmem:[#allocation7 + $0x278] sm:$0xff]
    %v3317 = vld [vmem:[#allocation7 + $0x280] sm:$0xff]
    %v3318 = vld [vmem:[#allocation7 + $0x288] sm:$0xff]
    %v3319 = vld [vmem:[#allocation7 + $0x290] sm:$0xff]
    %v3320 = vld [vmem:[#allocation7 + $0x298] sm:$0xff]
    %v3321 = vld [vmem:[#allocation7 + $0x2a0] sm:$0xff]
    %v3322 = vld [vmem:[#allocation7 + $0x2a8] sm:$0xff]
    %v3323 = vld [vmem:[#allocation7 + $0x2b0] sm:$0xff]
    %v3324 = vld [vmem:[#allocation7 + $0x2b8] sm:$0xff]
    %v3325 = vld [vmem:[#allocation7 + $0x2c0] sm:$0xff]
    %v3326 = vld [vmem:[#allocation7 + $0x2c8] sm:$0xff]
    %v3327 = vld [vmem:[#allocation7 + $0x2d0] sm:$0xff]
    %v3328 = vld [vmem:[#allocation7 + $0x2d8] sm:$0xff]
    %v3329 = vld [vmem:[#allocation7 + $0x2e0] sm:$0xff]
    %v3330 = vld [vmem:[#allocation7 + $0x2e8] sm:$0xff]
    %v3331 = vld [vmem:[#allocation7 + $0x2f0] sm:$0xff]
    %v3332 = vld [vmem:[#allocation7 + $0x2f8] sm:$0xff]
    %v3333 = vld [vmem:[#allocation7 + $0x300] sm:$0xff]
    %v3334 = vld [vmem:[#allocation7 + $0x308] sm:$0xff]
    %v3335 = vld [vmem:[#allocation7 + $0x310] sm:$0xff]
    %v3336 = vld [vmem:[#allocation7 + $0x318] sm:$0xff]
    %v3337 = vld [vmem:[#allocation7 + $0x320] sm:$0xff]
    %v3338 = vld [vmem:[#allocation7 + $0x328] sm:$0xff]
    %v3339 = vld [vmem:[#allocation7 + $0x330] sm:$0xff]
    %v3340 = vld [vmem:[#allocation7 + $0x338] sm:$0xff]
    %v3341 = vld [vmem:[#allocation7 + $0x340] sm:$0xff]
    %v3342 = vld [vmem:[#allocation7 + $0x348] sm:$0xff]
    %v3343 = vld [vmem:[#allocation7 + $0x350] sm:$0xff]
    %v3344 = vld [vmem:[#allocation7 + $0x358] sm:$0xff]
    %v3345 = vld [vmem:[#allocation7 + $0x360] sm:$0xff]
    %v3346 = vld [vmem:[#allocation7 + $0x368] sm:$0xff]
    %v3347 = vld [vmem:[#allocation7 + $0x370] sm:$0xff]
    %v3348 = vld [vmem:[#allocation7 + $0x378] sm:$0xff]
    %v3349 = vld [vmem:[#allocation7 + $0x380] sm:$0xff]
    %v3350 = vld [vmem:[#allocation7 + $0x388] sm:$0xff]
    %v3351 = vld [vmem:[#allocation7 + $0x390] sm:$0xff]
    %v3352 = vld [vmem:[#allocation7 + $0x398] sm:$0xff]
    %v3353 = vld [vmem:[#allocation7 + $0x3a0] sm:$0xff]
    %v3354 = vld [vmem:[#allocation7 + $0x3a8] sm:$0xff]
    %v3355 = vld [vmem:[#allocation7 + $0x3b0] sm:$0xff]
    %v3356 = vld [vmem:[#allocation7 + $0x3b8] sm:$0xff]
    %v3357 = vld [vmem:[#allocation7 + $0x3c0] sm:$0xff]
    %v3358 = vld [vmem:[#allocation7 + $0x3c8] sm:$0xff]
    %v3359 = vld [vmem:[#allocation7 + $0x3d0] sm:$0xff]
    %v3360 = vld [vmem:[#allocation7 + $0x3d8] sm:$0xff]
    %v3361 = vld [vmem:[#allocation7 + $0x3e0] sm:$0xff]
    %v3362 = vld [vmem:[#allocation7 + $0x3e8] sm:$0xff]
    %v3363 = vld [vmem:[#allocation7 + $0x3f0] sm:$0xff]
    %v3364 = vld [vmem:[#allocation7 + $0x3f8] sm:$0xff]
    %v3365 = vld [vmem:[%s6] sm:$0xff]
    %v3367 = vlaneseq
    %v3368 = vshrl.u32 %v3367, 7
    %v3369 = vsub.s32 0, %v3368
    %v3370 = vrot.slane %v3365, %v3369
    %v3371 = vlaneseq
    %v3372 = vshrl.u32 %v3371, 7
    %v3373 = vsub.s32 1, %v3372
    %v3374 = vrot.slane %v3365, %v3373
    %v3375 = vlaneseq
    %v3376 = vshrl.u32 %v3375, 7
    %v3377 = vsub.s32 2, %v3376
    %v3378 = vrot.slane %v3365, %v3377
    %v3379 = vlaneseq
    %v3380 = vshrl.u32 %v3379, 7
    %v3381 = vsub.s32 3, %v3380
    %v3382 = vrot.slane %v3365, %v3381
    %v3383 = vlaneseq
    %v3384 = vshrl.u32 %v3383, 7
    %v3385 = vsub.s32 4, %v3384
    %v3386 = vrot.slane %v3365, %v3385
    %v3387 = vlaneseq
    %v3388 = vshrl.u32 %v3387, 7
    %v3389 = vsub.s32 5, %v3388
    %v3390 = vrot.slane %v3365, %v3389
    %v3391 = vlaneseq
    %v3392 = vshrl.u32 %v3391, 7
    %v3393 = vsub.s32 6, %v3392
    %v3394 = vrot.slane %v3365, %v3393
    %v3395 = vlaneseq
    %v3396 = vshrl.u32 %v3395, 7
    %v3397 = vsub.s32 7, %v3396
    %v3398 = vrot.slane %v3365, %v3397
    %v3535 = vunpack.c.l.b16 %v3109
    %v3536 = vunpack.c.h.b16 %v3109
    %v3537 = vunpack.c.l.b16 %v3110
    %v3538 = vunpack.c.h.b16 %v3110
    %v3539 = vunpack.c.l.b16 %v3111
    %v3540 = vunpack.c.h.b16 %v3111
    %v3541 = vunpack.c.l.b16 %v3112
    %v3542 = vunpack.c.h.b16 %v3112
    %v3543 = vunpack.c.l.b16 %v3113
    %v3544 = vunpack.c.h.b16 %v3113
    %v3545 = vunpack.c.l.b16 %v3114
    %v3546 = vunpack.c.h.b16 %v3114
    %v3547 = vunpack.c.l.b16 %v3115
    %v3548 = vunpack.c.h.b16 %v3115
    %v3549 = vunpack.c.l.b16 %v3116
    %v3550 = vunpack.c.h.b16 %v3116
    %v3551 = vunpack.c.l.b16 %v3117
    %v3552 = vunpack.c.h.b16 %v3117
    %v3553 = vunpack.c.l.b16 %v3118
    %v3554 = vunpack.c.h.b16 %v3118
    %v3555 = vunpack.c.l.b16 %v3119
    %v3556 = vunpack.c.h.b16 %v3119
    %v3557 = vunpack.c.l.b16 %v3120
    %v3558 = vunpack.c.h.b16 %v3120
    %v3559 = vunpack.c.l.b16 %v3121
    %v3560 = vunpack.c.h.b16 %v3121
    %v3561 = vunpack.c.l.b16 %v3122
    %v3562 = vunpack.c.h.b16 %v3122
    %v3563 = vunpack.c.l.b16 %v3123
    %v3564 = vunpack.c.h.b16 %v3123
    %v3565 = vunpack.c.l.b16 %v3124
    %v3566 = vunpack.c.h.b16 %v3124
    %v3567 = vunpack.c.l.b16 %v3125
    %v3568 = vunpack.c.h.b16 %v3125
    %v3569 = vunpack.c.l.b16 %v3126
    %v3570 = vunpack.c.h.b16 %v3126
    %v3571 = vunpack.c.l.b16 %v3127
    %v3572 = vunpack.c.h.b16 %v3127
    %v3573 = vunpack.c.l.b16 %v3128
    %v3574 = vunpack.c.h.b16 %v3128
    %v3575 = vunpack.c.l.b16 %v3129
    %v3576 = vunpack.c.h.b16 %v3129
    %v3577 = vunpack.c.l.b16 %v3130
    %v3578 = vunpack.c.h.b16 %v3130
    %v3579 = vunpack.c.l.b16 %v3131
    %v3580 = vunpack.c.h.b16 %v3131
    %v3581 = vunpack.c.l.b16 %v3132
    %v3582 = vunpack.c.h.b16 %v3132
    %v3583 = vunpack.c.l.b16 %v3133
    %v3584 = vunpack.c.h.b16 %v3133
    %v3585 = vunpack.c.l.b16 %v3134
    %v3586 = vunpack.c.h.b16 %v3134
    %v3587 = vunpack.c.l.b16 %v3135
    %v3588 = vunpack.c.h.b16 %v3135
    %v3589 = vunpack.c.l.b16 %v3136
    %v3590 = vunpack.c.h.b16 %v3136
    %v3591 = vunpack.c.l.b16 %v3137
    %v3592 = vunpack.c.h.b16 %v3137
    %v3593 = vunpack.c.l.b16 %v3138
    %v3594 = vunpack.c.h.b16 %v3138
    %v3595 = vunpack.c.l.b16 %v3139
    %v3596 = vunpack.c.h.b16 %v3139
    %v3597 = vunpack.c.l.b16 %v3140
    %v3598 = vunpack.c.h.b16 %v3140
    %v3599 = vunpack.c.l.b16 %v3141
    %v3600 = vunpack.c.h.b16 %v3141
    %v3601 = vunpack.c.l.b16 %v3142
    %v3602 = vunpack.c.h.b16 %v3142
    %v3603 = vunpack.c.l.b16 %v3143
    %v3604 = vunpack.c.h.b16 %v3143
    %v3605 = vunpack.c.l.b16 %v3144
    %v3606 = vunpack.c.h.b16 %v3144
    %v3607 = vunpack.c.l.b16 %v3145
    %v3608 = vunpack.c.h.b16 %v3145
    %v3609 = vunpack.c.l.b16 %v3146
    %v3610 = vunpack.c.h.b16 %v3146
    %v3611 = vunpack.c.l.b16 %v3147
    %v3612 = vunpack.c.h.b16 %v3147
    %v3613 = vunpack.c.l.b16 %v3148
    %v3614 = vunpack.c.h.b16 %v3148
    %v3615 = vunpack.c.l.b16 %v3149
    %v3616 = vunpack.c.h.b16 %v3149
    %v3617 = vunpack.c.l.b16 %v3150
    %v3618 = vunpack.c.h.b16 %v3150
    %v3619 = vunpack.c.l.b16 %v3151
    %v3620 = vunpack.c.h.b16 %v3151
    %v3621 = vunpack.c.l.b16 %v3152
    %v3622 = vunpack.c.h.b16 %v3152
    %v3623 = vunpack.c.l.b16 %v3153
    %v3624 = vunpack.c.h.b16 %v3153
    %v3625 = vunpack.c.l.b16 %v3154
    %v3626 = vunpack.c.h.b16 %v3154
    %v3627 = vunpack.c.l.b16 %v3155
    %v3628 = vunpack.c.h.b16 %v3155
    %v3629 = vunpack.c.l.b16 %v3156
    %v3630 = vunpack.c.h.b16 %v3156
    %v3631 = vunpack.c.l.b16 %v3157
    %v3632 = vunpack.c.h.b16 %v3157
    %v3633 = vunpack.c.l.b16 %v3158
    %v3634 = vunpack.c.h.b16 %v3158
    %v3635 = vunpack.c.l.b16 %v3159
    %v3636 = vunpack.c.h.b16 %v3159
    %v3637 = vunpack.c.l.b16 %v3160
    %v3638 = vunpack.c.h.b16 %v3160
    %v3639 = vunpack.c.l.b16 %v3161
    %v3640 = vunpack.c.h.b16 %v3161
    %v3641 = vunpack.c.l.b16 %v3162
    %v3642 = vunpack.c.h.b16 %v3162
    %v3643 = vunpack.c.l.b16 %v3163
    %v3644 = vunpack.c.h.b16 %v3163
    %v3645 = vunpack.c.l.b16 %v3164
    %v3646 = vunpack.c.h.b16 %v3164
    %v3647 = vunpack.c.l.b16 %v3165
    %v3648 = vunpack.c.h.b16 %v3165
    %v3649 = vunpack.c.l.b16 %v3166
    %v3650 = vunpack.c.h.b16 %v3166
    %v3651 = vunpack.c.l.b16 %v3167
    %v3652 = vunpack.c.h.b16 %v3167
    %v3653 = vunpack.c.l.b16 %v3168
    %v3654 = vunpack.c.h.b16 %v3168
    %v3655 = vunpack.c.l.b16 %v3169
    %v3656 = vunpack.c.h.b16 %v3169
    %v3657 = vunpack.c.l.b16 %v3170
    %v3658 = vunpack.c.h.b16 %v3170
    %v3659 = vunpack.c.l.b16 %v3171
    %v3660 = vunpack.c.h.b16 %v3171
    %v3661 = vunpack.c.l.b16 %v3172
    %v3662 = vunpack.c.h.b16 %v3172
    %v3663 = vunpack.c.l.b16 %v3173
    %v3664 = vunpack.c.h.b16 %v3173
    %v3665 = vunpack.c.l.b16 %v3174
    %v3666 = vunpack.c.h.b16 %v3174
    %v3667 = vunpack.c.l.b16 %v3175
    %v3668 = vunpack.c.h.b16 %v3175
    %v3669 = vunpack.c.l.b16 %v3176
    %v3670 = vunpack.c.h.b16 %v3176
    %v3671 = vunpack.c.l.b16 %v3177
    %v3672 = vunpack.c.h.b16 %v3177
    %v3673 = vunpack.c.l.b16 %v3178
    %v3674 = vunpack.c.h.b16 %v3178
    %v3675 = vunpack.c.l.b16 %v3179
    %v3676 = vunpack.c.h.b16 %v3179
    %v3677 = vunpack.c.l.b16 %v3180
    %v3678 = vunpack.c.h.b16 %v3180
    %v3679 = vunpack.c.l.b16 %v3181
    %v3680 = vunpack.c.h.b16 %v3181
    %v3681 = vunpack.c.l.b16 %v3182
    %v3682 = vunpack.c.h.b16 %v3182
    %v3683 = vunpack.c.l.b16 %v3183
    %v3684 = vunpack.c.h.b16 %v3183
    %v3685 = vunpack.c.l.b16 %v3184
    %v3686 = vunpack.c.h.b16 %v3184
    %v3687 = vunpack.c.l.b16 %v3185
    %v3688 = vunpack.c.h.b16 %v3185
    %v3689 = vunpack.c.l.b16 %v3186
    %v3690 = vunpack.c.h.b16 %v3186
    %v3691 = vunpack.c.l.b16 %v3187
    %v3692 = vunpack.c.h.b16 %v3187
    %v3693 = vunpack.c.l.b16 %v3188
    %v3694 = vunpack.c.h.b16 %v3188
    %v3695 = vunpack.c.l.b16 %v3189
    %v3696 = vunpack.c.h.b16 %v3189
    %v3697 = vunpack.c.l.b16 %v3190
    %v3698 = vunpack.c.h.b16 %v3190
    %v3699 = vunpack.c.l.b16 %v3191
    %v3700 = vunpack.c.h.b16 %v3191
    %v3701 = vunpack.c.l.b16 %v3192
    %v3702 = vunpack.c.h.b16 %v3192
    %v3703 = vunpack.c.l.b16 %v3193
    %v3704 = vunpack.c.h.b16 %v3193
    %v3705 = vunpack.c.l.b16 %v3194
    %v3706 = vunpack.c.h.b16 %v3194
    %v3707 = vunpack.c.l.b16 %v3195
    %v3708 = vunpack.c.h.b16 %v3195
    %v3709 = vunpack.c.l.b16 %v3196
    %v3710 = vunpack.c.h.b16 %v3196
    %v3711 = vunpack.c.l.b16 %v3197
    %v3712 = vunpack.c.h.b16 %v3197
    %v3713 = vunpack.c.l.b16 %v3198
    %v3714 = vunpack.c.h.b16 %v3198
    %v3715 = vunpack.c.l.b16 %v3199
    %v3716 = vunpack.c.h.b16 %v3199
    %v3717 = vunpack.c.l.b16 %v3200
    %v3718 = vunpack.c.h.b16 %v3200
    %v3719 = vunpack.c.l.b16 %v3201
    %v3720 = vunpack.c.h.b16 %v3201
    %v3721 = vunpack.c.l.b16 %v3202
    %v3722 = vunpack.c.h.b16 %v3202
    %v3723 = vunpack.c.l.b16 %v3203
    %v3724 = vunpack.c.h.b16 %v3203
    %v3725 = vunpack.c.l.b16 %v3204
    %v3726 = vunpack.c.h.b16 %v3204
    %v3727 = vunpack.c.l.b16 %v3205
    %v3728 = vunpack.c.h.b16 %v3205
    %v3729 = vunpack.c.l.b16 %v3206
    %v3730 = vunpack.c.h.b16 %v3206
    %v3731 = vunpack.c.l.b16 %v3207
    %v3732 = vunpack.c.h.b16 %v3207
    %v3733 = vunpack.c.l.b16 %v3208
    %v3734 = vunpack.c.h.b16 %v3208
    %v3735 = vunpack.c.l.b16 %v3209
    %v3736 = vunpack.c.h.b16 %v3209
    %v3737 = vunpack.c.l.b16 %v3210
    %v3738 = vunpack.c.h.b16 %v3210
    %v3739 = vunpack.c.l.b16 %v3211
    %v3740 = vunpack.c.h.b16 %v3211
    %v3741 = vunpack.c.l.b16 %v3212
    %v3742 = vunpack.c.h.b16 %v3212
    %v3743 = vunpack.c.l.b16 %v3213
    %v3744 = vunpack.c.h.b16 %v3213
    %v3745 = vunpack.c.l.b16 %v3214
    %v3746 = vunpack.c.h.b16 %v3214
    %v3747 = vunpack.c.l.b16 %v3215
    %v3748 = vunpack.c.h.b16 %v3215
    %v3749 = vunpack.c.l.b16 %v3216
    %v3750 = vunpack.c.h.b16 %v3216
    %v3751 = vunpack.c.l.b16 %v3217
    %v3752 = vunpack.c.h.b16 %v3217
    %v3753 = vunpack.c.l.b16 %v3218
    %v3754 = vunpack.c.h.b16 %v3218
    %v3755 = vunpack.c.l.b16 %v3219
    %v3756 = vunpack.c.h.b16 %v3219
    %v3757 = vunpack.c.l.b16 %v3220
    %v3758 = vunpack.c.h.b16 %v3220
    %v3759 = vunpack.c.l.b16 %v3221
    %v3760 = vunpack.c.h.b16 %v3221
    %v3761 = vunpack.c.l.b16 %v3222
    %v3762 = vunpack.c.h.b16 %v3222
    %v3763 = vunpack.c.l.b16 %v3223
    %v3764 = vunpack.c.h.b16 %v3223
    %v3765 = vunpack.c.l.b16 %v3224
    %v3766 = vunpack.c.h.b16 %v3224
    %v3767 = vunpack.c.l.b16 %v3225
    %v3768 = vunpack.c.h.b16 %v3225
    %v3769 = vunpack.c.l.b16 %v3226
    %v3770 = vunpack.c.h.b16 %v3226
    %v3771 = vunpack.c.l.b16 %v3227
    %v3772 = vunpack.c.h.b16 %v3227
    %v3773 = vunpack.c.l.b16 %v3228
    %v3774 = vunpack.c.h.b16 %v3228
    %v3775 = vunpack.c.l.b16 %v3229
    %v3776 = vunpack.c.h.b16 %v3229
    %v3777 = vunpack.c.l.b16 %v3230
    %v3778 = vunpack.c.h.b16 %v3230
    %v3779 = vunpack.c.l.b16 %v3231
    %v3780 = vunpack.c.h.b16 %v3231
    %v3781 = vunpack.c.l.b16 %v3232
    %v3782 = vunpack.c.h.b16 %v3232
    %v3783 = vunpack.c.l.b16 %v3233
    %v3784 = vunpack.c.h.b16 %v3233
    %v3785 = vunpack.c.l.b16 %v3234
    %v3786 = vunpack.c.h.b16 %v3234
    %v3787 = vunpack.c.l.b16 %v3235
    %v3788 = vunpack.c.h.b16 %v3235
    %v3789 = vunpack.c.l.b16 %v3236
    %v3790 = vunpack.c.h.b16 %v3236
    %v3791 = vpack.c.b16 %v3543, %v3535
    %v3792 = vpack.c.b16 %v3544, %v3536
    %v3793 = vpack.c.b16 %v3545, %v3537
    %v3794 = vpack.c.b16 %v3546, %v3538
    %v3795 = vpack.c.b16 %v3547, %v3539
    %v3796 = vpack.c.b16 %v3548, %v3540
    %v3797 = vpack.c.b16 %v3549, %v3541
    %v3798 = vpack.c.b16 %v3550, %v3542
    %v3799 = vpack.c.b16 %v3559, %v3551
    %v3800 = vpack.c.b16 %v3560, %v3552
    %v3801 = vpack.c.b16 %v3561, %v3553
    %v3802 = vpack.c.b16 %v3562, %v3554
    %v3803 = vpack.c.b16 %v3563, %v3555
    %v3804 = vpack.c.b16 %v3564, %v3556
    %v3805 = vpack.c.b16 %v3565, %v3557
    %v3806 = vpack.c.b16 %v3566, %v3558
    %v3807 = vpack.c.b16 %v3575, %v3567
    %v3808 = vpack.c.b16 %v3576, %v3568
    %v3809 = vpack.c.b16 %v3577, %v3569
    %v3810 = vpack.c.b16 %v3578, %v3570
    %v3811 = vpack.c.b16 %v3579, %v3571
    %v3812 = vpack.c.b16 %v3580, %v3572
    %v3813 = vpack.c.b16 %v3581, %v3573
    %v3814 = vpack.c.b16 %v3582, %v3574
    %v3815 = vpack.c.b16 %v3591, %v3583
    %v3816 = vpack.c.b16 %v3592, %v3584
    %v3817 = vpack.c.b16 %v3593, %v3585
    %v3818 = vpack.c.b16 %v3594, %v3586
    %v3819 = vpack.c.b16 %v3595, %v3587
    %v3820 = vpack.c.b16 %v3596, %v3588
    %v3821 = vpack.c.b16 %v3597, %v3589
    %v3822 = vpack.c.b16 %v3598, %v3590
    %v3823 = vpack.c.b16 %v3607, %v3599
    %v3824 = vpack.c.b16 %v3608, %v3600
    %v3825 = vpack.c.b16 %v3609, %v3601
    %v3826 = vpack.c.b16 %v3610, %v3602
    %v3827 = vpack.c.b16 %v3611, %v3603
    %v3828 = vpack.c.b16 %v3612, %v3604
    %v3829 = vpack.c.b16 %v3613, %v3605
    %v3830 = vpack.c.b16 %v3614, %v3606
    %v3831 = vpack.c.b16 %v3623, %v3615
    %v3832 = vpack.c.b16 %v3624, %v3616
    %v3833 = vpack.c.b16 %v3625, %v3617
    %v3834 = vpack.c.b16 %v3626, %v3618
    %v3835 = vpack.c.b16 %v3627, %v3619
    %v3836 = vpack.c.b16 %v3628, %v3620
    %v3837 = vpack.c.b16 %v3629, %v3621
    %v3838 = vpack.c.b16 %v3630, %v3622
    %v3839 = vpack.c.b16 %v3639, %v3631
    %v3840 = vpack.c.b16 %v3640, %v3632
    %v3841 = vpack.c.b16 %v3641, %v3633
    %v3842 = vpack.c.b16 %v3642, %v3634
    %v3843 = vpack.c.b16 %v3643, %v3635
    %v3844 = vpack.c.b16 %v3644, %v3636
    %v3845 = vpack.c.b16 %v3645, %v3637
    %v3846 = vpack.c.b16 %v3646, %v3638
    %v3847 = vpack.c.b16 %v3655, %v3647
    %v3848 = vpack.c.b16 %v3656, %v3648
    %v3849 = vpack.c.b16 %v3657, %v3649
    %v3850 = vpack.c.b16 %v3658, %v3650
    %v3851 = vpack.c.b16 %v3659, %v3651
    %v3852 = vpack.c.b16 %v3660, %v3652
    %v3853 = vpack.c.b16 %v3661, %v3653
    %v3854 = vpack.c.b16 %v3662, %v3654
    %v3855 = vpack.c.b16 %v3671, %v3663
    %v3856 = vpack.c.b16 %v3672, %v3664
    %v3857 = vpack.c.b16 %v3673, %v3665
    %v3858 = vpack.c.b16 %v3674, %v3666
    %v3859 = vpack.c.b16 %v3675, %v3667
    %v3860 = vpack.c.b16 %v3676, %v3668
    %v3861 = vpack.c.b16 %v3677, %v3669
    %v3862 = vpack.c.b16 %v3678, %v3670
    %v3863 = vpack.c.b16 %v3687, %v3679
    %v3864 = vpack.c.b16 %v3688, %v3680
    %v3865 = vpack.c.b16 %v3689, %v3681
    %v3866 = vpack.c.b16 %v3690, %v3682
    %v3867 = vpack.c.b16 %v3691, %v3683
    %v3868 = vpack.c.b16 %v3692, %v3684
    %v3869 = vpack.c.b16 %v3693, %v3685
    %v3870 = vpack.c.b16 %v3694, %v3686
    %v3871 = vpack.c.b16 %v3703, %v3695
    %v3872 = vpack.c.b16 %v3704, %v3696
    %v3873 = vpack.c.b16 %v3705, %v3697
    %v3874 = vpack.c.b16 %v3706, %v3698
    %v3875 = vpack.c.b16 %v3707, %v3699
    %v3876 = vpack.c.b16 %v3708, %v3700
    %v3877 = vpack.c.b16 %v3709, %v3701
    %v3878 = vpack.c.b16 %v3710, %v3702
    %v3879 = vpack.c.b16 %v3719, %v3711
    %v3880 = vpack.c.b16 %v3720, %v3712
    %v3881 = vpack.c.b16 %v3721, %v3713
    %v3882 = vpack.c.b16 %v3722, %v3714
    %v3883 = vpack.c.b16 %v3723, %v3715
    %v3884 = vpack.c.b16 %v3724, %v3716
    %v3885 = vpack.c.b16 %v3725, %v3717
    %v3886 = vpack.c.b16 %v3726, %v3718
    %v3887 = vpack.c.b16 %v3735, %v3727
    %v3888 = vpack.c.b16 %v3736, %v3728
    %v3889 = vpack.c.b16 %v3737, %v3729
    %v3890 = vpack.c.b16 %v3738, %v3730
    %v3891 = vpack.c.b16 %v3739, %v3731
    %v3892 = vpack.c.b16 %v3740, %v3732
    %v3893 = vpack.c.b16 %v3741, %v3733
    %v3894 = vpack.c.b16 %v3742, %v3734
    %v3895 = vpack.c.b16 %v3751, %v3743
    %v3896 = vpack.c.b16 %v3752, %v3744
    %v3897 = vpack.c.b16 %v3753, %v3745
    %v3898 = vpack.c.b16 %v3754, %v3746
    %v3899 = vpack.c.b16 %v3755, %v3747
    %v3900 = vpack.c.b16 %v3756, %v3748
    %v3901 = vpack.c.b16 %v3757, %v3749
    %v3902 = vpack.c.b16 %v3758, %v3750
    %v3903 = vpack.c.b16 %v3767, %v3759
    %v3904 = vpack.c.b16 %v3768, %v3760
    %v3905 = vpack.c.b16 %v3769, %v3761
    %v3906 = vpack.c.b16 %v3770, %v3762
    %v3907 = vpack.c.b16 %v3771, %v3763
    %v3908 = vpack.c.b16 %v3772, %v3764
    %v3909 = vpack.c.b16 %v3773, %v3765
    %v3910 = vpack.c.b16 %v3774, %v3766
    %v3911 = vpack.c.b16 %v3783, %v3775
    %v3912 = vpack.c.b16 %v3784, %v3776
    %v3913 = vpack.c.b16 %v3785, %v3777
    %v3914 = vpack.c.b16 %v3786, %v3778
    %v3915 = vpack.c.b16 %v3787, %v3779
    %v3916 = vpack.c.b16 %v3788, %v3780
    %v3917 = vpack.c.b16 %v3789, %v3781
    %v3918 = vpack.c.b16 %v3790, %v3782
    %4047 = vmatprep.subr.bf16.mxu0 %v3792
    %4048 = vmatpush1.bf16.msra.mxu0 %v3791
    %4049 = vmatprep.subr.bf16.mxu0 %v3800
    %4050 = vmatpush1.bf16.msra.mxu0 %v3799
    %4051 = vmatprep.subr.bf16.mxu0 %v3808
    %4052 = vmatpush1.bf16.msra.mxu0 %v3807
    %4053 = vmatprep.subr.bf16.mxu0 %v3816
    %4054 = vmatpush1.bf16.msra.mxu0 %v3815
    %4055 = vmatprep.subr.bf16.mxu0 %v3824
    %4056 = vmatpush1.bf16.msra.mxu0 %v3823
    %4057 = vmatprep.subr.bf16.mxu0 %v3832
    %4058 = vmatpush1.bf16.msra.mxu0 %v3831
    %4059 = vmatprep.subr.bf16.mxu0 %v3840
    %4060 = vmatpush1.bf16.msra.mxu0 %v3839
    %4061 = vmatprep.subr.bf16.mxu0 %v3848
    %4062 = vmatpush1.bf16.msra.mxu0 %v3847
    %4063 = vmatprep.subr.bf16.mxu0 %v3856
    %4064 = vmatpush1.bf16.msra.mxu0 %v3855
    %4065 = vmatprep.subr.bf16.mxu0 %v3864
    %4066 = vmatpush1.bf16.msra.mxu0 %v3863
    %4067 = vmatprep.subr.bf16.mxu0 %v3872
    %4068 = vmatpush1.bf16.msra.mxu0 %v3871
    %4069 = vmatprep.subr.bf16.mxu0 %v3880
    %4070 = vmatpush1.bf16.msra.mxu0 %v3879
    %4071 = vmatprep.subr.bf16.mxu0 %v3888
    %4072 = vmatpush1.bf16.msra.mxu0 %v3887
    %4073 = vmatprep.subr.bf16.mxu0 %v3896
    %4074 = vmatpush1.bf16.msra.mxu0 %v3895
    %4075 = vmatprep.subr.bf16.mxu0 %v3904
    %4076 = vmatpush1.bf16.msra.mxu0 %v3903
    %4077 = vmatprep.subr.bf16.mxu0 %v3912
    %4078 = vmatpush1.bf16.msra.mxu0 %v3911
    %4079 = vmatprep.mubr.bf16.mxu0 %v3102
    %4080 = vmatmul.mubr.bf16.gmra.mrb[0].mxu0 %v3101
    %v4081 = vpop.f32.mrb[0].mxu0
    %v4082 = vadd.f32 %v3370, %v4081
    %v4083 = vpop.f32.mrb[0].mxu0
    %v4084 = vadd.f32 %v3374, %v4083
    %v4085 = vpop.f32.mrb[0].mxu0
    %v4086 = vadd.f32 %v3370, %v4085
    %v4087 = vpop.f32.mrb[0].mxu0
    %v4088 = vadd.f32 %v3374, %v4087
    %4089 = vmatprep.mubr.bf16.mxu0 %v3104
    %4090 = vmatmul.mubr.bf16.gmra.mrb[0].mxu0 %v3103
    %v4091 = vpop.f32.mrb[0].mxu0
    %v4092 = vadd.f32 %v3370, %v4091
    %v4093 = vpop.f32.mrb[0].mxu0
    %v4094 = vadd.f32 %v3374, %v4093
    %v4095 = vpop.f32.mrb[0].mxu0
    %v4096 = vadd.f32 %v3370, %v4095
    %v4097 = vpop.f32.mrb[0].mxu0
    %v4098 = vadd.f32 %v3374, %v4097
    %4099 = vmatprep.mubr.bf16.mxu0 %v3106
    %4100 = vmatmul.mubr.bf16.gmra.mrb[0].mxu0 %v3105
    %v4101 = vpop.f32.mrb[0].mxu0
    %v4102 = vadd.f32 %v3370, %v4101
    %v4103 = vpop.f32.mrb[0].mxu0
    %v4104 = vadd.f32 %v3374, %v4103
    %v4105 = vpop.f32.mrb[0].mxu0
    %v4106 = vadd.f32 %v3370, %v4105
    %v4107 = vpop.f32.mrb[0].mxu0
    %v4108 = vadd.f32 %v3374, %v4107
    %4109 = vmatprep.mubr.bf16.mxu0 %v3108
    %4110 = vmatmul.mubr.bf16.gmra.mrb[0].mxu0 %v3107
    %v4111 = vpop.f32.mrb[0].mxu0
    %v4112 = vadd.f32 %v3370, %v4111
    %v4113 = vpop.f32.mrb[0].mxu0
    %v4114 = vadd.f32 %v3374, %v4113
    %v4115 = vpop.f32.mrb[0].mxu0
    %v4116 = vadd.f32 %v3370, %v4115
    %v4117 = vpop.f32.mrb[0].mxu0
    %v4118 = vadd.f32 %v3374, %v4117
    %4119 = vdwg.mxu0
    %4120 = vmatprep.subr.bf16.mxu0 %v3794
    %4121 = vmatpush1.bf16.msra.mxu0 %v3793
    %4122 = vmatprep.subr.bf16.mxu0 %v3802
    %4123 = vmatpush1.bf16.msra.mxu0 %v3801
    %4124 = vmatprep.subr.bf16.mxu0 %v3810
    %4125 = vmatpush1.bf16.msra.mxu0 %v3809
    %4126 = vmatprep.subr.bf16.mxu0 %v3818
    %4127 = vmatpush1.bf16.msra.mxu0 %v3817
    %4128 = vmatprep.subr.bf16.mxu0 %v3826
    %4129 = vmatpush1.bf16.msra.mxu0 %v3825
    %4130 = vmatprep.subr.bf16.mxu0 %v3834
    %4131 = vmatpush1.bf16.msra.mxu0 %v3833
    %4132 = vmatprep.subr.bf16.mxu0 %v3842
    %4133 = vmatpush1.bf16.msra.mxu0 %v3841
    %4134 = vmatprep.subr.bf16.mxu0 %v3850
    %4135 = vmatpush1.bf16.msra.mxu0 %v3849
    %4136 = vmatprep.subr.bf16.mxu0 %v3858
    %4137 = vmatpush1.bf16.msra.mxu0 %v3857
    %4138 = vmatprep.subr.bf16.mxu0 %v3866
    %4139 = vmatpush1.bf16.msra.mxu0 %v3865
    %4140 = vmatprep.subr.bf16.mxu0 %v3874
    %4141 = vmatpush1.bf16.msra.mxu0 %v3873
    %4142 = vmatprep.subr.bf16.mxu0 %v3882
    %4143 = vmatpush1.bf16.msra.mxu0 %v3881
    %4144 = vmatprep.subr.bf16.mxu0 %v3890
    %4145 = vmatpush1.bf16.msra.mxu0 %v3889
    %4146 = vmatprep.subr.bf16.mxu0 %v3898
    %4147 = vmatpush1.bf16.msra.mxu0 %v3897
    %4148 = vmatprep.subr.bf16.mxu0 %v3906
    %4149 = vmatpush1.bf16.msra.mxu0 %v3905
    %4150 = vmatprep.subr.bf16.mxu0 %v3914
    %4151 = vmatpush1.bf16.msra.mxu0 %v3913
    %4152 = vmatprep.mubr.bf16.mxu0 %v3102
    %4153 = vmatmul.mubr.bf16.gmra.mrb[0].mxu0 %v3101
    %v4154 = vpop.f32.mrb[0].mxu0
    %v4155 = vadd.f32 %v3378, %v4154
    %v4156 = vpop.f32.mrb[0].mxu0
    %v4157 = vadd.f32 %v3382, %v4156
    %v4158 = vpop.f32.mrb[0].mxu0
    %v4159 = vadd.f32 %v3378, %v4158
    %v4160 = vpop.f32.mrb[0].mxu0
    %v4161 = vadd.f32 %v3382, %v4160
    %4162 = vmatprep.mubr.bf16.mxu0 %v3104
    %4163 = vmatmul.mubr.bf16.gmra.mrb[0].mxu0 %v3103
    %v4164 = vpop.f32.mrb[0].mxu0
    %v4165 = vadd.f32 %v3378, %v4164
    %v4166 = vpop.f32.mrb[0].mxu0
    %v4167 = vadd.f32 %v3382, %v4166
    %v4168 = vpop.f32.mrb[0].mxu0
    %v4169 = vadd.f32 %v3378, %v4168
    %v4170 = vpop.f32.mrb[0].mxu0
    %v4171 = vadd.f32 %v3382, %v4170
    %4172 = vmatprep.mubr.bf16.mxu0 %v3106
    %4173 = vmatmul.mubr.bf16.gmra.mrb[0].mxu0 %v3105
    %v4174 = vpop.f32.mrb[0].mxu0
    %v4175 = vadd.f32 %v3378, %v4174
    %v4176 = vpop.f32.mrb[0].mxu0
    %v4177 = vadd.f32 %v3382, %v4176
    %v4178 = vpop.f32.mrb[0].mxu0
    %v4179 = vadd.f32 %v3378, %v4178
    %v4180 = vpop.f32.mrb[0].mxu0
    %v4181 = vadd.f32 %v3382, %v4180
    %4182 = vmatprep.mubr.bf16.mxu0 %v3108
    %4183 = vmatmul.mubr.bf16.gmra.mrb[0].mxu0 %v3107
    %v4184 = vpop.f32.mrb[0].mxu0
    %v4185 = vadd.f32 %v3378, %v4184
    %v4186 = vpop.f32.mrb[0].mxu0
    %v4187 = vadd.f32 %v3382, %v4186
    %v4188 = vpop.f32.mrb[0].mxu0
    %v4189 = vadd.f32 %v3378, %v4188
    %v4190 = vpop.f32.mrb[0].mxu0
    %v4191 = vadd.f32 %v3382, %v4190
    %4192 = vdwg.mxu0
    %4193 = vmatprep.subr.bf16.mxu0 %v3796
    %4194 = vmatpush1.bf16.msra.mxu0 %v3795
    %4195 = vmatprep.subr.bf16.mxu0 %v3804
    %4196 = vmatpush1.bf16.msra.mxu0 %v3803
    %4197 = vmatprep.subr.bf16.mxu0 %v3812
    %4198 = vmatpush1.bf16.msra.mxu0 %v3811
    %4199 = vmatprep.subr.bf16.mxu0 %v3820
    %4200 = vmatpush1.bf16.msra.mxu0 %v3819
    %4201 = vmatprep.subr.bf16.mxu0 %v3828
    %4202 = vmatpush1.bf16.msra.mxu0 %v3827
    %4203 = vmatprep.subr.bf16.mxu0 %v3836
    %4204 = vmatpush1.bf16.msra.mxu0 %v3835
    %4205 = vmatprep.subr.bf16.mxu0 %v3844
    %4206 = vmatpush1.bf16.msra.mxu0 %v3843
    %4207 = vmatprep.subr.bf16.mxu0 %v3852
    %4208 = vmatpush1.bf16.msra.mxu0 %v3851
    %4209 = vmatprep.subr.bf16.mxu0 %v3860
    %4210 = vmatpush1.bf16.msra.mxu0 %v3859
    %4211 = vmatprep.subr.bf16.mxu0 %v3868
    %4212 = vmatpush1.bf16.msra.mxu0 %v3867
    %4213 = vmatprep.subr.bf16.mxu0 %v3876
    %4214 = vmatpush1.bf16.msra.mxu0 %v3875
    %4215 = vmatprep.subr.bf16.mxu0 %v3884
    %4216 = vmatpush1.bf16.msra.mxu0 %v3883
    %4217 = vmatprep.subr.bf16.mxu0 %v3892
    %4218 = vmatpush1.bf16.msra.mxu0 %v3891
    %4219 = vmatprep.subr.bf16.mxu0 %v3900
    %4220 = vmatpush1.bf16.msra.mxu0 %v3899
    %4221 = vmatprep.subr.bf16.mxu0 %v3908
    %4222 = vmatpush1.bf16.msra.mxu0 %v3907
    %4223 = vmatprep.subr.bf16.mxu0 %v3916
    %4224 = vmatpush1.bf16.msra.mxu0 %v3915
    %4225 = vmatprep.mubr.bf16.mxu0 %v3102
    %4226 = vmatmul.mubr.bf16.gmra.mrb[0].mxu0 %v3101
    %v4227 = vpop.f32.mrb[0].mxu0
    %v4228 = vpop.f32.mrb[0].mxu0
    %v4229 = vpop.f32.mrb[0].mxu0
    %v4230 = vadd.f32 %v3386, %v4229
    %v4231 = vpop.f32.mrb[0].mxu0
    %v4232 = vadd.f32 %v3390, %v4231
    %4233 = vmatprep.mubr.bf16.mxu0 %v3104
    %4234 = vmatmul.mubr.bf16.gmra.mrb[0].mxu0 %v3103
    %v4235 = vpop.f32.mrb[0].mxu0
    %v4236 = vadd.f32 %v3386, %v4235
    %v4237 = vpop.f32.mrb[0].mxu0
    %v4238 = vadd.f32 %v3390, %v4237
    %v4239 = vpop.f32.mrb[0].mxu0
    %v4240 = vadd.f32 %v3386, %v4239
    %v4241 = vpop.f32.mrb[0].mxu0
    %v4242 = vadd.f32 %v3390, %v4241
    %4243 = vmatprep.mubr.bf16.mxu0 %v3106
    %4244 = vmatmul.mubr.bf16.gmra.mrb[0].mxu0 %v3105
    %v4245 = vpop.f32.mrb[0].mxu0
    %v4246 = vadd.f32 %v3386, %v4245
    %v4247 = vpop.f32.mrb[0].mxu0
    %v4248 = vadd.f32 %v3390, %v4247
    %v4249 = vpop.f32.mrb[0].mxu0
    %v4250 = vadd.f32 %v3386, %v4249
    %v4251 = vpop.f32.mrb[0].mxu0
    %v4252 = vadd.f32 %v3390, %v4251
    %4253 = vmatprep.mubr.bf16.mxu0 %v3108
    %4254 = vmatmul.mubr.bf16.gmra.mrb[0].mxu0 %v3107
    %v4255 = vpop.f32.mrb[0].mxu0
    %v4256 = vadd.f32 %v3386, %v4255
    %v4257 = vpop.f32.mrb[0].mxu0
    %v4258 = vadd.f32 %v3390, %v4257
    %v4259 = vpop.f32.mrb[0].mxu0
    %v4260 = vadd.f32 %v3386, %v4259
    %v4261 = vpop.f32.mrb[0].mxu0
    %v4262 = vadd.f32 %v3390, %v4261
    %4263 = vdwg.mxu0
    %4264 = vmatprep.subr.bf16.mxu0 %v3798
    %4265 = vmatpush1.bf16.msra.mxu0 %v3797
    %4266 = vmatprep.subr.bf16.mxu0 %v3806
    %4267 = vmatpush1.bf16.msra.mxu0 %v3805
    %4268 = vmatprep.subr.bf16.mxu0 %v3814
    %4269 = vmatpush1.bf16.msra.mxu0 %v3813
    %4270 = vmatprep.subr.bf16.mxu0 %v3822
    %4271 = vmatpush1.bf16.msra.mxu0 %v3821
    %4272 = vmatprep.subr.bf16.mxu0 %v3830
    %4273 = vmatpush1.bf16.msra.mxu0 %v3829
    %4274 = vmatprep.subr.bf16.mxu0 %v3838
    %4275 = vmatpush1.bf16.msra.mxu0 %v3837
    %4276 = vmatprep.subr.bf16.mxu0 %v3846
    %4277 = vmatpush1.bf16.msra.mxu0 %v3845
    %4278 = vmatprep.subr.bf16.mxu0 %v3854
    %4279 = vmatpush1.bf16.msra.mxu0 %v3853
    %4280 = vmatprep.subr.bf16.mxu0 %v3862
    %4281 = vmatpush1.bf16.msra.mxu0 %v3861
    %4282 = vmatprep.subr.bf16.mxu0 %v3870
    %4283 = vmatpush1.bf16.msra.mxu0 %v3869
    %4284 = vmatprep.subr.bf16.mxu0 %v3878
    %4285 = vmatpush1.bf16.msra.mxu0 %v3877
    %4286 = vmatprep.subr.bf16.mxu0 %v3886
    %4287 = vmatpush1.bf16.msra.mxu0 %v3885
    %4288 = vmatprep.subr.bf16.mxu0 %v3894
    %4289 = vmatpush1.bf16.msra.mxu0 %v3893
    %4290 = vmatprep.subr.bf16.mxu0 %v3902
    %4291 = vmatpush1.bf16.msra.mxu0 %v3901
    %4292 = vmatprep.subr.bf16.mxu0 %v3910
    %4293 = vmatpush1.bf16.msra.mxu0 %v3909
    %4294 = vmatprep.subr.bf16.mxu0 %v3918
    %4295 = vmatpush1.bf16.msra.mxu0 %v3917
    %4296 = vmatprep.mubr.bf16.mxu0 %v3102
    %4297 = vmatmul.mubr.bf16.gmra.mrb[0].mxu0 %v3101
    %v4298 = vpop.f32.mrb[0].mxu0
    %v4299 = vpop.f32.mrb[0].mxu0
    %v4300 = vpop.f32.mrb[0].mxu0
    %v4301 = vadd.f32 %v3394, %v4300
    %v4302 = vpop.f32.mrb[0].mxu0
    %v4303 = vadd.f32 %v3398, %v4302
    %4304 = vmatprep.mubr.bf16.mxu0 %v3104
    %4305 = vmatmul.mubr.bf16.gmra.mrb[0].mxu0 %v3103
    %v4306 = vpop.f32.mrb[0].mxu0
    %v4307 = vadd.f32 %v3394, %v4306
    %v4308 = vpop.f32.mrb[0].mxu0
    %v4309 = vadd.f32 %v3398, %v4308
    %v4310 = vpop.f32.mrb[0].mxu0
    %v4311 = vadd.f32 %v3394, %v4310
    %v4312 = vpop.f32.mrb[0].mxu0
    %v4313 = vadd.f32 %v3398, %v4312
    %4314 = vmatprep.mubr.bf16.mxu0 %v3106
    %4315 = vmatmul.mubr.bf16.gmra.mrb[0].mxu0 %v3105
    %v4316 = vpop.f32.mrb[0].mxu0
    %v4317 = vadd.f32 %v3394, %v4316
    %v4318 = vpop.f32.mrb[0].mxu0
    %v4319 = vadd.f32 %v3398, %v4318
    %v4320 = vpop.f32.mrb[0].mxu0
    %v4321 = vadd.f32 %v3394, %v4320
    %v4322 = vpop.f32.mrb[0].mxu0
    %v4323 = vadd.f32 %v3398, %v4322
    %4324 = vmatprep.mubr.bf16.mxu0 %v3108
    %4325 = vmatmul.mubr.bf16.gmra.mrb[0].mxu0 %v3107
    %v4326 = vpop.f32.mrb[0].mxu0
    %v4327 = vadd.f32 %v3394, %v4326
    %v4328 = vpop.f32.mrb[0].mxu0
    %v4329 = vadd.f32 %v3398, %v4328
    %v4330 = vpop.f32.mrb[0].mxu0
    %v4331 = vadd.f32 %v3394, %v4330
    %v4332 = vpop.f32.mrb[0].mxu0
    %v4333 = vadd.f32 %v3398, %v4332
    %4334 = vdwg.mxu0
    %v4463 = vunpack.c.l.b16 %v3237
    %v4464 = vunpack.c.h.b16 %v3237
    %v4465 = vunpack.c.l.b16 %v3238
    %v4466 = vunpack.c.h.b16 %v3238
    %v4467 = vunpack.c.l.b16 %v3239
    %v4468 = vunpack.c.h.b16 %v3239
    %v4469 = vunpack.c.l.b16 %v3240
    %v4470 = vunpack.c.h.b16 %v3240
    %v4471 = vunpack.c.l.b16 %v3241
    %v4472 = vunpack.c.h.b16 %v3241
    %v4473 = vunpack.c.l.b16 %v3242
    %v4474 = vunpack.c.h.b16 %v3242
    %v4475 = vunpack.c.l.b16 %v3243
    %v4476 = vunpack.c.h.b16 %v3243
    %v4477 = vunpack.c.l.b16 %v3244
    %v4478 = vunpack.c.h.b16 %v3244
    %v4479 = vunpack.c.l.b16 %v3245
    %v4480 = vunpack.c.h.b16 %v3245
    %v4481 = vunpack.c.l.b16 %v3246
    %v4482 = vunpack.c.h.b16 %v3246
    %v4483 = vunpack.c.l.b16 %v3247
    %v4484 = vunpack.c.h.b16 %v3247
    %v4485 = vunpack.c.l.b16 %v3248
    %v4486 = vunpack.c.h.b16 %v3248
    %v4487 = vunpack.c.l.b16 %v3249
    %v4488 = vunpack.c.h.b16 %v3249
    %v4489 = vunpack.c.l.b16 %v3250
    %v4490 = vunpack.c.h.b16 %v3250
    %v4491 = vunpack.c.l.b16 %v3251
    %v4492 = vunpack.c.h.b16 %v3251
    %v4493 = vunpack.c.l.b16 %v3252
    %v4494 = vunpack.c.h.b16 %v3252
    %v4495 = vunpack.c.l.b16 %v3253
    %v4496 = vunpack.c.h.b16 %v3253
    %v4497 = vunpack.c.l.b16 %v3254
    %v4498 = vunpack.c.h.b16 %v3254
    %v4499 = vunpack.c.l.b16 %v3255
    %v4500 = vunpack.c.h.b16 %v3255
    %v4501 = vunpack.c.l.b16 %v3256
    %v4502 = vunpack.c.h.b16 %v3256
    %v4503 = vunpack.c.l.b16 %v3257
    %v4504 = vunpack.c.h.b16 %v3257
    %v4505 = vunpack.c.l.b16 %v3258
    %v4506 = vunpack.c.h.b16 %v3258
    %v4507 = vunpack.c.l.b16 %v3259
    %v4508 = vunpack.c.h.b16 %v3259
    %v4509 = vunpack.c.l.b16 %v3260
    %v4510 = vunpack.c.h.b16 %v3260
    %v4511 = vunpack.c.l.b16 %v3261
    %v4512 = vunpack.c.h.b16 %v3261
    %v4513 = vunpack.c.l.b16 %v3262
    %v4514 = vunpack.c.h.b16 %v3262
    %v4515 = vunpack.c.l.b16 %v3263
    %v4516 = vunpack.c.h.b16 %v3263
    %v4517 = vunpack.c.l.b16 %v3264
    %v4518 = vunpack.c.h.b16 %v3264
    %v4519 = vunpack.c.l.b16 %v3265
    %v4520 = vunpack.c.h.b16 %v3265
    %v4521 = vunpack.c.l.b16 %v3266
    %v4522 = vunpack.c.h.b16 %v3266
    %v4523 = vunpack.c.l.b16 %v3267
    %v4524 = vunpack.c.h.b16 %v3267
    %v4525 = vunpack.c.l.b16 %v3268
    %v4526 = vunpack.c.h.b16 %v3268
    %v4527 = vunpack.c.l.b16 %v3269
    %v4528 = vunpack.c.h.b16 %v3269
    %v4529 = vunpack.c.l.b16 %v3270
    %v4530 = vunpack.c.h.b16 %v3270
    %v4531 = vunpack.c.l.b16 %v3271
    %v4532 = vunpack.c.h.b16 %v3271
    %v4533 = vunpack.c.l.b16 %v3272
    %v4534 = vunpack.c.h.b16 %v3272
    %v4535 = vunpack.c.l.b16 %v3273
    %v4536 = vunpack.c.h.b16 %v3273
    %v4537 = vunpack.c.l.b16 %v3274
    %v4538 = vunpack.c.h.b16 %v3274
    %v4539 = vunpack.c.l.b16 %v3275
    %v4540 = vunpack.c.h.b16 %v3275
    %v4541 = vunpack.c.l.b16 %v3276
    %v4542 = vunpack.c.h.b16 %v3276
    %v4543 = vunpack.c.l.b16 %v3277
    %v4544 = vunpack.c.h.b16 %v3277
    %v4545 = vunpack.c.l.b16 %v3278
    %v4546 = vunpack.c.h.b16 %v3278
    %v4547 = vunpack.c.l.b16 %v3279
    %v4548 = vunpack.c.h.b16 %v3279
    %v4549 = vunpack.c.l.b16 %v3280
    %v4550 = vunpack.c.h.b16 %v3280
    %v4551 = vunpack.c.l.b16 %v3281
    %v4552 = vunpack.c.h.b16 %v3281
    %v4553 = vunpack.c.l.b16 %v3282
    %v4554 = vunpack.c.h.b16 %v3282
    %v4555 = vunpack.c.l.b16 %v3283
    %v4556 = vunpack.c.h.b16 %v3283
    %v4557 = vunpack.c.l.b16 %v3284
    %v4558 = vunpack.c.h.b16 %v3284
    %v4559 = vunpack.c.l.b16 %v3285
    %v4560 = vunpack.c.h.b16 %v3285
    %v4561 = vunpack.c.l.b16 %v3286
    %v4562 = vunpack.c.h.b16 %v3286
    %v4563 = vunpack.c.l.b16 %v3287
    %v4564 = vunpack.c.h.b16 %v3287
    %v4565 = vunpack.c.l.b16 %v3288
    %v4566 = vunpack.c.h.b16 %v3288
    %v4567 = vunpack.c.l.b16 %v3289
    %v4568 = vunpack.c.h.b16 %v3289
    %v4569 = vunpack.c.l.b16 %v3290
    %v4570 = vunpack.c.h.b16 %v3290
    %v4571 = vunpack.c.l.b16 %v3291
    %v4572 = vunpack.c.h.b16 %v3291
    %v4573 = vunpack.c.l.b16 %v3292
    %v4574 = vunpack.c.h.b16 %v3292
    %v4575 = vunpack.c.l.b16 %v3293
    %v4576 = vunpack.c.h.b16 %v3293
    %v4577 = vunpack.c.l.b16 %v3294
    %v4578 = vunpack.c.h.b16 %v3294
    %v4579 = vunpack.c.l.b16 %v3295
    %v4580 = vunpack.c.h.b16 %v3295
    %v4581 = vunpack.c.l.b16 %v3296
    %v4582 = vunpack.c.h.b16 %v3296
    %v4583 = vunpack.c.l.b16 %v3297
    %v4584 = vunpack.c.h.b16 %v3297
    %v4585 = vunpack.c.l.b16 %v3298
    %v4586 = vunpack.c.h.b16 %v3298
    %v4587 = vunpack.c.l.b16 %v3299
    %v4588 = vunpack.c.h.b16 %v3299
    %v4589 = vunpack.c.l.b16 %v3300
    %v4590 = vunpack.c.h.b16 %v3300
    %v4591 = vunpack.c.l.b16 %v3301
    %v4592 = vunpack.c.h.b16 %v3301
    %v4593 = vunpack.c.l.b16 %v3302
    %v4594 = vunpack.c.h.b16 %v3302
    %v4595 = vunpack.c.l.b16 %v3303
    %v4596 = vunpack.c.h.b16 %v3303
    %v4597 = vunpack.c.l.b16 %v3304
    %v4598 = vunpack.c.h.b16 %v3304
    %v4599 = vunpack.c.l.b16 %v3305
    %v4600 = vunpack.c.h.b16 %v3305
    %v4601 = vunpack.c.l.b16 %v3306
    %v4602 = vunpack.c.h.b16 %v3306
    %v4603 = vunpack.c.l.b16 %v3307
    %v4604 = vunpack.c.h.b16 %v3307
    %v4605 = vunpack.c.l.b16 %v3308
    %v4606 = vunpack.c.h.b16 %v3308
    %v4607 = vunpack.c.l.b16 %v3309
    %v4608 = vunpack.c.h.b16 %v3309
    %v4609 = vunpack.c.l.b16 %v3310
    %v4610 = vunpack.c.h.b16 %v3310
    %v4611 = vunpack.c.l.b16 %v3311
    %v4612 = vunpack.c.h.b16 %v3311
    %v4613 = vunpack.c.l.b16 %v3312
    %v4614 = vunpack.c.h.b16 %v3312
    %v4615 = vunpack.c.l.b16 %v3313
    %v4616 = vunpack.c.h.b16 %v3313
    %v4617 = vunpack.c.l.b16 %v3314
    %v4618 = vunpack.c.h.b16 %v3314
    %v4619 = vunpack.c.l.b16 %v3315
    %v4620 = vunpack.c.h.b16 %v3315
    %v4621 = vunpack.c.l.b16 %v3316
    %v4622 = vunpack.c.h.b16 %v3316
    %v4623 = vunpack.c.l.b16 %v3317
    %v4624 = vunpack.c.h.b16 %v3317
    %v4625 = vunpack.c.l.b16 %v3318
    %v4626 = vunpack.c.h.b16 %v3318
    %v4627 = vunpack.c.l.b16 %v3319
    %v4628 = vunpack.c.h.b16 %v3319
    %v4629 = vunpack.c.l.b16 %v3320
    %v4630 = vunpack.c.h.b16 %v3320
    %v4631 = vunpack.c.l.b16 %v3321
    %v4632 = vunpack.c.h.b16 %v3321
    %v4633 = vunpack.c.l.b16 %v3322
    %v4634 = vunpack.c.h.b16 %v3322
    %v4635 = vunpack.c.l.b16 %v3323
    %v4636 = vunpack.c.h.b16 %v3323
    %v4637 = vunpack.c.l.b16 %v3324
    %v4638 = vunpack.c.h.b16 %v3324
    %v4639 = vunpack.c.l.b16 %v3325
    %v4640 = vunpack.c.h.b16 %v3325
    %v4641 = vunpack.c.l.b16 %v3326
    %v4642 = vunpack.c.h.b16 %v3326
    %v4643 = vunpack.c.l.b16 %v3327
    %v4644 = vunpack.c.h.b16 %v3327
    %v4645 = vunpack.c.l.b16 %v3328
    %v4646 = vunpack.c.h.b16 %v3328
    %v4647 = vunpack.c.l.b16 %v3329
    %v4648 = vunpack.c.h.b16 %v3329
    %v4649 = vunpack.c.l.b16 %v3330
    %v4650 = vunpack.c.h.b16 %v3330
    %v4651 = vunpack.c.l.b16 %v3331
    %v4652 = vunpack.c.h.b16 %v3331
    %v4653 = vunpack.c.l.b16 %v3332
    %v4654 = vunpack.c.h.b16 %v3332
    %v4655 = vunpack.c.l.b16 %v3333
    %v4656 = vunpack.c.h.b16 %v3333
    %v4657 = vunpack.c.l.b16 %v3334
    %v4658 = vunpack.c.h.b16 %v3334
    %v4659 = vunpack.c.l.b16 %v3335
    %v4660 = vunpack.c.h.b16 %v3335
    %v4661 = vunpack.c.l.b16 %v3336
    %v4662 = vunpack.c.h.b16 %v3336
    %v4663 = vunpack.c.l.b16 %v3337
    %v4664 = vunpack.c.h.b16 %v3337
    %v4665 = vunpack.c.l.b16 %v3338
    %v4666 = vunpack.c.h.b16 %v3338
    %v4667 = vunpack.c.l.b16 %v3339
    %v4668 = vunpack.c.h.b16 %v3339
    %v4669 = vunpack.c.l.b16 %v3340
    %v4670 = vunpack.c.h.b16 %v3340
    %v4671 = vunpack.c.l.b16 %v3341
    %v4672 = vunpack.c.h.b16 %v3341
    %v4673 = vunpack.c.l.b16 %v3342
    %v4674 = vunpack.c.h.b16 %v3342
    %v4675 = vunpack.c.l.b16 %v3343
    %v4676 = vunpack.c.h.b16 %v3343
    %v4677 = vunpack.c.l.b16 %v3344
    %v4678 = vunpack.c.h.b16 %v3344
    %v4679 = vunpack.c.l.b16 %v3345
    %v4680 = vunpack.c.h.b16 %v3345
    %v4681 = vunpack.c.l.b16 %v3346
    %v4682 = vunpack.c.h.b16 %v3346
    %v4683 = vunpack.c.l.b16 %v3347
    %v4684 = vunpack.c.h.b16 %v3347
    %v4685 = vunpack.c.l.b16 %v3348
    %v4686 = vunpack.c.h.b16 %v3348
    %v4687 = vunpack.c.l.b16 %v3349
    %v4688 = vunpack.c.h.b16 %v3349
    %v4689 = vunpack.c.l.b16 %v3350
    %v4690 = vunpack.c.h.b16 %v3350
    %v4691 = vunpack.c.l.b16 %v3351
    %v4692 = vunpack.c.h.b16 %v3351
    %v4693 = vunpack.c.l.b16 %v3352
    %v4694 = vunpack.c.h.b16 %v3352
    %v4695 = vunpack.c.l.b16 %v3353
    %v4696 = vunpack.c.h.b16 %v3353
    %v4697 = vunpack.c.l.b16 %v3354
    %v4698 = vunpack.c.h.b16 %v3354
    %v4699 = vunpack.c.l.b16 %v3355
    %v4700 = vunpack.c.h.b16 %v3355
    %v4701 = vunpack.c.l.b16 %v3356
    %v4702 = vunpack.c.h.b16 %v3356
    %v4703 = vunpack.c.l.b16 %v3357
    %v4704 = vunpack.c.h.b16 %v3357
    %v4705 = vunpack.c.l.b16 %v3358
    %v4706 = vunpack.c.h.b16 %v3358
    %v4707 = vunpack.c.l.b16 %v3359
    %v4708 = vunpack.c.h.b16 %v3359
    %v4709 = vunpack.c.l.b16 %v3360
    %v4710 = vunpack.c.h.b16 %v3360
    %v4711 = vunpack.c.l.b16 %v3361
    %v4712 = vunpack.c.h.b16 %v3361
    %v4713 = vunpack.c.l.b16 %v3362
    %v4714 = vunpack.c.h.b16 %v3362
    %v4715 = vunpack.c.l.b16 %v3363
    %v4716 = vunpack.c.h.b16 %v3363
    %v4717 = vunpack.c.l.b16 %v3364
    %v4718 = vunpack.c.h.b16 %v3364
    %v4719 = vpack.c.b16 %v4471, %v4463
    %v4720 = vpack.c.b16 %v4472, %v4464
    %v4721 = vpack.c.b16 %v4473, %v4465
    %v4722 = vpack.c.b16 %v4474, %v4466
    %v4723 = vpack.c.b16 %v4475, %v4467
    %v4724 = vpack.c.b16 %v4476, %v4468
    %v4725 = vpack.c.b16 %v4477, %v4469
    %v4726 = vpack.c.b16 %v4478, %v4470
    %v4727 = vpack.c.b16 %v4487, %v4479
    %v4728 = vpack.c.b16 %v4488, %v4480
    %v4729 = vpack.c.b16 %v4489, %v4481
    %v4730 = vpack.c.b16 %v4490, %v4482
    %v4731 = vpack.c.b16 %v4491, %v4483
    %v4732 = vpack.c.b16 %v4492, %v4484
    %v4733 = vpack.c.b16 %v4493, %v4485
    %v4734 = vpack.c.b16 %v4494, %v4486
    %v4735 = vpack.c.b16 %v4503, %v4495
    %v4736 = vpack.c.b16 %v4504, %v4496
    %v4737 = vpack.c.b16 %v4505, %v4497
    %v4738 = vpack.c.b16 %v4506, %v4498
    %v4739 = vpack.c.b16 %v4507, %v4499
    %v4740 = vpack.c.b16 %v4508, %v4500
    %v4741 = vpack.c.b16 %v4509, %v4501
    %v4742 = vpack.c.b16 %v4510, %v4502
    %v4743 = vpack.c.b16 %v4519, %v4511
    %v4744 = vpack.c.b16 %v4520, %v4512
    %v4745 = vpack.c.b16 %v4521, %v4513
    %v4746 = vpack.c.b16 %v4522, %v4514
    %v4747 = vpack.c.b16 %v4523, %v4515
    %v4748 = vpack.c.b16 %v4524, %v4516
    %v4749 = vpack.c.b16 %v4525, %v4517
    %v4750 = vpack.c.b16 %v4526, %v4518
    %v4751 = vpack.c.b16 %v4535, %v4527
    %v4752 = vpack.c.b16 %v4536, %v4528
    %v4753 = vpack.c.b16 %v4537, %v4529
    %v4754 = vpack.c.b16 %v4538, %v4530
    %v4755 = vpack.c.b16 %v4539, %v4531
    %v4756 = vpack.c.b16 %v4540, %v4532
    %v4757 = vpack.c.b16 %v4541, %v4533
    %v4758 = vpack.c.b16 %v4542, %v4534
    %v4759 = vpack.c.b16 %v4551, %v4543
    %v4760 = vpack.c.b16 %v4552, %v4544
    %v4761 = vpack.c.b16 %v4553, %v4545
    %v4762 = vpack.c.b16 %v4554, %v4546
    %v4763 = vpack.c.b16 %v4555, %v4547
    %v4764 = vpack.c.b16 %v4556, %v4548
    %v4765 = vpack.c.b16 %v4557, %v4549
    %v4766 = vpack.c.b16 %v4558, %v4550
    %v4767 = vpack.c.b16 %v4567, %v4559
    %v4768 = vpack.c.b16 %v4568, %v4560
    %v4769 = vpack.c.b16 %v4569, %v4561
    %v4770 = vpack.c.b16 %v4570, %v4562
    %v4771 = vpack.c.b16 %v4571, %v4563
    %v4772 = vpack.c.b16 %v4572, %v4564
    %v4773 = vpack.c.b16 %v4573, %v4565
    %v4774 = vpack.c.b16 %v4574, %v4566
    %v4775 = vpack.c.b16 %v4583, %v4575
    %v4776 = vpack.c.b16 %v4584, %v4576
    %v4777 = vpack.c.b16 %v4585, %v4577
    %v4778 = vpack.c.b16 %v4586, %v4578
    %v4779 = vpack.c.b16 %v4587, %v4579
    %v4780 = vpack.c.b16 %v4588, %v4580
    %v4781 = vpack.c.b16 %v4589, %v4581
    %v4782 = vpack.c.b16 %v4590, %v4582
    %v4783 = vpack.c.b16 %v4599, %v4591
    %v4784 = vpack.c.b16 %v4600, %v4592
    %v4785 = vpack.c.b16 %v4601, %v4593
    %v4786 = vpack.c.b16 %v4602, %v4594
    %v4787 = vpack.c.b16 %v4603, %v4595
    %v4788 = vpack.c.b16 %v4604, %v4596
    %v4789 = vpack.c.b16 %v4605, %v4597
    %v4790 = vpack.c.b16 %v4606, %v4598
    %v4791 = vpack.c.b16 %v4615, %v4607
    %v4792 = vpack.c.b16 %v4616, %v4608
    %v4793 = vpack.c.b16 %v4617, %v4609
    %v4794 = vpack.c.b16 %v4618, %v4610
    %v4795 = vpack.c.b16 %v4619, %v4611
    %v4796 = vpack.c.b16 %v4620, %v4612
    %v4797 = vpack.c.b16 %v4621, %v4613
    %v4798 = vpack.c.b16 %v4622, %v4614
    %v4799 = vpack.c.b16 %v4631, %v4623
    %v4800 = vpack.c.b16 %v4632, %v4624
    %v4801 = vpack.c.b16 %v4633, %v4625
    %v4802 = vpack.c.b16 %v4634, %v4626
    %v4803 = vpack.c.b16 %v4635, %v4627
    %v4804 = vpack.c.b16 %v4636, %v4628
    %v4805 = vpack.c.b16 %v4637, %v4629
    %v4806 = vpack.c.b16 %v4638, %v4630
    %v4807 = vpack.c.b16 %v4647, %v4639
    %v4808 = vpack.c.b16 %v4648, %v4640
    %v4809 = vpack.c.b16 %v4649, %v4641
    %v4810 = vpack.c.b16 %v4650, %v4642
    %v4811 = vpack.c.b16 %v4651, %v4643
    %v4812 = vpack.c.b16 %v4652, %v4644
    %v4813 = vpack.c.b16 %v4653, %v4645
    %v4814 = vpack.c.b16 %v4654, %v4646
    %v4815 = vpack.c.b16 %v4663, %v4655
    %v4816 = vpack.c.b16 %v4664, %v4656
    %v4817 = vpack.c.b16 %v4665, %v4657
    %v4818 = vpack.c.b16 %v4666, %v4658
    %v4819 = vpack.c.b16 %v4667, %v4659
    %v4820 = vpack.c.b16 %v4668, %v4660
    %v4821 = vpack.c.b16 %v4669, %v4661
    %v4822 = vpack.c.b16 %v4670, %v4662
    %v4823 = vpack.c.b16 %v4679, %v4671
    %v4824 = vpack.c.b16 %v4680, %v4672
    %v4825 = vpack.c.b16 %v4681, %v4673
    %v4826 = vpack.c.b16 %v4682, %v4674
    %v4827 = vpack.c.b16 %v4683, %v4675
    %v4828 = vpack.c.b16 %v4684, %v4676
    %v4829 = vpack.c.b16 %v4685, %v4677
    %v4830 = vpack.c.b16 %v4686, %v4678
    %v4831 = vpack.c.b16 %v4695, %v4687
    %v4832 = vpack.c.b16 %v4696, %v4688
    %v4833 = vpack.c.b16 %v4697, %v4689
    %v4834 = vpack.c.b16 %v4698, %v4690
    %v4835 = vpack.c.b16 %v4699, %v4691
    %v4836 = vpack.c.b16 %v4700, %v4692
    %v4837 = vpack.c.b16 %v4701, %v4693
    %v4838 = vpack.c.b16 %v4702, %v4694
    %v4839 = vpack.c.b16 %v4711, %v4703
    %v4840 = vpack.c.b16 %v4712, %v4704
    %v4841 = vpack.c.b16 %v4713, %v4705
    %v4842 = vpack.c.b16 %v4714, %v4706
    %v4843 = vpack.c.b16 %v4715, %v4707
    %v4844 = vpack.c.b16 %v4716, %v4708
    %v4845 = vpack.c.b16 %v4717, %v4709
    %v4846 = vpack.c.b16 %v4718, %v4710
    %4975 = vmatprep.subr.bf16.mxu0 %v4720
    %4976 = vmatpush1.bf16.msra.mxu0 %v4719
    %4977 = vmatprep.subr.bf16.mxu0 %v4728
    %4978 = vmatpush1.bf16.msra.mxu0 %v4727
    %4979 = vmatprep.subr.bf16.mxu0 %v4736
    %4980 = vmatpush1.bf16.msra.mxu0 %v4735
    %4981 = vmatprep.subr.bf16.mxu0 %v4744
    %4982 = vmatpush1.bf16.msra.mxu0 %v4743
    %4983 = vmatprep.subr.bf16.mxu0 %v4752
    %4984 = vmatpush1.bf16.msra.mxu0 %v4751
    %4985 = vmatprep.subr.bf16.mxu0 %v4760
    %4986 = vmatpush1.bf16.msra.mxu0 %v4759
    %4987 = vmatprep.subr.bf16.mxu0 %v4768
    %4988 = vmatpush1.bf16.msra.mxu0 %v4767
    %4989 = vmatprep.subr.bf16.mxu0 %v4776
    %4990 = vmatpush1.bf16.msra.mxu0 %v4775
    %4991 = vmatprep.subr.bf16.mxu0 %v4784
    %4992 = vmatpush1.bf16.msra.mxu0 %v4783
    %4993 = vmatprep.subr.bf16.mxu0 %v4792
    %4994 = vmatpush1.bf16.msra.mxu0 %v4791
    %4995 = vmatprep.subr.bf16.mxu0 %v4800
    %4996 = vmatpush1.bf16.msra.mxu0 %v4799
    %4997 = vmatprep.subr.bf16.mxu0 %v4808
    %4998 = vmatpush1.bf16.msra.mxu0 %v4807
    %4999 = vmatprep.subr.bf16.mxu0 %v4816
    %5000 = vmatpush1.bf16.msra.mxu0 %v4815
    %5001 = vmatprep.subr.bf16.mxu0 %v4824
    %5002 = vmatpush1.bf16.msra.mxu0 %v4823
    %5003 = vmatprep.subr.bf16.mxu0 %v4832
    %5004 = vmatpush1.bf16.msra.mxu0 %v4831
    %5005 = vmatprep.subr.bf16.mxu0 %v4840
    %5006 = vmatpush1.bf16.msra.mxu0 %v4839
    %5007 = vmatprep.mubr.bf16.mxu0 %v654
    %5008 = vmatmul.mubr.bf16.gmra.mrb[0].mxu0 %v654
    %v5009 = vpop.f32.mrb[0].mxu0
    %v5010 = vadd.f32 0.0, %v5009
    %v5011 = vpop.f32.mrb[0].mxu0
    %v5012 = vadd.f32 0.0, %v5011
    %v5013 = vpop.f32.mrb[0].mxu0
    %v5014 = vpop.f32.mrb[0].mxu0
    %5015 = vdwg.mxu0
    %5016 = vmatprep.subr.bf16.mxu0 %v4722
    %5017 = vmatpush1.bf16.msra.mxu0 %v4721
    %5018 = vmatprep.subr.bf16.mxu0 %v4730
    %5019 = vmatpush1.bf16.msra.mxu0 %v4729
    %5020 = vmatprep.subr.bf16.mxu0 %v4738
    %5021 = vmatpush1.bf16.msra.mxu0 %v4737
    %5022 = vmatprep.subr.bf16.mxu0 %v4746
    %5023 = vmatpush1.bf16.msra.mxu0 %v4745
    %5024 = vmatprep.subr.bf16.mxu0 %v4754
    %5025 = vmatpush1.bf16.msra.mxu0 %v4753
    %5026 = vmatprep.subr.bf16.mxu0 %v4762
    %5027 = vmatpush1.bf16.msra.mxu0 %v4761
    %5028 = vmatprep.subr.bf16.mxu0 %v4770
    %5029 = vmatpush1.bf16.msra.mxu0 %v4769
    %5030 = vmatprep.subr.bf16.mxu0 %v4778
    %5031 = vmatpush1.bf16.msra.mxu0 %v4777
    %5032 = vmatprep.subr.bf16.mxu0 %v4786
    %5033 = vmatpush1.bf16.msra.mxu0 %v4785
    %5034 = vmatprep.subr.bf16.mxu0 %v4794
    %5035 = vmatpush1.bf16.msra.mxu0 %v4793
    %5036 = vmatprep.subr.bf16.mxu0 %v4802
    %5037 = vmatpush1.bf16.msra.mxu0 %v4801
    %5038 = vmatprep.subr.bf16.mxu0 %v4810
    %5039 = vmatpush1.bf16.msra.mxu0 %v4809
    %5040 = vmatprep.subr.bf16.mxu0 %v4818
    %5041 = vmatpush1.bf16.msra.mxu0 %v4817
    %5042 = vmatprep.subr.bf16.mxu0 %v4826
    %5043 = vmatpush1.bf16.msra.mxu0 %v4825
    %5044 = vmatprep.subr.bf16.mxu0 %v4834
    %5045 = vmatpush1.bf16.msra.mxu0 %v4833
    %5046 = vmatprep.subr.bf16.mxu0 %v4842
    %5047 = vmatpush1.bf16.msra.mxu0 %v4841
    %5048 = vmatprep.mubr.bf16.mxu0 %v654
    %5049 = vmatmul.mubr.bf16.gmra.mrb[0].mxu0 %v654
    %v5050 = vpop.f32.mrb[0].mxu0
    %v5051 = vadd.f32 0.0, %v5050
    %v5052 = vpop.f32.mrb[0].mxu0
    %v5053 = vadd.f32 0.0, %v5052
    %v5054 = vpop.f32.mrb[0].mxu0
    %v5055 = vpop.f32.mrb[0].mxu0
    %5056 = vdwg.mxu0
    %5057 = vmatprep.subr.bf16.mxu0 %v4724
    %5058 = vmatpush1.bf16.msra.mxu0 %v4723
    %5059 = vmatprep.subr.bf16.mxu0 %v4732
    %5060 = vmatpush1.bf16.msra.mxu0 %v4731
    %5061 = vmatprep.subr.bf16.mxu0 %v4740
    %5062 = vmatpush1.bf16.msra.mxu0 %v4739
    %5063 = vmatprep.subr.bf16.mxu0 %v4748
    %5064 = vmatpush1.bf16.msra.mxu0 %v4747
    %5065 = vmatprep.subr.bf16.mxu0 %v4756
    %5066 = vmatpush1.bf16.msra.mxu0 %v4755
    %5067 = vmatprep.subr.bf16.mxu0 %v4764
    %5068 = vmatpush1.bf16.msra.mxu0 %v4763
    %5069 = vmatprep.subr.bf16.mxu0 %v4772
    %5070 = vmatpush1.bf16.msra.mxu0 %v4771
    %5071 = vmatprep.subr.bf16.mxu0 %v4780
    %5072 = vmatpush1.bf16.msra.mxu0 %v4779
    %5073 = vmatprep.subr.bf16.mxu0 %v4788
    %5074 = vmatpush1.bf16.msra.mxu0 %v4787
    %5075 = vmatprep.subr.bf16.mxu0 %v4796
    %5076 = vmatpush1.bf16.msra.mxu0 %v4795
    %5077 = vmatprep.subr.bf16.mxu0 %v4804
    %5078 = vmatpush1.bf16.msra.mxu0 %v4803
    %5079 = vmatprep.subr.bf16.mxu0 %v4812
    %5080 = vmatpush1.bf16.msra.mxu0 %v4811
    %5081 = vmatprep.subr.bf16.mxu0 %v4820
    %5082 = vmatpush1.bf16.msra.mxu0 %v4819
    %5083 = vmatprep.subr.bf16.mxu0 %v4828
    %5084 = vmatpush1.bf16.msra.mxu0 %v4827
    %5085 = vmatprep.subr.bf16.mxu0 %v4836
    %5086 = vmatpush1.bf16.msra.mxu0 %v4835
    %5087 = vmatprep.subr.bf16.mxu0 %v4844
    %5088 = vmatpush1.bf16.msra.mxu0 %v4843
    %5089 = vmatprep.mubr.bf16.mxu0 %v654
    %5090 = vmatmul.mubr.bf16.gmra.mrb[0].mxu0 %v654
    %v5091 = vpop.f32.mrb[0].mxu0
    %v5092 = vadd.f32 0.0, %v5091
    %v5093 = vpop.f32.mrb[0].mxu0
    %v5094 = vadd.f32 0.0, %v5093
    %v5095 = vpop.f32.mrb[0].mxu0
    %v5096 = vpop.f32.mrb[0].mxu0
    %5097 = vdwg.mxu0
    %5098 = vmatprep.subr.bf16.mxu0 %v4726
    %5099 = vmatpush1.bf16.msra.mxu0 %v4725
    %5100 = vmatprep.subr.bf16.mxu0 %v4734
    %5101 = vmatpush1.bf16.msra.mxu0 %v4733
    %5102 = vmatprep.subr.bf16.mxu0 %v4742
    %5103 = vmatpush1.bf16.msra.mxu0 %v4741
    %5104 = vmatprep.subr.bf16.mxu0 %v4750
    %5105 = vmatpush1.bf16.msra.mxu0 %v4749
    %5106 = vmatprep.subr.bf16.mxu0 %v4758
    %5107 = vmatpush1.bf16.msra.mxu0 %v4757
    %5108 = vmatprep.subr.bf16.mxu0 %v4766
    %5109 = vmatpush1.bf16.msra.mxu0 %v4765
    %5110 = vmatprep.subr.bf16.mxu0 %v4774
    %5111 = vmatpush1.bf16.msra.mxu0 %v4773
    %5112 = vmatprep.subr.bf16.mxu0 %v4782
    %5113 = vmatpush1.bf16.msra.mxu0 %v4781
    %5114 = vmatprep.subr.bf16.mxu0 %v4790
    %5115 = vmatpush1.bf16.msra.mxu0 %v4789
    %5116 = vmatprep.subr.bf16.mxu0 %v4798
    %5117 = vmatpush1.bf16.msra.mxu0 %v4797
    %5118 = vmatprep.subr.bf16.mxu0 %v4806
    %5119 = vmatpush1.bf16.msra.mxu0 %v4805
    %5120 = vmatprep.subr.bf16.mxu0 %v4814
    %5121 = vmatpush1.bf16.msra.mxu0 %v4813
    %5122 = vmatprep.subr.bf16.mxu0 %v4822
    %5123 = vmatpush1.bf16.msra.mxu0 %v4821
    %5124 = vmatprep.subr.bf16.mxu0 %v4830
    %5125 = vmatpush1.bf16.msra.mxu0 %v4829
    %5126 = vmatprep.subr.bf16.mxu0 %v4838
    %5127 = vmatpush1.bf16.msra.mxu0 %v4837
    %5128 = vmatprep.subr.bf16.mxu0 %v4846
    %5129 = vmatpush1.bf16.msra.mxu0 %v4845
    %5130 = vmatprep.mubr.bf16.mxu0 %v654
    %5131 = vmatmul.mubr.bf16.gmra.mrb[0].mxu0 %v654
    %v5132 = vpop.f32.mrb[0].mxu0
    %v5133 = vadd.f32 0.0, %v5132
    %v5134 = vpop.f32.mrb[0].mxu0
    %v5135 = vadd.f32 0.0, %v5134
    %v5136 = vpop.f32.mrb[0].mxu0
    %v5137 = vpop.f32.mrb[0].mxu0
    %5138 = vdwg.mxu0
    %v5139 = vadd.f32 %v4082, %v5010
    %v5140 = vadd.f32 %v4084, %v5012
    %v5141 = vadd.f32 %v4155, %v5051
    %v5142 = vadd.f32 %v4157, %v5053
    %v5143 = vadd.f32 %v4260, %v5092
    %v5144 = vadd.f32 %v4262, %v5094
    %v5145 = vadd.f32 %v4331, %v5133
    %v5146 = vadd.f32 %v4333, %v5135
    %v5147 = vxor.u32 %v5139, 2147483648
    %v5148 = vmul.f32 %v5147, 1.442695
    %v5149 = vpow.pop %v5148
    %v5150 = vadd.f32 %v5149, 1.0
    %v5151 = vrcp.pop %v5150
    %v5152 = vmul.f32 1.0, %v5151
    %v5153 = vxor.u32 %v5140, 2147483648
    %v5154 = vmul.f32 %v5153, 1.442695
    %v5155 = vpow.pop %v5154
    %v5156 = vadd.f32 %v5155, 1.0
    %v5157 = vrcp.pop %v5156
    %v5158 = vmul.f32 1.0, %v5157
    %v5159 = vtanh.pop %v5141
    %v5160 = vxor.u32 %v5142, 2147483648
    %v5161 = vmul.f32 %v5160, 1.442695
    %v5162 = vpow.pop %v5161
    %v5163 = vadd.f32 %v5162, 1.0
    %v5164 = vrcp.pop %v5163
    %v5165 = vmul.f32 1.0, %v5164
    %v5166 = vmul.f32 %v5158, 0.0
    %v5167 = vmul.f32 %v5152, %v5159
    %v5168 = vadd.f32 %v5166, %v5167
    %v5169 = vtanh.pop %v5168
    %v5170 = vmul.f32 %v5165, %v5169
    %v5171 = vxor.u32 %v5143, 2147483648
    %v5172 = vmul.f32 %v5171, 1.442695
    %v5173 = vpow.pop %v5172
    %v5174 = vadd.f32 %v5173, 1.0
    %v5175 = vrcp.pop %v5174
    %v5176 = vmul.f32 1.0, %v5175
    %v5177 = vxor.u32 %v5144, 2147483648
    %v5178 = vmul.f32 %v5177, 1.442695
    %v5179 = vpow.pop %v5178
    %v5180 = vadd.f32 %v5179, 1.0
    %v5181 = vrcp.pop %v5180
    %v5182 = vmul.f32 1.0, %v5181
    %v5183 = vtanh.pop %v5145
    %v5184 = vxor.u32 %v5146, 2147483648
    %v5185 = vmul.f32 %v5184, 1.442695
    %v5186 = vpow.pop %v5185
    %v5187 = vadd.f32 %v5186, 1.0
    %v5188 = vrcp.pop %v5187
    %v5189 = vmul.f32 1.0, %v5188
    %v5190 = vmul.f32 %v5182, 0.0
    %v5191 = vmul.f32 %v5176, %v5183
    %v5192 = vadd.f32 %v5190, %v5191
    %v5193 = vtanh.pop %v5192
    %v5194 = vmul.f32 %v5189, %v5193
    %v5195 = vpack.c.bf16 %v5170, %v5170
    %v5196 = vpack.c.bf16 %v5194, %v5194
    %5197 = vmatprep.subr.bf16.mxu0 %v4720
    %5198 = vmatpush1.bf16.msra.mxu0 %v4719
    %5199 = vmatprep.subr.bf16.mxu0 %v4728
    %5200 = vmatpush1.bf16.msra.mxu0 %v4727
    %5201 = vmatprep.subr.bf16.mxu0 %v4736
    %5202 = vmatpush1.bf16.msra.mxu0 %v4735
    %5203 = vmatprep.subr.bf16.mxu0 %v4744
    %5204 = vmatpush1.bf16.msra.mxu0 %v4743
    %5205 = vmatprep.subr.bf16.mxu0 %v4752
    %5206 = vmatpush1.bf16.msra.mxu0 %v4751
    %5207 = vmatprep.subr.bf16.mxu0 %v4760
    %5208 = vmatpush1.bf16.msra.mxu0 %v4759
    %5209 = vmatprep.subr.bf16.mxu0 %v4768
    %5210 = vmatpush1.bf16.msra.mxu0 %v4767
    %5211 = vmatprep.subr.bf16.mxu0 %v4776
    %5212 = vmatpush1.bf16.msra.mxu0 %v4775
    %5213 = vmatprep.subr.bf16.mxu0 %v4784
    %5214 = vmatpush1.bf16.msra.mxu0 %v4783
    %5215 = vmatprep.subr.bf16.mxu0 %v4792
    %5216 = vmatpush1.bf16.msra.mxu0 %v4791
    %5217 = vmatprep.subr.bf16.mxu0 %v4800
    %5218 = vmatpush1.bf16.msra.mxu0 %v4799
    %5219 = vmatprep.subr.bf16.mxu0 %v4808
    %5220 = vmatpush1.bf16.msra.mxu0 %v4807
    %5221 = vmatprep.subr.bf16.mxu0 %v4816
    %5222 = vmatpush1.bf16.msra.mxu0 %v4815
    %5223 = vmatprep.subr.bf16.mxu0 %v4824
    %5224 = vmatpush1.bf16.msra.mxu0 %v4823
    %5225 = vmatprep.subr.bf16.mxu0 %v4832
    %5226 = vmatpush1.bf16.msra.mxu0 %v4831
    %5227 = vmatprep.subr.bf16.mxu0 %v4840
    %5228 = vmatpush1.bf16.msra.mxu0 %v4839
    %5229 = vmatprep.mubr.bf16.mxu0 %v5196
    %5230 = vmatmul.mubr.bf16.gmra.mrb[0].mxu0 %v5195
    %v5231 = vpop.f32.mrb[0].mxu0
    %v5232 = vadd.f32 0.0, %v5231
    %v5233 = vpop.f32.mrb[0].mxu0
    %v5234 = vadd.f32 0.0, %v5233
    %v5235 = vpop.f32.mrb[0].mxu0
    %v5236 = vpop.f32.mrb[0].mxu0
    %5237 = vdwg.mxu0
    %5238 = vmatprep.subr.bf16.mxu0 %v4722
    %5239 = vmatpush1.bf16.msra.mxu0 %v4721
    %5240 = vmatprep.subr.bf16.mxu0 %v4730
    %5241 = vmatpush1.bf16.msra.mxu0 %v4729
    %5242 = vmatprep.subr.bf16.mxu0 %v4738
    %5243 = vmatpush1.bf16.msra.mxu0 %v4737
    %5244 = vmatprep.subr.bf16.mxu0 %v4746
    %5245 = vmatpush1.bf16.msra.mxu0 %v4745
    %5246 = vmatprep.subr.bf16.mxu0 %v4754
    %5247 = vmatpush1.bf16.msra.mxu0 %v4753
    %5248 = vmatprep.subr.bf16.mxu0 %v4762
    %5249 = vmatpush1.bf16.msra.mxu0 %v4761
    %5250 = vmatprep.subr.bf16.mxu0 %v4770
    %5251 = vmatpush1.bf16.msra.mxu0 %v4769
    %5252 = vmatprep.subr.bf16.mxu0 %v4778
    %5253 = vmatpush1.bf16.msra.mxu0 %v4777
    %5254 = vmatprep.subr.bf16.mxu0 %v4786
    %5255 = vmatpush1.bf16.msra.mxu0 %v4785
    %5256 = vmatprep.subr.bf16.mxu0 %v4794
    %5257 = vmatpush1.bf16.msra.mxu0 %v4793
    %5258 = vmatprep.subr.bf16.mxu0 %v4802
    %5259 = vmatpush1.bf16.msra.mxu0 %v4801
    %5260 = vmatprep.subr.bf16.mxu0 %v4810
    %5261 = vmatpush1.bf16.msra.mxu0 %v4809
    %5262 = vmatprep.subr.bf16.mxu0 %v4818
    %5263 = vmatpush1.bf16.msra.mxu0 %v4817
    %5264 = vmatprep.subr.bf16.mxu0 %v4826
    %5265 = vmatpush1.bf16.msra.mxu0 %v4825
    %5266 = vmatprep.subr.bf16.mxu0 %v4834
    %5267 = vmatpush1.bf16.msra.mxu0 %v4833
    %5268 = vmatprep.subr.bf16.mxu0 %v4842
    %5269 = vmatpush1.bf16.msra.mxu0 %v4841
    %5270 = vmatprep.mubr.bf16.mxu0 %v5196
    %5271 = vmatmul.mubr.bf16.gmra.mrb[0].mxu0 %v5195
    %v5272 = vpop.f32.mrb[0].mxu0
    %v5273 = vadd.f32 0.0, %v5272
    %v5274 = vpop.f32.mrb[0].mxu0
    %v5275 = vadd.f32 0.0, %v5274
    %v5276 = vpop.f32.mrb[0].mxu0
    %v5277 = vpop.f32.mrb[0].mxu0
    %5278 = vdwg.mxu0
    %5279 = vmatprep.subr.bf16.mxu0 %v4724
    %5280 = vmatpush1.bf16.msra.mxu0 %v4723
    %5281 = vmatprep.subr.bf16.mxu0 %v4732
    %5282 = vmatpush1.bf16.msra.mxu0 %v4731
    %5283 = vmatprep.subr.bf16.mxu0 %v4740
    %5284 = vmatpush1.bf16.msra.mxu0 %v4739
    %5285 = vmatprep.subr.bf16.mxu0 %v4748
    %5286 = vmatpush1.bf16.msra.mxu0 %v4747
    %5287 = vmatprep.subr.bf16.mxu0 %v4756
    %5288 = vmatpush1.bf16.msra.mxu0 %v4755
    %5289 = vmatprep.subr.bf16.mxu0 %v4764
    %5290 = vmatpush1.bf16.msra.mxu0 %v4763
    %5291 = vmatprep.subr.bf16.mxu0 %v4772
    %5292 = vmatpush1.bf16.msra.mxu0 %v4771
    %5293 = vmatprep.subr.bf16.mxu0 %v4780
    %5294 = vmatpush1.bf16.msra.mxu0 %v4779
    %5295 = vmatprep.subr.bf16.mxu0 %v4788
    %5296 = vmatpush1.bf16.msra.mxu0 %v4787
    %5297 = vmatprep.subr.bf16.mxu0 %v4796
    %5298 = vmatpush1.bf16.msra.mxu0 %v4795
    %5299 = vmatprep.subr.bf16.mxu0 %v4804
    %5300 = vmatpush1.bf16.msra.mxu0 %v4803
    %5301 = vmatprep.subr.bf16.mxu0 %v4812
    %5302 = vmatpush1.bf16.msra.mxu0 %v4811
    %5303 = vmatprep.subr.bf16.mxu0 %v4820
    %5304 = vmatpush1.bf16.msra.mxu0 %v4819
    %5305 = vmatprep.subr.bf16.mxu0 %v4828
    %5306 = vmatpush1.bf16.msra.mxu0 %v4827
    %5307 = vmatprep.subr.bf16.mxu0 %v4836
    %5308 = vmatpush1.bf16.msra.mxu0 %v4835
    %5309 = vmatprep.subr.bf16.mxu0 %v4844
    %5310 = vmatpush1.bf16.msra.mxu0 %v4843
    %5311 = vmatprep.mubr.bf16.mxu0 %v5196
    %5312 = vmatmul.mubr.bf16.gmra.mrb[0].mxu0 %v5195
    %v5313 = vpop.f32.mrb[0].mxu0
    %v5314 = vadd.f32 0.0, %v5313
    %v5315 = vpop.f32.mrb[0].mxu0
    %v5316 = vadd.f32 0.0, %v5315
    %v5317 = vpop.f32.mrb[0].mxu0
    %v5318 = vpop.f32.mrb[0].mxu0
    %5319 = vdwg.mxu0
    %5320 = vmatprep.subr.bf16.mxu0 %v4726
    %5321 = vmatpush1.bf16.msra.mxu0 %v4725
    %5322 = vmatprep.subr.bf16.mxu0 %v4734
    %5323 = vmatpush1.bf16.msra.mxu0 %v4733
    %5324 = vmatprep.subr.bf16.mxu0 %v4742
    %5325 = vmatpush1.bf16.msra.mxu0 %v4741
    %5326 = vmatprep.subr.bf16.mxu0 %v4750
    %5327 = vmatpush1.bf16.msra.mxu0 %v4749
    %5328 = vmatprep.subr.bf16.mxu0 %v4758
    %5329 = vmatpush1.bf16.msra.mxu0 %v4757
    %5330 = vmatprep.subr.bf16.mxu0 %v4766
    %5331 = vmatpush1.bf16.msra.mxu0 %v4765
    %5332 = vmatprep.subr.bf16.mxu0 %v4774
    %5333 = vmatpush1.bf16.msra.mxu0 %v4773
    %5334 = vmatprep.subr.bf16.mxu0 %v4782
    %5335 = vmatpush1.bf16.msra.mxu0 %v4781
    %5336 = vmatprep.subr.bf16.mxu0 %v4790
    %5337 = vmatpush1.bf16.msra.mxu0 %v4789
    %5338 = vmatprep.subr.bf16.mxu0 %v4798
    %5339 = vmatpush1.bf16.msra.mxu0 %v4797
    %5340 = vmatprep.subr.bf16.mxu0 %v4806
    %5341 = vmatpush1.bf16.msra.mxu0 %v4805
    %5342 = vmatprep.subr.bf16.mxu0 %v4814
    %5343 = vmatpush1.bf16.msra.mxu0 %v4813
    %5344 = vmatprep.subr.bf16.mxu0 %v4822
    %5345 = vmatpush1.bf16.msra.mxu0 %v4821
    %5346 = vmatprep.subr.bf16.mxu0 %v4830
    %5347 = vmatpush1.bf16.msra.mxu0 %v4829
    %5348 = vmatprep.subr.bf16.mxu0 %v4838
    %5349 = vmatpush1.bf16.msra.mxu0 %v4837
    %5350 = vmatprep.subr.bf16.mxu0 %v4846
    %5351 = vmatpush1.bf16.msra.mxu0 %v4845
    %5352 = vmatprep.mubr.bf16.mxu0 %v5196
    %5353 = vmatmul.mubr.bf16.gmra.mrb[0].mxu0 %v5195
    %v5354 = vpop.f32.mrb[0].mxu0
    %v5355 = vadd.f32 0.0, %v5354
    %v5356 = vpop.f32.mrb[0].mxu0
    %v5357 = vadd.f32 0.0, %v5356
    %v5358 = vpop.f32.mrb[0].mxu0
    %v5359 = vpop.f32.mrb[0].mxu0
    %5360 = vdwg.mxu0
    %v5361 = vadd.f32 %v4086, %v5232
    %v5362 = vadd.f32 %v4088, %v5234
    %v5363 = vadd.f32 %v4159, %v5273
    %v5364 = vadd.f32 %v4161, %v5275
    %v5365 = vadd.f32 %v4256, %v5314
    %v5366 = vadd.f32 %v4258, %v5316
    %v5367 = vadd.f32 %v4327, %v5355
    %v5368 = vadd.f32 %v4329, %v5357
    %v5369 = vxor.u32 %v5361, 2147483648
    %v5370 = vmul.f32 %v5369, 1.442695
    %v5371 = vpow.pop %v5370
    %v5372 = vadd.f32 %v5371, 1.0
    %v5373 = vrcp.pop %v5372
    %v5374 = vmul.f32 1.0, %v5373
    %v5375 = vxor.u32 %v5362, 2147483648
    %v5376 = vmul.f32 %v5375, 1.442695
    %v5377 = vpow.pop %v5376
    %v5378 = vadd.f32 %v5377, 1.0
    %v5379 = vrcp.pop %v5378
    %v5380 = vmul.f32 1.0, %v5379
    %v5381 = vtanh.pop %v5363
    %v5382 = vxor.u32 %v5364, 2147483648
    %v5383 = vmul.f32 %v5382, 1.442695
    %v5384 = vpow.pop %v5383
    %v5385 = vadd.f32 %v5384, 1.0
    %v5386 = vrcp.pop %v5385
    %v5387 = vmul.f32 1.0, %v5386
    %v5388 = vmul.f32 %v5380, %v5168
    %v5389 = vmul.f32 %v5374, %v5381
    %v5390 = vadd.f32 %v5388, %v5389
    %v5391 = vtanh.pop %v5390
    %v5392 = vmul.f32 %v5387, %v5391
    %v5393 = vxor.u32 %v5365, 2147483648
    %v5394 = vmul.f32 %v5393, 1.442695
    %v5395 = vpow.pop %v5394
    %v5396 = vadd.f32 %v5395, 1.0
    %v5397 = vrcp.pop %v5396
    %v5398 = vmul.f32 1.0, %v5397
    %v5399 = vxor.u32 %v5366, 2147483648
    %v5400 = vmul.f32 %v5399, 1.442695
    %v5401 = vpow.pop %v5400
    %v5402 = vadd.f32 %v5401, 1.0
    %v5403 = vrcp.pop %v5402
    %v5404 = vmul.f32 1.0, %v5403
    %v5405 = vtanh.pop %v5367
    %v5406 = vxor.u32 %v5368, 2147483648
    %v5407 = vmul.f32 %v5406, 1.442695
    %v5408 = vpow.pop %v5407
    %v5409 = vadd.f32 %v5408, 1.0
    %v5410 = vrcp.pop %v5409
    %v5411 = vmul.f32 1.0, %v5410
    %v5412 = vmul.f32 %v5404, %v5192
    %v5413 = vmul.f32 %v5398, %v5405
    %v5414 = vadd.f32 %v5412, %v5413
    %v5415 = vtanh.pop %v5414
    %v5416 = vmul.f32 %v5411, %v5415
    %v5417 = vpack.c.bf16 %v5392, %v5392
    %v5418 = vpack.c.bf16 %v5416, %v5416
    %5419 = vmatprep.subr.bf16.mxu0 %v4720
    %5420 = vmatpush1.bf16.msra.mxu0 %v4719
    %5421 = vmatprep.subr.bf16.mxu0 %v4728
    %5422 = vmatpush1.bf16.msra.mxu0 %v4727
    %5423 = vmatprep.subr.bf16.mxu0 %v4736
    %5424 = vmatpush1.bf16.msra.mxu0 %v4735
    %5425 = vmatprep.subr.bf16.mxu0 %v4744
    %5426 = vmatpush1.bf16.msra.mxu0 %v4743
    %5427 = vmatprep.subr.bf16.mxu0 %v4752
    %5428 = vmatpush1.bf16.msra.mxu0 %v4751
    %5429 = vmatprep.subr.bf16.mxu0 %v4760
    %5430 = vmatpush1.bf16.msra.mxu0 %v4759
    %5431 = vmatprep.subr.bf16.mxu0 %v4768
    %5432 = vmatpush1.bf16.msra.mxu0 %v4767
    %5433 = vmatprep.subr.bf16.mxu0 %v4776
    %5434 = vmatpush1.bf16.msra.mxu0 %v4775
    %5435 = vmatprep.subr.bf16.mxu0 %v4784
    %5436 = vmatpush1.bf16.msra.mxu0 %v4783
    %5437 = vmatprep.subr.bf16.mxu0 %v4792
    %5438 = vmatpush1.bf16.msra.mxu0 %v4791
    %5439 = vmatprep.subr.bf16.mxu0 %v4800
    %5440 = vmatpush1.bf16.msra.mxu0 %v4799
    %5441 = vmatprep.subr.bf16.mxu0 %v4808
    %5442 = vmatpush1.bf16.msra.mxu0 %v4807
    %5443 = vmatprep.subr.bf16.mxu0 %v4816
    %5444 = vmatpush1.bf16.msra.mxu0 %v4815
    %5445 = vmatprep.subr.bf16.mxu0 %v4824
    %5446 = vmatpush1.bf16.msra.mxu0 %v4823
    %5447 = vmatprep.subr.bf16.mxu0 %v4832
    %5448 = vmatpush1.bf16.msra.mxu0 %v4831
    %5449 = vmatprep.subr.bf16.mxu0 %v4840
    %5450 = vmatpush1.bf16.msra.mxu0 %v4839
    %5451 = vmatprep.mubr.bf16.mxu0 %v5418
    %5452 = vmatmul.mubr.bf16.gmra.mrb[0].mxu0 %v5417
    %v5453 = vpop.f32.mrb[0].mxu0
    %v5454 = vadd.f32 0.0, %v5453
    %v5455 = vpop.f32.mrb[0].mxu0
    %v5456 = vadd.f32 0.0, %v5455
    %v5457 = vpop.f32.mrb[0].mxu0
    %v5458 = vpop.f32.mrb[0].mxu0
    %5459 = vdwg.mxu0
    %5460 = vmatprep.subr.bf16.mxu0 %v4722
    %5461 = vmatpush1.bf16.msra.mxu0 %v4721
    %5462 = vmatprep.subr.bf16.mxu0 %v4730
    %5463 = vmatpush1.bf16.msra.mxu0 %v4729
    %5464 = vmatprep.subr.bf16.mxu0 %v4738
    %5465 = vmatpush1.bf16.msra.mxu0 %v4737
    %5466 = vmatprep.subr.bf16.mxu0 %v4746
    %5467 = vmatpush1.bf16.msra.mxu0 %v4745
    %5468 = vmatprep.subr.bf16.mxu0 %v4754
    %5469 = vmatpush1.bf16.msra.mxu0 %v4753
    %5470 = vmatprep.subr.bf16.mxu0 %v4762
    %5471 = vmatpush1.bf16.msra.mxu0 %v4761
    %5472 = vmatprep.subr.bf16.mxu0 %v4770
    %5473 = vmatpush1.bf16.msra.mxu0 %v4769
    %5474 = vmatprep.subr.bf16.mxu0 %v4778
    %5475 = vmatpush1.bf16.msra.mxu0 %v4777
    %5476 = vmatprep.subr.bf16.mxu0 %v4786
    %5477 = vmatpush1.bf16.msra.mxu0 %v4785
    %5478 = vmatprep.subr.bf16.mxu0 %v4794
    %5479 = vmatpush1.bf16.msra.mxu0 %v4793
    %5480 = vmatprep.subr.bf16.mxu0 %v4802
    %5481 = vmatpush1.bf16.msra.mxu0 %v4801
    %5482 = vmatprep.subr.bf16.mxu0 %v4810
    %5483 = vmatpush1.bf16.msra.mxu0 %v4809
    %5484 = vmatprep.subr.bf16.mxu0 %v4818
    %5485 = vmatpush1.bf16.msra.mxu0 %v4817
    %5486 = vmatprep.subr.bf16.mxu0 %v4826
    %5487 = vmatpush1.bf16.msra.mxu0 %v4825
    %5488 = vmatprep.subr.bf16.mxu0 %v4834
    %5489 = vmatpush1.bf16.msra.mxu0 %v4833
    %5490 = vmatprep.subr.bf16.mxu0 %v4842
    %5491 = vmatpush1.bf16.msra.mxu0 %v4841
    %5492 = vmatprep.mubr.bf16.mxu0 %v5418
    %5493 = vmatmul.mubr.bf16.gmra.mrb[0].mxu0 %v5417
    %v5494 = vpop.f32.mrb[0].mxu0
    %v5495 = vadd.f32 0.0, %v5494
    %v5496 = vpop.f32.mrb[0].mxu0
    %v5497 = vadd.f32 0.0, %v5496
    %v5498 = vpop.f32.mrb[0].mxu0
    %v5499 = vpop.f32.mrb[0].mxu0
    %5500 = vdwg.mxu0
    %5501 = vmatprep.subr.bf16.mxu0 %v4724
    %5502 = vmatpush1.bf16.msra.mxu0 %v4723
    %5503 = vmatprep.subr.bf16.mxu0 %v4732
    %5504 = vmatpush1.bf16.msra.mxu0 %v4731
    %5505 = vmatprep.subr.bf16.mxu0 %v4740
    %5506 = vmatpush1.bf16.msra.mxu0 %v4739
    %5507 = vmatprep.subr.bf16.mxu0 %v4748
    %5508 = vmatpush1.bf16.msra.mxu0 %v4747
    %5509 = vmatprep.subr.bf16.mxu0 %v4756
    %5510 = vmatpush1.bf16.msra.mxu0 %v4755
    %5511 = vmatprep.subr.bf16.mxu0 %v4764
    %5512 = vmatpush1.bf16.msra.mxu0 %v4763
    %5513 = vmatprep.subr.bf16.mxu0 %v4772
    %5514 = vmatpush1.bf16.msra.mxu0 %v4771
    %5515 = vmatprep.subr.bf16.mxu0 %v4780
    %5516 = vmatpush1.bf16.msra.mxu0 %v4779
    %5517 = vmatprep.subr.bf16.mxu0 %v4788
    %5518 = vmatpush1.bf16.msra.mxu0 %v4787
    %5519 = vmatprep.subr.bf16.mxu0 %v4796
    %5520 = vmatpush1.bf16.msra.mxu0 %v4795
    %5521 = vmatprep.subr.bf16.mxu0 %v4804
    %5522 = vmatpush1.bf16.msra.mxu0 %v4803
    %5523 = vmatprep.subr.bf16.mxu0 %v4812
    %5524 = vmatpush1.bf16.msra.mxu0 %v4811
    %5525 = vmatprep.subr.bf16.mxu0 %v4820
    %5526 = vmatpush1.bf16.msra.mxu0 %v4819
    %5527 = vmatprep.subr.bf16.mxu0 %v4828
    %5528 = vmatpush1.bf16.msra.mxu0 %v4827
    %5529 = vmatprep.subr.bf16.mxu0 %v4836
    %5530 = vmatpush1.bf16.msra.mxu0 %v4835
    %5531 = vmatprep.subr.bf16.mxu0 %v4844
    %5532 = vmatpush1.bf16.msra.mxu0 %v4843
    %5533 = vmatprep.mubr.bf16.mxu0 %v5418
    %5534 = vmatmul.mubr.bf16.gmra.mrb[0].mxu0 %v5417
    %v5535 = vpop.f32.mrb[0].mxu0
    %v5536 = vadd.f32 0.0, %v5535
    %v5537 = vpop.f32.mrb[0].mxu0
    %v5538 = vadd.f32 0.0, %v5537
    %v5539 = vpop.f32.mrb[0].mxu0
    %v5540 = vpop.f32.mrb[0].mxu0
    %5541 = vdwg.mxu0
    %5542 = vmatprep.subr.bf16.mxu0 %v4726
    %5543 = vmatpush1.bf16.msra.mxu0 %v4725
    %5544 = vmatprep.subr.bf16.mxu0 %v4734
    %5545 = vmatpush1.bf16.msra.mxu0 %v4733
    %5546 = vmatprep.subr.bf16.mxu0 %v4742
    %5547 = vmatpush1.bf16.msra.mxu0 %v4741
    %5548 = vmatprep.subr.bf16.mxu0 %v4750
    %5549 = vmatpush1.bf16.msra.mxu0 %v4749
    %5550 = vmatprep.subr.bf16.mxu0 %v4758
    %5551 = vmatpush1.bf16.msra.mxu0 %v4757
    %5552 = vmatprep.subr.bf16.mxu0 %v4766
    %5553 = vmatpush1.bf16.msra.mxu0 %v4765
    %5554 = vmatprep.subr.bf16.mxu0 %v4774
    %5555 = vmatpush1.bf16.msra.mxu0 %v4773
    %5556 = vmatprep.subr.bf16.mxu0 %v4782
    %5557 = vmatpush1.bf16.msra.mxu0 %v4781
    %5558 = vmatprep.subr.bf16.mxu0 %v4790
    %5559 = vmatpush1.bf16.msra.mxu0 %v4789
    %5560 = vmatprep.subr.bf16.mxu0 %v4798
    %5561 = vmatpush1.bf16.msra.mxu0 %v4797
    %5562 = vmatprep.subr.bf16.mxu0 %v4806
    %5563 = vmatpush1.bf16.msra.mxu0 %v4805
    %5564 = vmatprep.subr.bf16.mxu0 %v4814
    %5565 = vmatpush1.bf16.msra.mxu0 %v4813
    %5566 = vmatprep.subr.bf16.mxu0 %v4822
    %5567 = vmatpush1.bf16.msra.mxu0 %v4821
    %5568 = vmatprep.subr.bf16.mxu0 %v4830
    %5569 = vmatpush1.bf16.msra.mxu0 %v4829
    %5570 = vmatprep.subr.bf16.mxu0 %v4838
    %5571 = vmatpush1.bf16.msra.mxu0 %v4837
    %5572 = vmatprep.subr.bf16.mxu0 %v4846
    %5573 = vmatpush1.bf16.msra.mxu0 %v4845
    %5574 = vmatprep.mubr.bf16.mxu0 %v5418
    %5575 = vmatmul.mubr.bf16.gmra.mrb[0].mxu0 %v5417
    %v5576 = vpop.f32.mrb[0].mxu0
    %v5577 = vadd.f32 0.0, %v5576
    %v5578 = vpop.f32.mrb[0].mxu0
    %v5579 = vadd.f32 0.0, %v5578
    %v5580 = vpop.f32.mrb[0].mxu0
    %v5581 = vpop.f32.mrb[0].mxu0
    %5582 = vdwg.mxu0
    %v5583 = vadd.f32 %v4092, %v5454
    %v5584 = vadd.f32 %v4094, %v5456
    %v5585 = vadd.f32 %v4165, %v5495
    %v5586 = vadd.f32 %v4167, %v5497
    %v5587 = vadd.f32 %v4250, %v5536
    %v5588 = vadd.f32 %v4252, %v5538
    %v5589 = vadd.f32 %v4321, %v5577
    %v5590 = vadd.f32 %v4323, %v5579
    %v5591 = vxor.u32 %v5583, 2147483648
    %v5592 = vmul.f32 %v5591, 1.442695
    %v5593 = vpow.pop %v5592
    %v5594 = vadd.f32 %v5593, 1.0
    %v5595 = vrcp.pop %v5594
    %v5596 = vmul.f32 1.0, %v5595
    %v5597 = vxor.u32 %v5584, 2147483648
    %v5598 = vmul.f32 %v5597, 1.442695
    %v5599 = vpow.pop %v5598
    %v5600 = vadd.f32 %v5599, 1.0
    %v5601 = vrcp.pop %v5600
    %v5602 = vmul.f32 1.0, %v5601
    %v5603 = vtanh.pop %v5585
    %v5604 = vxor.u32 %v5586, 2147483648
    %v5605 = vmul.f32 %v5604, 1.442695
    %v5606 = vpow.pop %v5605
    %v5607 = vadd.f32 %v5606, 1.0
    %v5608 = vrcp.pop %v5607
    %v5609 = vmul.f32 1.0, %v5608
    %v5610 = vmul.f32 %v5602, %v5390
    %v5611 = vmul.f32 %v5596, %v5603
    %v5612 = vadd.f32 %v5610, %v5611
    %v5613 = vtanh.pop %v5612
    %v5614 = vmul.f32 %v5609, %v5613
    %v5615 = vxor.u32 %v5587, 2147483648
    %v5616 = vmul.f32 %v5615, 1.442695
    %v5617 = vpow.pop %v5616
    %v5618 = vadd.f32 %v5617, 1.0
    %v5619 = vrcp.pop %v5618
    %v5620 = vmul.f32 1.0, %v5619
    %v5621 = vxor.u32 %v5588, 2147483648
    %v5622 = vmul.f32 %v5621, 1.442695
    %v5623 = vpow.pop %v5622
    %v5624 = vadd.f32 %v5623, 1.0
    %v5625 = vrcp.pop %v5624
    %v5626 = vmul.f32 1.0, %v5625
    %v5627 = vtanh.pop %v5589
    %v5628 = vxor.u32 %v5590, 2147483648
    %v5629 = vmul.f32 %v5628, 1.442695
    %v5630 = vpow.pop %v5629
    %v5631 = vadd.f32 %v5630, 1.0
    %v5632 = vrcp.pop %v5631
    %v5633 = vmul.f32 1.0, %v5632
    %v5634 = vmul.f32 %v5626, %v5414
    %v5635 = vmul.f32 %v5620, %v5627
    %v5636 = vadd.f32 %v5634, %v5635
    %v5637 = vtanh.pop %v5636
    %v5638 = vmul.f32 %v5633, %v5637
    %v5639 = vpack.c.bf16 %v5614, %v5614
    %v5640 = vpack.c.bf16 %v5638, %v5638
    %5641 = vmatprep.subr.bf16.mxu0 %v4720
    %5642 = vmatpush1.bf16.msra.mxu0 %v4719
    %5643 = vmatprep.subr.bf16.mxu0 %v4728
    %5644 = vmatpush1.bf16.msra.mxu0 %v4727
    %5645 = vmatprep.subr.bf16.mxu0 %v4736
    %5646 = vmatpush1.bf16.msra.mxu0 %v4735
    %5647 = vmatprep.subr.bf16.mxu0 %v4744
    %5648 = vmatpush1.bf16.msra.mxu0 %v4743
    %5649 = vmatprep.subr.bf16.mxu0 %v4752
    %5650 = vmatpush1.bf16.msra.mxu0 %v4751
    %5651 = vmatprep.subr.bf16.mxu0 %v4760
    %5652 = vmatpush1.bf16.msra.mxu0 %v4759
    %5653 = vmatprep.subr.bf16.mxu0 %v4768
    %5654 = vmatpush1.bf16.msra.mxu0 %v4767
    %5655 = vmatprep.subr.bf16.mxu0 %v4776
    %5656 = vmatpush1.bf16.msra.mxu0 %v4775
    %5657 = vmatprep.subr.bf16.mxu0 %v4784
    %5658 = vmatpush1.bf16.msra.mxu0 %v4783
    %5659 = vmatprep.subr.bf16.mxu0 %v4792
    %5660 = vmatpush1.bf16.msra.mxu0 %v4791
    %5661 = vmatprep.subr.bf16.mxu0 %v4800
    %5662 = vmatpush1.bf16.msra.mxu0 %v4799
    %5663 = vmatprep.subr.bf16.mxu0 %v4808
    %5664 = vmatpush1.bf16.msra.mxu0 %v4807
    %5665 = vmatprep.subr.bf16.mxu0 %v4816
    %5666 = vmatpush1.bf16.msra.mxu0 %v4815
    %5667 = vmatprep.subr.bf16.mxu0 %v4824
    %5668 = vmatpush1.bf16.msra.mxu0 %v4823
    %5669 = vmatprep.subr.bf16.mxu0 %v4832
    %5670 = vmatpush1.bf16.msra.mxu0 %v4831
    %5671 = vmatprep.subr.bf16.mxu0 %v4840
    %5672 = vmatpush1.bf16.msra.mxu0 %v4839
    %5673 = vmatprep.mubr.bf16.mxu0 %v5640
    %5674 = vmatmul.mubr.bf16.gmra.mrb[0].mxu0 %v5639
    %v5675 = vpop.f32.mrb[0].mxu0
    %v5676 = vadd.f32 0.0, %v5675
    %v5677 = vpop.f32.mrb[0].mxu0
    %v5678 = vadd.f32 0.0, %v5677
    %v5679 = vpop.f32.mrb[0].mxu0
    %v5680 = vpop.f32.mrb[0].mxu0
    %5681 = vdwg.mxu0
    %5682 = vmatprep.subr.bf16.mxu0 %v4722
    %5683 = vmatpush1.bf16.msra.mxu0 %v4721
    %5684 = vmatprep.subr.bf16.mxu0 %v4730
    %5685 = vmatpush1.bf16.msra.mxu0 %v4729
    %5686 = vmatprep.subr.bf16.mxu0 %v4738
    %5687 = vmatpush1.bf16.msra.mxu0 %v4737
    %5688 = vmatprep.subr.bf16.mxu0 %v4746
    %5689 = vmatpush1.bf16.msra.mxu0 %v4745
    %5690 = vmatprep.subr.bf16.mxu0 %v4754
    %5691 = vmatpush1.bf16.msra.mxu0 %v4753
    %5692 = vmatprep.subr.bf16.mxu0 %v4762
    %5693 = vmatpush1.bf16.msra.mxu0 %v4761
    %5694 = vmatprep.subr.bf16.mxu0 %v4770
    %5695 = vmatpush1.bf16.msra.mxu0 %v4769
    %5696 = vmatprep.subr.bf16.mxu0 %v4778
    %5697 = vmatpush1.bf16.msra.mxu0 %v4777
    %5698 = vmatprep.subr.bf16.mxu0 %v4786
    %5699 = vmatpush1.bf16.msra.mxu0 %v4785
    %5700 = vmatprep.subr.bf16.mxu0 %v4794
    %5701 = vmatpush1.bf16.msra.mxu0 %v4793
    %5702 = vmatprep.subr.bf16.mxu0 %v4802
    %5703 = vmatpush1.bf16.msra.mxu0 %v4801
    %5704 = vmatprep.subr.bf16.mxu0 %v4810
    %5705 = vmatpush1.bf16.msra.mxu0 %v4809
    %5706 = vmatprep.subr.bf16.mxu0 %v4818
    %5707 = vmatpush1.bf16.msra.mxu0 %v4817
    %5708 = vmatprep.subr.bf16.mxu0 %v4826
    %5709 = vmatpush1.bf16.msra.mxu0 %v4825
    %5710 = vmatprep.subr.bf16.mxu0 %v4834
    %5711 = vmatpush1.bf16.msra.mxu0 %v4833
    %5712 = vmatprep.subr.bf16.mxu0 %v4842
    %5713 = vmatpush1.bf16.msra.mxu0 %v4841
    %5714 = vmatprep.mubr.bf16.mxu0 %v5640
    %5715 = vmatmul.mubr.bf16.gmra.mrb[0].mxu0 %v5639
    %v5716 = vpop.f32.mrb[0].mxu0
    %v5717 = vadd.f32 0.0, %v5716
    %v5718 = vpop.f32.mrb[0].mxu0
    %v5719 = vadd.f32 0.0, %v5718
    %v5720 = vpop.f32.mrb[0].mxu0
    %v5721 = vpop.f32.mrb[0].mxu0
    %5722 = vdwg.mxu0
    %5723 = vmatprep.subr.bf16.mxu0 %v4724
    %5724 = vmatpush1.bf16.msra.mxu0 %v4723
    %5725 = vmatprep.subr.bf16.mxu0 %v4732
    %5726 = vmatpush1.bf16.msra.mxu0 %v4731
    %5727 = vmatprep.subr.bf16.mxu0 %v4740
    %5728 = vmatpush1.bf16.msra.mxu0 %v4739
    %5729 = vmatprep.subr.bf16.mxu0 %v4748
    %5730 = vmatpush1.bf16.msra.mxu0 %v4747
    %5731 = vmatprep.subr.bf16.mxu0 %v4756
    %5732 = vmatpush1.bf16.msra.mxu0 %v4755
    %5733 = vmatprep.subr.bf16.mxu0 %v4764
    %5734 = vmatpush1.bf16.msra.mxu0 %v4763
    %5735 = vmatprep.subr.bf16.mxu0 %v4772
    %5736 = vmatpush1.bf16.msra.mxu0 %v4771
    %5737 = vmatprep.subr.bf16.mxu0 %v4780
    %5738 = vmatpush1.bf16.msra.mxu0 %v4779
    %5739 = vmatprep.subr.bf16.mxu0 %v4788
    %5740 = vmatpush1.bf16.msra.mxu0 %v4787
    %5741 = vmatprep.subr.bf16.mxu0 %v4796
    %5742 = vmatpush1.bf16.msra.mxu0 %v4795
    %5743 = vmatprep.subr.bf16.mxu0 %v4804
    %5744 = vmatpush1.bf16.msra.mxu0 %v4803
    %5745 = vmatprep.subr.bf16.mxu0 %v4812
    %5746 = vmatpush1.bf16.msra.mxu0 %v4811
    %5747 = vmatprep.subr.bf16.mxu0 %v4820
    %5748 = vmatpush1.bf16.msra.mxu0 %v4819
    %5749 = vmatprep.subr.bf16.mxu0 %v4828
    %5750 = vmatpush1.bf16.msra.mxu0 %v4827
    %5751 = vmatprep.subr.bf16.mxu0 %v4836
    %5752 = vmatpush1.bf16.msra.mxu0 %v4835
    %5753 = vmatprep.subr.bf16.mxu0 %v4844
    %5754 = vmatpush1.bf16.msra.mxu0 %v4843
    %5755 = vmatprep.mubr.bf16.mxu0 %v5640
    %5756 = vmatmul.mubr.bf16.gmra.mrb[0].mxu0 %v5639
    %v5757 = vpop.f32.mrb[0].mxu0
    %v5758 = vadd.f32 0.0, %v5757
    %v5759 = vpop.f32.mrb[0].mxu0
    %v5760 = vadd.f32 0.0, %v5759
    %v5761 = vpop.f32.mrb[0].mxu0
    %v5762 = vpop.f32.mrb[0].mxu0
    %5763 = vdwg.mxu0
    %5764 = vmatprep.subr.bf16.mxu0 %v4726
    %5765 = vmatpush1.bf16.msra.mxu0 %v4725
    %5766 = vmatprep.subr.bf16.mxu0 %v4734
    %5767 = vmatpush1.bf16.msra.mxu0 %v4733
    %5768 = vmatprep.subr.bf16.mxu0 %v4742
    %5769 = vmatpush1.bf16.msra.mxu0 %v4741
    %5770 = vmatprep.subr.bf16.mxu0 %v4750
    %5771 = vmatpush1.bf16.msra.mxu0 %v4749
    %5772 = vmatprep.subr.bf16.mxu0 %v4758
    %5773 = vmatpush1.bf16.msra.mxu0 %v4757
    %5774 = vmatprep.subr.bf16.mxu0 %v4766
    %5775 = vmatpush1.bf16.msra.mxu0 %v4765
    %5776 = vmatprep.subr.bf16.mxu0 %v4774
    %5777 = vmatpush1.bf16.msra.mxu0 %v4773
    %5778 = vmatprep.subr.bf16.mxu0 %v4782
    %5779 = vmatpush1.bf16.msra.mxu0 %v4781
    %5780 = vmatprep.subr.bf16.mxu0 %v4790
    %5781 = vmatpush1.bf16.msra.mxu0 %v4789
    %5782 = vmatprep.subr.bf16.mxu0 %v4798
    %5783 = vmatpush1.bf16.msra.mxu0 %v4797
    %5784 = vmatprep.subr.bf16.mxu0 %v4806
    %5785 = vmatpush1.bf16.msra.mxu0 %v4805
    %5786 = vmatprep.subr.bf16.mxu0 %v4814
    %5787 = vmatpush1.bf16.msra.mxu0 %v4813
    %5788 = vmatprep.subr.bf16.mxu0 %v4822
    %5789 = vmatpush1.bf16.msra.mxu0 %v4821
    %5790 = vmatprep.subr.bf16.mxu0 %v4830
    %5791 = vmatpush1.bf16.msra.mxu0 %v4829
    %5792 = vmatprep.subr.bf16.mxu0 %v4838
    %5793 = vmatpush1.bf16.msra.mxu0 %v4837
    %5794 = vmatprep.subr.bf16.mxu0 %v4846
    %5795 = vmatpush1.bf16.msra.mxu0 %v4845
    %5796 = vmatprep.mubr.bf16.mxu0 %v5640
    %5797 = vmatmul.mubr.bf16.gmra.mrb[0].mxu0 %v5639
    %v5798 = vpop.f32.mrb[0].mxu0
    %v5799 = vadd.f32 0.0, %v5798
    %v5800 = vpop.f32.mrb[0].mxu0
    %v5801 = vadd.f32 0.0, %v5800
    %v5802 = vpop.f32.mrb[0].mxu0
    %v5803 = vpop.f32.mrb[0].mxu0
    %5804 = vdwg.mxu0
    %v5805 = vadd.f32 %v4096, %v5676
    %v5806 = vadd.f32 %v4098, %v5678
    %v5807 = vadd.f32 %v4169, %v5717
    %v5808 = vadd.f32 %v4171, %v5719
    %v5809 = vadd.f32 %v4246, %v5758
    %v5810 = vadd.f32 %v4248, %v5760
    %v5811 = vadd.f32 %v4317, %v5799
    %v5812 = vadd.f32 %v4319, %v5801
    %v5813 = vxor.u32 %v5805, 2147483648
    %v5814 = vmul.f32 %v5813, 1.442695
    %v5815 = vpow.pop %v5814
    %v5816 = vadd.f32 %v5815, 1.0
    %v5817 = vrcp.pop %v5816
    %v5818 = vmul.f32 1.0, %v5817
    %v5819 = vxor.u32 %v5806, 2147483648
    %v5820 = vmul.f32 %v5819, 1.442695
    %v5821 = vpow.pop %v5820
    %v5822 = vadd.f32 %v5821, 1.0
    %v5823 = vrcp.pop %v5822
    %v5824 = vmul.f32 1.0, %v5823
    %v5825 = vtanh.pop %v5807
    %v5826 = vxor.u32 %v5808, 2147483648
    %v5827 = vmul.f32 %v5826, 1.442695
    %v5828 = vpow.pop %v5827
    %v5829 = vadd.f32 %v5828, 1.0
    %v5830 = vrcp.pop %v5829
    %v5831 = vmul.f32 1.0, %v5830
    %v5832 = vmul.f32 %v5824, %v5612
    %v5833 = vmul.f32 %v5818, %v5825
    %v5834 = vadd.f32 %v5832, %v5833
    %v5835 = vtanh.pop %v5834
    %v5836 = vmul.f32 %v5831, %v5835
    %v5837 = vxor.u32 %v5809, 2147483648
    %v5838 = vmul.f32 %v5837, 1.442695
    %v5839 = vpow.pop %v5838
    %v5840 = vadd.f32 %v5839, 1.0
    %v5841 = vrcp.pop %v5840
    %v5842 = vmul.f32 1.0, %v5841
    %v5843 = vxor.u32 %v5810, 2147483648
    %v5844 = vmul.f32 %v5843, 1.442695
    %v5845 = vpow.pop %v5844
    %v5846 = vadd.f32 %v5845, 1.0
    %v5847 = vrcp.pop %v5846
    %v5848 = vmul.f32 1.0, %v5847
    %v5849 = vtanh.pop %v5811
    %v5850 = vxor.u32 %v5812, 2147483648
    %v5851 = vmul.f32 %v5850, 1.442695
    %v5852 = vpow.pop %v5851
    %v5853 = vadd.f32 %v5852, 1.0
    %v5854 = vrcp.pop %v5853
    %v5855 = vmul.f32 1.0, %v5854
    %v5856 = vmul.f32 %v5848, %v5636
    %v5857 = vmul.f32 %v5842, %v5849
    %v5858 = vadd.f32 %v5856, %v5857
    %v5859 = vtanh.pop %v5858
    %v5860 = vmul.f32 %v5855, %v5859
    %v5861 = vpack.c.bf16 %v5836, %v5836
    %v5862 = vpack.c.bf16 %v5860, %v5860
    %5863 = vmatprep.subr.bf16.mxu0 %v4720
    %5864 = vmatpush1.bf16.msra.mxu0 %v4719
    %5865 = vmatprep.subr.bf16.mxu0 %v4728
    %5866 = vmatpush1.bf16.msra.mxu0 %v4727
    %5867 = vmatprep.subr.bf16.mxu0 %v4736
    %5868 = vmatpush1.bf16.msra.mxu0 %v4735
    %5869 = vmatprep.subr.bf16.mxu0 %v4744
    %5870 = vmatpush1.bf16.msra.mxu0 %v4743
    %5871 = vmatprep.subr.bf16.mxu0 %v4752
    %5872 = vmatpush1.bf16.msra.mxu0 %v4751
    %5873 = vmatprep.subr.bf16.mxu0 %v4760
    %5874 = vmatpush1.bf16.msra.mxu0 %v4759
    %5875 = vmatprep.subr.bf16.mxu0 %v4768
    %5876 = vmatpush1.bf16.msra.mxu0 %v4767
    %5877 = vmatprep.subr.bf16.mxu0 %v4776
    %5878 = vmatpush1.bf16.msra.mxu0 %v4775
    %5879 = vmatprep.subr.bf16.mxu0 %v4784
    %5880 = vmatpush1.bf16.msra.mxu0 %v4783
    %5881 = vmatprep.subr.bf16.mxu0 %v4792
    %5882 = vmatpush1.bf16.msra.mxu0 %v4791
    %5883 = vmatprep.subr.bf16.mxu0 %v4800
    %5884 = vmatpush1.bf16.msra.mxu0 %v4799
    %5885 = vmatprep.subr.bf16.mxu0 %v4808
    %5886 = vmatpush1.bf16.msra.mxu0 %v4807
    %5887 = vmatprep.subr.bf16.mxu0 %v4816
    %5888 = vmatpush1.bf16.msra.mxu0 %v4815
    %5889 = vmatprep.subr.bf16.mxu0 %v4824
    %5890 = vmatpush1.bf16.msra.mxu0 %v4823
    %5891 = vmatprep.subr.bf16.mxu0 %v4832
    %5892 = vmatpush1.bf16.msra.mxu0 %v4831
    %5893 = vmatprep.subr.bf16.mxu0 %v4840
    %5894 = vmatpush1.bf16.msra.mxu0 %v4839
    %5895 = vmatprep.mubr.bf16.mxu0 %v5862
    %5896 = vmatmul.mubr.bf16.gmra.mrb[0].mxu0 %v5861
    %v5897 = vpop.f32.mrb[0].mxu0
    %v5898 = vadd.f32 0.0, %v5897
    %v5899 = vpop.f32.mrb[0].mxu0
    %v5900 = vadd.f32 0.0, %v5899
    %v5901 = vpop.f32.mrb[0].mxu0
    %v5902 = vpop.f32.mrb[0].mxu0
    %5903 = vdwg.mxu0
    %5904 = vmatprep.subr.bf16.mxu0 %v4722
    %5905 = vmatpush1.bf16.msra.mxu0 %v4721
    %5906 = vmatprep.subr.bf16.mxu0 %v4730
    %5907 = vmatpush1.bf16.msra.mxu0 %v4729
    %5908 = vmatprep.subr.bf16.mxu0 %v4738
    %5909 = vmatpush1.bf16.msra.mxu0 %v4737
    %5910 = vmatprep.subr.bf16.mxu0 %v4746
    %5911 = vmatpush1.bf16.msra.mxu0 %v4745
    %5912 = vmatprep.subr.bf16.mxu0 %v4754
    %5913 = vmatpush1.bf16.msra.mxu0 %v4753
    %5914 = vmatprep.subr.bf16.mxu0 %v4762
    %5915 = vmatpush1.bf16.msra.mxu0 %v4761
    %5916 = vmatprep.subr.bf16.mxu0 %v4770
    %5917 = vmatpush1.bf16.msra.mxu0 %v4769
    %5918 = vmatprep.subr.bf16.mxu0 %v4778
    %5919 = vmatpush1.bf16.msra.mxu0 %v4777
    %5920 = vmatprep.subr.bf16.mxu0 %v4786
    %5921 = vmatpush1.bf16.msra.mxu0 %v4785
    %5922 = vmatprep.subr.bf16.mxu0 %v4794
    %5923 = vmatpush1.bf16.msra.mxu0 %v4793
    %5924 = vmatprep.subr.bf16.mxu0 %v4802
    %5925 = vmatpush1.bf16.msra.mxu0 %v4801
    %5926 = vmatprep.subr.bf16.mxu0 %v4810
    %5927 = vmatpush1.bf16.msra.mxu0 %v4809
    %5928 = vmatprep.subr.bf16.mxu0 %v4818
    %5929 = vmatpush1.bf16.msra.mxu0 %v4817
    %5930 = vmatprep.subr.bf16.mxu0 %v4826
    %5931 = vmatpush1.bf16.msra.mxu0 %v4825
    %5932 = vmatprep.subr.bf16.mxu0 %v4834
    %5933 = vmatpush1.bf16.msra.mxu0 %v4833
    %5934 = vmatprep.subr.bf16.mxu0 %v4842
    %5935 = vmatpush1.bf16.msra.mxu0 %v4841
    %5936 = vmatprep.mubr.bf16.mxu0 %v5862
    %5937 = vmatmul.mubr.bf16.gmra.mrb[0].mxu0 %v5861
    %v5938 = vpop.f32.mrb[0].mxu0
    %v5939 = vadd.f32 0.0, %v5938
    %v5940 = vpop.f32.mrb[0].mxu0
    %v5941 = vadd.f32 0.0, %v5940
    %v5942 = vpop.f32.mrb[0].mxu0
    %v5943 = vpop.f32.mrb[0].mxu0
    %5944 = vdwg.mxu0
    %5945 = vmatprep.subr.bf16.mxu0 %v4724
    %5946 = vmatpush1.bf16.msra.mxu0 %v4723
    %5947 = vmatprep.subr.bf16.mxu0 %v4732
    %5948 = vmatpush1.bf16.msra.mxu0 %v4731
    %5949 = vmatprep.subr.bf16.mxu0 %v4740
    %5950 = vmatpush1.bf16.msra.mxu0 %v4739
    %5951 = vmatprep.subr.bf16.mxu0 %v4748
    %5952 = vmatpush1.bf16.msra.mxu0 %v4747
    %5953 = vmatprep.subr.bf16.mxu0 %v4756
    %5954 = vmatpush1.bf16.msra.mxu0 %v4755
    %5955 = vmatprep.subr.bf16.mxu0 %v4764
    %5956 = vmatpush1.bf16.msra.mxu0 %v4763
    %5957 = vmatprep.subr.bf16.mxu0 %v4772
    %5958 = vmatpush1.bf16.msra.mxu0 %v4771
    %5959 = vmatprep.subr.bf16.mxu0 %v4780
    %5960 = vmatpush1.bf16.msra.mxu0 %v4779
    %5961 = vmatprep.subr.bf16.mxu0 %v4788
    %5962 = vmatpush1.bf16.msra.mxu0 %v4787
    %5963 = vmatprep.subr.bf16.mxu0 %v4796
    %5964 = vmatpush1.bf16.msra.mxu0 %v4795
    %5965 = vmatprep.subr.bf16.mxu0 %v4804
    %5966 = vmatpush1.bf16.msra.mxu0 %v4803
    %5967 = vmatprep.subr.bf16.mxu0 %v4812
    %5968 = vmatpush1.bf16.msra.mxu0 %v4811
    %5969 = vmatprep.subr.bf16.mxu0 %v4820
    %5970 = vmatpush1.bf16.msra.mxu0 %v4819
    %5971 = vmatprep.subr.bf16.mxu0 %v4828
    %5972 = vmatpush1.bf16.msra.mxu0 %v4827
    %5973 = vmatprep.subr.bf16.mxu0 %v4836
    %5974 = vmatpush1.bf16.msra.mxu0 %v4835
    %5975 = vmatprep.subr.bf16.mxu0 %v4844
    %5976 = vmatpush1.bf16.msra.mxu0 %v4843
    %5977 = vmatprep.mubr.bf16.mxu0 %v5862
    %5978 = vmatmul.mubr.bf16.gmra.mrb[0].mxu0 %v5861
    %v5979 = vpop.f32.mrb[0].mxu0
    %v5980 = vadd.f32 0.0, %v5979
    %v5981 = vpop.f32.mrb[0].mxu0
    %v5982 = vadd.f32 0.0, %v5981
    %v5983 = vpop.f32.mrb[0].mxu0
    %v5984 = vpop.f32.mrb[0].mxu0
    %5985 = vdwg.mxu0
    %5986 = vmatprep.subr.bf16.mxu0 %v4726
    %5987 = vmatpush1.bf16.msra.mxu0 %v4725
    %5988 = vmatprep.subr.bf16.mxu0 %v4734
    %5989 = vmatpush1.bf16.msra.mxu0 %v4733
    %5990 = vmatprep.subr.bf16.mxu0 %v4742
    %5991 = vmatpush1.bf16.msra.mxu0 %v4741
    %5992 = vmatprep.subr.bf16.mxu0 %v4750
    %5993 = vmatpush1.bf16.msra.mxu0 %v4749
    %5994 = vmatprep.subr.bf16.mxu0 %v4758
    %5995 = vmatpush1.bf16.msra.mxu0 %v4757
    %5996 = vmatprep.subr.bf16.mxu0 %v4766
    %5997 = vmatpush1.bf16.msra.mxu0 %v4765
    %5998 = vmatprep.subr.bf16.mxu0 %v4774
    %5999 = vmatpush1.bf16.msra.mxu0 %v4773
    %6000 = vmatprep.subr.bf16.mxu0 %v4782
    %6001 = vmatpush1.bf16.msra.mxu0 %v4781
    %6002 = vmatprep.subr.bf16.mxu0 %v4790
    %6003 = vmatpush1.bf16.msra.mxu0 %v4789
    %6004 = vmatprep.subr.bf16.mxu0 %v4798
    %6005 = vmatpush1.bf16.msra.mxu0 %v4797
    %6006 = vmatprep.subr.bf16.mxu0 %v4806
    %6007 = vmatpush1.bf16.msra.mxu0 %v4805
    %6008 = vmatprep.subr.bf16.mxu0 %v4814
    %6009 = vmatpush1.bf16.msra.mxu0 %v4813
    %6010 = vmatprep.subr.bf16.mxu0 %v4822
    %6011 = vmatpush1.bf16.msra.mxu0 %v4821
    %6012 = vmatprep.subr.bf16.mxu0 %v4830
    %6013 = vmatpush1.bf16.msra.mxu0 %v4829
    %6014 = vmatprep.subr.bf16.mxu0 %v4838
    %6015 = vmatpush1.bf16.msra.mxu0 %v4837
    %6016 = vmatprep.subr.bf16.mxu0 %v4846
    %6017 = vmatpush1.bf16.msra.mxu0 %v4845
    %6018 = vmatprep.mubr.bf16.mxu0 %v5862
    %6019 = vmatmul.mubr.bf16.gmra.mrb[0].mxu0 %v5861
    %v6020 = vpop.f32.mrb[0].mxu0
    %v6021 = vadd.f32 0.0, %v6020
    %v6022 = vpop.f32.mrb[0].mxu0
    %v6023 = vadd.f32 0.0, %v6022
    %v6024 = vpop.f32.mrb[0].mxu0
    %v6025 = vpop.f32.mrb[0].mxu0
    %6026 = vdwg.mxu0
    %v6027 = vadd.f32 %v4102, %v5898
    %v6028 = vadd.f32 %v4104, %v5900
    %v6029 = vadd.f32 %v4175, %v5939
    %v6030 = vadd.f32 %v4177, %v5941
    %v6031 = vadd.f32 %v4240, %v5980
    %v6032 = vadd.f32 %v4242, %v5982
    %v6033 = vadd.f32 %v4311, %v6021
    %v6034 = vadd.f32 %v4313, %v6023
    %v6035 = vxor.u32 %v6027, 2147483648
    %v6036 = vmul.f32 %v6035, 1.442695
    %v6037 = vpow.pop %v6036
    %v6038 = vadd.f32 %v6037, 1.0
    %v6039 = vrcp.pop %v6038
    %v6040 = vmul.f32 1.0, %v6039
    %v6041 = vxor.u32 %v6028, 2147483648
    %v6042 = vmul.f32 %v6041, 1.442695
    %v6043 = vpow.pop %v6042
    %v6044 = vadd.f32 %v6043, 1.0
    %v6045 = vrcp.pop %v6044
    %v6046 = vmul.f32 1.0, %v6045
    %v6047 = vtanh.pop %v6029
    %v6048 = vxor.u32 %v6030, 2147483648
    %v6049 = vmul.f32 %v6048, 1.442695
    %v6050 = vpow.pop %v6049
    %v6051 = vadd.f32 %v6050, 1.0
    %v6052 = vrcp.pop %v6051
    %v6053 = vmul.f32 1.0, %v6052
    %v6054 = vmul.f32 %v6046, %v5834
    %v6055 = vmul.f32 %v6040, %v6047
    %v6056 = vadd.f32 %v6054, %v6055
    %v6057 = vtanh.pop %v6056
    %v6058 = vmul.f32 %v6053, %v6057
    %v6059 = vxor.u32 %v6031, 2147483648
    %v6060 = vmul.f32 %v6059, 1.442695
    %v6061 = vpow.pop %v6060
    %v6062 = vadd.f32 %v6061, 1.0
    %v6063 = vrcp.pop %v6062
    %v6064 = vmul.f32 1.0, %v6063
    %v6065 = vxor.u32 %v6032, 2147483648
    %v6066 = vmul.f32 %v6065, 1.442695
    %v6067 = vpow.pop %v6066
    %v6068 = vadd.f32 %v6067, 1.0
    %v6069 = vrcp.pop %v6068
    %v6070 = vmul.f32 1.0, %v6069
    %v6071 = vtanh.pop %v6033
    %v6072 = vxor.u32 %v6034, 2147483648
    %v6073 = vmul.f32 %v6072, 1.442695
    %v6074 = vpow.pop %v6073
    %v6075 = vadd.f32 %v6074, 1.0
    %v6076 = vrcp.pop %v6075
    %v6077 = vmul.f32 1.0, %v6076
    %v6078 = vmul.f32 %v6070, %v5858
    %v6079 = vmul.f32 %v6064, %v6071
    %v6080 = vadd.f32 %v6078, %v6079
    %v6081 = vtanh.pop %v6080
    %v6082 = vmul.f32 %v6077, %v6081
    %v6083 = vpack.c.bf16 %v6058, %v6058
    %v6084 = vpack.c.bf16 %v6082, %v6082
    %6085 = vmatprep.subr.bf16.mxu0 %v4720
    %6086 = vmatpush1.bf16.msra.mxu0 %v4719
    %6087 = vmatprep.subr.bf16.mxu0 %v4728
    %6088 = vmatpush1.bf16.msra.mxu0 %v4727
    %6089 = vmatprep.subr.bf16.mxu0 %v4736
    %6090 = vmatpush1.bf16.msra.mxu0 %v4735
    %6091 = vmatprep.subr.bf16.mxu0 %v4744
    %6092 = vmatpush1.bf16.msra.mxu0 %v4743
    %6093 = vmatprep.subr.bf16.mxu0 %v4752
    %6094 = vmatpush1.bf16.msra.mxu0 %v4751
    %6095 = vmatprep.subr.bf16.mxu0 %v4760
    %6096 = vmatpush1.bf16.msra.mxu0 %v4759
    %6097 = vmatprep.subr.bf16.mxu0 %v4768
    %6098 = vmatpush1.bf16.msra.mxu0 %v4767
    %6099 = vmatprep.subr.bf16.mxu0 %v4776
    %6100 = vmatpush1.bf16.msra.mxu0 %v4775
    %6101 = vmatprep.subr.bf16.mxu0 %v4784
    %6102 = vmatpush1.bf16.msra.mxu0 %v4783
    %6103 = vmatprep.subr.bf16.mxu0 %v4792
    %6104 = vmatpush1.bf16.msra.mxu0 %v4791
    %6105 = vmatprep.subr.bf16.mxu0 %v4800
    %6106 = vmatpush1.bf16.msra.mxu0 %v4799
    %6107 = vmatprep.subr.bf16.mxu0 %v4808
    %6108 = vmatpush1.bf16.msra.mxu0 %v4807
    %6109 = vmatprep.subr.bf16.mxu0 %v4816
    %6110 = vmatpush1.bf16.msra.mxu0 %v4815
    %6111 = vmatprep.subr.bf16.mxu0 %v4824
    %6112 = vmatpush1.bf16.msra.mxu0 %v4823
    %6113 = vmatprep.subr.bf16.mxu0 %v4832
    %6114 = vmatpush1.bf16.msra.mxu0 %v4831
    %6115 = vmatprep.subr.bf16.mxu0 %v4840
    %6116 = vmatpush1.bf16.msra.mxu0 %v4839
    %6117 = vmatprep.mubr.bf16.mxu0 %v6084
    %6118 = vmatmul.mubr.bf16.gmra.mrb[0].mxu0 %v6083
    %v6119 = vpop.f32.mrb[0].mxu0
    %v6120 = vadd.f32 0.0, %v6119
    %v6121 = vpop.f32.mrb[0].mxu0
    %v6122 = vadd.f32 0.0, %v6121
    %v6123 = vpop.f32.mrb[0].mxu0
    %v6124 = vpop.f32.mrb[0].mxu0
    %6125 = vdwg.mxu0
    %6126 = vmatprep.subr.bf16.mxu0 %v4722
    %6127 = vmatpush1.bf16.msra.mxu0 %v4721
    %6128 = vmatprep.subr.bf16.mxu0 %v4730
    %6129 = vmatpush1.bf16.msra.mxu0 %v4729
    %6130 = vmatprep.subr.bf16.mxu0 %v4738
    %6131 = vmatpush1.bf16.msra.mxu0 %v4737
    %6132 = vmatprep.subr.bf16.mxu0 %v4746
    %6133 = vmatpush1.bf16.msra.mxu0 %v4745
    %6134 = vmatprep.subr.bf16.mxu0 %v4754
    %6135 = vmatpush1.bf16.msra.mxu0 %v4753
    %6136 = vmatprep.subr.bf16.mxu0 %v4762
    %6137 = vmatpush1.bf16.msra.mxu0 %v4761
    %6138 = vmatprep.subr.bf16.mxu0 %v4770
    %6139 = vmatpush1.bf16.msra.mxu0 %v4769
    %6140 = vmatprep.subr.bf16.mxu0 %v4778
    %6141 = vmatpush1.bf16.msra.mxu0 %v4777
    %6142 = vmatprep.subr.bf16.mxu0 %v4786
    %6143 = vmatpush1.bf16.msra.mxu0 %v4785
    %6144 = vmatprep.subr.bf16.mxu0 %v4794
    %6145 = vmatpush1.bf16.msra.mxu0 %v4793
    %6146 = vmatprep.subr.bf16.mxu0 %v4802
    %6147 = vmatpush1.bf16.msra.mxu0 %v4801
    %6148 = vmatprep.subr.bf16.mxu0 %v4810
    %6149 = vmatpush1.bf16.msra.mxu0 %v4809
    %6150 = vmatprep.subr.bf16.mxu0 %v4818
    %6151 = vmatpush1.bf16.msra.mxu0 %v4817
    %6152 = vmatprep.subr.bf16.mxu0 %v4826
    %6153 = vmatpush1.bf16.msra.mxu0 %v4825
    %6154 = vmatprep.subr.bf16.mxu0 %v4834
    %6155 = vmatpush1.bf16.msra.mxu0 %v4833
    %6156 = vmatprep.subr.bf16.mxu0 %v4842
    %6157 = vmatpush1.bf16.msra.mxu0 %v4841
    %6158 = vmatprep.mubr.bf16.mxu0 %v6084
    %6159 = vmatmul.mubr.bf16.gmra.mrb[0].mxu0 %v6083
    %v6160 = vpop.f32.mrb[0].mxu0
    %v6161 = vadd.f32 0.0, %v6160
    %v6162 = vpop.f32.mrb[0].mxu0
    %v6163 = vadd.f32 0.0, %v6162
    %v6164 = vpop.f32.mrb[0].mxu0
    %v6165 = vpop.f32.mrb[0].mxu0
    %6166 = vdwg.mxu0
    %6167 = vmatprep.subr.bf16.mxu0 %v4724
    %6168 = vmatpush1.bf16.msra.mxu0 %v4723
    %6169 = vmatprep.subr.bf16.mxu0 %v4732
    %6170 = vmatpush1.bf16.msra.mxu0 %v4731
    %6171 = vmatprep.subr.bf16.mxu0 %v4740
    %6172 = vmatpush1.bf16.msra.mxu0 %v4739
    %6173 = vmatprep.subr.bf16.mxu0 %v4748
    %6174 = vmatpush1.bf16.msra.mxu0 %v4747
    %6175 = vmatprep.subr.bf16.mxu0 %v4756
    %6176 = vmatpush1.bf16.msra.mxu0 %v4755
    %6177 = vmatprep.subr.bf16.mxu0 %v4764
    %6178 = vmatpush1.bf16.msra.mxu0 %v4763
    %6179 = vmatprep.subr.bf16.mxu0 %v4772
    %6180 = vmatpush1.bf16.msra.mxu0 %v4771
    %6181 = vmatprep.subr.bf16.mxu0 %v4780
    %6182 = vmatpush1.bf16.msra.mxu0 %v4779
    %6183 = vmatprep.subr.bf16.mxu0 %v4788
    %6184 = vmatpush1.bf16.msra.mxu0 %v4787
    %6185 = vmatprep.subr.bf16.mxu0 %v4796
    %6186 = vmatpush1.bf16.msra.mxu0 %v4795
    %6187 = vmatprep.subr.bf16.mxu0 %v4804
    %6188 = vmatpush1.bf16.msra.mxu0 %v4803
    %6189 = vmatprep.subr.bf16.mxu0 %v4812
    %6190 = vmatpush1.bf16.msra.mxu0 %v4811
    %6191 = vmatprep.subr.bf16.mxu0 %v4820
    %6192 = vmatpush1.bf16.msra.mxu0 %v4819
    %6193 = vmatprep.subr.bf16.mxu0 %v4828
    %6194 = vmatpush1.bf16.msra.mxu0 %v4827
    %6195 = vmatprep.subr.bf16.mxu0 %v4836
    %6196 = vmatpush1.bf16.msra.mxu0 %v4835
    %6197 = vmatprep.subr.bf16.mxu0 %v4844
    %6198 = vmatpush1.bf16.msra.mxu0 %v4843
    %6199 = vmatprep.mubr.bf16.mxu0 %v6084
    %6200 = vmatmul.mubr.bf16.gmra.mrb[0].mxu0 %v6083
    %v6201 = vpop.f32.mrb[0].mxu0
    %v6202 = vadd.f32 0.0, %v6201
    %v6203 = vpop.f32.mrb[0].mxu0
    %v6204 = vadd.f32 0.0, %v6203
    %v6205 = vpop.f32.mrb[0].mxu0
    %v6206 = vpop.f32.mrb[0].mxu0
    %6207 = vdwg.mxu0
    %6208 = vmatprep.subr.bf16.mxu0 %v4726
    %6209 = vmatpush1.bf16.msra.mxu0 %v4725
    %6210 = vmatprep.subr.bf16.mxu0 %v4734
    %6211 = vmatpush1.bf16.msra.mxu0 %v4733
    %6212 = vmatprep.subr.bf16.mxu0 %v4742
    %6213 = vmatpush1.bf16.msra.mxu0 %v4741
    %6214 = vmatprep.subr.bf16.mxu0 %v4750
    %6215 = vmatpush1.bf16.msra.mxu0 %v4749
    %6216 = vmatprep.subr.bf16.mxu0 %v4758
    %6217 = vmatpush1.bf16.msra.mxu0 %v4757
    %6218 = vmatprep.subr.bf16.mxu0 %v4766
    %6219 = vmatpush1.bf16.msra.mxu0 %v4765
    %6220 = vmatprep.subr.bf16.mxu0 %v4774
    %6221 = vmatpush1.bf16.msra.mxu0 %v4773
    %6222 = vmatprep.subr.bf16.mxu0 %v4782
    %6223 = vmatpush1.bf16.msra.mxu0 %v4781
    %6224 = vmatprep.subr.bf16.mxu0 %v4790
    %6225 = vmatpush1.bf16.msra.mxu0 %v4789
    %6226 = vmatprep.subr.bf16.mxu0 %v4798
    %6227 = vmatpush1.bf16.msra.mxu0 %v4797
    %6228 = vmatprep.subr.bf16.mxu0 %v4806
    %6229 = vmatpush1.bf16.msra.mxu0 %v4805
    %6230 = vmatprep.subr.bf16.mxu0 %v4814
    %6231 = vmatpush1.bf16.msra.mxu0 %v4813
    %6232 = vmatprep.subr.bf16.mxu0 %v4822
    %6233 = vmatpush1.bf16.msra.mxu0 %v4821
    %6234 = vmatprep.subr.bf16.mxu0 %v4830
    %6235 = vmatpush1.bf16.msra.mxu0 %v4829
    %6236 = vmatprep.subr.bf16.mxu0 %v4838
    %6237 = vmatpush1.bf16.msra.mxu0 %v4837
    %6238 = vmatprep.subr.bf16.mxu0 %v4846
    %6239 = vmatpush1.bf16.msra.mxu0 %v4845
    %6240 = vmatprep.mubr.bf16.mxu0 %v6084
    %6241 = vmatmul.mubr.bf16.gmra.mrb[0].mxu0 %v6083
    %v6242 = vpop.f32.mrb[0].mxu0
    %v6243 = vadd.f32 0.0, %v6242
    %v6244 = vpop.f32.mrb[0].mxu0
    %v6245 = vadd.f32 0.0, %v6244
    %v6246 = vpop.f32.mrb[0].mxu0
    %v6247 = vpop.f32.mrb[0].mxu0
    %6248 = vdwg.mxu0
    %v6249 = vadd.f32 %v4106, %v6120
    %v6250 = vadd.f32 %v4108, %v6122
    %v6251 = vadd.f32 %v4179, %v6161
    %v6252 = vadd.f32 %v4181, %v6163
    %v6253 = vadd.f32 %v4236, %v6202
    %v6254 = vadd.f32 %v4238, %v6204
    %v6255 = vadd.f32 %v4307, %v6243
    %v6256 = vadd.f32 %v4309, %v6245
    %v6257 = vxor.u32 %v6249, 2147483648
    %v6258 = vmul.f32 %v6257, 1.442695
    %v6259 = vpow.pop %v6258
    %v6260 = vadd.f32 %v6259, 1.0
    %v6261 = vrcp.pop %v6260
    %v6262 = vmul.f32 1.0, %v6261
    %v6263 = vxor.u32 %v6250, 2147483648
    %v6264 = vmul.f32 %v6263, 1.442695
    %v6265 = vpow.pop %v6264
    %v6266 = vadd.f32 %v6265, 1.0
    %v6267 = vrcp.pop %v6266
    %v6268 = vmul.f32 1.0, %v6267
    %v6269 = vtanh.pop %v6251
    %v6270 = vxor.u32 %v6252, 2147483648
    %v6271 = vmul.f32 %v6270, 1.442695
    %v6272 = vpow.pop %v6271
    %v6273 = vadd.f32 %v6272, 1.0
    %v6274 = vrcp.pop %v6273
    %v6275 = vmul.f32 1.0, %v6274
    %v6276 = vmul.f32 %v6268, %v6056
    %v6277 = vmul.f32 %v6262, %v6269
    %v6278 = vadd.f32 %v6276, %v6277
    %v6279 = vtanh.pop %v6278
    %v6280 = vmul.f32 %v6275, %v6279
    %v6281 = vxor.u32 %v6253, 2147483648
    %v6282 = vmul.f32 %v6281, 1.442695
    %v6283 = vpow.pop %v6282
    %v6284 = vadd.f32 %v6283, 1.0
    %v6285 = vrcp.pop %v6284
    %v6286 = vmul.f32 1.0, %v6285
    %v6287 = vxor.u32 %v6254, 2147483648
    %v6288 = vmul.f32 %v6287, 1.442695
    %v6289 = vpow.pop %v6288
    %v6290 = vadd.f32 %v6289, 1.0
    %v6291 = vrcp.pop %v6290
    %v6292 = vmul.f32 1.0, %v6291
    %v6293 = vtanh.pop %v6255
    %v6294 = vxor.u32 %v6256, 2147483648
    %v6295 = vmul.f32 %v6294, 1.442695
    %v6296 = vpow.pop %v6295
    %v6297 = vadd.f32 %v6296, 1.0
    %v6298 = vrcp.pop %v6297
    %v6299 = vmul.f32 1.0, %v6298
    %v6300 = vmul.f32 %v6292, %v6080
    %v6301 = vmul.f32 %v6286, %v6293
    %v6302 = vadd.f32 %v6300, %v6301
    %v6303 = vtanh.pop %v6302
    %v6304 = vmul.f32 %v6299, %v6303
    %v6305 = vpack.c.bf16 %v6280, %v6280
    %v6306 = vpack.c.bf16 %v6304, %v6304
    %6307 = vmatprep.subr.bf16.mxu0 %v4720
    %6308 = vmatpush1.bf16.msra.mxu0 %v4719
    %6309 = vmatprep.subr.bf16.mxu0 %v4728
    %6310 = vmatpush1.bf16.msra.mxu0 %v4727
    %6311 = vmatprep.subr.bf16.mxu0 %v4736
    %6312 = vmatpush1.bf16.msra.mxu0 %v4735
    %6313 = vmatprep.subr.bf16.mxu0 %v4744
    %6314 = vmatpush1.bf16.msra.mxu0 %v4743
    %6315 = vmatprep.subr.bf16.mxu0 %v4752
    %6316 = vmatpush1.bf16.msra.mxu0 %v4751
    %6317 = vmatprep.subr.bf16.mxu0 %v4760
    %6318 = vmatpush1.bf16.msra.mxu0 %v4759
    %6319 = vmatprep.subr.bf16.mxu0 %v4768
    %6320 = vmatpush1.bf16.msra.mxu0 %v4767
    %6321 = vmatprep.subr.bf16.mxu0 %v4776
    %6322 = vmatpush1.bf16.msra.mxu0 %v4775
    %6323 = vmatprep.subr.bf16.mxu0 %v4784
    %6324 = vmatpush1.bf16.msra.mxu0 %v4783
    %6325 = vmatprep.subr.bf16.mxu0 %v4792
    %6326 = vmatpush1.bf16.msra.mxu0 %v4791
    %6327 = vmatprep.subr.bf16.mxu0 %v4800
    %6328 = vmatpush1.bf16.msra.mxu0 %v4799
    %6329 = vmatprep.subr.bf16.mxu0 %v4808
    %6330 = vmatpush1.bf16.msra.mxu0 %v4807
    %6331 = vmatprep.subr.bf16.mxu0 %v4816
    %6332 = vmatpush1.bf16.msra.mxu0 %v4815
    %6333 = vmatprep.subr.bf16.mxu0 %v4824
    %6334 = vmatpush1.bf16.msra.mxu0 %v4823
    %6335 = vmatprep.subr.bf16.mxu0 %v4832
    %6336 = vmatpush1.bf16.msra.mxu0 %v4831
    %6337 = vmatprep.subr.bf16.mxu0 %v4840
    %6338 = vmatpush1.bf16.msra.mxu0 %v4839
    %6339 = vmatprep.mubr.bf16.mxu0 %v6306
    %6340 = vmatmul.mubr.bf16.gmra.mrb[0].mxu0 %v6305
    %v6341 = vpop.f32.mrb[0].mxu0
    %v6342 = vadd.f32 0.0, %v6341
    %v6343 = vpop.f32.mrb[0].mxu0
    %v6344 = vadd.f32 0.0, %v6343
    %v6345 = vpop.f32.mrb[0].mxu0
    %v6346 = vpop.f32.mrb[0].mxu0
    %6347 = vdwg.mxu0
    %6348 = vmatprep.subr.bf16.mxu0 %v4722
    %6349 = vmatpush1.bf16.msra.mxu0 %v4721
    %6350 = vmatprep.subr.bf16.mxu0 %v4730
    %6351 = vmatpush1.bf16.msra.mxu0 %v4729
    %6352 = vmatprep.subr.bf16.mxu0 %v4738
    %6353 = vmatpush1.bf16.msra.mxu0 %v4737
    %6354 = vmatprep.subr.bf16.mxu0 %v4746
    %6355 = vmatpush1.bf16.msra.mxu0 %v4745
    %6356 = vmatprep.subr.bf16.mxu0 %v4754
    %6357 = vmatpush1.bf16.msra.mxu0 %v4753
    %6358 = vmatprep.subr.bf16.mxu0 %v4762
    %6359 = vmatpush1.bf16.msra.mxu0 %v4761
    %6360 = vmatprep.subr.bf16.mxu0 %v4770
    %6361 = vmatpush1.bf16.msra.mxu0 %v4769
    %6362 = vmatprep.subr.bf16.mxu0 %v4778
    %6363 = vmatpush1.bf16.msra.mxu0 %v4777
    %6364 = vmatprep.subr.bf16.mxu0 %v4786
    %6365 = vmatpush1.bf16.msra.mxu0 %v4785
    %6366 = vmatprep.subr.bf16.mxu0 %v4794
    %6367 = vmatpush1.bf16.msra.mxu0 %v4793
    %6368 = vmatprep.subr.bf16.mxu0 %v4802
    %6369 = vmatpush1.bf16.msra.mxu0 %v4801
    %6370 = vmatprep.subr.bf16.mxu0 %v4810
    %6371 = vmatpush1.bf16.msra.mxu0 %v4809
    %6372 = vmatprep.subr.bf16.mxu0 %v4818
    %6373 = vmatpush1.bf16.msra.mxu0 %v4817
    %6374 = vmatprep.subr.bf16.mxu0 %v4826
    %6375 = vmatpush1.bf16.msra.mxu0 %v4825
    %6376 = vmatprep.subr.bf16.mxu0 %v4834
    %6377 = vmatpush1.bf16.msra.mxu0 %v4833
    %6378 = vmatprep.subr.bf16.mxu0 %v4842
    %6379 = vmatpush1.bf16.msra.mxu0 %v4841
    %6380 = vmatprep.mubr.bf16.mxu0 %v6306
    %6381 = vmatmul.mubr.bf16.gmra.mrb[0].mxu0 %v6305
    %v6382 = vpop.f32.mrb[0].mxu0
    %v6383 = vadd.f32 0.0, %v6382
    %v6384 = vpop.f32.mrb[0].mxu0
    %v6385 = vadd.f32 0.0, %v6384
    %v6386 = vpop.f32.mrb[0].mxu0
    %v6387 = vpop.f32.mrb[0].mxu0
    %6388 = vdwg.mxu0
    %6389 = vmatprep.subr.bf16.mxu0 %v4724
    %6390 = vmatpush1.bf16.msra.mxu0 %v4723
    %6391 = vmatprep.subr.bf16.mxu0 %v4732
    %6392 = vmatpush1.bf16.msra.mxu0 %v4731
    %6393 = vmatprep.subr.bf16.mxu0 %v4740
    %6394 = vmatpush1.bf16.msra.mxu0 %v4739
    %6395 = vmatprep.subr.bf16.mxu0 %v4748
    %6396 = vmatpush1.bf16.msra.mxu0 %v4747
    %6397 = vmatprep.subr.bf16.mxu0 %v4756
    %6398 = vmatpush1.bf16.msra.mxu0 %v4755
    %6399 = vmatprep.subr.bf16.mxu0 %v4764
    %6400 = vmatpush1.bf16.msra.mxu0 %v4763
    %6401 = vmatprep.subr.bf16.mxu0 %v4772
    %6402 = vmatpush1.bf16.msra.mxu0 %v4771
    %6403 = vmatprep.subr.bf16.mxu0 %v4780
    %6404 = vmatpush1.bf16.msra.mxu0 %v4779
    %6405 = vmatprep.subr.bf16.mxu0 %v4788
    %6406 = vmatpush1.bf16.msra.mxu0 %v4787
    %6407 = vmatprep.subr.bf16.mxu0 %v4796
    %6408 = vmatpush1.bf16.msra.mxu0 %v4795
    %6409 = vmatprep.subr.bf16.mxu0 %v4804
    %6410 = vmatpush1.bf16.msra.mxu0 %v4803
    %6411 = vmatprep.subr.bf16.mxu0 %v4812
    %6412 = vmatpush1.bf16.msra.mxu0 %v4811
    %6413 = vmatprep.subr.bf16.mxu0 %v4820
    %6414 = vmatpush1.bf16.msra.mxu0 %v4819
    %6415 = vmatprep.subr.bf16.mxu0 %v4828
    %6416 = vmatpush1.bf16.msra.mxu0 %v4827
    %6417 = vmatprep.subr.bf16.mxu0 %v4836
    %6418 = vmatpush1.bf16.msra.mxu0 %v4835
    %6419 = vmatprep.subr.bf16.mxu0 %v4844
    %6420 = vmatpush1.bf16.msra.mxu0 %v4843
    %6421 = vmatprep.mubr.bf16.mxu0 %v6306
    %6422 = vmatmul.mubr.bf16.gmra.mrb[0].mxu0 %v6305
    %v6423 = vpop.f32.mrb[0].mxu0
    %v6424 = vadd.f32 0.0, %v6423
    %v6425 = vpop.f32.mrb[0].mxu0
    %v6426 = vadd.f32 0.0, %v6425
    %v6427 = vpop.f32.mrb[0].mxu0
    %v6428 = vpop.f32.mrb[0].mxu0
    %6429 = vdwg.mxu0
    %6430 = vmatprep.subr.bf16.mxu0 %v4726
    %6431 = vmatpush1.bf16.msra.mxu0 %v4725
    %6432 = vmatprep.subr.bf16.mxu0 %v4734
    %6433 = vmatpush1.bf16.msra.mxu0 %v4733
    %6434 = vmatprep.subr.bf16.mxu0 %v4742
    %6435 = vmatpush1.bf16.msra.mxu0 %v4741
    %6436 = vmatprep.subr.bf16.mxu0 %v4750
    %6437 = vmatpush1.bf16.msra.mxu0 %v4749
    %6438 = vmatprep.subr.bf16.mxu0 %v4758
    %6439 = vmatpush1.bf16.msra.mxu0 %v4757
    %6440 = vmatprep.subr.bf16.mxu0 %v4766
    %6441 = vmatpush1.bf16.msra.mxu0 %v4765
    %6442 = vmatprep.subr.bf16.mxu0 %v4774
    %6443 = vmatpush1.bf16.msra.mxu0 %v4773
    %6444 = vmatprep.subr.bf16.mxu0 %v4782
    %6445 = vmatpush1.bf16.msra.mxu0 %v4781
    %6446 = vmatprep.subr.bf16.mxu0 %v4790
    %6447 = vmatpush1.bf16.msra.mxu0 %v4789
    %6448 = vmatprep.subr.bf16.mxu0 %v4798
    %6449 = vmatpush1.bf16.msra.mxu0 %v4797
    %6450 = vmatprep.subr.bf16.mxu0 %v4806
    %6451 = vmatpush1.bf16.msra.mxu0 %v4805
    %6452 = vmatprep.subr.bf16.mxu0 %v4814
    %6453 = vmatpush1.bf16.msra.mxu0 %v4813
    %6454 = vmatprep.subr.bf16.mxu0 %v4822
    %6455 = vmatpush1.bf16.msra.mxu0 %v4821
    %6456 = vmatprep.subr.bf16.mxu0 %v4830
    %6457 = vmatpush1.bf16.msra.mxu0 %v4829
    %6458 = vmatprep.subr.bf16.mxu0 %v4838
    %6459 = vmatpush1.bf16.msra.mxu0 %v4837
    %6460 = vmatprep.subr.bf16.mxu0 %v4846
    %6461 = vmatpush1.bf16.msra.mxu0 %v4845
    %6462 = vmatprep.mubr.bf16.mxu0 %v6306
    %6463 = vmatmul.mubr.bf16.gmra.mrb[0].mxu0 %v6305
    %v6464 = vpop.f32.mrb[0].mxu0
    %v6465 = vadd.f32 0.0, %v6464
    %v6466 = vpop.f32.mrb[0].mxu0
    %v6467 = vadd.f32 0.0, %v6466
    %v6468 = vpop.f32.mrb[0].mxu0
    %v6469 = vpop.f32.mrb[0].mxu0
    %6470 = vdwg.mxu0
    %v6471 = vadd.f32 %v4112, %v6342
    %v6472 = vadd.f32 %v4114, %v6344
    %v6473 = vadd.f32 %v4185, %v6383
    %v6474 = vadd.f32 %v4187, %v6385
    %v6475 = vadd.f32 %v4230, %v6424
    %v6476 = vadd.f32 %v4232, %v6426
    %v6477 = vadd.f32 %v4301, %v6465
    %v6478 = vadd.f32 %v4303, %v6467
    %v6479 = vxor.u32 %v6471, 2147483648
    %v6480 = vmul.f32 %v6479, 1.442695
    %v6481 = vpow.pop %v6480
    %v6482 = vadd.f32 %v6481, 1.0
    %v6483 = vrcp.pop %v6482
    %v6484 = vmul.f32 1.0, %v6483
    %v6485 = vxor.u32 %v6472, 2147483648
    %v6486 = vmul.f32 %v6485, 1.442695
    %v6487 = vpow.pop %v6486
    %v6488 = vadd.f32 %v6487, 1.0
    %v6489 = vrcp.pop %v6488
    %v6490 = vmul.f32 1.0, %v6489
    %v6491 = vtanh.pop %v6473
    %v6492 = vxor.u32 %v6474, 2147483648
    %v6493 = vmul.f32 %v6492, 1.442695
    %v6494 = vpow.pop %v6493
    %v6495 = vadd.f32 %v6494, 1.0
    %v6496 = vrcp.pop %v6495
    %v6497 = vmul.f32 1.0, %v6496
    %v6498 = vmul.f32 %v6490, %v6278
    %v6499 = vmul.f32 %v6484, %v6491
    %v6500 = vadd.f32 %v6498, %v6499
    %v6501 = vtanh.pop %v6500
    %v6502 = vmul.f32 %v6497, %v6501
    %v6503 = vxor.u32 %v6475, 2147483648
    %v6504 = vmul.f32 %v6503, 1.442695
    %v6505 = vpow.pop %v6504
    %v6506 = vadd.f32 %v6505, 1.0
    %v6507 = vrcp.pop %v6506
    %v6508 = vmul.f32 1.0, %v6507
    %v6509 = vxor.u32 %v6476, 2147483648
    %v6510 = vmul.f32 %v6509, 1.442695
    %v6511 = vpow.pop %v6510
    %v6512 = vadd.f32 %v6511, 1.0
    %v6513 = vrcp.pop %v6512
    %v6514 = vmul.f32 1.0, %v6513
    %v6515 = vtanh.pop %v6477
    %v6516 = vxor.u32 %v6478, 2147483648
    %v6517 = vmul.f32 %v6516, 1.442695
    %v6518 = vpow.pop %v6517
    %v6519 = vadd.f32 %v6518, 1.0
    %v6520 = vrcp.pop %v6519
    %v6521 = vmul.f32 1.0, %v6520
    %v6522 = vmul.f32 %v6514, %v6302
    %v6523 = vmul.f32 %v6508, %v6515
    %v6524 = vadd.f32 %v6522, %v6523
    %v6525 = vtanh.pop %v6524
    %v6526 = vmul.f32 %v6521, %v6525
    %v6527 = vpack.c.bf16 %v6502, %v6502
    %v6528 = vpack.c.bf16 %v6526, %v6526
    %6529 = vmatprep.subr.bf16.mxu0 %v4720
    %6530 = vmatpush1.bf16.msra.mxu0 %v4719
    %6531 = vmatprep.subr.bf16.mxu0 %v4728
    %6532 = vmatpush1.bf16.msra.mxu0 %v4727
    %6533 = vmatprep.subr.bf16.mxu0 %v4736
    %6534 = vmatpush1.bf16.msra.mxu0 %v4735
    %6535 = vmatprep.subr.bf16.mxu0 %v4744
    %6536 = vmatpush1.bf16.msra.mxu0 %v4743
    %6537 = vmatprep.subr.bf16.mxu0 %v4752
    %6538 = vmatpush1.bf16.msra.mxu0 %v4751
    %6539 = vmatprep.subr.bf16.mxu0 %v4760
    %6540 = vmatpush1.bf16.msra.mxu0 %v4759
    %6541 = vmatprep.subr.bf16.mxu0 %v4768
    %6542 = vmatpush1.bf16.msra.mxu0 %v4767
    %6543 = vmatprep.subr.bf16.mxu0 %v4776
    %6544 = vmatpush1.bf16.msra.mxu0 %v4775
    %6545 = vmatprep.subr.bf16.mxu0 %v4784
    %6546 = vmatpush1.bf16.msra.mxu0 %v4783
    %6547 = vmatprep.subr.bf16.mxu0 %v4792
    %6548 = vmatpush1.bf16.msra.mxu0 %v4791
    %6549 = vmatprep.subr.bf16.mxu0 %v4800
    %6550 = vmatpush1.bf16.msra.mxu0 %v4799
    %6551 = vmatprep.subr.bf16.mxu0 %v4808
    %6552 = vmatpush1.bf16.msra.mxu0 %v4807
    %6553 = vmatprep.subr.bf16.mxu0 %v4816
    %6554 = vmatpush1.bf16.msra.mxu0 %v4815
    %6555 = vmatprep.subr.bf16.mxu0 %v4824
    %6556 = vmatpush1.bf16.msra.mxu0 %v4823
    %6557 = vmatprep.subr.bf16.mxu0 %v4832
    %6558 = vmatpush1.bf16.msra.mxu0 %v4831
    %6559 = vmatprep.subr.bf16.mxu0 %v4840
    %6560 = vmatpush1.bf16.msra.mxu0 %v4839
    %6561 = vmatprep.mubr.bf16.mxu0 %v6528
    %6562 = vmatmul.mubr.bf16.gmra.mrb[0].mxu0 %v6527
    %v6563 = vpop.f32.mrb[0].mxu0
    %v6564 = vadd.f32 0.0, %v6563
    %v6565 = vpop.f32.mrb[0].mxu0
    %v6566 = vadd.f32 0.0, %v6565
    %v6567 = vpop.f32.mrb[0].mxu0
    %v6568 = vpop.f32.mrb[0].mxu0
    %6569 = vdwg.mxu0
    %6570 = vmatprep.subr.bf16.mxu0 %v4722
    %6571 = vmatpush1.bf16.msra.mxu0 %v4721
    %6572 = vmatprep.subr.bf16.mxu0 %v4730
    %6573 = vmatpush1.bf16.msra.mxu0 %v4729
    %6574 = vmatprep.subr.bf16.mxu0 %v4738
    %6575 = vmatpush1.bf16.msra.mxu0 %v4737
    %6576 = vmatprep.subr.bf16.mxu0 %v4746
    %6577 = vmatpush1.bf16.msra.mxu0 %v4745
    %6578 = vmatprep.subr.bf16.mxu0 %v4754
    %6579 = vmatpush1.bf16.msra.mxu0 %v4753
    %6580 = vmatprep.subr.bf16.mxu0 %v4762
    %6581 = vmatpush1.bf16.msra.mxu0 %v4761
    %6582 = vmatprep.subr.bf16.mxu0 %v4770
    %6583 = vmatpush1.bf16.msra.mxu0 %v4769
    %6584 = vmatprep.subr.bf16.mxu0 %v4778
    %6585 = vmatpush1.bf16.msra.mxu0 %v4777
    %6586 = vmatprep.subr.bf16.mxu0 %v4786
    %6587 = vmatpush1.bf16.msra.mxu0 %v4785
    %6588 = vmatprep.subr.bf16.mxu0 %v4794
    %6589 = vmatpush1.bf16.msra.mxu0 %v4793
    %6590 = vmatprep.subr.bf16.mxu0 %v4802
    %6591 = vmatpush1.bf16.msra.mxu0 %v4801
    %6592 = vmatprep.subr.bf16.mxu0 %v4810
    %6593 = vmatpush1.bf16.msra.mxu0 %v4809
    %6594 = vmatprep.subr.bf16.mxu0 %v4818
    %6595 = vmatpush1.bf16.msra.mxu0 %v4817
    %6596 = vmatprep.subr.bf16.mxu0 %v4826
    %6597 = vmatpush1.bf16.msra.mxu0 %v4825
    %6598 = vmatprep.subr.bf16.mxu0 %v4834
    %6599 = vmatpush1.bf16.msra.mxu0 %v4833
    %6600 = vmatprep.subr.bf16.mxu0 %v4842
    %6601 = vmatpush1.bf16.msra.mxu0 %v4841
    %6602 = vmatprep.mubr.bf16.mxu0 %v6528
    %6603 = vmatmul.mubr.bf16.gmra.mrb[0].mxu0 %v6527
    %v6604 = vpop.f32.mrb[0].mxu0
    %v6605 = vadd.f32 0.0, %v6604
    %v6606 = vpop.f32.mrb[0].mxu0
    %v6607 = vadd.f32 0.0, %v6606
    %v6608 = vpop.f32.mrb[0].mxu0
    %v6609 = vpop.f32.mrb[0].mxu0
    %6610 = vdwg.mxu0
    %v6611 = vadd.f32 %v4116, %v6564
    %v6612 = vadd.f32 %v4118, %v6566
    %v6613 = vadd.f32 %v4189, %v6605
    %v6614 = vadd.f32 %v4191, %v6607
    %v6615 = vxor.u32 %v6611, 2147483648
    %v6616 = vmul.f32 %v6615, 1.442695
    %v6617 = vpow.pop %v6616
    %v6618 = vadd.f32 %v6617, 1.0
    %v6619 = vrcp.pop %v6618
    %v6620 = vmul.f32 1.0, %v6619
    %v6621 = vxor.u32 %v6612, 2147483648
    %v6622 = vmul.f32 %v6621, 1.442695
    %v6623 = vpow.pop %v6622
    %v6624 = vadd.f32 %v6623, 1.0
    %v6625 = vrcp.pop %v6624
    %v6626 = vmul.f32 1.0, %v6625
    %v6627 = vtanh.pop %v6613
    %v6628 = vxor.u32 %v6614, 2147483648
    %v6629 = vmul.f32 %v6628, 1.442695
    %v6630 = vpow.pop %v6629
    %v6631 = vadd.f32 %v6630, 1.0
    %v6632 = vrcp.pop %v6631
    %v6633 = vmul.f32 1.0, %v6632
    %v6634 = vmul.f32 %v6626, %v6500
    %v6635 = vmul.f32 %v6620, %v6627
    %v6636 = vadd.f32 %v6634, %v6635
    %v6637 = vtanh.pop %v6636
    %v6638 = vmul.f32 %v6633, %v6637
    %v6639 = vpack.c.bf16 %v6638, %v6638
    %v6640 = vld [vmem:[#allocation8] sm:$0xf]
    %v6641 = vld [vmem:[#allocation8 + $0x4] sm:$0xf]
    %v6642 = vld [vmem:[#allocation8 + $0x8] sm:$0xf]
    %v6643 = vld [vmem:[#allocation8 + $0xc] sm:$0xf]
    %v6644 = vld [vmem:[#allocation8 + $0x10] sm:$0xf]
    %v6645 = vld [vmem:[#allocation8 + $0x14] sm:$0xf]
    %v6646 = vld [vmem:[#allocation8 + $0x18] sm:$0xf]
    %v6647 = vld [vmem:[#allocation8 + $0x1c] sm:$0xf]
    %v6648 = vld [vmem:[#allocation8 + $0x20] sm:$0xf]
    %v6649 = vld [vmem:[#allocation8 + $0x24] sm:$0xf]
    %v6650 = vld [vmem:[#allocation8 + $0x28] sm:$0xf]
    %v6651 = vld [vmem:[#allocation8 + $0x2c] sm:$0xf]
    %v6652 = vld [vmem:[#allocation8 + $0x30] sm:$0xf]
    %v6653 = vld [vmem:[#allocation8 + $0x34] sm:$0xf]
    %v6654 = vld [vmem:[#allocation8 + $0x38] sm:$0xf]
    %v6655 = vld [vmem:[#allocation8 + $0x3c] sm:$0xf]
    %v6656 = vld [vmem:[#allocation8 + $0x40] sm:$0xf]
    %v6657 = vld [vmem:[#allocation8 + $0x44] sm:$0xf]
    %v6658 = vld [vmem:[#allocation8 + $0x48] sm:$0xf]
    %v6659 = vld [vmem:[#allocation8 + $0x4c] sm:$0xf]
    %v6660 = vld [vmem:[#allocation8 + $0x50] sm:$0xf]
    %v6661 = vld [vmem:[#allocation8 + $0x54] sm:$0xf]
    %v6662 = vld [vmem:[#allocation8 + $0x58] sm:$0xf]
    %v6663 = vld [vmem:[#allocation8 + $0x5c] sm:$0xf]
    %v6664 = vld [vmem:[#allocation8 + $0x60] sm:$0xf]
    %v6665 = vld [vmem:[#allocation8 + $0x64] sm:$0xf]
    %v6666 = vld [vmem:[#allocation8 + $0x68] sm:$0xf]
    %v6667 = vld [vmem:[#allocation8 + $0x6c] sm:$0xf]
    %v6668 = vld [vmem:[#allocation8 + $0x70] sm:$0xf]
    %v6669 = vld [vmem:[#allocation8 + $0x74] sm:$0xf]
    %v6670 = vld [vmem:[#allocation8 + $0x78] sm:$0xf]
    %v6671 = vld [vmem:[#allocation8 + $0x7c] sm:$0xf]
    %v6672 = vld [vmem:[%s8] sm:$0x1]
    %v6674 = vlaneseq
    %v6675 = vshrl.u32 %v6674, 7
    %v6676 = vsub.s32 0, %v6675
    %v6677 = vrot.slane %v6672, %v6676
    %v6711 = vunpack.c.l.b16 %v6640
    %v6712 = vunpack.c.l.b16 %v6641
    %v6713 = vunpack.c.l.b16 %v6642
    %v6714 = vunpack.c.l.b16 %v6643
    %v6715 = vunpack.c.l.b16 %v6644
    %v6716 = vunpack.c.l.b16 %v6645
    %v6717 = vunpack.c.l.b16 %v6646
    %v6718 = vunpack.c.l.b16 %v6647
    %v6719 = vunpack.c.l.b16 %v6648
    %v6720 = vunpack.c.l.b16 %v6649
    %v6721 = vunpack.c.l.b16 %v6650
    %v6722 = vunpack.c.l.b16 %v6651
    %v6723 = vunpack.c.l.b16 %v6652
    %v6724 = vunpack.c.l.b16 %v6653
    %v6725 = vunpack.c.l.b16 %v6654
    %v6726 = vunpack.c.l.b16 %v6655
    %v6727 = vunpack.c.l.b16 %v6656
    %v6728 = vunpack.c.l.b16 %v6657
    %v6729 = vunpack.c.l.b16 %v6658
    %v6730 = vunpack.c.l.b16 %v6659
    %v6731 = vunpack.c.l.b16 %v6660
    %v6732 = vunpack.c.l.b16 %v6661
    %v6733 = vunpack.c.l.b16 %v6662
    %v6734 = vunpack.c.l.b16 %v6663
    %v6735 = vunpack.c.l.b16 %v6664
    %v6736 = vunpack.c.l.b16 %v6665
    %v6737 = vunpack.c.l.b16 %v6666
    %v6738 = vunpack.c.l.b16 %v6667
    %v6739 = vunpack.c.l.b16 %v6668
    %v6740 = vunpack.c.l.b16 %v6669
    %v6741 = vunpack.c.l.b16 %v6670
    %v6742 = vunpack.c.l.b16 %v6671
    %v6743 = vpack.c.b16 %v6712, %v6711
    %v6744 = vpack.c.b16 %v6714, %v6713
    %v6745 = vpack.c.b16 %v6716, %v6715
    %v6746 = vpack.c.b16 %v6718, %v6717
    %v6747 = vpack.c.b16 %v6720, %v6719
    %v6748 = vpack.c.b16 %v6722, %v6721
    %v6749 = vpack.c.b16 %v6724, %v6723
    %v6750 = vpack.c.b16 %v6726, %v6725
    %v6751 = vpack.c.b16 %v6728, %v6727
    %v6752 = vpack.c.b16 %v6730, %v6729
    %v6753 = vpack.c.b16 %v6732, %v6731
    %v6754 = vpack.c.b16 %v6734, %v6733
    %v6755 = vpack.c.b16 %v6736, %v6735
    %v6756 = vpack.c.b16 %v6738, %v6737
    %v6757 = vpack.c.b16 %v6740, %v6739
    %v6758 = vpack.c.b16 %v6742, %v6741
    %6775 = vmatprep.subr.bf16.mxu0 0
    %6776 = vmatpush1.bf16.msra.mxu0 %v6743
    %6777 = vmatprep.subr.bf16.mxu0 0
    %6778 = vmatpush1.bf16.msra.mxu0 %v6744
    %6779 = vmatprep.subr.bf16.mxu0 0
    %6780 = vmatpush1.bf16.msra.mxu0 %v6745
    %6781 = vmatprep.subr.bf16.mxu0 0
    %6782 = vmatpush1.bf16.msra.mxu0 %v6746
    %6783 = vmatprep.subr.bf16.mxu0 0
    %6784 = vmatpush1.bf16.msra.mxu0 %v6747
    %6785 = vmatprep.subr.bf16.mxu0 0
    %6786 = vmatpush1.bf16.msra.mxu0 %v6748
    %6787 = vmatprep.subr.bf16.mxu0 0
    %6788 = vmatpush1.bf16.msra.mxu0 %v6749
    %6789 = vmatprep.subr.bf16.mxu0 0
    %6790 = vmatpush1.bf16.msra.mxu0 %v6750
    %6791 = vmatprep.subr.bf16.mxu0 0
    %6792 = vmatpush1.bf16.msra.mxu0 %v6751
    %6793 = vmatprep.subr.bf16.mxu0 0
    %6794 = vmatpush1.bf16.msra.mxu0 %v6752
    %6795 = vmatprep.subr.bf16.mxu0 0
    %6796 = vmatpush1.bf16.msra.mxu0 %v6753
    %6797 = vmatprep.subr.bf16.mxu0 0
    %6798 = vmatpush1.bf16.msra.mxu0 %v6754
    %6799 = vmatprep.subr.bf16.mxu0 0
    %6800 = vmatpush1.bf16.msra.mxu0 %v6755
    %6801 = vmatprep.subr.bf16.mxu0 0
    %6802 = vmatpush1.bf16.msra.mxu0 %v6756
    %6803 = vmatprep.subr.bf16.mxu0 0
    %6804 = vmatpush1.bf16.msra.mxu0 %v6757
    %6805 = vmatprep.subr.bf16.mxu0 0
    %6806 = vmatpush1.bf16.msra.mxu0 %v6758
    %6807 = vmatprep.mubr.bf16.mxu0 %v5196
    %6808 = vmatmul.mubr.bf16.gmra.mrb[0].mxu0 %v6639
    %v6809 = vpop.f32.mrb[0].mxu0
    %v6810 = vadd.f32 %v6677, %v6809
    %v6811 = vpop.f32.mrb[0].mxu0
    %v6812 = vpop.f32.mrb[0].mxu0
    %v6813 = vpop.f32.mrb[0].mxu0
    %6814 = vdwg.mxu0
    %6815 = vst [vmem:[%s9] sm:$0xff] %v6810
    // Predicated region
    $region54: #{lstm_model_forward.1} parent=1 // pred_check
      _
    $region55: #{lstm_model_forward.1} parent=1 // pred_check_branch
      %6817 = sbr.rel (0) target = $region57
    $region56: #{lstm_model_forward.1} parent=1 // pred_region
      _
    $region57: #{lstm_model_forward.1} parent=1 // pred_fallthru
      _
    // Predicated region
    $region58: #{lstm_model_forward.1} parent=1 // pred_check
      _
    $region59: #{lstm_model_forward.1} parent=1 // pred_check_branch
      %6819 = sbr.rel (0) target = $region61
    $region60: #{lstm_model_forward.1} parent=1 // pred_region
      _
    $region61: #{lstm_model_forward.1} parent=1 // pred_fallthru
      _
    %6820 = vsyncpa [#allocation4], 1
    %6821 = vsyncpa [#allocation6], 1
    %6822 = vsyncpa [#allocation9], 1

</llo_original>
